<compile_context>
chip_gen: v6e
topology: v6e:2x2x1
jax: 0.10.0
libtpu: 0.0.40
codegen_flags: <defaults>
</compile_context>

<pallas_src>
import functools
import math

import jax
import jax.numpy as jnp
from jax import lax
from jax.experimental import pallas as pl
from jax.experimental.pallas import tpu as pltpu  # noqa: F401  (TPU backend assumed)

# -----------------------------------------------------------------------------
# Model hyper-parameters (small, consistent with the module's forward)
# -----------------------------------------------------------------------------
EMBED_DIM = 32
NUM_HEADS = 4
HEAD_DIM = EMBED_DIM // NUM_HEADS
FFN_DIM = 64
LN_EPS = 1e-5
SCALE = HEAD_DIM ** (-0.5)
_SQRT_HALF = 0.7071067811865476


# -----------------------------------------------------------------------------
# In-kernel math helpers (all lower to VPU/EUP/XLU ops)
# -----------------------------------------------------------------------------
def _layer_norm(x, g, b):
    # x: [N, D] f32, g/b: [1, D]; biased variance + eps (matches PyTorch).
    mu = jnp.mean(x, axis=-1, keepdims=True)
    xc = x - mu
    var = jnp.mean(xc * xc, axis=-1, keepdims=True)
    return xc * lax.rsqrt(var + LN_EPS) * g + b


def _erf(x):
    # Abramowitz & Stegun 7.1.26 rational approximation, |err| <= 1.5e-7
    # (float32-exact for practical purposes).  Built only from exp/div/mul so
    # it always lowers in Mosaic.
    # TODO(synk): replace with lax.erf once Mosaic erf lowering is guaranteed.
    p = 0.3275911
    a1, a2, a3, a4, a5 = (0.254829592, -0.284496736, 1.421413741,
                          -1.453152027, 1.061405429)
    ax = jnp.abs(x)
    t = 1.0 / (1.0 + p * ax)
    poly = ((((a5 * t + a4) * t + a3) * t + a2) * t + a1) * t
    y = 1.0 - poly * jnp.exp(-ax * ax)
    return jnp.where(x >= 0.0, y, -y)


def _gelu_exact(x):
    # 0.5 * x * (1 + erf(x / sqrt(2)))  == F.gelu(x, approximate='none')
    return 0.5 * x * (1.0 + _erf(x * _SQRT_HALF))


# -----------------------------------------------------------------------------
# The fused DualFormerBlock kernel
# -----------------------------------------------------------------------------
def dualformer_block_kernel(
    x1_ref, x2_ref,          # [B*S1, D], [B*S2, D]
    ln_g_ref, ln_b_ref,      # [4, 1, D]  rows: norm1_1, norm1_2, norm2_1, norm2_2
    wqkv_ref, bqkv_ref,      # [2, D, 3D], [2, 1, 3D]   (q|k|v per stream)
    wo_ref, bo_ref,          # [2, D, D],  [2, 1, D]    (out1_proj, out2_proj)
    fw1_ref, fb1_ref,        # [2, D, F],  [2, 1, F]    (ffn1, ffn2)
    flng_ref, flnb_ref,      # [2, 1, F],  [2, 1, F]
    fw2_ref, fb2_ref,        # [2, F, D],  [2, 1, D]
    o1_ref, o2_ref,          # [B*S1, D], [B*S2, D]
    *, batch, s1, s2):
    d = EMBED_DIM

    x1 = x1_ref[...]
    x2 = x2_ref[...]

    # --- pre-attention LayerNorms + fused per-stream QKV projection ---------
    h1 = _layer_norm(x1, ln_g_ref[0], ln_b_ref[0])
    h2 = _layer_norm(x2, ln_g_ref[1], ln_b_ref[1])
    qkv1 = jnp.dot(h1, wqkv_ref[0], preferred_element_type=jnp.float32) + bqkv_ref[0]
    qkv2 = jnp.dot(h2, wqkv_ref[1], preferred_element_type=jnp.float32) + bqkv_ref[1]

    q1, k1, v1 = qkv1[:, :d], qkv1[:, d:2 * d], qkv1[:, 2 * d:]
    q2, k2, v2 = qkv2[:, :d], qkv2[:, d:2 * d], qkv2[:, 2 * d:]

    def cross_attention(q_all, k_all, v_all, wo, bo, sq, sk):
        # Multi-head attention fused with the output projection:
        #   out_proj(concat_h o_h) == sum_h o_h @ Wo[h*Dh:(h+1)*Dh, :]
        # so heads are indexed by lane slices and never re-concatenated or
        # transposed.  Loops are static (B, H small) -> fully unrolled.
        outs = []
        for b in range(batch):
            q_b = q_all[b * sq:(b + 1) * sq]
            k_b = k_all[b * sk:(b + 1) * sk]
            v_b = v_all[b * sk:(b + 1) * sk]
            acc = jnp.zeros((sq, d), jnp.float32)
            for h in range(NUM_HEADS):
                cols = slice(h * HEAD_DIM, (h + 1) * HEAD_DIM)
                q = q_b[:, cols]
                k = k_b[:, cols]
                v = v_b[:, cols]
                s = lax.dot_general(q, k, (((1,), (1,)), ((), ())),
                                    preferred_element_type=jnp.float32) * SCALE
                s = s - jnp.max(s, axis=-1, keepdims=True)
                p = jnp.exp(s)
                p = p * pl.reciprocal(jnp.sum(p, axis=-1, keepdims=True),
                                      approx=True)
                o = jnp.dot(p, v, preferred_element_type=jnp.float32)
                acc = acc + jnp.dot(o, wo[cols, :],
                                    preferred_element_type=jnp.float32)
            outs.append(acc + bo)
        return jnp.concatenate(outs, axis=0)

    # direction 1: x1 queries x2;  direction 2: x2 queries x1
    a1 = cross_attention(q1, k2, v2, wo_ref[0], bo_ref[0], s1, s2)
    a2 = cross_attention(q2, k1, v1, wo_ref[1], bo_ref[1], s2, s1)

    y1 = x1 + a1
    y2 = x2 + a2

    # --- FFN: pre-norm -> W1 -> GELU(exact erf) -> LayerNorm -> W2 ----------
    def ffn(y, g_pre, b_pre, w1, b1, lg, lb, w2, b2):
        h = _layer_norm(y, g_pre, b_pre)
        h = jnp.dot(h, w1, preferred_element_type=jnp.float32) + b1
        h = _gelu_exact(h)
        h = _layer_norm(h, lg, lb)
        return jnp.dot(h, w2, preferred_element_type=jnp.float32) + b2

    f1 = ffn(y1, ln_g_ref[2], ln_b_ref[2], fw1_ref[0], fb1_ref[0],
             flng_ref[0], flnb_ref[0], fw2_ref[0], fb2_ref[0])
    f2 = ffn(y2, ln_g_ref[3], ln_b_ref[3], fw1_ref[1], fb1_ref[1],
             flng_ref[1], flnb_ref[1], fw2_ref[1], fb2_ref[1])

    o1_ref[...] = (y1 + f1).astype(o1_ref.dtype)
    o2_ref[...] = (y2 + f2).astype(o2_ref.dtype)


# -----------------------------------------------------------------------------
# Parameter packing (QKV concat per stream, stacked per-stream weights)
# -----------------------------------------------------------------------------
def pack_params(p):
    a = p["attn"]
    ln_g = jnp.stack([p["n11_g"], p["n12_g"], p["n21_g"], p["n22_g"]])[:, None, :]
    ln_b = jnp.stack([p["n11_b"], p["n12_b"], p["n21_b"], p["n22_b"]])[:, None, :]
    # stream 0 projections apply to LN(x1): q1 | k1 | v1
    # stream 1 projections apply to LN(x2): q2 | k2 | v2
    wqkv = jnp.stack([
        jnp.concatenate([a["q1_w"], a["k1_w"], a["v1_w"]], axis=1),
        jnp.concatenate([a["q2_w"], a["k2_w"], a["v2_w"]], axis=1),
    ])
    bqkv = jnp.stack([
        jnp.concatenate([a["q1_b"], a["k1_b"], a["v1_b"]]),
        jnp.concatenate([a["q2_b"], a["k2_b"], a["v2_b"]]),
    ])[:, None, :]
    wo = jnp.stack([a["o1_w"], a["o2_w"]])
    bo = jnp.stack([a["o1_b"], a["o2_b"]])[:, None, :]
    f1, f2 = p["ffn1"], p["ffn2"]
    fw1 = jnp.stack([f1["w1"], f2["w1"]])
    fb1 = jnp.stack([f1["b1"], f2["b1"]])[:, None, :]
    flng = jnp.stack([f1["ln_g"], f2["ln_g"]])[:, None, :]
    flnb = jnp.stack([f1["ln_b"], f2["ln_b"]])[:, None, :]
    fw2 = jnp.stack([f1["w2"], f2["w2"]])
    fb2 = jnp.stack([f1["b2"], f2["b2"]])[:, None, :]
    return (ln_g, ln_b, wqkv, bqkv, wo, bo, fw1, fb1, flng, flnb, fw2, fb2)


def dualformer_block(x1, x2, params):
    """DualFormerBlock forward. x1: [B,S1,D], x2: [B,S2,D] -> same shapes."""
    B, S1, D = x1.shape
    S2 = x2.shape[1]
    assert D == EMBED_DIM

    packed = pack_params(params)
    kernel = functools.partial(dualformer_block_kernel, batch=B, s1=S1, s2=S2)

    o1, o2 = pl.pallas_call(
        kernel,
        out_shape=(jax.ShapeDtypeStruct((B * S1, D), jnp.float32),
                   jax.ShapeDtypeStruct((B * S2, D), jnp.float32)),
    )(x1.reshape(B * S1, D).astype(jnp.float32),
      x2.reshape(B * S2, D).astype(jnp.float32),
      *packed)
    return o1.reshape(B, S1, D), o2.reshape(B, S2, D)


# -----------------------------------------------------------------------------
# Parameter initialization (PyTorch-style nn.Linear init, LN = ones/zeros)
# -----------------------------------------------------------------------------
def init_linear(key, din, dout):
    k_w, k_b = jax.random.split(key)
    bound = 1.0 / math.sqrt(din)
    w = jax.random.uniform(k_w, (din, dout), jnp.float32, -bound, bound)
    b = jax.random.uniform(k_b, (dout,), jnp.float32, -bound, bound)
    return w, b


def init_params(key, d, f):
    keys = jax.random.split(key, 12)
    attn = {}
    for i, name in enumerate(["q1", "k1", "v1", "q2", "k2", "v2", "o1", "o2"]):
        w, b = init_linear(keys[i], d, d)
        attn[name + "_w"], attn[name + "_b"] = w, b

    def make_ffn(k1, k2):
        w1, b1 = init_linear(k1, d, f)
        w2, b2 = init_linear(k2, f, d)
        return {"w1": w1, "b1": b1, "w2": w2, "b2": b2,
                "ln_g": jnp.ones((f,), jnp.float32),
                "ln_b": jnp.zeros((f,), jnp.float32)}

    ones = jnp.ones((d,), jnp.float32)
    zeros = jnp.zeros((d,), jnp.float32)
    return {
        "attn": attn,
        "ffn1": make_ffn(keys[8], keys[9]),
        "ffn2": make_ffn(keys[10], keys[11]),
        "n11_g": ones, "n11_b": zeros, "n12_g": ones, "n12_b": zeros,
        "n21_g": ones, "n21_b": zeros, "n22_g": ones, "n22_b": zeros,
    }


# -----------------------------------------------------------------------------
# Pure-JAX reference (mirrors the PyTorch forward, eval mode) for validation
# -----------------------------------------------------------------------------
def reference_block(x1, x2, p):
    def ln(x, g, b):
        mu = jnp.mean(x, axis=-1, keepdims=True)
        var = jnp.mean((x - mu) ** 2, axis=-1, keepdims=True)
        return (x - mu) / jnp.sqrt(var + LN_EPS) * g + b

    def lin(x, w, b):
        return x @ w + b

    def split(x):
        B, S, _ = x.shape
        return x.reshape(B, S, NUM_HEADS, HEAD_DIM).transpose(0, 2, 1, 3)

    def attn(q, k, v):
        s = jnp.einsum("bhqd,bhkd->bhqk", q, k) * SCALE
        w = jax.nn.softmax(s, axis=-1)
        o = jnp.einsum("bhqk,bhkd->bhqd", w, v)
        B, H, S, Dh = o.shape
        return o.transpose(0, 2, 1, 3).reshape(B, S, H * Dh)

    a = p["attn"]
    h1 = ln(x1, p["n11_g"], p["n11_b"])
    h2 = ln(x2, p["n12_g"], p["n12_b"])
    att1 = lin(attn(split(lin(h1, a["q1_w"], a["q1_b"])),
                    split(lin(h2, a["k2_w"], a["k2_b"])),
                    split(lin(h2, a["v2_w"], a["v2_b"]))), a["o1_w"], a["o1_b"])
    att2 = lin(attn(split(lin(h2, a["q2_w"], a["q2_b"])),
                    split(lin(h1, a["k1_w"], a["k1_b"])),
                    split(lin(h1, a["v1_w"], a["v1_b"]))), a["o2_w"], a["o2_b"])
    x1 = x1 + att1
    x2 = x2 + att2

    def ffn(x, f, g, b):
        h = ln(x, g, b)
        h = lin(h, f["w1"], f["b1"])
        h = jax.nn.gelu(h, approximate=False)
        h = ln(h, f["ln_g"], f["ln_b"])
        return lin(h, f["w2"], f["b2"])

    x1 = x1 + ffn(x1, p["ffn1"], p["n21_g"], p["n21_b"])
    x2 = x2 + ffn(x2, p["ffn2"], p["n22_g"], p["n22_b"])
    return x1, x2


# -----------------------------------------------------------------------------
if __name__ == "__main__":
    key = jax.random.PRNGKey(0)
    k_params, k_x1, k_x2 = jax.random.split(key, 3)

    batch, seq1, seq2 = 2, 8, 16
    x1 = jax.random.normal(k_x1, (batch, seq1, EMBED_DIM), jnp.float32)
    x2 = jax.random.normal(k_x2, (batch, seq2, EMBED_DIM), jnp.float32)

    params = init_params(k_params, EMBED_DIM, FFN_DIM)

    fwd = jax.jit(dualformer_block)
    out1, out2 = fwd(x1, x2, params)
    jax.block_until_ready((out1, out2))

    assert out1.shape == (batch, seq1, EMBED_DIM)
    assert out2.shape == (batch, seq2, EMBED_DIM)
    assert bool(jnp.all(jnp.isfinite(out1))) and bool(jnp.all(jnp.isfinite(out2)))

    # Cross-check the fused kernel against a pure-JAX reference of the
    # PyTorch forward (tolerance covers the approx reciprocal in softmax).
    r1, r2 = jax.jit(reference_block)(x1, x2, params)
    err = max(float(jnp.max(jnp.abs(out1 - r1))),
              float(jnp.max(jnp.abs(out2 - r2))))
    assert err < 3e-2, f"mismatch vs reference: {err}"

    print("KERNEL_OK")
</pallas_src>

<mosaic_0001>
module attributes {stable_mosaic.version = 11 : i64} {
  func.func @dualformer_block_kernel(%arg0: memref<16x32xf32, #tpu.memory_space<vmem>>, %arg1: memref<32x32xf32, #tpu.memory_space<vmem>>, %arg2: memref<4x1x32xf32, #tpu.memory_space<vmem>>, %arg3: memref<4x1x32xf32, #tpu.memory_space<vmem>>, %arg4: memref<2x32x96xf32, #tpu.memory_space<vmem>>, %arg5: memref<2x1x96xf32, #tpu.memory_space<vmem>>, %arg6: memref<2x32x32xf32, #tpu.memory_space<vmem>>, %arg7: memref<2x1x32xf32, #tpu.memory_space<vmem>>, %arg8: memref<2x32x64xf32, #tpu.memory_space<vmem>>, %arg9: memref<2x1x64xf32, #tpu.memory_space<vmem>>, %arg10: memref<2x1x64xf32, #tpu.memory_space<vmem>>, %arg11: memref<2x1x64xf32, #tpu.memory_space<vmem>>, %arg12: memref<2x64x32xf32, #tpu.memory_space<vmem>>, %arg13: memref<2x1x32xf32, #tpu.memory_space<vmem>>, %arg14: memref<16x32xf32, #tpu.memory_space<vmem>>, %arg15: memref<32x32xf32, #tpu.memory_space<vmem>>) attributes {dimension_semantics = [], scalar_prefetch = 0 : i64, scratch_operands = 0 : i64, tpu.core_type = #tpu.core_type<tc>} {
    %c0 = arith.constant 0 : index
    %c0_0 = arith.constant 0 : index
    %0 = vector.load %arg0[%c0, %c0_0] : memref<16x32xf32, #tpu.memory_space<vmem>>, vector<16x32xf32>
    %c0_1 = arith.constant 0 : index
    %c0_2 = arith.constant 0 : index
    %1 = vector.load %arg1[%c0_1, %c0_2] : memref<32x32xf32, #tpu.memory_space<vmem>>, vector<32x32xf32>
    %c0_3 = arith.constant 0 : index
    %c0_4 = arith.constant 0 : index
    %c0_5 = arith.constant 0 : index
    %2 = vector.load %arg2[%c0_3, %c0_4, %c0_5] : memref<4x1x32xf32, #tpu.memory_space<vmem>>, vector<1x1x32xf32>
    %3 = vector.shape_cast %2 : vector<1x1x32xf32> to vector<1x32xf32>
    %c0_6 = arith.constant 0 : index
    %c0_7 = arith.constant 0 : index
    %c0_8 = arith.constant 0 : index
    %4 = vector.load %arg3[%c0_6, %c0_7, %c0_8] : memref<4x1x32xf32, #tpu.memory_space<vmem>>, vector<1x1x32xf32>
    %5 = vector.shape_cast %4 : vector<1x1x32xf32> to vector<1x32xf32>
    %cst = arith.constant dense<0.000000e+00> : vector<16xf32>
    %6 = vector.multi_reduction <add>, %0, %cst [1] : vector<16x32xf32> to vector<16xf32>
    %7 = vector.shape_cast %6 : vector<16xf32> to vector<16x1xf32>
    %cst_9 = arith.constant 3.200000e+01 : f32
    %8 = vector.broadcast %cst_9 : f32 to vector<16x1xf32>
    %9 = arith.divf %7, %8 : vector<16x1xf32>
    %10 = vector.broadcast %9 : vector<16x1xf32> to vector<16x32xf32>
    %11 = arith.subf %0, %10 : vector<16x32xf32>
    %12 = arith.mulf %11, %11 : vector<16x32xf32>
    %cst_10 = arith.constant dense<0.000000e+00> : vector<16xf32>
    %13 = vector.multi_reduction <add>, %12, %cst_10 [1] : vector<16x32xf32> to vector<16xf32>
    %14 = vector.shape_cast %13 : vector<16xf32> to vector<16x1xf32>
    %cst_11 = arith.constant 3.200000e+01 : f32
    %15 = vector.broadcast %cst_11 : f32 to vector<16x1xf32>
    %16 = arith.divf %14, %15 : vector<16x1xf32>
    %cst_12 = arith.constant 9.99999974E-6 : f32
    %17 = vector.broadcast %cst_12 : f32 to vector<16x1xf32>
    %18 = arith.addf %16, %17 : vector<16x1xf32>
    %19 = math.rsqrt %18 : vector<16x1xf32>
    %20 = vector.broadcast %19 : vector<16x1xf32> to vector<16x32xf32>
    %21 = arith.mulf %11, %20 : vector<16x32xf32>
    %22 = vector.broadcast %3 : vector<1x32xf32> to vector<16x32xf32>
    %23 = arith.mulf %21, %22 : vector<16x32xf32>
    %24 = vector.broadcast %5 : vector<1x32xf32> to vector<16x32xf32>
    %25 = arith.addf %23, %24 : vector<16x32xf32>
    %c1 = arith.constant 1 : index
    %c0_13 = arith.constant 0 : index
    %c0_14 = arith.constant 0 : index
    %26 = vector.load %arg2[%c1, %c0_13, %c0_14] : memref<4x1x32xf32, #tpu.memory_space<vmem>>, vector<1x1x32xf32>
    %27 = vector.shape_cast %26 : vector<1x1x32xf32> to vector<1x32xf32>
    %c1_15 = arith.constant 1 : index
    %c0_16 = arith.constant 0 : index
    %c0_17 = arith.constant 0 : index
    %28 = vector.load %arg3[%c1_15, %c0_16, %c0_17] : memref<4x1x32xf32, #tpu.memory_space<vmem>>, vector<1x1x32xf32>
    %29 = vector.shape_cast %28 : vector<1x1x32xf32> to vector<1x32xf32>
    %cst_18 = arith.constant dense<0.000000e+00> : vector<32xf32>
    %30 = vector.multi_reduction <add>, %1, %cst_18 [1] : vector<32x32xf32> to vector<32xf32>
    %31 = vector.shape_cast %30 : vector<32xf32> to vector<32x1xf32>
    %cst_19 = arith.constant 3.200000e+01 : f32
    %32 = vector.broadcast %cst_19 : f32 to vector<32x1xf32>
    %33 = arith.divf %31, %32 : vector<32x1xf32>
    %34 = vector.broadcast %33 : vector<32x1xf32> to vector<32x32xf32>
    %35 = arith.subf %1, %34 : vector<32x32xf32>
    %36 = arith.mulf %35, %35 : vector<32x32xf32>
    %cst_20 = arith.constant dense<0.000000e+00> : vector<32xf32>
    %37 = vector.multi_reduction <add>, %36, %cst_20 [1] : vector<32x32xf32> to vector<32xf32>
    %38 = vector.shape_cast %37 : vector<32xf32> to vector<32x1xf32>
    %cst_21 = arith.constant 3.200000e+01 : f32
    %39 = vector.broadcast %cst_21 : f32 to vector<32x1xf32>
    %40 = arith.divf %38, %39 : vector<32x1xf32>
    %cst_22 = arith.constant 9.99999974E-6 : f32
    %41 = vector.broadcast %cst_22 : f32 to vector<32x1xf32>
    %42 = arith.addf %40, %41 : vector<32x1xf32>
    %43 = math.rsqrt %42 : vector<32x1xf32>
    %44 = vector.broadcast %43 : vector<32x1xf32> to vector<32x32xf32>
    %45 = arith.mulf %35, %44 : vector<32x32xf32>
    %46 = vector.broadcast %27 : vector<1x32xf32> to vector<32x32xf32>
    %47 = arith.mulf %45, %46 : vector<32x32xf32>
    %48 = vector.broadcast %29 : vector<1x32xf32> to vector<32x32xf32>
    %49 = arith.addf %47, %48 : vector<32x32xf32>
    %c0_23 = arith.constant 0 : index
    %c0_24 = arith.constant 0 : index
    %c0_25 = arith.constant 0 : index
    %50 = vector.load %arg4[%c0_23, %c0_24, %c0_25] : memref<2x32x96xf32, #tpu.memory_space<vmem>>, vector<1x32x96xf32>
    %51 = vector.shape_cast %50 : vector<1x32x96xf32> to vector<32x96xf32>
    %cst_26 = arith.constant dense<0.000000e+00> : vector<16x96xf32>
    %52 = tpu.matmul %25, %51, %cst_26 {dimension_numbers = #tpu.dot_dimension_numbers<[1], [0], [0], [1], [0, 0, 1, 1], [], []>} : vector<16x32xf32>, vector<32x96xf32>, vector<16x96xf32> -> vector<16x96xf32>
    %c0_27 = arith.constant 0 : index
    %c0_28 = arith.constant 0 : index
    %c0_29 = arith.constant 0 : index
    %53 = vector.load %arg5[%c0_27, %c0_28, %c0_29] : memref<2x1x96xf32, #tpu.memory_space<vmem>>, vector<1x1x96xf32>
    %54 = vector.shape_cast %53 : vector<1x1x96xf32> to vector<1x96xf32>
    %55 = vector.broadcast %54 : vector<1x96xf32> to vector<16x96xf32>
    %56 = arith.addf %52, %55 : vector<16x96xf32>
    %c1_30 = arith.constant 1 : index
    %c0_31 = arith.constant 0 : index
    %c0_32 = arith.constant 0 : index
    %57 = vector.load %arg4[%c1_30, %c0_31, %c0_32] : memref<2x32x96xf32, #tpu.memory_space<vmem>>, vector<1x32x96xf32>
    %58 = vector.shape_cast %57 : vector<1x32x96xf32> to vector<32x96xf32>
    %cst_33 = arith.constant dense<0.000000e+00> : vector<32x96xf32>
    %59 = tpu.matmul %49, %58, %cst_33 {dimension_numbers = #tpu.dot_dimension_numbers<[1], [0], [0], [1], [0, 0, 1, 1], [], []>} : vector<32x32xf32>, vector<32x96xf32>, vector<32x96xf32> -> vector<32x96xf32>
    %c1_34 = arith.constant 1 : index
    %c0_35 = arith.constant 0 : index
    %c0_36 = arith.constant 0 : index
    %60 = vector.load %arg5[%c1_34, %c0_35, %c0_36] : memref<2x1x96xf32, #tpu.memory_space<vmem>>, vector<1x1x96xf32>
    %61 = vector.shape_cast %60 : vector<1x1x96xf32> to vector<1x96xf32>
    %62 = vector.broadcast %61 : vector<1x96xf32> to vector<32x96xf32>
    %63 = arith.addf %59, %62 : vector<32x96xf32>
    %64 = vector.extract_strided_slice %56 {offsets = [0, 0], sizes = [16, 32], strides = [1, 1]} : vector<16x96xf32> to vector<16x32xf32>
    %65 = vector.extract_strided_slice %56 {offsets = [0, 32], sizes = [16, 32], strides = [1, 1]} : vector<16x96xf32> to vector<16x32xf32>
    %66 = vector.extract_strided_slice %56 {offsets = [0, 64], sizes = [16, 32], strides = [1, 1]} : vector<16x96xf32> to vector<16x32xf32>
    %67 = vector.extract_strided_slice %63 {offsets = [0, 0], sizes = [32, 32], strides = [1, 1]} : vector<32x96xf32> to vector<32x32xf32>
    %68 = vector.extract_strided_slice %63 {offsets = [0, 32], sizes = [32, 32], strides = [1, 1]} : vector<32x96xf32> to vector<32x32xf32>
    %69 = vector.extract_strided_slice %63 {offsets = [0, 64], sizes = [32, 32], strides = [1, 1]} : vector<32x96xf32> to vector<32x32xf32>
    %c0_37 = arith.constant 0 : index
    %c0_38 = arith.constant 0 : index
    %c0_39 = arith.constant 0 : index
    %70 = vector.load %arg6[%c0_37, %c0_38, %c0_39] : memref<2x32x32xf32, #tpu.memory_space<vmem>>, vector<1x32x32xf32>
    %71 = vector.shape_cast %70 : vector<1x32x32xf32> to vector<32x32xf32>
    %c0_40 = arith.constant 0 : index
    %c0_41 = arith.constant 0 : index
    %c0_42 = arith.constant 0 : index
    %72 = vector.load %arg7[%c0_40, %c0_41, %c0_42] : memref<2x1x32xf32, #tpu.memory_space<vmem>>, vector<1x1x32xf32>
    %73 = vector.shape_cast %72 : vector<1x1x32xf32> to vector<1x32xf32>
    %74 = vector.extract_strided_slice %64 {offsets = [0, 0], sizes = [8, 32], strides = [1, 1]} : vector<16x32xf32> to vector<8x32xf32>
    %75 = vector.extract_strided_slice %68 {offsets = [0, 0], sizes = [16, 32], strides = [1, 1]} : vector<32x32xf32> to vector<16x32xf32>
    %76 = vector.extract_strided_slice %69 {offsets = [0, 0], sizes = [16, 32], strides = [1, 1]} : vector<32x32xf32> to vector<16x32xf32>
    %cst_43 = arith.constant 0.000000e+00 : f32
    %77 = vector.broadcast %cst_43 : f32 to vector<8x32xf32>
    %78 = vector.extract_strided_slice %74 {offsets = [0, 0], sizes = [8, 8], strides = [1, 1]} : vector<8x32xf32> to vector<8x8xf32>
    %79 = vector.extract_strided_slice %75 {offsets = [0, 0], sizes = [16, 8], strides = [1, 1]} : vector<16x32xf32> to vector<16x8xf32>
    %80 = vector.extract_strided_slice %76 {offsets = [0, 0], sizes = [16, 8], strides = [1, 1]} : vector<16x32xf32> to vector<16x8xf32>
    %cst_44 = arith.constant dense<0.000000e+00> : vector<8x16xf32>
    %81 = tpu.matmul %78, %79, %cst_44 {dimension_numbers = #tpu.dot_dimension_numbers<[1], [1], [0], [0], [0, 0, 1, 0], [], []>} : vector<8x8xf32>, vector<16x8xf32>, vector<8x16xf32> -> vector<8x16xf32>
    %cst_45 = arith.constant 0.353553385 : f32
    %82 = vector.broadcast %cst_45 : f32 to vector<8x16xf32>
    %83 = arith.mulf %81, %82 : vector<8x16xf32>
    %cst_46 = arith.constant dense<0xFF800000> : vector<8xf32>
    %84 = vector.multi_reduction <maximumf>, %83, %cst_46 [1] : vector<8x16xf32> to vector<8xf32>
    %85 = vector.shape_cast %84 : vector<8xf32> to vector<8x1xf32>
    %86 = vector.broadcast %85 : vector<8x1xf32> to vector<8x16xf32>
    %87 = arith.subf %83, %86 : vector<8x16xf32>
    %88 = math.exp %87 : vector<8x16xf32>
    %cst_47 = arith.constant dense<0.000000e+00> : vector<8xf32>
    %89 = vector.multi_reduction <add>, %88, %cst_47 [1] : vector<8x16xf32> to vector<8xf32>
    %90 = vector.shape_cast %89 : vector<8xf32> to vector<8x1xf32>
    %91 = tpu.reciprocal %90 {approx = true} : vector<8x1xf32> -> vector<8x1xf32>
    %92 = vector.broadcast %91 : vector<8x1xf32> to vector<8x16xf32>
    %93 = arith.mulf %88, %92 : vector<8x16xf32>
    %cst_48 = arith.constant dense<0.000000e+00> : vector<8x8xf32>
    %94 = tpu.matmul %93, %80, %cst_48 {dimension_numbers = #tpu.dot_dimension_numbers<[1], [0], [0], [1], [0, 0, 1, 1], [], []>} : vector<8x16xf32>, vector<16x8xf32>, vector<8x8xf32> -> vector<8x8xf32>
    %95 = vector.extract_strided_slice %71 {offsets = [0, 0], sizes = [8, 32], strides = [1, 1]} : vector<32x32xf32> to vector<8x32xf32>
    %cst_49 = arith.constant dense<0.000000e+00> : vector<8x32xf32>
    %96 = tpu.matmul %94, %95, %cst_49 {dimension_numbers = #tpu.dot_dimension_numbers<[1], [0], [0], [1], [0, 0, 1, 1], [], []>} : vector<8x8xf32>, vector<8x32xf32>, vector<8x32xf32> -> vector<8x32xf32>
    %97 = arith.addf %77, %96 : vector<8x32xf32>
    %98 = vector.extract_strided_slice %74 {offsets = [0, 8], sizes = [8, 8], strides = [1, 1]} : vector<8x32xf32> to vector<8x8xf32>
    %99 = vector.extract_strided_slice %75 {offsets = [0, 8], sizes = [16, 8], strides = [1, 1]} : vector<16x32xf32> to vector<16x8xf32>
    %100 = vector.extract_strided_slice %76 {offsets = [0, 8], sizes = [16, 8], strides = [1, 1]} : vector<16x32xf32> to vector<16x8xf32>
    %cst_50 = arith.constant dense<0.000000e+00> : vector<8x16xf32>
    %101 = tpu.matmul %98, %99, %cst_50 {dimension_numbers = #tpu.dot_dimension_numbers<[1], [1], [0], [0], [0, 0, 1, 0], [], []>} : vector<8x8xf32>, vector<16x8xf32>, vector<8x16xf32> -> vector<8x16xf32>
    %cst_51 = arith.constant 0.353553385 : f32
    %102 = vector.broadcast %cst_51 : f32 to vector<8x16xf32>
    %103 = arith.mulf %101, %102 : vector<8x16xf32>
    %cst_52 = arith.constant dense<0xFF800000> : vector<8xf32>
    %104 = vector.multi_reduction <maximumf>, %103, %cst_52 [1] : vector<8x16xf32> to vector<8xf32>
    %105 = vector.shape_cast %104 : vector<8xf32> to vector<8x1xf32>
    %106 = vector.broadcast %105 : vector<8x1xf32> to vector<8x16xf32>
    %107 = arith.subf %103, %106 : vector<8x16xf32>
    %108 = math.exp %107 : vector<8x16xf32>
    %cst_53 = arith.constant dense<0.000000e+00> : vector<8xf32>
    %109 = vector.multi_reduction <add>, %108, %cst_53 [1] : vector<8x16xf32> to vector<8xf32>
    %110 = vector.shape_cast %109 : vector<8xf32> to vector<8x1xf32>
    %111 = tpu.reciprocal %110 {approx = true} : vector<8x1xf32> -> vector<8x1xf32>
    %112 = vector.broadcast %111 : vector<8x1xf32> to vector<8x16xf32>
    %113 = arith.mulf %108, %112 : vector<8x16xf32>
    %cst_54 = arith.constant dense<0.000000e+00> : vector<8x8xf32>
    %114 = tpu.matmul %113, %100, %cst_54 {dimension_numbers = #tpu.dot_dimension_numbers<[1], [0], [0], [1], [0, 0, 1, 1], [], []>} : vector<8x16xf32>, vector<16x8xf32>, vector<8x8xf32> -> vector<8x8xf32>
    %115 = vector.extract_strided_slice %71 {offsets = [8, 0], sizes = [8, 32], strides = [1, 1]} : vector<32x32xf32> to vector<8x32xf32>
    %cst_55 = arith.constant dense<0.000000e+00> : vector<8x32xf32>
    %116 = tpu.matmul %114, %115, %cst_55 {dimension_numbers = #tpu.dot_dimension_numbers<[1], [0], [0], [1], [0, 0, 1, 1], [], []>} : vector<8x8xf32>, vector<8x32xf32>, vector<8x32xf32> -> vector<8x32xf32>
    %117 = arith.addf %97, %116 : vector<8x32xf32>
    %118 = vector.extract_strided_slice %74 {offsets = [0, 16], sizes = [8, 8], strides = [1, 1]} : vector<8x32xf32> to vector<8x8xf32>
    %119 = vector.extract_strided_slice %75 {offsets = [0, 16], sizes = [16, 8], strides = [1, 1]} : vector<16x32xf32> to vector<16x8xf32>
    %120 = vector.extract_strided_slice %76 {offsets = [0, 16], sizes = [16, 8], strides = [1, 1]} : vector<16x32xf32> to vector<16x8xf32>
    %cst_56 = arith.constant dense<0.000000e+00> : vector<8x16xf32>
    %121 = tpu.matmul %118, %119, %cst_56 {dimension_numbers = #tpu.dot_dimension_numbers<[1], [1], [0], [0], [0, 0, 1, 0], [], []>} : vector<8x8xf32>, vector<16x8xf32>, vector<8x16xf32> -> vector<8x16xf32>
    %cst_57 = arith.constant 0.353553385 : f32
    %122 = vector.broadcast %cst_57 : f32 to vector<8x16xf32>
    %123 = arith.mulf %121, %122 : vector<8x16xf32>
    %cst_58 = arith.constant dense<0xFF800000> : vector<8xf32>
    %124 = vector.multi_reduction <maximumf>, %123, %cst_58 [1] : vector<8x16xf32> to vector<8xf32>
    %125 = vector.shape_cast %124 : vector<8xf32> to vector<8x1xf32>
    %126 = vector.broadcast %125 : vector<8x1xf32> to vector<8x16xf32>
    %127 = arith.subf %123, %126 : vector<8x16xf32>
    %128 = math.exp %127 : vector<8x16xf32>
    %cst_59 = arith.constant dense<0.000000e+00> : vector<8xf32>
    %129 = vector.multi_reduction <add>, %128, %cst_59 [1] : vector<8x16xf32> to vector<8xf32>
    %130 = vector.shape_cast %129 : vector<8xf32> to vector<8x1xf32>
    %131 = tpu.reciprocal %130 {approx = true} : vector<8x1xf32> -> vector<8x1xf32>
    %132 = vector.broadcast %131 : vector<8x1xf32> to vector<8x16xf32>
    %133 = arith.mulf %128, %132 : vector<8x16xf32>
    %cst_60 = arith.constant dense<0.000000e+00> : vector<8x8xf32>
    %134 = tpu.matmul %133, %120, %cst_60 {dimension_numbers = #tpu.dot_dimension_numbers<[1], [0], [0], [1], [0, 0, 1, 1], [], []>} : vector<8x16xf32>, vector<16x8xf32>, vector<8x8xf32> -> vector<8x8xf32>
    %135 = vector.extract_strided_slice %71 {offsets = [16, 0], sizes = [8, 32], strides = [1, 1]} : vector<32x32xf32> to vector<8x32xf32>
    %cst_61 = arith.constant dense<0.000000e+00> : vector<8x32xf32>
    %136 = tpu.matmul %134, %135, %cst_61 {dimension_numbers = #tpu.dot_dimension_numbers<[1], [0], [0], [1], [0, 0, 1, 1], [], []>} : vector<8x8xf32>, vector<8x32xf32>, vector<8x32xf32> -> vector<8x32xf32>
    %137 = arith.addf %117, %136 : vector<8x32xf32>
    %138 = vector.extract_strided_slice %74 {offsets = [0, 24], sizes = [8, 8], strides = [1, 1]} : vector<8x32xf32> to vector<8x8xf32>
    %139 = vector.extract_strided_slice %75 {offsets = [0, 24], sizes = [16, 8], strides = [1, 1]} : vector<16x32xf32> to vector<16x8xf32>
    %140 = vector.extract_strided_slice %76 {offsets = [0, 24], sizes = [16, 8], strides = [1, 1]} : vector<16x32xf32> to vector<16x8xf32>
    %cst_62 = arith.constant dense<0.000000e+00> : vector<8x16xf32>
    %141 = tpu.matmul %138, %139, %cst_62 {dimension_numbers = #tpu.dot_dimension_numbers<[1], [1], [0], [0], [0, 0, 1, 0], [], []>} : vector<8x8xf32>, vector<16x8xf32>, vector<8x16xf32> -> vector<8x16xf32>
    %cst_63 = arith.constant 0.353553385 : f32
    %142 = vector.broadcast %cst_63 : f32 to vector<8x16xf32>
    %143 = arith.mulf %141, %142 : vector<8x16xf32>
    %cst_64 = arith.constant dense<0xFF800000> : vector<8xf32>
    %144 = vector.multi_reduction <maximumf>, %143, %cst_64 [1] : vector<8x16xf32> to vector<8xf32>
    %145 = vector.shape_cast %144 : vector<8xf32> to vector<8x1xf32>
    %146 = vector.broadcast %145 : vector<8x1xf32> to vector<8x16xf32>
    %147 = arith.subf %143, %146 : vector<8x16xf32>
    %148 = math.exp %147 : vector<8x16xf32>
    %cst_65 = arith.constant dense<0.000000e+00> : vector<8xf32>
    %149 = vector.multi_reduction <add>, %148, %cst_65 [1] : vector<8x16xf32> to vector<8xf32>
    %150 = vector.shape_cast %149 : vector<8xf32> to vector<8x1xf32>
    %151 = tpu.reciprocal %150 {approx = true} : vector<8x1xf32> -> vector<8x1xf32>
    %152 = vector.broadcast %151 : vector<8x1xf32> to vector<8x16xf32>
    %153 = arith.mulf %148, %152 : vector<8x16xf32>
    %cst_66 = arith.constant dense<0.000000e+00> : vector<8x8xf32>
    %154 = tpu.matmul %153, %140, %cst_66 {dimension_numbers = #tpu.dot_dimension_numbers<[1], [0], [0], [1], [0, 0, 1, 1], [], []>} : vector<8x16xf32>, vector<16x8xf32>, vector<8x8xf32> -> vector<8x8xf32>
    %155 = vector.extract_strided_slice %71 {offsets = [24, 0], sizes = [8, 32], strides = [1, 1]} : vector<32x32xf32> to vector<8x32xf32>
    %cst_67 = arith.constant dense<0.000000e+00> : vector<8x32xf32>
    %156 = tpu.matmul %154, %155, %cst_67 {dimension_numbers = #tpu.dot_dimension_numbers<[1], [0], [0], [1], [0, 0, 1, 1], [], []>} : vector<8x8xf32>, vector<8x32xf32>, vector<8x32xf32> -> vector<8x32xf32>
    %157 = arith.addf %137, %156 : vector<8x32xf32>
    %158 = vector.broadcast %73 : vector<1x32xf32> to vector<8x32xf32>
    %159 = arith.addf %157, %158 : vector<8x32xf32>
    %160 = vector.extract_strided_slice %64 {offsets = [8, 0], sizes = [8, 32], strides = [1, 1]} : vector<16x32xf32> to vector<8x32xf32>
    %161 = vector.extract_strided_slice %68 {offsets = [16, 0], sizes = [16, 32], strides = [1, 1]} : vector<32x32xf32> to vector<16x32xf32>
    %162 = vector.extract_strided_slice %69 {offsets = [16, 0], sizes = [16, 32], strides = [1, 1]} : vector<32x32xf32> to vector<16x32xf32>
    %cst_68 = arith.constant 0.000000e+00 : f32
    %163 = vector.broadcast %cst_68 : f32 to vector<8x32xf32>
    %164 = vector.extract_strided_slice %160 {offsets = [0, 0], sizes = [8, 8], strides = [1, 1]} : vector<8x32xf32> to vector<8x8xf32>
    %165 = vector.extract_strided_slice %161 {offsets = [0, 0], sizes = [16, 8], strides = [1, 1]} : vector<16x32xf32> to vector<16x8xf32>
    %166 = vector.extract_strided_slice %162 {offsets = [0, 0], sizes = [16, 8], strides = [1, 1]} : vector<16x32xf32> to vector<16x8xf32>
    %cst_69 = arith.constant dense<0.000000e+00> : vector<8x16xf32>
    %167 = tpu.matmul %164, %165, %cst_69 {dimension_numbers = #tpu.dot_dimension_numbers<[1], [1], [0], [0], [0, 0, 1, 0], [], []>} : vector<8x8xf32>, vector<16x8xf32>, vector<8x16xf32> -> vector<8x16xf32>
    %cst_70 = arith.constant 0.353553385 : f32
    %168 = vector.broadcast %cst_70 : f32 to vector<8x16xf32>
    %169 = arith.mulf %167, %168 : vector<8x16xf32>
    %cst_71 = arith.constant dense<0xFF800000> : vector<8xf32>
    %170 = vector.multi_reduction <maximumf>, %169, %cst_71 [1] : vector<8x16xf32> to vector<8xf32>
    %171 = vector.shape_cast %170 : vector<8xf32> to vector<8x1xf32>
    %172 = vector.broadcast %171 : vector<8x1xf32> to vector<8x16xf32>
    %173 = arith.subf %169, %172 : vector<8x16xf32>
    %174 = math.exp %173 : vector<8x16xf32>
    %cst_72 = arith.constant dense<0.000000e+00> : vector<8xf32>
    %175 = vector.multi_reduction <add>, %174, %cst_72 [1] : vector<8x16xf32> to vector<8xf32>
    %176 = vector.shape_cast %175 : vector<8xf32> to vector<8x1xf32>
    %177 = tpu.reciprocal %176 {approx = true} : vector<8x1xf32> -> vector<8x1xf32>
    %178 = vector.broadcast %177 : vector<8x1xf32> to vector<8x16xf32>
    %179 = arith.mulf %174, %178 : vector<8x16xf32>
    %cst_73 = arith.constant dense<0.000000e+00> : vector<8x8xf32>
    %180 = tpu.matmul %179, %166, %cst_73 {dimension_numbers = #tpu.dot_dimension_numbers<[1], [0], [0], [1], [0, 0, 1, 1], [], []>} : vector<8x16xf32>, vector<16x8xf32>, vector<8x8xf32> -> vector<8x8xf32>
    %181 = vector.extract_strided_slice %71 {offsets = [0, 0], sizes = [8, 32], strides = [1, 1]} : vector<32x32xf32> to vector<8x32xf32>
    %cst_74 = arith.constant dense<0.000000e+00> : vector<8x32xf32>
    %182 = tpu.matmul %180, %181, %cst_74 {dimension_numbers = #tpu.dot_dimension_numbers<[1], [0], [0], [1], [0, 0, 1, 1], [], []>} : vector<8x8xf32>, vector<8x32xf32>, vector<8x32xf32> -> vector<8x32xf32>
    %183 = arith.addf %163, %182 : vector<8x32xf32>
    %184 = vector.extract_strided_slice %160 {offsets = [0, 8], sizes = [8, 8], strides = [1, 1]} : vector<8x32xf32> to vector<8x8xf32>
    %185 = vector.extract_strided_slice %161 {offsets = [0, 8], sizes = [16, 8], strides = [1, 1]} : vector<16x32xf32> to vector<16x8xf32>
    %186 = vector.extract_strided_slice %162 {offsets = [0, 8], sizes = [16, 8], strides = [1, 1]} : vector<16x32xf32> to vector<16x8xf32>
    %cst_75 = arith.constant dense<0.000000e+00> : vector<8x16xf32>
    %187 = tpu.matmul %184, %185, %cst_75 {dimension_numbers = #tpu.dot_dimension_numbers<[1], [1], [0], [0], [0, 0, 1, 0], [], []>} : vector<8x8xf32>, vector<16x8xf32>, vector<8x16xf32> -> vector<8x16xf32>
    %cst_76 = arith.constant 0.353553385 : f32
    %188 = vector.broadcast %cst_76 : f32 to vector<8x16xf32>
    %189 = arith.mulf %187, %188 : vector<8x16xf32>
    %cst_77 = arith.constant dense<0xFF800000> : vector<8xf32>
    %190 = vector.multi_reduction <maximumf>, %189, %cst_77 [1] : vector<8x16xf32> to vector<8xf32>
    %191 = vector.shape_cast %190 : vector<8xf32> to vector<8x1xf32>
    %192 = vector.broadcast %191 : vector<8x1xf32> to vector<8x16xf32>
    %193 = arith.subf %189, %192 : vector<8x16xf32>
    %194 = math.exp %193 : vector<8x16xf32>
    %cst_78 = arith.constant dense<0.000000e+00> : vector<8xf32>
    %195 = vector.multi_reduction <add>, %194, %cst_78 [1] : vector<8x16xf32> to vector<8xf32>
    %196 = vector.shape_cast %195 : vector<8xf32> to vector<8x1xf32>
    %197 = tpu.reciprocal %196 {approx = true} : vector<8x1xf32> -> vector<8x1xf32>
    %198 = vector.broadcast %197 : vector<8x1xf32> to vector<8x16xf32>
    %199 = arith.mulf %194, %198 : vector<8x16xf32>
    %cst_79 = arith.constant dense<0.000000e+00> : vector<8x8xf32>
    %200 = tpu.matmul %199, %186, %cst_79 {dimension_numbers = #tpu.dot_dimension_numbers<[1], [0], [0], [1], [0, 0, 1, 1], [], []>} : vector<8x16xf32>, vector<16x8xf32>, vector<8x8xf32> -> vector<8x8xf32>
    %201 = vector.extract_strided_slice %71 {offsets = [8, 0], sizes = [8, 32], strides = [1, 1]} : vector<32x32xf32> to vector<8x32xf32>
    %cst_80 = arith.constant dense<0.000000e+00> : vector<8x32xf32>
    %202 = tpu.matmul %200, %201, %cst_80 {dimension_numbers = #tpu.dot_dimension_numbers<[1], [0], [0], [1], [0, 0, 1, 1], [], []>} : vector<8x8xf32>, vector<8x32xf32>, vector<8x32xf32> -> vector<8x32xf32>
    %203 = arith.addf %183, %202 : vector<8x32xf32>
    %204 = vector.extract_strided_slice %160 {offsets = [0, 16], sizes = [8, 8], strides = [1, 1]} : vector<8x32xf32> to vector<8x8xf32>
    %205 = vector.extract_strided_slice %161 {offsets = [0, 16], sizes = [16, 8], strides = [1, 1]} : vector<16x32xf32> to vector<16x8xf32>
    %206 = vector.extract_strided_slice %162 {offsets = [0, 16], sizes = [16, 8], strides = [1, 1]} : vector<16x32xf32> to vector<16x8xf32>
    %cst_81 = arith.constant dense<0.000000e+00> : vector<8x16xf32>
    %207 = tpu.matmul %204, %205, %cst_81 {dimension_numbers = #tpu.dot_dimension_numbers<[1], [1], [0], [0], [0, 0, 1, 0], [], []>} : vector<8x8xf32>, vector<16x8xf32>, vector<8x16xf32> -> vector<8x16xf32>
    %cst_82 = arith.constant 0.353553385 : f32
    %208 = vector.broadcast %cst_82 : f32 to vector<8x16xf32>
    %209 = arith.mulf %207, %208 : vector<8x16xf32>
    %cst_83 = arith.constant dense<0xFF800000> : vector<8xf32>
    %210 = vector.multi_reduction <maximumf>, %209, %cst_83 [1] : vector<8x16xf32> to vector<8xf32>
    %211 = vector.shape_cast %210 : vector<8xf32> to vector<8x1xf32>
    %212 = vector.broadcast %211 : vector<8x1xf32> to vector<8x16xf32>
    %213 = arith.subf %209, %212 : vector<8x16xf32>
    %214 = math.exp %213 : vector<8x16xf32>
    %cst_84 = arith.constant dense<0.000000e+00> : vector<8xf32>
    %215 = vector.multi_reduction <add>, %214, %cst_84 [1] : vector<8x16xf32> to vector<8xf32>
    %216 = vector.shape_cast %215 : vector<8xf32> to vector<8x1xf32>
    %217 = tpu.reciprocal %216 {approx = true} : vector<8x1xf32> -> vector<8x1xf32>
    %218 = vector.broadcast %217 : vector<8x1xf32> to vector<8x16xf32>
    %219 = arith.mulf %214, %218 : vector<8x16xf32>
    %cst_85 = arith.constant dense<0.000000e+00> : vector<8x8xf32>
    %220 = tpu.matmul %219, %206, %cst_85 {dimension_numbers = #tpu.dot_dimension_numbers<[1], [0], [0], [1], [0, 0, 1, 1], [], []>} : vector<8x16xf32>, vector<16x8xf32>, vector<8x8xf32> -> vector<8x8xf32>
    %221 = vector.extract_strided_slice %71 {offsets = [16, 0], sizes = [8, 32], strides = [1, 1]} : vector<32x32xf32> to vector<8x32xf32>
    %cst_86 = arith.constant dense<0.000000e+00> : vector<8x32xf32>
    %222 = tpu.matmul %220, %221, %cst_86 {dimension_numbers = #tpu.dot_dimension_numbers<[1], [0], [0], [1], [0, 0, 1, 1], [], []>} : vector<8x8xf32>, vector<8x32xf32>, vector<8x32xf32> -> vector<8x32xf32>
    %223 = arith.addf %203, %222 : vector<8x32xf32>
    %224 = vector.extract_strided_slice %160 {offsets = [0, 24], sizes = [8, 8], strides = [1, 1]} : vector<8x32xf32> to vector<8x8xf32>
    %225 = vector.extract_strided_slice %161 {offsets = [0, 24], sizes = [16, 8], strides = [1, 1]} : vector<16x32xf32> to vector<16x8xf32>
    %226 = vector.extract_strided_slice %162 {offsets = [0, 24], sizes = [16, 8], strides = [1, 1]} : vector<16x32xf32> to vector<16x8xf32>
    %cst_87 = arith.constant dense<0.000000e+00> : vector<8x16xf32>
    %227 = tpu.matmul %224, %225, %cst_87 {dimension_numbers = #tpu.dot_dimension_numbers<[1], [1], [0], [0], [0, 0, 1, 0], [], []>} : vector<8x8xf32>, vector<16x8xf32>, vector<8x16xf32> -> vector<8x16xf32>
    %cst_88 = arith.constant 0.353553385 : f32
    %228 = vector.broadcast %cst_88 : f32 to vector<8x16xf32>
    %229 = arith.mulf %227, %228 : vector<8x16xf32>
    %cst_89 = arith.constant dense<0xFF800000> : vector<8xf32>
    %230 = vector.multi_reduction <maximumf>, %229, %cst_89 [1] : vector<8x16xf32> to vector<8xf32>
    %231 = vector.shape_cast %230 : vector<8xf32> to vector<8x1xf32>
    %232 = vector.broadcast %231 : vector<8x1xf32> to vector<8x16xf32>
    %233 = arith.subf %229, %232 : vector<8x16xf32>
    %234 = math.exp %233 : vector<8x16xf32>
    %cst_90 = arith.constant dense<0.000000e+00> : vector<8xf32>
    %235 = vector.multi_reduction <add>, %234, %cst_90 [1] : vector<8x16xf32> to vector<8xf32>
    %236 = vector.shape_cast %235 : vector<8xf32> to vector<8x1xf32>
    %237 = tpu.reciprocal %236 {approx = true} : vector<8x1xf32> -> vector<8x1xf32>
    %238 = vector.broadcast %237 : vector<8x1xf32> to vector<8x16xf32>
    %239 = arith.mulf %234, %238 : vector<8x16xf32>
    %cst_91 = arith.constant dense<0.000000e+00> : vector<8x8xf32>
    %240 = tpu.matmul %239, %226, %cst_91 {dimension_numbers = #tpu.dot_dimension_numbers<[1], [0], [0], [1], [0, 0, 1, 1], [], []>} : vector<8x16xf32>, vector<16x8xf32>, vector<8x8xf32> -> vector<8x8xf32>
    %241 = vector.extract_strided_slice %71 {offsets = [24, 0], sizes = [8, 32], strides = [1, 1]} : vector<32x32xf32> to vector<8x32xf32>
    %cst_92 = arith.constant dense<0.000000e+00> : vector<8x32xf32>
    %242 = tpu.matmul %240, %241, %cst_92 {dimension_numbers = #tpu.dot_dimension_numbers<[1], [0], [0], [1], [0, 0, 1, 1], [], []>} : vector<8x8xf32>, vector<8x32xf32>, vector<8x32xf32> -> vector<8x32xf32>
    %243 = arith.addf %223, %242 : vector<8x32xf32>
    %244 = vector.broadcast %73 : vector<1x32xf32> to vector<8x32xf32>
    %245 = arith.addf %243, %244 : vector<8x32xf32>
    %246 = tpu.concatenate %159, %245 in 0 : vector<8x32xf32>, vector<8x32xf32> -> vector<16x32xf32>
    %c1_93 = arith.constant 1 : index
    %c0_94 = arith.constant 0 : index
    %c0_95 = arith.constant 0 : index
    %247 = vector.load %arg6[%c1_93, %c0_94, %c0_95] : memref<2x32x32xf32, #tpu.memory_space<vmem>>, vector<1x32x32xf32>
    %248 = vector.shape_cast %247 : vector<1x32x32xf32> to vector<32x32xf32>
    %c1_96 = arith.constant 1 : index
    %c0_97 = arith.constant 0 : index
    %c0_98 = arith.constant 0 : index
    %249 = vector.load %arg7[%c1_96, %c0_97, %c0_98] : memref<2x1x32xf32, #tpu.memory_space<vmem>>, vector<1x1x32xf32>
    %250 = vector.shape_cast %249 : vector<1x1x32xf32> to vector<1x32xf32>
    %251 = vector.extract_strided_slice %67 {offsets = [0, 0], sizes = [16, 32], strides = [1, 1]} : vector<32x32xf32> to vector<16x32xf32>
    %252 = vector.extract_strided_slice %65 {offsets = [0, 0], sizes = [8, 32], strides = [1, 1]} : vector<16x32xf32> to vector<8x32xf32>
    %253 = vector.extract_strided_slice %66 {offsets = [0, 0], sizes = [8, 32], strides = [1, 1]} : vector<16x32xf32> to vector<8x32xf32>
    %cst_99 = arith.constant 0.000000e+00 : f32
    %254 = vector.broadcast %cst_99 : f32 to vector<16x32xf32>
    %255 = vector.extract_strided_slice %251 {offsets = [0, 0], sizes = [16, 8], strides = [1, 1]} : vector<16x32xf32> to vector<16x8xf32>
    %256 = vector.extract_strided_slice %252 {offsets = [0, 0], sizes = [8, 8], strides = [1, 1]} : vector<8x32xf32> to vector<8x8xf32>
    %257 = vector.extract_strided_slice %253 {offsets = [0, 0], sizes = [8, 8], strides = [1, 1]} : vector<8x32xf32> to vector<8x8xf32>
    %cst_100 = arith.constant dense<0.000000e+00> : vector<16x8xf32>
    %258 = tpu.matmul %255, %256, %cst_100 {dimension_numbers = #tpu.dot_dimension_numbers<[1], [1], [0], [0], [0, 0, 1, 0], [], []>} : vector<16x8xf32>, vector<8x8xf32>, vector<16x8xf32> -> vector<16x8xf32>
    %cst_101 = arith.constant 0.353553385 : f32
    %259 = vector.broadcast %cst_101 : f32 to vector<16x8xf32>
    %260 = arith.mulf %258, %259 : vector<16x8xf32>
    %cst_102 = arith.constant dense<0xFF800000> : vector<16xf32>
    %261 = vector.multi_reduction <maximumf>, %260, %cst_102 [1] : vector<16x8xf32> to vector<16xf32>
    %262 = vector.shape_cast %261 : vector<16xf32> to vector<16x1xf32>
    %263 = vector.broadcast %262 : vector<16x1xf32> to vector<16x8xf32>
    %264 = arith.subf %260, %263 : vector<16x8xf32>
    %265 = math.exp %264 : vector<16x8xf32>
    %cst_103 = arith.constant dense<0.000000e+00> : vector<16xf32>
    %266 = vector.multi_reduction <add>, %265, %cst_103 [1] : vector<16x8xf32> to vector<16xf32>
    %267 = vector.shape_cast %266 : vector<16xf32> to vector<16x1xf32>
    %268 = tpu.reciprocal %267 {approx = true} : vector<16x1xf32> -> vector<16x1xf32>
    %269 = vector.broadcast %268 : vector<16x1xf32> to vector<16x8xf32>
    %270 = arith.mulf %265, %269 : vector<16x8xf32>
    %cst_104 = arith.constant dense<0.000000e+00> : vector<16x8xf32>
    %271 = tpu.matmul %270, %257, %cst_104 {dimension_numbers = #tpu.dot_dimension_numbers<[1], [0], [0], [1], [0, 0, 1, 1], [], []>} : vector<16x8xf32>, vector<8x8xf32>, vector<16x8xf32> -> vector<16x8xf32>
    %272 = vector.extract_strided_slice %248 {offsets = [0, 0], sizes = [8, 32], strides = [1, 1]} : vector<32x32xf32> to vector<8x32xf32>
    %cst_105 = arith.constant dense<0.000000e+00> : vector<16x32xf32>
    %273 = tpu.matmul %271, %272, %cst_105 {dimension_numbers = #tpu.dot_dimension_numbers<[1], [0], [0], [1], [0, 0, 1, 1], [], []>} : vector<16x8xf32>, vector<8x32xf32>, vector<16x32xf32> -> vector<16x32xf32>
    %274 = arith.addf %254, %273 : vector<16x32xf32>
    %275 = vector.extract_strided_slice %251 {offsets = [0, 8], sizes = [16, 8], strides = [1, 1]} : vector<16x32xf32> to vector<16x8xf32>
    %276 = vector.extract_strided_slice %252 {offsets = [0, 8], sizes = [8, 8], strides = [1, 1]} : vector<8x32xf32> to vector<8x8xf32>
    %277 = vector.extract_strided_slice %253 {offsets = [0, 8], sizes = [8, 8], strides = [1, 1]} : vector<8x32xf32> to vector<8x8xf32>
    %cst_106 = arith.constant dense<0.000000e+00> : vector<16x8xf32>
    %278 = tpu.matmul %275, %276, %cst_106 {dimension_numbers = #tpu.dot_dimension_numbers<[1], [1], [0], [0], [0, 0, 1, 0], [], []>} : vector<16x8xf32>, vector<8x8xf32>, vector<16x8xf32> -> vector<16x8xf32>
    %cst_107 = arith.constant 0.353553385 : f32
    %279 = vector.broadcast %cst_107 : f32 to vector<16x8xf32>
    %280 = arith.mulf %278, %279 : vector<16x8xf32>
    %cst_108 = arith.constant dense<0xFF800000> : vector<16xf32>
    %281 = vector.multi_reduction <maximumf>, %280, %cst_108 [1] : vector<16x8xf32> to vector<16xf32>
    %282 = vector.shape_cast %281 : vector<16xf32> to vector<16x1xf32>
    %283 = vector.broadcast %282 : vector<16x1xf32> to vector<16x8xf32>
    %284 = arith.subf %280, %283 : vector<16x8xf32>
    %285 = math.exp %284 : vector<16x8xf32>
    %cst_109 = arith.constant dense<0.000000e+00> : vector<16xf32>
    %286 = vector.multi_reduction <add>, %285, %cst_109 [1] : vector<16x8xf32> to vector<16xf32>
    %287 = vector.shape_cast %286 : vector<16xf32> to vector<16x1xf32>
    %288 = tpu.reciprocal %287 {approx = true} : vector<16x1xf32> -> vector<16x1xf32>
    %289 = vector.broadcast %288 : vector<16x1xf32> to vector<16x8xf32>
    %290 = arith.mulf %285, %289 : vector<16x8xf32>
    %cst_110 = arith.constant dense<0.000000e+00> : vector<16x8xf32>
    %291 = tpu.matmul %290, %277, %cst_110 {dimension_numbers = #tpu.dot_dimension_numbers<[1], [0], [0], [1], [0, 0, 1, 1], [], []>} : vector<16x8xf32>, vector<8x8xf32>, vector<16x8xf32> -> vector<16x8xf32>
    %292 = vector.extract_strided_slice %248 {offsets = [8, 0], sizes = [8, 32], strides = [1, 1]} : vector<32x32xf32> to vector<8x32xf32>
    %cst_111 = arith.constant dense<0.000000e+00> : vector<16x32xf32>
    %293 = tpu.matmul %291, %292, %cst_111 {dimension_numbers = #tpu.dot_dimension_numbers<[1], [0], [0], [1], [0, 0, 1, 1], [], []>} : vector<16x8xf32>, vector<8x32xf32>, vector<16x32xf32> -> vector<16x32xf32>
    %294 = arith.addf %274, %293 : vector<16x32xf32>
    %295 = vector.extract_strided_slice %251 {offsets = [0, 16], sizes = [16, 8], strides = [1, 1]} : vector<16x32xf32> to vector<16x8xf32>
    %296 = vector.extract_strided_slice %252 {offsets = [0, 16], sizes = [8, 8], strides = [1, 1]} : vector<8x32xf32> to vector<8x8xf32>
    %297 = vector.extract_strided_slice %253 {offsets = [0, 16], sizes = [8, 8], strides = [1, 1]} : vector<8x32xf32> to vector<8x8xf32>
    %cst_112 = arith.constant dense<0.000000e+00> : vector<16x8xf32>
    %298 = tpu.matmul %295, %296, %cst_112 {dimension_numbers = #tpu.dot_dimension_numbers<[1], [1], [0], [0], [0, 0, 1, 0], [], []>} : vector<16x8xf32>, vector<8x8xf32>, vector<16x8xf32> -> vector<16x8xf32>
    %cst_113 = arith.constant 0.353553385 : f32
    %299 = vector.broadcast %cst_113 : f32 to vector<16x8xf32>
    %300 = arith.mulf %298, %299 : vector<16x8xf32>
    %cst_114 = arith.constant dense<0xFF800000> : vector<16xf32>
    %301 = vector.multi_reduction <maximumf>, %300, %cst_114 [1] : vector<16x8xf32> to vector<16xf32>
    %302 = vector.shape_cast %301 : vector<16xf32> to vector<16x1xf32>
    %303 = vector.broadcast %302 : vector<16x1xf32> to vector<16x8xf32>
    %304 = arith.subf %300, %303 : vector<16x8xf32>
    %305 = math.exp %304 : vector<16x8xf32>
    %cst_115 = arith.constant dense<0.000000e+00> : vector<16xf32>
    %306 = vector.multi_reduction <add>, %305, %cst_115 [1] : vector<16x8xf32> to vector<16xf32>
    %307 = vector.shape_cast %306 : vector<16xf32> to vector<16x1xf32>
    %308 = tpu.reciprocal %307 {approx = true} : vector<16x1xf32> -> vector<16x1xf32>
    %309 = vector.broadcast %308 : vector<16x1xf32> to vector<16x8xf32>
    %310 = arith.mulf %305, %309 : vector<16x8xf32>
    %cst_116 = arith.constant dense<0.000000e+00> : vector<16x8xf32>
    %311 = tpu.matmul %310, %297, %cst_116 {dimension_numbers = #tpu.dot_dimension_numbers<[1], [0], [0], [1], [0, 0, 1, 1], [], []>} : vector<16x8xf32>, vector<8x8xf32>, vector<16x8xf32> -> vector<16x8xf32>
    %312 = vector.extract_strided_slice %248 {offsets = [16, 0], sizes = [8, 32], strides = [1, 1]} : vector<32x32xf32> to vector<8x32xf32>
    %cst_117 = arith.constant dense<0.000000e+00> : vector<16x32xf32>
    %313 = tpu.matmul %311, %312, %cst_117 {dimension_numbers = #tpu.dot_dimension_numbers<[1], [0], [0], [1], [0, 0, 1, 1], [], []>} : vector<16x8xf32>, vector<8x32xf32>, vector<16x32xf32> -> vector<16x32xf32>
    %314 = arith.addf %294, %313 : vector<16x32xf32>
    %315 = vector.extract_strided_slice %251 {offsets = [0, 24], sizes = [16, 8], strides = [1, 1]} : vector<16x32xf32> to vector<16x8xf32>
    %316 = vector.extract_strided_slice %252 {offsets = [0, 24], sizes = [8, 8], strides = [1, 1]} : vector<8x32xf32> to vector<8x8xf32>
    %317 = vector.extract_strided_slice %253 {offsets = [0, 24], sizes = [8, 8], strides = [1, 1]} : vector<8x32xf32> to vector<8x8xf32>
    %cst_118 = arith.constant dense<0.000000e+00> : vector<16x8xf32>
    %318 = tpu.matmul %315, %316, %cst_118 {dimension_numbers = #tpu.dot_dimension_numbers<[1], [1], [0], [0], [0, 0, 1, 0], [], []>} : vector<16x8xf32>, vector<8x8xf32>, vector<16x8xf32> -> vector<16x8xf32>
    %cst_119 = arith.constant 0.353553385 : f32
    %319 = vector.broadcast %cst_119 : f32 to vector<16x8xf32>
    %320 = arith.mulf %318, %319 : vector<16x8xf32>
    %cst_120 = arith.constant dense<0xFF800000> : vector<16xf32>
    %321 = vector.multi_reduction <maximumf>, %320, %cst_120 [1] : vector<16x8xf32> to vector<16xf32>
    %322 = vector.shape_cast %321 : vector<16xf32> to vector<16x1xf32>
    %323 = vector.broadcast %322 : vector<16x1xf32> to vector<16x8xf32>
    %324 = arith.subf %320, %323 : vector<16x8xf32>
    %325 = math.exp %324 : vector<16x8xf32>
    %cst_121 = arith.constant dense<0.000000e+00> : vector<16xf32>
    %326 = vector.multi_reduction <add>, %325, %cst_121 [1] : vector<16x8xf32> to vector<16xf32>
    %327 = vector.shape_cast %326 : vector<16xf32> to vector<16x1xf32>
    %328 = tpu.reciprocal %327 {approx = true} : vector<16x1xf32> -> vector<16x1xf32>
    %329 = vector.broadcast %328 : vector<16x1xf32> to vector<16x8xf32>
    %330 = arith.mulf %325, %329 : vector<16x8xf32>
    %cst_122 = arith.constant dense<0.000000e+00> : vector<16x8xf32>
    %331 = tpu.matmul %330, %317, %cst_122 {dimension_numbers = #tpu.dot_dimension_numbers<[1], [0], [0], [1], [0, 0, 1, 1], [], []>} : vector<16x8xf32>, vector<8x8xf32>, vector<16x8xf32> -> vector<16x8xf32>
    %332 = vector.extract_strided_slice %248 {offsets = [24, 0], sizes = [8, 32], strides = [1, 1]} : vector<32x32xf32> to vector<8x32xf32>
    %cst_123 = arith.constant dense<0.000000e+00> : vector<16x32xf32>
    %333 = tpu.matmul %331, %332, %cst_123 {dimension_numbers = #tpu.dot_dimension_numbers<[1], [0], [0], [1], [0, 0, 1, 1], [], []>} : vector<16x8xf32>, vector<8x32xf32>, vector<16x32xf32> -> vector<16x32xf32>
    %334 = arith.addf %314, %333 : vector<16x32xf32>
    %335 = vector.broadcast %250 : vector<1x32xf32> to vector<16x32xf32>
    %336 = arith.addf %334, %335 : vector<16x32xf32>
    %337 = vector.extract_strided_slice %67 {offsets = [16, 0], sizes = [16, 32], strides = [1, 1]} : vector<32x32xf32> to vector<16x32xf32>
    %338 = vector.extract_strided_slice %65 {offsets = [8, 0], sizes = [8, 32], strides = [1, 1]} : vector<16x32xf32> to vector<8x32xf32>
    %339 = vector.extract_strided_slice %66 {offsets = [8, 0], sizes = [8, 32], strides = [1, 1]} : vector<16x32xf32> to vector<8x32xf32>
    %cst_124 = arith.constant 0.000000e+00 : f32
    %340 = vector.broadcast %cst_124 : f32 to vector<16x32xf32>
    %341 = vector.extract_strided_slice %337 {offsets = [0, 0], sizes = [16, 8], strides = [1, 1]} : vector<16x32xf32> to vector<16x8xf32>
    %342 = vector.extract_strided_slice %338 {offsets = [0, 0], sizes = [8, 8], strides = [1, 1]} : vector<8x32xf32> to vector<8x8xf32>
    %343 = vector.extract_strided_slice %339 {offsets = [0, 0], sizes = [8, 8], strides = [1, 1]} : vector<8x32xf32> to vector<8x8xf32>
    %cst_125 = arith.constant dense<0.000000e+00> : vector<16x8xf32>
    %344 = tpu.matmul %341, %342, %cst_125 {dimension_numbers = #tpu.dot_dimension_numbers<[1], [1], [0], [0], [0, 0, 1, 0], [], []>} : vector<16x8xf32>, vector<8x8xf32>, vector<16x8xf32> -> vector<16x8xf32>
    %cst_126 = arith.constant 0.353553385 : f32
    %345 = vector.broadcast %cst_126 : f32 to vector<16x8xf32>
    %346 = arith.mulf %344, %345 : vector<16x8xf32>
    %cst_127 = arith.constant dense<0xFF800000> : vector<16xf32>
    %347 = vector.multi_reduction <maximumf>, %346, %cst_127 [1] : vector<16x8xf32> to vector<16xf32>
    %348 = vector.shape_cast %347 : vector<16xf32> to vector<16x1xf32>
    %349 = vector.broadcast %348 : vector<16x1xf32> to vector<16x8xf32>
    %350 = arith.subf %346, %349 : vector<16x8xf32>
    %351 = math.exp %350 : vector<16x8xf32>
    %cst_128 = arith.constant dense<0.000000e+00> : vector<16xf32>
    %352 = vector.multi_reduction <add>, %351, %cst_128 [1] : vector<16x8xf32> to vector<16xf32>
    %353 = vector.shape_cast %352 : vector<16xf32> to vector<16x1xf32>
    %354 = tpu.reciprocal %353 {approx = true} : vector<16x1xf32> -> vector<16x1xf32>
    %355 = vector.broadcast %354 : vector<16x1xf32> to vector<16x8xf32>
    %356 = arith.mulf %351, %355 : vector<16x8xf32>
    %cst_129 = arith.constant dense<0.000000e+00> : vector<16x8xf32>
    %357 = tpu.matmul %356, %343, %cst_129 {dimension_numbers = #tpu.dot_dimension_numbers<[1], [0], [0], [1], [0, 0, 1, 1], [], []>} : vector<16x8xf32>, vector<8x8xf32>, vector<16x8xf32> -> vector<16x8xf32>
    %358 = vector.extract_strided_slice %248 {offsets = [0, 0], sizes = [8, 32], strides = [1, 1]} : vector<32x32xf32> to vector<8x32xf32>
    %cst_130 = arith.constant dense<0.000000e+00> : vector<16x32xf32>
    %359 = tpu.matmul %357, %358, %cst_130 {dimension_numbers = #tpu.dot_dimension_numbers<[1], [0], [0], [1], [0, 0, 1, 1], [], []>} : vector<16x8xf32>, vector<8x32xf32>, vector<16x32xf32> -> vector<16x32xf32>
    %360 = arith.addf %340, %359 : vector<16x32xf32>
    %361 = vector.extract_strided_slice %337 {offsets = [0, 8], sizes = [16, 8], strides = [1, 1]} : vector<16x32xf32> to vector<16x8xf32>
    %362 = vector.extract_strided_slice %338 {offsets = [0, 8], sizes = [8, 8], strides = [1, 1]} : vector<8x32xf32> to vector<8x8xf32>
    %363 = vector.extract_strided_slice %339 {offsets = [0, 8], sizes = [8, 8], strides = [1, 1]} : vector<8x32xf32> to vector<8x8xf32>
    %cst_131 = arith.constant dense<0.000000e+00> : vector<16x8xf32>
    %364 = tpu.matmul %361, %362, %cst_131 {dimension_numbers = #tpu.dot_dimension_numbers<[1], [1], [0], [0], [0, 0, 1, 0], [], []>} : vector<16x8xf32>, vector<8x8xf32>, vector<16x8xf32> -> vector<16x8xf32>
    %cst_132 = arith.constant 0.353553385 : f32
    %365 = vector.broadcast %cst_132 : f32 to vector<16x8xf32>
    %366 = arith.mulf %364, %365 : vector<16x8xf32>
    %cst_133 = arith.constant dense<0xFF800000> : vector<16xf32>
    %367 = vector.multi_reduction <maximumf>, %366, %cst_133 [1] : vector<16x8xf32> to vector<16xf32>
    %368 = vector.shape_cast %367 : vector<16xf32> to vector<16x1xf32>
    %369 = vector.broadcast %368 : vector<16x1xf32> to vector<16x8xf32>
    %370 = arith.subf %366, %369 : vector<16x8xf32>
    %371 = math.exp %370 : vector<16x8xf32>
    %cst_134 = arith.constant dense<0.000000e+00> : vector<16xf32>
    %372 = vector.multi_reduction <add>, %371, %cst_134 [1] : vector<16x8xf32> to vector<16xf32>
    %373 = vector.shape_cast %372 : vector<16xf32> to vector<16x1xf32>
    %374 = tpu.reciprocal %373 {approx = true} : vector<16x1xf32> -> vector<16x1xf32>
    %375 = vector.broadcast %374 : vector<16x1xf32> to vector<16x8xf32>
    %376 = arith.mulf %371, %375 : vector<16x8xf32>
    %cst_135 = arith.constant dense<0.000000e+00> : vector<16x8xf32>
    %377 = tpu.matmul %376, %363, %cst_135 {dimension_numbers = #tpu.dot_dimension_numbers<[1], [0], [0], [1], [0, 0, 1, 1], [], []>} : vector<16x8xf32>, vector<8x8xf32>, vector<16x8xf32> -> vector<16x8xf32>
    %378 = vector.extract_strided_slice %248 {offsets = [8, 0], sizes = [8, 32], strides = [1, 1]} : vector<32x32xf32> to vector<8x32xf32>
    %cst_136 = arith.constant dense<0.000000e+00> : vector<16x32xf32>
    %379 = tpu.matmul %377, %378, %cst_136 {dimension_numbers = #tpu.dot_dimension_numbers<[1], [0], [0], [1], [0, 0, 1, 1], [], []>} : vector<16x8xf32>, vector<8x32xf32>, vector<16x32xf32> -> vector<16x32xf32>
    %380 = arith.addf %360, %379 : vector<16x32xf32>
    %381 = vector.extract_strided_slice %337 {offsets = [0, 16], sizes = [16, 8], strides = [1, 1]} : vector<16x32xf32> to vector<16x8xf32>
    %382 = vector.extract_strided_slice %338 {offsets = [0, 16], sizes = [8, 8], strides = [1, 1]} : vector<8x32xf32> to vector<8x8xf32>
    %383 = vector.extract_strided_slice %339 {offsets = [0, 16], sizes = [8, 8], strides = [1, 1]} : vector<8x32xf32> to vector<8x8xf32>
    %cst_137 = arith.constant dense<0.000000e+00> : vector<16x8xf32>
    %384 = tpu.matmul %381, %382, %cst_137 {dimension_numbers = #tpu.dot_dimension_numbers<[1], [1], [0], [0], [0, 0, 1, 0], [], []>} : vector<16x8xf32>, vector<8x8xf32>, vector<16x8xf32> -> vector<16x8xf32>
    %cst_138 = arith.constant 0.353553385 : f32
    %385 = vector.broadcast %cst_138 : f32 to vector<16x8xf32>
    %386 = arith.mulf %384, %385 : vector<16x8xf32>
    %cst_139 = arith.constant dense<0xFF800000> : vector<16xf32>
    %387 = vector.multi_reduction <maximumf>, %386, %cst_139 [1] : vector<16x8xf32> to vector<16xf32>
    %388 = vector.shape_cast %387 : vector<16xf32> to vector<16x1xf32>
    %389 = vector.broadcast %388 : vector<16x1xf32> to vector<16x8xf32>
    %390 = arith.subf %386, %389 : vector<16x8xf32>
    %391 = math.exp %390 : vector<16x8xf32>
    %cst_140 = arith.constant dense<0.000000e+00> : vector<16xf32>
    %392 = vector.multi_reduction <add>, %391, %cst_140 [1] : vector<16x8xf32> to vector<16xf32>
    %393 = vector.shape_cast %392 : vector<16xf32> to vector<16x1xf32>
    %394 = tpu.reciprocal %393 {approx = true} : vector<16x1xf32> -> vector<16x1xf32>
    %395 = vector.broadcast %394 : vector<16x1xf32> to vector<16x8xf32>
    %396 = arith.mulf %391, %395 : vector<16x8xf32>
    %cst_141 = arith.constant dense<0.000000e+00> : vector<16x8xf32>
    %397 = tpu.matmul %396, %383, %cst_141 {dimension_numbers = #tpu.dot_dimension_numbers<[1], [0], [0], [1], [0, 0, 1, 1], [], []>} : vector<16x8xf32>, vector<8x8xf32>, vector<16x8xf32> -> vector<16x8xf32>
    %398 = vector.extract_strided_slice %248 {offsets = [16, 0], sizes = [8, 32], strides = [1, 1]} : vector<32x32xf32> to vector<8x32xf32>
    %cst_142 = arith.constant dense<0.000000e+00> : vector<16x32xf32>
    %399 = tpu.matmul %397, %398, %cst_142 {dimension_numbers = #tpu.dot_dimension_numbers<[1], [0], [0], [1], [0, 0, 1, 1], [], []>} : vector<16x8xf32>, vector<8x32xf32>, vector<16x32xf32> -> vector<16x32xf32>
    %400 = arith.addf %380, %399 : vector<16x32xf32>
    %401 = vector.extract_strided_slice %337 {offsets = [0, 24], sizes = [16, 8], strides = [1, 1]} : vector<16x32xf32> to vector<16x8xf32>
    %402 = vector.extract_strided_slice %338 {offsets = [0, 24], sizes = [8, 8], strides = [1, 1]} : vector<8x32xf32> to vector<8x8xf32>
    %403 = vector.extract_strided_slice %339 {offsets = [0, 24], sizes = [8, 8], strides = [1, 1]} : vector<8x32xf32> to vector<8x8xf32>
    %cst_143 = arith.constant dense<0.000000e+00> : vector<16x8xf32>
    %404 = tpu.matmul %401, %402, %cst_143 {dimension_numbers = #tpu.dot_dimension_numbers<[1], [1], [0], [0], [0, 0, 1, 0], [], []>} : vector<16x8xf32>, vector<8x8xf32>, vector<16x8xf32> -> vector<16x8xf32>
    %cst_144 = arith.constant 0.353553385 : f32
    %405 = vector.broadcast %cst_144 : f32 to vector<16x8xf32>
    %406 = arith.mulf %404, %405 : vector<16x8xf32>
    %cst_145 = arith.constant dense<0xFF800000> : vector<16xf32>
    %407 = vector.multi_reduction <maximumf>, %406, %cst_145 [1] : vector<16x8xf32> to vector<16xf32>
    %408 = vector.shape_cast %407 : vector<16xf32> to vector<16x1xf32>
    %409 = vector.broadcast %408 : vector<16x1xf32> to vector<16x8xf32>
    %410 = arith.subf %406, %409 : vector<16x8xf32>
    %411 = math.exp %410 : vector<16x8xf32>
    %cst_146 = arith.constant dense<0.000000e+00> : vector<16xf32>
    %412 = vector.multi_reduction <add>, %411, %cst_146 [1] : vector<16x8xf32> to vector<16xf32>
    %413 = vector.shape_cast %412 : vector<16xf32> to vector<16x1xf32>
    %414 = tpu.reciprocal %413 {approx = true} : vector<16x1xf32> -> vector<16x1xf32>
    %415 = vector.broadcast %414 : vector<16x1xf32> to vector<16x8xf32>
    %416 = arith.mulf %411, %415 : vector<16x8xf32>
    %cst_147 = arith.constant dense<0.000000e+00> : vector<16x8xf32>
    %417 = tpu.matmul %416, %403, %cst_147 {dimension_numbers = #tpu.dot_dimension_numbers<[1], [0], [0], [1], [0, 0, 1, 1], [], []>} : vector<16x8xf32>, vector<8x8xf32>, vector<16x8xf32> -> vector<16x8xf32>
    %418 = vector.extract_strided_slice %248 {offsets = [24, 0], sizes = [8, 32], strides = [1, 1]} : vector<32x32xf32> to vector<8x32xf32>
    %cst_148 = arith.constant dense<0.000000e+00> : vector<16x32xf32>
    %419 = tpu.matmul %417, %418, %cst_148 {dimension_numbers = #tpu.dot_dimension_numbers<[1], [0], [0], [1], [0, 0, 1, 1], [], []>} : vector<16x8xf32>, vector<8x32xf32>, vector<16x32xf32> -> vector<16x32xf32>
    %420 = arith.addf %400, %419 : vector<16x32xf32>
    %421 = vector.broadcast %250 : vector<1x32xf32> to vector<16x32xf32>
    %422 = arith.addf %420, %421 : vector<16x32xf32>
    %423 = tpu.concatenate %336, %422 in 0 : vector<16x32xf32>, vector<16x32xf32> -> vector<32x32xf32>
    %424 = arith.addf %0, %246 : vector<16x32xf32>
    %425 = arith.addf %1, %423 : vector<32x32xf32>
    %c2 = arith.constant 2 : index
    %c0_149 = arith.constant 0 : index
    %c0_150 = arith.constant 0 : index
    %426 = vector.load %arg2[%c2, %c0_149, %c0_150] : memref<4x1x32xf32, #tpu.memory_space<vmem>>, vector<1x1x32xf32>
    %427 = vector.shape_cast %426 : vector<1x1x32xf32> to vector<1x32xf32>
    %c2_151 = arith.constant 2 : index
    %c0_152 = arith.constant 0 : index
    %c0_153 = arith.constant 0 : index
    %428 = vector.load %arg3[%c2_151, %c0_152, %c0_153] : memref<4x1x32xf32, #tpu.memory_space<vmem>>, vector<1x1x32xf32>
    %429 = vector.shape_cast %428 : vector<1x1x32xf32> to vector<1x32xf32>
    %c0_154 = arith.constant 0 : index
    %c0_155 = arith.constant 0 : index
    %c0_156 = arith.constant 0 : index
    %430 = vector.load %arg8[%c0_154, %c0_155, %c0_156] : memref<2x32x64xf32, #tpu.memory_space<vmem>>, vector<1x32x64xf32>
    %431 = vector.shape_cast %430 : vector<1x32x64xf32> to vector<32x64xf32>
    %c0_157 = arith.constant 0 : index
    %c0_158 = arith.constant 0 : index
    %c0_159 = arith.constant 0 : index
    %432 = vector.load %arg9[%c0_157, %c0_158, %c0_159] : memref<2x1x64xf32, #tpu.memory_space<vmem>>, vector<1x1x64xf32>
    %433 = vector.shape_cast %432 : vector<1x1x64xf32> to vector<1x64xf32>
    %c0_160 = arith.constant 0 : index
    %c0_161 = arith.constant 0 : index
    %c0_162 = arith.constant 0 : index
    %434 = vector.load %arg10[%c0_160, %c0_161, %c0_162] : memref<2x1x64xf32, #tpu.memory_space<vmem>>, vector<1x1x64xf32>
    %435 = vector.shape_cast %434 : vector<1x1x64xf32> to vector<1x64xf32>
    %c0_163 = arith.constant 0 : index
    %c0_164 = arith.constant 0 : index
    %c0_165 = arith.constant 0 : index
    %436 = vector.load %arg11[%c0_163, %c0_164, %c0_165] : memref<2x1x64xf32, #tpu.memory_space<vmem>>, vector<1x1x64xf32>
    %437 = vector.shape_cast %436 : vector<1x1x64xf32> to vector<1x64xf32>
    %c0_166 = arith.constant 0 : index
    %c0_167 = arith.constant 0 : index
    %c0_168 = arith.constant 0 : index
    %438 = vector.load %arg12[%c0_166, %c0_167, %c0_168] : memref<2x64x32xf32, #tpu.memory_space<vmem>>, vector<1x64x32xf32>
    %439 = vector.shape_cast %438 : vector<1x64x32xf32> to vector<64x32xf32>
    %c0_169 = arith.constant 0 : index
    %c0_170 = arith.constant 0 : index
    %c0_171 = arith.constant 0 : index
    %440 = vector.load %arg13[%c0_169, %c0_170, %c0_171] : memref<2x1x32xf32, #tpu.memory_space<vmem>>, vector<1x1x32xf32>
    %441 = vector.shape_cast %440 : vector<1x1x32xf32> to vector<1x32xf32>
    %cst_172 = arith.constant dense<0.000000e+00> : vector<16xf32>
    %442 = vector.multi_reduction <add>, %424, %cst_172 [1] : vector<16x32xf32> to vector<16xf32>
    %443 = vector.shape_cast %442 : vector<16xf32> to vector<16x1xf32>
    %cst_173 = arith.constant 3.200000e+01 : f32
    %444 = vector.broadcast %cst_173 : f32 to vector<16x1xf32>
    %445 = arith.divf %443, %444 : vector<16x1xf32>
    %446 = vector.broadcast %445 : vector<16x1xf32> to vector<16x32xf32>
    %447 = arith.subf %424, %446 : vector<16x32xf32>
    %448 = arith.mulf %447, %447 : vector<16x32xf32>
    %cst_174 = arith.constant dense<0.000000e+00> : vector<16xf32>
    %449 = vector.multi_reduction <add>, %448, %cst_174 [1] : vector<16x32xf32> to vector<16xf32>
    %450 = vector.shape_cast %449 : vector<16xf32> to vector<16x1xf32>
    %cst_175 = arith.constant 3.200000e+01 : f32
    %451 = vector.broadcast %cst_175 : f32 to vector<16x1xf32>
    %452 = arith.divf %450, %451 : vector<16x1xf32>
    %cst_176 = arith.constant 9.99999974E-6 : f32
    %453 = vector.broadcast %cst_176 : f32 to vector<16x1xf32>
    %454 = arith.addf %452, %453 : vector<16x1xf32>
    %455 = math.rsqrt %454 : vector<16x1xf32>
    %456 = vector.broadcast %455 : vector<16x1xf32> to vector<16x32xf32>
    %457 = arith.mulf %447, %456 : vector<16x32xf32>
    %458 = vector.broadcast %427 : vector<1x32xf32> to vector<16x32xf32>
    %459 = arith.mulf %457, %458 : vector<16x32xf32>
    %460 = vector.broadcast %429 : vector<1x32xf32> to vector<16x32xf32>
    %461 = arith.addf %459, %460 : vector<16x32xf32>
    %cst_177 = arith.constant dense<0.000000e+00> : vector<16x64xf32>
    %462 = tpu.matmul %461, %431, %cst_177 {dimension_numbers = #tpu.dot_dimension_numbers<[1], [0], [0], [1], [0, 0, 1, 1], [], []>} : vector<16x32xf32>, vector<32x64xf32>, vector<16x64xf32> -> vector<16x64xf32>
    %463 = vector.broadcast %433 : vector<1x64xf32> to vector<16x64xf32>
    %464 = arith.addf %462, %463 : vector<16x64xf32>
    %cst_178 = arith.constant 5.000000e-01 : f32
    %465 = vector.broadcast %cst_178 : f32 to vector<16x64xf32>
    %466 = arith.mulf %465, %464 : vector<16x64xf32>
    %cst_179 = arith.constant 0.707106769 : f32
    %467 = vector.broadcast %cst_179 : f32 to vector<16x64xf32>
    %468 = arith.mulf %464, %467 : vector<16x64xf32>
    %469 = math.absf %468 : vector<16x64xf32>
    %cst_180 = arith.constant 0.327591091 : f32
    %470 = vector.broadcast %cst_180 : f32 to vector<16x64xf32>
    %471 = arith.mulf %470, %469 : vector<16x64xf32>
    %cst_181 = arith.constant 1.000000e+00 : f32
    %472 = vector.broadcast %cst_181 : f32 to vector<16x64xf32>
    %473 = arith.addf %472, %471 : vector<16x64xf32>
    %cst_182 = arith.constant 1.000000e+00 : f32
    %474 = vector.broadcast %cst_182 : f32 to vector<16x64xf32>
    %475 = arith.divf %474, %473 : vector<16x64xf32>
    %cst_183 = arith.constant 1.06140542 : f32
    %476 = vector.broadcast %cst_183 : f32 to vector<16x64xf32>
    %477 = arith.mulf %476, %475 : vector<16x64xf32>
    %cst_184 = arith.constant -1.45315206 : f32
    %478 = vector.broadcast %cst_184 : f32 to vector<16x64xf32>
    %479 = arith.addf %477, %478 : vector<16x64xf32>
    %480 = arith.mulf %479, %475 : vector<16x64xf32>
    %cst_185 = arith.constant 1.42141378 : f32
    %481 = vector.broadcast %cst_185 : f32 to vector<16x64xf32>
    %482 = arith.addf %480, %481 : vector<16x64xf32>
    %483 = arith.mulf %482, %475 : vector<16x64xf32>
    %cst_186 = arith.constant -0.284496725 : f32
    %484 = vector.broadcast %cst_186 : f32 to vector<16x64xf32>
    %485 = arith.addf %483, %484 : vector<16x64xf32>
    %486 = arith.mulf %485, %475 : vector<16x64xf32>
    %cst_187 = arith.constant 0.254829586 : f32
    %487 = vector.broadcast %cst_187 : f32 to vector<16x64xf32>
    %488 = arith.addf %486, %487 : vector<16x64xf32>
    %489 = arith.mulf %488, %475 : vector<16x64xf32>
    %cst_188 = arith.constant 0.000000e+00 : f32
    %490 = vector.broadcast %cst_188 : f32 to vector<16x64xf32>
    %491 = arith.subf %490, %469 : vector<16x64xf32>
    %492 = arith.mulf %491, %469 : vector<16x64xf32>
    %493 = math.exp %492 : vector<16x64xf32>
    %494 = arith.mulf %489, %493 : vector<16x64xf32>
    %cst_189 = arith.constant 1.000000e+00 : f32
    %495 = vector.broadcast %cst_189 : f32 to vector<16x64xf32>
    %496 = arith.subf %495, %494 : vector<16x64xf32>
    %cst_190 = arith.constant 0.000000e+00 : f32
    %497 = vector.broadcast %cst_190 : f32 to vector<16x64xf32>
    %498 = arith.cmpf oge, %468, %497 : vector<16x64xf32>
    %cst_191 = arith.constant 0.000000e+00 : f32
    %499 = vector.broadcast %cst_191 : f32 to vector<16x64xf32>
    %500 = arith.subf %499, %496 : vector<16x64xf32>
    %501 = arith.select %498, %496, %500 : vector<16x64xi1>, vector<16x64xf32>
    %cst_192 = arith.constant 1.000000e+00 : f32
    %502 = vector.broadcast %cst_192 : f32 to vector<16x64xf32>
    %503 = arith.addf %502, %501 : vector<16x64xf32>
    %504 = arith.mulf %466, %503 : vector<16x64xf32>
    %cst_193 = arith.constant dense<0.000000e+00> : vector<16xf32>
    %505 = vector.multi_reduction <add>, %504, %cst_193 [1] : vector<16x64xf32> to vector<16xf32>
    %506 = vector.shape_cast %505 : vector<16xf32> to vector<16x1xf32>
    %cst_194 = arith.constant 6.400000e+01 : f32
    %507 = vector.broadcast %cst_194 : f32 to vector<16x1xf32>
    %508 = arith.divf %506, %507 : vector<16x1xf32>
    %509 = vector.broadcast %508 : vector<16x1xf32> to vector<16x64xf32>
    %510 = arith.subf %504, %509 : vector<16x64xf32>
    %511 = arith.mulf %510, %510 : vector<16x64xf32>
    %cst_195 = arith.constant dense<0.000000e+00> : vector<16xf32>
    %512 = vector.multi_reduction <add>, %511, %cst_195 [1] : vector<16x64xf32> to vector<16xf32>
    %513 = vector.shape_cast %512 : vector<16xf32> to vector<16x1xf32>
    %cst_196 = arith.constant 6.400000e+01 : f32
    %514 = vector.broadcast %cst_196 : f32 to vector<16x1xf32>
    %515 = arith.divf %513, %514 : vector<16x1xf32>
    %cst_197 = arith.constant 9.99999974E-6 : f32
    %516 = vector.broadcast %cst_197 : f32 to vector<16x1xf32>
    %517 = arith.addf %515, %516 : vector<16x1xf32>
    %518 = math.rsqrt %517 : vector<16x1xf32>
    %519 = vector.broadcast %518 : vector<16x1xf32> to vector<16x64xf32>
    %520 = arith.mulf %510, %519 : vector<16x64xf32>
    %521 = vector.broadcast %435 : vector<1x64xf32> to vector<16x64xf32>
    %522 = arith.mulf %520, %521 : vector<16x64xf32>
    %523 = vector.broadcast %437 : vector<1x64xf32> to vector<16x64xf32>
    %524 = arith.addf %522, %523 : vector<16x64xf32>
    %cst_198 = arith.constant dense<0.000000e+00> : vector<16x32xf32>
    %525 = tpu.matmul %524, %439, %cst_198 {dimension_numbers = #tpu.dot_dimension_numbers<[1], [0], [0], [1], [0, 0, 1, 1], [], []>} : vector<16x64xf32>, vector<64x32xf32>, vector<16x32xf32> -> vector<16x32xf32>
    %526 = vector.broadcast %441 : vector<1x32xf32> to vector<16x32xf32>
    %527 = arith.addf %525, %526 : vector<16x32xf32>
    %c3 = arith.constant 3 : index
    %c0_199 = arith.constant 0 : index
    %c0_200 = arith.constant 0 : index
    %528 = vector.load %arg2[%c3, %c0_199, %c0_200] : memref<4x1x32xf32, #tpu.memory_space<vmem>>, vector<1x1x32xf32>
    %529 = vector.shape_cast %528 : vector<1x1x32xf32> to vector<1x32xf32>
    %c3_201 = arith.constant 3 : index
    %c0_202 = arith.constant 0 : index
    %c0_203 = arith.constant 0 : index
    %530 = vector.load %arg3[%c3_201, %c0_202, %c0_203] : memref<4x1x32xf32, #tpu.memory_space<vmem>>, vector<1x1x32xf32>
    %531 = vector.shape_cast %530 : vector<1x1x32xf32> to vector<1x32xf32>
    %c1_204 = arith.constant 1 : index
    %c0_205 = arith.constant 0 : index
    %c0_206 = arith.constant 0 : index
    %532 = vector.load %arg8[%c1_204, %c0_205, %c0_206] : memref<2x32x64xf32, #tpu.memory_space<vmem>>, vector<1x32x64xf32>
    %533 = vector.shape_cast %532 : vector<1x32x64xf32> to vector<32x64xf32>
    %c1_207 = arith.constant 1 : index
    %c0_208 = arith.constant 0 : index
    %c0_209 = arith.constant 0 : index
    %534 = vector.load %arg9[%c1_207, %c0_208, %c0_209] : memref<2x1x64xf32, #tpu.memory_space<vmem>>, vector<1x1x64xf32>
    %535 = vector.shape_cast %534 : vector<1x1x64xf32> to vector<1x64xf32>
    %c1_210 = arith.constant 1 : index
    %c0_211 = arith.constant 0 : index
    %c0_212 = arith.constant 0 : index
    %536 = vector.load %arg10[%c1_210, %c0_211, %c0_212] : memref<2x1x64xf32, #tpu.memory_space<vmem>>, vector<1x1x64xf32>
    %537 = vector.shape_cast %536 : vector<1x1x64xf32> to vector<1x64xf32>
    %c1_213 = arith.constant 1 : index
    %c0_214 = arith.constant 0 : index
    %c0_215 = arith.constant 0 : index
    %538 = vector.load %arg11[%c1_213, %c0_214, %c0_215] : memref<2x1x64xf32, #tpu.memory_space<vmem>>, vector<1x1x64xf32>
    %539 = vector.shape_cast %538 : vector<1x1x64xf32> to vector<1x64xf32>
    %c1_216 = arith.constant 1 : index
    %c0_217 = arith.constant 0 : index
    %c0_218 = arith.constant 0 : index
    %540 = vector.load %arg12[%c1_216, %c0_217, %c0_218] : memref<2x64x32xf32, #tpu.memory_space<vmem>>, vector<1x64x32xf32>
    %541 = vector.shape_cast %540 : vector<1x64x32xf32> to vector<64x32xf32>
    %c1_219 = arith.constant 1 : index
    %c0_220 = arith.constant 0 : index
    %c0_221 = arith.constant 0 : index
    %542 = vector.load %arg13[%c1_219, %c0_220, %c0_221] : memref<2x1x32xf32, #tpu.memory_space<vmem>>, vector<1x1x32xf32>
    %543 = vector.shape_cast %542 : vector<1x1x32xf32> to vector<1x32xf32>
    %cst_222 = arith.constant dense<0.000000e+00> : vector<32xf32>
    %544 = vector.multi_reduction <add>, %425, %cst_222 [1] : vector<32x32xf32> to vector<32xf32>
    %545 = vector.shape_cast %544 : vector<32xf32> to vector<32x1xf32>
    %cst_223 = arith.constant 3.200000e+01 : f32
    %546 = vector.broadcast %cst_223 : f32 to vector<32x1xf32>
    %547 = arith.divf %545, %546 : vector<32x1xf32>
    %548 = vector.broadcast %547 : vector<32x1xf32> to vector<32x32xf32>
    %549 = arith.subf %425, %548 : vector<32x32xf32>
    %550 = arith.mulf %549, %549 : vector<32x32xf32>
    %cst_224 = arith.constant dense<0.000000e+00> : vector<32xf32>
    %551 = vector.multi_reduction <add>, %550, %cst_224 [1] : vector<32x32xf32> to vector<32xf32>
    %552 = vector.shape_cast %551 : vector<32xf32> to vector<32x1xf32>
    %cst_225 = arith.constant 3.200000e+01 : f32
    %553 = vector.broadcast %cst_225 : f32 to vector<32x1xf32>
    %554 = arith.divf %552, %553 : vector<32x1xf32>
    %cst_226 = arith.constant 9.99999974E-6 : f32
    %555 = vector.broadcast %cst_226 : f32 to vector<32x1xf32>
    %556 = arith.addf %554, %555 : vector<32x1xf32>
    %557 = math.rsqrt %556 : vector<32x1xf32>
    %558 = vector.broadcast %557 : vector<32x1xf32> to vector<32x32xf32>
    %559 = arith.mulf %549, %558 : vector<32x32xf32>
    %560 = vector.broadcast %529 : vector<1x32xf32> to vector<32x32xf32>
    %561 = arith.mulf %559, %560 : vector<32x32xf32>
    %562 = vector.broadcast %531 : vector<1x32xf32> to vector<32x32xf32>
    %563 = arith.addf %561, %562 : vector<32x32xf32>
    %cst_227 = arith.constant dense<0.000000e+00> : vector<32x64xf32>
    %564 = tpu.matmul %563, %533, %cst_227 {dimension_numbers = #tpu.dot_dimension_numbers<[1], [0], [0], [1], [0, 0, 1, 1], [], []>} : vector<32x32xf32>, vector<32x64xf32>, vector<32x64xf32> -> vector<32x64xf32>
    %565 = vector.broadcast %535 : vector<1x64xf32> to vector<32x64xf32>
    %566 = arith.addf %564, %565 : vector<32x64xf32>
    %cst_228 = arith.constant 5.000000e-01 : f32
    %567 = vector.broadcast %cst_228 : f32 to vector<32x64xf32>
    %568 = arith.mulf %567, %566 : vector<32x64xf32>
    %cst_229 = arith.constant 0.707106769 : f32
    %569 = vector.broadcast %cst_229 : f32 to vector<32x64xf32>
    %570 = arith.mulf %566, %569 : vector<32x64xf32>
    %571 = math.absf %570 : vector<32x64xf32>
    %cst_230 = arith.constant 0.327591091 : f32
    %572 = vector.broadcast %cst_230 : f32 to vector<32x64xf32>
    %573 = arith.mulf %572, %571 : vector<32x64xf32>
    %cst_231 = arith.constant 1.000000e+00 : f32
    %574 = vector.broadcast %cst_231 : f32 to vector<32x64xf32>
    %575 = arith.addf %574, %573 : vector<32x64xf32>
    %cst_232 = arith.constant 1.000000e+00 : f32
    %576 = vector.broadcast %cst_232 : f32 to vector<32x64xf32>
    %577 = arith.divf %576, %575 : vector<32x64xf32>
    %cst_233 = arith.constant 1.06140542 : f32
    %578 = vector.broadcast %cst_233 : f32 to vector<32x64xf32>
    %579 = arith.mulf %578, %577 : vector<32x64xf32>
    %cst_234 = arith.constant -1.45315206 : f32
    %580 = vector.broadcast %cst_234 : f32 to vector<32x64xf32>
    %581 = arith.addf %579, %580 : vector<32x64xf32>
    %582 = arith.mulf %581, %577 : vector<32x64xf32>
    %cst_235 = arith.constant 1.42141378 : f32
    %583 = vector.broadcast %cst_235 : f32 to vector<32x64xf32>
    %584 = arith.addf %582, %583 : vector<32x64xf32>
    %585 = arith.mulf %584, %577 : vector<32x64xf32>
    %cst_236 = arith.constant -0.284496725 : f32
    %586 = vector.broadcast %cst_236 : f32 to vector<32x64xf32>
    %587 = arith.addf %585, %586 : vector<32x64xf32>
    %588 = arith.mulf %587, %577 : vector<32x64xf32>
    %cst_237 = arith.constant 0.254829586 : f32
    %589 = vector.broadcast %cst_237 : f32 to vector<32x64xf32>
    %590 = arith.addf %588, %589 : vector<32x64xf32>
    %591 = arith.mulf %590, %577 : vector<32x64xf32>
    %cst_238 = arith.constant 0.000000e+00 : f32
    %592 = vector.broadcast %cst_238 : f32 to vector<32x64xf32>
    %593 = arith.subf %592, %571 : vector<32x64xf32>
    %594 = arith.mulf %593, %571 : vector<32x64xf32>
    %595 = math.exp %594 : vector<32x64xf32>
    %596 = arith.mulf %591, %595 : vector<32x64xf32>
    %cst_239 = arith.constant 1.000000e+00 : f32
    %597 = vector.broadcast %cst_239 : f32 to vector<32x64xf32>
    %598 = arith.subf %597, %596 : vector<32x64xf32>
    %cst_240 = arith.constant 0.000000e+00 : f32
    %599 = vector.broadcast %cst_240 : f32 to vector<32x64xf32>
    %600 = arith.cmpf oge, %570, %599 : vector<32x64xf32>
    %cst_241 = arith.constant 0.000000e+00 : f32
    %601 = vector.broadcast %cst_241 : f32 to vector<32x64xf32>
    %602 = arith.subf %601, %598 : vector<32x64xf32>
    %603 = arith.select %600, %598, %602 : vector<32x64xi1>, vector<32x64xf32>
    %cst_242 = arith.constant 1.000000e+00 : f32
    %604 = vector.broadcast %cst_242 : f32 to vector<32x64xf32>
    %605 = arith.addf %604, %603 : vector<32x64xf32>
    %606 = arith.mulf %568, %605 : vector<32x64xf32>
    %cst_243 = arith.constant dense<0.000000e+00> : vector<32xf32>
    %607 = vector.multi_reduction <add>, %606, %cst_243 [1] : vector<32x64xf32> to vector<32xf32>
    %608 = vector.shape_cast %607 : vector<32xf32> to vector<32x1xf32>
    %cst_244 = arith.constant 6.400000e+01 : f32
    %609 = vector.broadcast %cst_244 : f32 to vector<32x1xf32>
    %610 = arith.divf %608, %609 : vector<32x1xf32>
    %611 = vector.broadcast %610 : vector<32x1xf32> to vector<32x64xf32>
    %612 = arith.subf %606, %611 : vector<32x64xf32>
    %613 = arith.mulf %612, %612 : vector<32x64xf32>
    %cst_245 = arith.constant dense<0.000000e+00> : vector<32xf32>
    %614 = vector.multi_reduction <add>, %613, %cst_245 [1] : vector<32x64xf32> to vector<32xf32>
    %615 = vector.shape_cast %614 : vector<32xf32> to vector<32x1xf32>
    %cst_246 = arith.constant 6.400000e+01 : f32
    %616 = vector.broadcast %cst_246 : f32 to vector<32x1xf32>
    %617 = arith.divf %615, %616 : vector<32x1xf32>
    %cst_247 = arith.constant 9.99999974E-6 : f32
    %618 = vector.broadcast %cst_247 : f32 to vector<32x1xf32>
    %619 = arith.addf %617, %618 : vector<32x1xf32>
    %620 = math.rsqrt %619 : vector<32x1xf32>
    %621 = vector.broadcast %620 : vector<32x1xf32> to vector<32x64xf32>
    %622 = arith.mulf %612, %621 : vector<32x64xf32>
    %623 = vector.broadcast %537 : vector<1x64xf32> to vector<32x64xf32>
    %624 = arith.mulf %622, %623 : vector<32x64xf32>
    %625 = vector.broadcast %539 : vector<1x64xf32> to vector<32x64xf32>
    %626 = arith.addf %624, %625 : vector<32x64xf32>
    %cst_248 = arith.constant dense<0.000000e+00> : vector<32x32xf32>
    %627 = tpu.matmul %626, %541, %cst_248 {dimension_numbers = #tpu.dot_dimension_numbers<[1], [0], [0], [1], [0, 0, 1, 1], [], []>} : vector<32x64xf32>, vector<64x32xf32>, vector<32x32xf32> -> vector<32x32xf32>
    %628 = vector.broadcast %543 : vector<1x32xf32> to vector<32x32xf32>
    %629 = arith.addf %627, %628 : vector<32x32xf32>
    %630 = arith.addf %424, %527 : vector<16x32xf32>
    %c0_249 = arith.constant 0 : index
    %c0_250 = arith.constant 0 : index
    %631 = vector.load %arg14[%c0_249, %c0_250] : memref<16x32xf32, #tpu.memory_space<vmem>>, vector<16x32xf32>
    tpu.vector_store %arg14[%c0_249, %c0_250], %630 {strides = array<i32>} : memref<16x32xf32, #tpu.memory_space<vmem>>, vector<16x32xf32>,
    %632 = arith.addf %425, %629 : vector<32x32xf32>
    %c0_251 = arith.constant 0 : index
    %c0_252 = arith.constant 0 : index
    %633 = vector.load %arg15[%c0_251, %c0_252] : memref<32x32xf32, #tpu.memory_space<vmem>>, vector<32x32xf32>
    tpu.vector_store %arg15[%c0_251, %c0_252], %632 {strides = array<i32>} : memref<32x32xf32, #tpu.memory_space<vmem>>, vector<32x32xf32>,
    return
  }
}

</mosaic_0001>

<llo_original>
// kernel: dualformer_block.1
$region0: #{dualformer_block.1}
  #allocation0 [shape = 'u32[]', space=smem, size = 0x4, offset = 0x4, fixed_abs, tag = 'smem constant byte address 0x4 - core index']
  #allocation1 [shape = 'u32[144,128]{1,0:T(1,128)}', space=vmem, size = 0x12000, scoped, tag = 'internal scratch']
  %s0 = inlined_call_operand.vmem [shape: f32[16,32], index: 0, kind: input, shape index: {}]
  %s1 = inlined_call_operand.vmem [shape: f32[32,32], index: 1, kind: input, shape index: {}]
  %s2 = inlined_call_operand.vmem [shape: f32[4,1,32], index: 2, kind: input, shape index: {}]
  %s3 = inlined_call_operand.vmem [shape: f32[4,1,32], index: 3, kind: input, shape index: {}]
  %s4 = inlined_call_operand.vmem [shape: f32[2,32,96], index: 4, kind: input, shape index: {}]
  %s5 = inlined_call_operand.vmem [shape: f32[2,1,96], index: 5, kind: input, shape index: {}]
  %s6 = inlined_call_operand.vmem [shape: f32[2,32,32], index: 6, kind: input, shape index: {}]
  %s7 = inlined_call_operand.vmem [shape: f32[2,1,32], index: 7, kind: input, shape index: {}]
  %s8 = inlined_call_operand.vmem [shape: f32[2,32,64], index: 8, kind: input, shape index: {}]
  %s9 = inlined_call_operand.vmem [shape: f32[2,1,64], index: 9, kind: input, shape index: {}]
  %s10 = inlined_call_operand.vmem [shape: f32[2,1,64], index: 10, kind: input, shape index: {}]
  %s11 = inlined_call_operand.vmem [shape: f32[2,1,64], index: 11, kind: input, shape index: {}]
  %s12 = inlined_call_operand.vmem [shape: f32[2,64,32], index: 12, kind: input, shape index: {}]
  %s13 = inlined_call_operand.vmem [shape: f32[2,1,32], index: 13, kind: input, shape index: {}]
  %s14 = inlined_call_operand.hbm [shape: f32[16,32], index: 14, kind: output, shape index: {0}]
  %s15 = inlined_call_operand.hbm [shape: f32[32,32], index: 15, kind: output, shape index: {1}]
  %16 = xla_tuple %s14, %s15
  %s17 = sld [smem:[#allocation0]]
  $region74: #{dualformer_block.1} parent=0
    _
  %s19 = ssub.s32 1, %s17
  %s20 = scalar_select 0, %s19, %s17
  $region1: #{dualformer_block.1} parent=0
    #allocation2 [shape = 'u8[8192]{0}', space=vmem, size = 0x2000, scoped, tag = 'output window, operand 0, single buffered']
    #allocation3 [shape = 's32[1]{0}', space=sflag, size = 0x4, scoped, tag = 'scoped memory for dualformer_block.1']
    #allocation4 [shape = 'u8[16384]{0}', space=vmem, size = 0x4000, scoped, tag = 'output window, operand 1, single buffered']
    #allocation5 [shape = 's32[1]{0}', space=sflag, size = 0x4, scoped, tag = 'scoped memory for dualformer_block.1']
    %21 = vsyncpa [#allocation3], 0
    %22 = vsyncpa [#allocation5], 0
    // Predicated region
    $region2: #{dualformer_block.1} parent=1 // pred_check
      _
    $region3: #{dualformer_block.1} parent=1 // pred_check_branch
      %24 = sbr.rel (0) target = $region5
    $region4: #{dualformer_block.1} parent=1 // pred_region
      _
    $region5: #{dualformer_block.1} parent=1 // pred_fallthru
      _
    // Predicated region
    $region6: #{dualformer_block.1} parent=1 // pred_check
      _
    $region7: #{dualformer_block.1} parent=1 // pred_check_branch
      %26 = sbr.rel (0) target = $region9
    $region8: #{dualformer_block.1} parent=1 // pred_region
      _
    $region9: #{dualformer_block.1} parent=1 // pred_fallthru
      _
    // Predicated region
    $region10: #{dualformer_block.1} parent=1 // pred_check
      _
    $region11: #{dualformer_block.1} parent=1 // pred_check_branch
      %28 = sbr.rel (0) target = $region13
    $region12: #{dualformer_block.1} parent=1 // pred_region
      _
    $region13: #{dualformer_block.1} parent=1 // pred_fallthru
      _
    // Predicated region
    $region14: #{dualformer_block.1} parent=1 // pred_check
      _
    $region15: #{dualformer_block.1} parent=1 // pred_check_branch
      %30 = sbr.rel (0) target = $region17
    $region16: #{dualformer_block.1} parent=1 // pred_region
      _
    $region17: #{dualformer_block.1} parent=1 // pred_fallthru
      _
    // Predicated region
    $region18: #{dualformer_block.1} parent=1 // pred_check
      _
    $region19: #{dualformer_block.1} parent=1 // pred_check_branch
      %32 = sbr.rel (0) target = $region21
    $region20: #{dualformer_block.1} parent=1 // pred_region
      _
    $region21: #{dualformer_block.1} parent=1 // pred_fallthru
      _
    // Predicated region
    $region22: #{dualformer_block.1} parent=1 // pred_check
      _
    $region23: #{dualformer_block.1} parent=1 // pred_check_branch
      %34 = sbr.rel (0) target = $region25
    $region24: #{dualformer_block.1} parent=1 // pred_region
      _
    $region25: #{dualformer_block.1} parent=1 // pred_fallthru
      _
    // Predicated region
    $region26: #{dualformer_block.1} parent=1 // pred_check
      _
    $region27: #{dualformer_block.1} parent=1 // pred_check_branch
      %36 = sbr.rel (0) target = $region29
    $region28: #{dualformer_block.1} parent=1 // pred_region
      _
    $region29: #{dualformer_block.1} parent=1 // pred_fallthru
      _
    // Predicated region
    $region30: #{dualformer_block.1} parent=1 // pred_check
      _
    $region31: #{dualformer_block.1} parent=1 // pred_check_branch
      %38 = sbr.rel (0) target = $region33
    $region32: #{dualformer_block.1} parent=1 // pred_region
      _
    $region33: #{dualformer_block.1} parent=1 // pred_fallthru
      _
    // Predicated region
    $region34: #{dualformer_block.1} parent=1 // pred_check
      _
    $region35: #{dualformer_block.1} parent=1 // pred_check_branch
      %40 = sbr.rel (0) target = $region37
    $region36: #{dualformer_block.1} parent=1 // pred_region
      _
    $region37: #{dualformer_block.1} parent=1 // pred_fallthru
      _
    // Predicated region
    $region38: #{dualformer_block.1} parent=1 // pred_check
      _
    $region39: #{dualformer_block.1} parent=1 // pred_check_branch
      %42 = sbr.rel (0) target = $region41
    $region40: #{dualformer_block.1} parent=1 // pred_region
      _
    $region41: #{dualformer_block.1} parent=1 // pred_fallthru
      _
    // Predicated region
    $region42: #{dualformer_block.1} parent=1 // pred_check
      _
    $region43: #{dualformer_block.1} parent=1 // pred_check_branch
      %44 = sbr.rel (0) target = $region45
    $region44: #{dualformer_block.1} parent=1 // pred_region
      _
    $region45: #{dualformer_block.1} parent=1 // pred_fallthru
      _
    // Predicated region
    $region46: #{dualformer_block.1} parent=1 // pred_check
      _
    $region47: #{dualformer_block.1} parent=1 // pred_check_branch
      %46 = sbr.rel (0) target = $region49
    $region48: #{dualformer_block.1} parent=1 // pred_region
      _
    $region49: #{dualformer_block.1} parent=1 // pred_fallthru
      _
    // Predicated region
    $region50: #{dualformer_block.1} parent=1 // pred_check
      _
    $region51: #{dualformer_block.1} parent=1 // pred_check_branch
      %48 = sbr.rel (0) target = $region53
    $region52: #{dualformer_block.1} parent=1 // pred_region
      _
    $region53: #{dualformer_block.1} parent=1 // pred_fallthru
      _
    // Predicated region
    $region54: #{dualformer_block.1} parent=1 // pred_check
      _
    $region55: #{dualformer_block.1} parent=1 // pred_check_branch
      %50 = sbr.rel (0) target = $region57
    $region56: #{dualformer_block.1} parent=1 // pred_region
      _
    $region57: #{dualformer_block.1} parent=1 // pred_fallthru
      _
    %v51 = vld [vmem:[%s0] sm:$0xff]
    %v52 = vld [vmem:[%s0 + $0x8] sm:$0xff]
    %v53 = vld [vmem:[%s1] sm:$0xff]
    %v54 = vld [vmem:[%s1 + $0x8] sm:$0xff]
    %v55 = vld [vmem:[%s1 + $0x10] sm:$0xff]
    %v56 = vld [vmem:[%s1 + $0x18] sm:$0xff]
    %v57 = vld [vmem:[%s2] sm:$0x1]
    %v58 = vld [vmem:[%s3] sm:$0x1]
    %vm59 = vcmask 261120
    %v60 = vsel %vm59, %v51, 0.0
    %61 = vadd.xlane.f32.xlu0 %v60
    %v62 = vpop.xlane.xlu0 %61
    %v63 = vsel %vm59, %v52, 0.0
    %64 = vadd.xlane.f32.xlu0 %v63
    %v65 = vpop.xlane.xlu0 %64
    %v66 = vrcp.pop 32.0
    %v67 = vmul.f32 %v62, %v66
    %v68 = vmul.f32 %v65, %v66
    %v69 = vsub.f32 %v51, %v67
    %v70 = vsub.f32 %v52, %v68
    %v71 = vmul.f32 %v69, %v69
    %v72 = vmul.f32 %v70, %v70
    %v73 = vsel %vm59, %v71, 0.0
    %74 = vadd.xlane.f32.xlu0 %v73
    %v75 = vpop.xlane.xlu0 %74
    %v76 = vsel %vm59, %v72, 0.0
    %77 = vadd.xlane.f32.xlu0 %v76
    %v78 = vpop.xlane.xlu0 %77
    %v79 = vmul.f32 %v75, %v66
    %v80 = vmul.f32 %v78, %v66
    %v81 = vadd.f32 %v79, 1e-05
    %v82 = vadd.f32 %v80, 1e-05
    %v83 = vrsqrt.pop %v81
    %v84 = vrsqrt.pop %v82
    %v85 = vmul.f32 %v69, %v83
    %v86 = vmul.f32 %v70, %v84
    %v88 = vlaneseq
    %v89 = vshrl.u32 %v88, 7
    %v90 = vsub.s32 0, %v89
    %v91 = vrot.slane %v57, %v90
    %v93 = vmul.f32 %v85, %v91
    %v94 = vmul.f32 %v86, %v91
    %v96 = vlaneseq
    %v97 = vshrl.u32 %v96, 7
    %v98 = vsub.s32 0, %v97
    %v99 = vrot.slane %v58, %v98
    %v101 = vadd.f32 %v93, %v99
    %v102 = vadd.f32 %v94, %v99
    %s103 = scalar_lea.vmem %s2, 1
    %v104 = vld [vmem:[%s103] sm:$0x1]
    %s105 = scalar_lea.vmem %s3, 1
    %v106 = vld [vmem:[%s105] sm:$0x1]
    %v107 = vsel %vm59, %v53, 0.0
    %108 = vadd.xlane.f32.xlu0 %v107
    %v109 = vpop.xlane.xlu0 %108
    %v110 = vsel %vm59, %v54, 0.0
    %111 = vadd.xlane.f32.xlu0 %v110
    %v112 = vpop.xlane.xlu0 %111
    %v113 = vsel %vm59, %v55, 0.0
    %114 = vadd.xlane.f32.xlu0 %v113
    %v115 = vpop.xlane.xlu0 %114
    %v116 = vsel %vm59, %v56, 0.0
    %117 = vadd.xlane.f32.xlu0 %v116
    %v118 = vpop.xlane.xlu0 %117
    %v119 = vmul.f32 %v109, %v66
    %v120 = vmul.f32 %v112, %v66
    %v121 = vmul.f32 %v115, %v66
    %v122 = vmul.f32 %v118, %v66
    %v123 = vsub.f32 %v53, %v119
    %v124 = vsub.f32 %v54, %v120
    %v125 = vsub.f32 %v55, %v121
    %v126 = vsub.f32 %v56, %v122
    %v127 = vmul.f32 %v123, %v123
    %v128 = vmul.f32 %v124, %v124
    %v129 = vmul.f32 %v125, %v125
    %v130 = vmul.f32 %v126, %v126
    %v131 = vsel %vm59, %v127, 0.0
    %132 = vadd.xlane.f32.xlu0 %v131
    %v133 = vpop.xlane.xlu0 %132
    %v134 = vsel %vm59, %v128, 0.0
    %135 = vadd.xlane.f32.xlu0 %v134
    %v136 = vpop.xlane.xlu0 %135
    %v137 = vsel %vm59, %v129, 0.0
    %138 = vadd.xlane.f32.xlu0 %v137
    %v139 = vpop.xlane.xlu0 %138
    %v140 = vsel %vm59, %v130, 0.0
    %141 = vadd.xlane.f32.xlu0 %v140
    %v142 = vpop.xlane.xlu0 %141
    %v143 = vmul.f32 %v133, %v66
    %v144 = vmul.f32 %v136, %v66
    %v145 = vmul.f32 %v139, %v66
    %v146 = vmul.f32 %v142, %v66
    %v147 = vadd.f32 %v143, 1e-05
    %v148 = vadd.f32 %v144, 1e-05
    %v149 = vadd.f32 %v145, 1e-05
    %v150 = vadd.f32 %v146, 1e-05
    %v151 = vrsqrt.pop %v147
    %v152 = vrsqrt.pop %v148
    %v153 = vrsqrt.pop %v149
    %v154 = vrsqrt.pop %v150
    %v155 = vmul.f32 %v123, %v151
    %v156 = vmul.f32 %v124, %v152
    %v157 = vmul.f32 %v125, %v153
    %v158 = vmul.f32 %v126, %v154
    %v160 = vlaneseq
    %v161 = vshrl.u32 %v160, 7
    %v162 = vsub.s32 0, %v161
    %v163 = vrot.slane %v104, %v162
    %v165 = vmul.f32 %v155, %v163
    %v166 = vmul.f32 %v156, %v163
    %v167 = vmul.f32 %v157, %v163
    %v168 = vmul.f32 %v158, %v163
    %v170 = vlaneseq
    %v171 = vshrl.u32 %v170, 7
    %v172 = vsub.s32 0, %v171
    %v173 = vrot.slane %v106, %v172
    %v175 = vadd.f32 %v165, %v173
    %v176 = vadd.f32 %v166, %v173
    %v177 = vadd.f32 %v167, %v173
    %v178 = vadd.f32 %v168, %v173
    %v179 = vld [vmem:[%s4] sm:$0xff]
    %v180 = vld [vmem:[%s4 + $0x8] sm:$0xff]
    %v181 = vld [vmem:[%s4 + $0x10] sm:$0xff]
    %v182 = vld [vmem:[%s4 + $0x18] sm:$0xff]
    %v183 = vld [vmem:[%s5] sm:$0x1]
    %v185 = vlaneseq
    %v186 = vshrl.u32 %v185, 7
    %v187 = vsub.s32 0, %v186
    %v188 = vrot.slane %v183, %v187
    %v191 = vsel %vm59, %v101, 0
    %v194 = vsel %vm59, %v102, 0
    %196 = vmatprep.subr.mxu0 0.0
    %197 = vmatpush1.msra.mxu0 0.0
    %198 = vmatprep.subr.mxu0 0.0
    %199 = vmatpush1.msra.mxu0 0.0
    %200 = vmatprep.subr.mxu0 0.0
    %201 = vmatpush1.msra.mxu0 0.0
    %202 = vmatprep.subr.mxu0 0.0
    %203 = vmatpush1.msra.mxu0 0.0
    %204 = vmatprep.subr.mxu0 0.0
    %205 = vmatpush1.msra.mxu0 0.0
    %206 = vmatprep.subr.mxu0 0.0
    %207 = vmatpush1.msra.mxu0 0.0
    %208 = vmatprep.subr.mxu0 0.0
    %209 = vmatpush1.msra.mxu0 0.0
    %210 = vmatprep.subr.mxu0 0.0
    %211 = vmatpush1.msra.mxu0 0.0
    %212 = vmatprep.subr.mxu0 0.0
    %213 = vmatpush1.msra.mxu0 0.0
    %214 = vmatprep.subr.mxu0 0.0
    %215 = vmatpush1.msra.mxu0 0.0
    %216 = vmatprep.subr.mxu0 0.0
    %217 = vmatpush1.msra.mxu0 0.0
    %218 = vmatprep.subr.mxu0 0.0
    %219 = vmatpush1.msra.mxu0 0.0
    %220 = vmatprep.subr.mxu0 0.0
    %221 = vmatpush1.msra.mxu0 %v182
    %222 = vmatprep.subr.mxu0 0.0
    %223 = vmatpush1.msra.mxu0 %v181
    %224 = vmatprep.subr.mxu0 0.0
    %225 = vmatpush1.msra.mxu0 %v180
    %226 = vmatprep.subr.mxu0 0.0
    %227 = vmatpush1.msra.mxu0 %v179
    %228 = vmatprep.subr.mxu0 0.0
    %229 = vmatpush2.msra.mxu0 0.0
    %230 = vmatprep.subr.mxu0 0.0
    %231 = vmatpush2.msra.mxu0 0.0
    %232 = vmatprep.subr.mxu0 0.0
    %233 = vmatpush2.msra.mxu0 0.0
    %234 = vmatprep.subr.mxu0 0.0
    %235 = vmatpush2.msra.mxu0 0.0
    %236 = vmatprep.subr.mxu0 0.0
    %237 = vmatpush2.msra.mxu0 0.0
    %238 = vmatprep.subr.mxu0 0.0
    %239 = vmatpush2.msra.mxu0 0.0
    %240 = vmatprep.subr.mxu0 0.0
    %241 = vmatpush2.msra.mxu0 0.0
    %242 = vmatprep.subr.mxu0 0.0
    %243 = vmatpush2.msra.mxu0 0.0
    %244 = vmatprep.subr.mxu0 0.0
    %245 = vmatpush2.msra.mxu0 0.0
    %246 = vmatprep.subr.mxu0 0.0
    %247 = vmatpush2.msra.mxu0 0.0
    %248 = vmatprep.subr.mxu0 0.0
    %249 = vmatpush2.msra.mxu0 0.0
    %250 = vmatprep.subr.mxu0 0.0
    %251 = vmatpush2.msra.mxu0 0.0
    %252 = vmatprep.subr.mxu0 0.0
    %253 = vmatpush2.msra.mxu0 0.0
    %254 = vmatprep.subr.mxu0 0.0
    %255 = vmatpush2.msra.mxu0 0.0
    %256 = vmatprep.subr.mxu0 0.0
    %257 = vmatpush2.msra.mxu0 0.0
    %258 = vmatprep.subr.mxu0 0.0
    %259 = vmatpush2.msra.mxu0 0.0
    %260 = vmatprep.mubr.f32.mxu0 0.0
    %261 = vmatmul.mubr.f32.gmra.mxu0 %v191
    %v262 = vpop.f32.mrf.mxu0
    %v263 = vadd.f32 %v188, %v262
    %v264 = vpop.f32.mrf.mxu0
    %265 = vmatprep.mubr.f32.mxu0 0.0
    %266 = vmatmul.mubr.f32.gmra.mxu0 %v194
    %v267 = vpop.f32.mrf.mxu0
    %v268 = vadd.f32 %v188, %v267
    %v269 = vpop.f32.mrf.mxu0
    %270 = vdwg.mxu0
    %s271 = scalar_lea.vmem %s4, 32
    %v272 = vld [vmem:[%s271] sm:$0xff]
    %v273 = vld [vmem:[%s271 + $0x8] sm:$0xff]
    %v274 = vld [vmem:[%s271 + $0x10] sm:$0xff]
    %v275 = vld [vmem:[%s271 + $0x18] sm:$0xff]
    %s276 = scalar_lea.vmem %s5, 1
    %v277 = vld [vmem:[%s276] sm:$0x1]
    %v279 = vlaneseq
    %v280 = vshrl.u32 %v279, 7
    %v281 = vsub.s32 0, %v280
    %v282 = vrot.slane %v277, %v281
    %v285 = vsel %vm59, %v175, 0
    %v288 = vsel %vm59, %v176, 0
    %v291 = vsel %vm59, %v177, 0
    %v294 = vsel %vm59, %v178, 0
    %296 = vmatprep.subr.mxu0 0.0
    %297 = vmatpush1.msra.mxu0 0.0
    %298 = vmatprep.subr.mxu0 0.0
    %299 = vmatpush1.msra.mxu0 0.0
    %300 = vmatprep.subr.mxu0 0.0
    %301 = vmatpush1.msra.mxu0 0.0
    %302 = vmatprep.subr.mxu0 0.0
    %303 = vmatpush1.msra.mxu0 0.0
    %304 = vmatprep.subr.mxu0 0.0
    %305 = vmatpush1.msra.mxu0 0.0
    %306 = vmatprep.subr.mxu0 0.0
    %307 = vmatpush1.msra.mxu0 0.0
    %308 = vmatprep.subr.mxu0 0.0
    %309 = vmatpush1.msra.mxu0 0.0
    %310 = vmatprep.subr.mxu0 0.0
    %311 = vmatpush1.msra.mxu0 0.0
    %312 = vmatprep.subr.mxu0 0.0
    %313 = vmatpush1.msra.mxu0 0.0
    %314 = vmatprep.subr.mxu0 0.0
    %315 = vmatpush1.msra.mxu0 0.0
    %316 = vmatprep.subr.mxu0 0.0
    %317 = vmatpush1.msra.mxu0 0.0
    %318 = vmatprep.subr.mxu0 0.0
    %319 = vmatpush1.msra.mxu0 0.0
    %320 = vmatprep.subr.mxu0 0.0
    %321 = vmatpush1.msra.mxu0 %v275
    %322 = vmatprep.subr.mxu0 0.0
    %323 = vmatpush1.msra.mxu0 %v274
    %324 = vmatprep.subr.mxu0 0.0
    %325 = vmatpush1.msra.mxu0 %v273
    %326 = vmatprep.subr.mxu0 0.0
    %327 = vmatpush1.msra.mxu0 %v272
    %328 = vmatprep.subr.mxu0 0.0
    %329 = vmatpush2.msra.mxu0 0.0
    %330 = vmatprep.subr.mxu0 0.0
    %331 = vmatpush2.msra.mxu0 0.0
    %332 = vmatprep.subr.mxu0 0.0
    %333 = vmatpush2.msra.mxu0 0.0
    %334 = vmatprep.subr.mxu0 0.0
    %335 = vmatpush2.msra.mxu0 0.0
    %336 = vmatprep.subr.mxu0 0.0
    %337 = vmatpush2.msra.mxu0 0.0
    %338 = vmatprep.subr.mxu0 0.0
    %339 = vmatpush2.msra.mxu0 0.0
    %340 = vmatprep.subr.mxu0 0.0
    %341 = vmatpush2.msra.mxu0 0.0
    %342 = vmatprep.subr.mxu0 0.0
    %343 = vmatpush2.msra.mxu0 0.0
    %344 = vmatprep.subr.mxu0 0.0
    %345 = vmatpush2.msra.mxu0 0.0
    %346 = vmatprep.subr.mxu0 0.0
    %347 = vmatpush2.msra.mxu0 0.0
    %348 = vmatprep.subr.mxu0 0.0
    %349 = vmatpush2.msra.mxu0 0.0
    %350 = vmatprep.subr.mxu0 0.0
    %351 = vmatpush2.msra.mxu0 0.0
    %352 = vmatprep.subr.mxu0 0.0
    %353 = vmatpush2.msra.mxu0 0.0
    %354 = vmatprep.subr.mxu0 0.0
    %355 = vmatpush2.msra.mxu0 0.0
    %356 = vmatprep.subr.mxu0 0.0
    %357 = vmatpush2.msra.mxu0 0.0
    %358 = vmatprep.subr.mxu0 0.0
    %359 = vmatpush2.msra.mxu0 0.0
    %360 = vmatprep.mubr.f32.mxu0 0.0
    %361 = vmatmul.mubr.f32.gmra.mxu0 %v285
    %v362 = vpop.f32.mrf.mxu0
    %v363 = vadd.f32 %v282, %v362
    %v364 = vpop.f32.mrf.mxu0
    %365 = vmatprep.mubr.f32.mxu0 0.0
    %366 = vmatmul.mubr.f32.gmra.mxu0 %v288
    %v367 = vpop.f32.mrf.mxu0
    %v368 = vadd.f32 %v282, %v367
    %v369 = vpop.f32.mrf.mxu0
    %370 = vmatprep.mubr.f32.mxu0 0.0
    %371 = vmatmul.mubr.f32.gmra.mxu0 %v291
    %v372 = vpop.f32.mrf.mxu0
    %v373 = vadd.f32 %v282, %v372
    %v374 = vpop.f32.mrf.mxu0
    %375 = vmatprep.mubr.f32.mxu0 0.0
    %376 = vmatmul.mubr.f32.gmra.mxu0 %v294
    %v377 = vpop.f32.mrf.mxu0
    %v378 = vadd.f32 %v282, %v377
    %v379 = vpop.f32.mrf.mxu0
    %380 = vdwg.mxu0
    %v381 = vld [vmem:[%s6] sm:$0xff]
    %v382 = vld [vmem:[%s6 + $0x8] sm:$0xff]
    %v383 = vld [vmem:[%s6 + $0x10] sm:$0xff]
    %v384 = vld [vmem:[%s6 + $0x18] sm:$0xff]
    %v385 = vld [vmem:[%s7] sm:$0x1]
    %388 = vrot.lane.b32.xlu0 %v363, 96
    %v389 = vpop.permute.xlu0 %388
    %390 = vrot.lane.b32.xlu0 %v368, 96
    %v391 = vpop.permute.xlu0 %390
    %vm392 = vcmask 64512
    %v394 = vsel %vm392, %v263, 0
    %v396 = vsel %vm392, %v389, 0
    %v398 = vsel %vm392, %v391, 0
    %400 = vmatprep.subr.mxu0 0.0
    %401 = vmatpush1.xpose.msra.mxu0 0.0
    %402 = vmatprep.subr.mxu0 0.0
    %403 = vmatpush1.xpose.msra.mxu0 0.0
    %404 = vmatprep.subr.mxu0 0.0
    %405 = vmatpush1.xpose.msra.mxu0 0.0
    %406 = vmatprep.subr.mxu0 0.0
    %407 = vmatpush1.xpose.msra.mxu0 0.0
    %408 = vmatprep.subr.mxu0 0.0
    %409 = vmatpush1.xpose.msra.mxu0 0.0
    %410 = vmatprep.subr.mxu0 0.0
    %411 = vmatpush1.xpose.msra.mxu0 0.0
    %412 = vmatprep.subr.mxu0 0.0
    %413 = vmatpush1.xpose.msra.mxu0 0.0
    %414 = vmatprep.subr.mxu0 0.0
    %415 = vmatpush1.xpose.msra.mxu0 0.0
    %416 = vmatprep.subr.mxu0 0.0
    %417 = vmatpush1.xpose.msra.mxu0 0.0
    %418 = vmatprep.subr.mxu0 0.0
    %419 = vmatpush1.xpose.msra.mxu0 0.0
    %420 = vmatprep.subr.mxu0 0.0
    %421 = vmatpush1.xpose.msra.mxu0 0.0
    %422 = vmatprep.subr.mxu0 0.0
    %423 = vmatpush1.xpose.msra.mxu0 0.0
    %424 = vmatprep.subr.mxu0 0.0
    %425 = vmatpush1.xpose.msra.mxu0 0.0
    %426 = vmatprep.subr.mxu0 0.0
    %427 = vmatpush1.xpose.msra.mxu0 0.0
    %428 = vmatprep.subr.mxu0 0.0
    %429 = vmatpush1.xpose.msra.mxu0 %v398
    %430 = vmatprep.subr.mxu0 0.0
    %431 = vmatpush1.xpose.msra.mxu0 %v396
    %432 = vmatprep.subr.mxu0 0.0
    %433 = vmatpush2.xpose.msra.mxu0 0.0
    %434 = vmatprep.subr.mxu0 0.0
    %435 = vmatpush2.xpose.msra.mxu0 0.0
    %436 = vmatprep.subr.mxu0 0.0
    %437 = vmatpush2.xpose.msra.mxu0 0.0
    %438 = vmatprep.subr.mxu0 0.0
    %439 = vmatpush2.xpose.msra.mxu0 0.0
    %440 = vmatprep.subr.mxu0 0.0
    %441 = vmatpush2.xpose.msra.mxu0 0.0
    %442 = vmatprep.subr.mxu0 0.0
    %443 = vmatpush2.xpose.msra.mxu0 0.0
    %444 = vmatprep.subr.mxu0 0.0
    %445 = vmatpush2.xpose.msra.mxu0 0.0
    %446 = vmatprep.subr.mxu0 0.0
    %447 = vmatpush2.xpose.msra.mxu0 0.0
    %448 = vmatprep.subr.mxu0 0.0
    %449 = vmatpush2.xpose.msra.mxu0 0.0
    %450 = vmatprep.subr.mxu0 0.0
    %451 = vmatpush2.xpose.msra.mxu0 0.0
    %452 = vmatprep.subr.mxu0 0.0
    %453 = vmatpush2.xpose.msra.mxu0 0.0
    %454 = vmatprep.subr.mxu0 0.0
    %455 = vmatpush2.xpose.msra.mxu0 0.0
    %456 = vmatprep.subr.mxu0 0.0
    %457 = vmatpush2.xpose.msra.mxu0 0.0
    %458 = vmatprep.subr.mxu0 0.0
    %459 = vmatpush2.xpose.msra.mxu0 0.0
    %460 = vmatprep.subr.mxu0 0.0
    %461 = vmatpush2.xpose.msra.mxu0 0.0
    %462 = vmatprep.subr.mxu0 0.0
    %463 = vmatpush2.xpose.msra.mxu0 0.0
    %464 = vmatprep.mubr.f32.mxu0 0.0
    %465 = vmatmul.mubr.f32.gmra.mxu0 %v394
    %v466 = vpop.f32.mrf.mxu0
    %v467 = vadd.f32 0.0, %v466
    %v468 = vpop.f32.mrf.mxu0
    %469 = vdwg.mxu0
    %v470 = vmul.f32 %v467, 0.35355338
    %vm471 = vcmask 130048
    %v472 = vsel %vm471, %v470, -inf
    %473 = vmax.xlane.f32.xlu0 %v472
    %v474 = vpop.xlane.xlu0 %473
    %v475 = vsub.f32 %v470, %v474
    %v476 = vmul.f32 %v475, 1.442695
    %v477 = vpow.pop %v476
    %v478 = vsel %vm471, %v477, 0.0
    %479 = vadd.xlane.f32.xlu0 %v478
    %v480 = vpop.xlane.xlu0 %479
    %v481 = vrcp.pop %v480
    %v482 = vmul.f32 %v477, %v481
    %483 = vrot.lane.b32.xlu0 %v363, 64
    %v484 = vpop.permute.xlu0 %483
    %485 = vrot.lane.b32.xlu0 %v368, 64
    %v486 = vpop.permute.xlu0 %485
    %v490 = vsel %vm471, %v482, 0
    %492 = vmatprep.subr.mxu0 0.0
    %493 = vmatpush1.msra.mxu0 0.0
    %494 = vmatprep.subr.mxu0 0.0
    %495 = vmatpush1.msra.mxu0 0.0
    %496 = vmatprep.subr.mxu0 0.0
    %497 = vmatpush1.msra.mxu0 0.0
    %498 = vmatprep.subr.mxu0 0.0
    %499 = vmatpush1.msra.mxu0 0.0
    %500 = vmatprep.subr.mxu0 0.0
    %501 = vmatpush1.msra.mxu0 0.0
    %502 = vmatprep.subr.mxu0 0.0
    %503 = vmatpush1.msra.mxu0 0.0
    %504 = vmatprep.subr.mxu0 0.0
    %505 = vmatpush1.msra.mxu0 0.0
    %506 = vmatprep.subr.mxu0 0.0
    %507 = vmatpush1.msra.mxu0 0.0
    %508 = vmatprep.subr.mxu0 0.0
    %509 = vmatpush1.msra.mxu0 0.0
    %510 = vmatprep.subr.mxu0 0.0
    %511 = vmatpush1.msra.mxu0 0.0
    %512 = vmatprep.subr.mxu0 0.0
    %513 = vmatpush1.msra.mxu0 0.0
    %514 = vmatprep.subr.mxu0 0.0
    %515 = vmatpush1.msra.mxu0 0.0
    %516 = vmatprep.subr.mxu0 0.0
    %517 = vmatpush1.msra.mxu0 0.0
    %518 = vmatprep.subr.mxu0 0.0
    %519 = vmatpush1.msra.mxu0 0.0
    %520 = vmatprep.subr.mxu0 0.0
    %521 = vmatpush1.msra.mxu0 %v486
    %522 = vmatprep.subr.mxu0 0.0
    %523 = vmatpush1.msra.mxu0 %v484
    %524 = vmatprep.subr.mxu0 0.0
    %525 = vmatpush2.msra.mxu0 0.0
    %526 = vmatprep.subr.mxu0 0.0
    %527 = vmatpush2.msra.mxu0 0.0
    %528 = vmatprep.subr.mxu0 0.0
    %529 = vmatpush2.msra.mxu0 0.0
    %530 = vmatprep.subr.mxu0 0.0
    %531 = vmatpush2.msra.mxu0 0.0
    %532 = vmatprep.subr.mxu0 0.0
    %533 = vmatpush2.msra.mxu0 0.0
    %534 = vmatprep.subr.mxu0 0.0
    %535 = vmatpush2.msra.mxu0 0.0
    %536 = vmatprep.subr.mxu0 0.0
    %537 = vmatpush2.msra.mxu0 0.0
    %538 = vmatprep.subr.mxu0 0.0
    %539 = vmatpush2.msra.mxu0 0.0
    %540 = vmatprep.subr.mxu0 0.0
    %541 = vmatpush2.msra.mxu0 0.0
    %542 = vmatprep.subr.mxu0 0.0
    %543 = vmatpush2.msra.mxu0 0.0
    %544 = vmatprep.subr.mxu0 0.0
    %545 = vmatpush2.msra.mxu0 0.0
    %546 = vmatprep.subr.mxu0 0.0
    %547 = vmatpush2.msra.mxu0 0.0
    %548 = vmatprep.subr.mxu0 0.0
    %549 = vmatpush2.msra.mxu0 0.0
    %550 = vmatprep.subr.mxu0 0.0
    %551 = vmatpush2.msra.mxu0 0.0
    %552 = vmatprep.subr.mxu0 0.0
    %553 = vmatpush2.msra.mxu0 0.0
    %554 = vmatprep.subr.mxu0 0.0
    %555 = vmatpush2.msra.mxu0 0.0
    %556 = vmatprep.mubr.f32.mxu0 0.0
    %557 = vmatmul.mubr.f32.gmra.mxu0 %v490
    %v558 = vpop.f32.mrf.mxu0
    %v559 = vadd.f32 0.0, %v558
    %v560 = vpop.f32.mrf.mxu0
    %561 = vdwg.mxu0
    %562 = vrot.lane.b32.xlu0 %v263, 120
    %v563 = vpop.permute.xlu0 %562
    %564 = vrot.lane.b32.xlu0 %v363, 88
    %v565 = vpop.permute.xlu0 %564
    %566 = vrot.lane.b32.xlu0 %v368, 88
    %v567 = vpop.permute.xlu0 %566
    %v568 = vsel %vm392, %v563, 0
    %v570 = vsel %vm392, %v565, 0
    %v572 = vsel %vm392, %v567, 0
    %574 = vmatprep.subr.mxu0 0.0
    %575 = vmatpush1.xpose.msra.mxu0 0.0
    %576 = vmatprep.subr.mxu0 0.0
    %577 = vmatpush1.xpose.msra.mxu0 0.0
    %578 = vmatprep.subr.mxu0 0.0
    %579 = vmatpush1.xpose.msra.mxu0 0.0
    %580 = vmatprep.subr.mxu0 0.0
    %581 = vmatpush1.xpose.msra.mxu0 0.0
    %582 = vmatprep.subr.mxu0 0.0
    %583 = vmatpush1.xpose.msra.mxu0 0.0
    %584 = vmatprep.subr.mxu0 0.0
    %585 = vmatpush1.xpose.msra.mxu0 0.0
    %586 = vmatprep.subr.mxu0 0.0
    %587 = vmatpush1.xpose.msra.mxu0 0.0
    %588 = vmatprep.subr.mxu0 0.0
    %589 = vmatpush1.xpose.msra.mxu0 0.0
    %590 = vmatprep.subr.mxu0 0.0
    %591 = vmatpush1.xpose.msra.mxu0 0.0
    %592 = vmatprep.subr.mxu0 0.0
    %593 = vmatpush1.xpose.msra.mxu0 0.0
    %594 = vmatprep.subr.mxu0 0.0
    %595 = vmatpush1.xpose.msra.mxu0 0.0
    %596 = vmatprep.subr.mxu0 0.0
    %597 = vmatpush1.xpose.msra.mxu0 0.0
    %598 = vmatprep.subr.mxu0 0.0
    %599 = vmatpush1.xpose.msra.mxu0 0.0
    %600 = vmatprep.subr.mxu0 0.0
    %601 = vmatpush1.xpose.msra.mxu0 0.0
    %602 = vmatprep.subr.mxu0 0.0
    %603 = vmatpush1.xpose.msra.mxu0 %v572
    %604 = vmatprep.subr.mxu0 0.0
    %605 = vmatpush1.xpose.msra.mxu0 %v570
    %606 = vmatprep.subr.mxu0 0.0
    %607 = vmatpush2.xpose.msra.mxu0 0.0
    %608 = vmatprep.subr.mxu0 0.0
    %609 = vmatpush2.xpose.msra.mxu0 0.0
    %610 = vmatprep.subr.mxu0 0.0
    %611 = vmatpush2.xpose.msra.mxu0 0.0
    %612 = vmatprep.subr.mxu0 0.0
    %613 = vmatpush2.xpose.msra.mxu0 0.0
    %614 = vmatprep.subr.mxu0 0.0
    %615 = vmatpush2.xpose.msra.mxu0 0.0
    %616 = vmatprep.subr.mxu0 0.0
    %617 = vmatpush2.xpose.msra.mxu0 0.0
    %618 = vmatprep.subr.mxu0 0.0
    %619 = vmatpush2.xpose.msra.mxu0 0.0
    %620 = vmatprep.subr.mxu0 0.0
    %621 = vmatpush2.xpose.msra.mxu0 0.0
    %622 = vmatprep.subr.mxu0 0.0
    %623 = vmatpush2.xpose.msra.mxu0 0.0
    %624 = vmatprep.subr.mxu0 0.0
    %625 = vmatpush2.xpose.msra.mxu0 0.0
    %626 = vmatprep.subr.mxu0 0.0
    %627 = vmatpush2.xpose.msra.mxu0 0.0
    %628 = vmatprep.subr.mxu0 0.0
    %629 = vmatpush2.xpose.msra.mxu0 0.0
    %630 = vmatprep.subr.mxu0 0.0
    %631 = vmatpush2.xpose.msra.mxu0 0.0
    %632 = vmatprep.subr.mxu0 0.0
    %633 = vmatpush2.xpose.msra.mxu0 0.0
    %634 = vmatprep.subr.mxu0 0.0
    %635 = vmatpush2.xpose.msra.mxu0 0.0
    %636 = vmatprep.subr.mxu0 0.0
    %637 = vmatpush2.xpose.msra.mxu0 0.0
    %638 = vmatprep.mubr.f32.mxu0 0.0
    %639 = vmatmul.mubr.f32.gmra.mxu0 %v568
    %v640 = vpop.f32.mrf.mxu0
    %v641 = vadd.f32 0.0, %v640
    %v642 = vpop.f32.mrf.mxu0
    %643 = vdwg.mxu0
    %v644 = vmul.f32 %v641, 0.35355338
    %v645 = vsel %vm471, %v644, -inf
    %646 = vmax.xlane.f32.xlu0 %v645
    %v647 = vpop.xlane.xlu0 %646
    %v648 = vsub.f32 %v644, %v647
    %v649 = vmul.f32 %v648, 1.442695
    %v650 = vpow.pop %v649
    %v651 = vsel %vm471, %v650, 0.0
    %652 = vadd.xlane.f32.xlu0 %v651
    %v653 = vpop.xlane.xlu0 %652
    %v654 = vrcp.pop %v653
    %v655 = vmul.f32 %v650, %v654
    %656 = vrot.lane.b32.xlu0 %v363, 56
    %v657 = vpop.permute.xlu0 %656
    %658 = vrot.lane.b32.xlu0 %v368, 56
    %v659 = vpop.permute.xlu0 %658
    %v663 = vsel %vm471, %v655, 0
    %665 = vmatprep.subr.mxu0 0.0
    %666 = vmatpush1.msra.mxu0 0.0
    %667 = vmatprep.subr.mxu0 0.0
    %668 = vmatpush1.msra.mxu0 0.0
    %669 = vmatprep.subr.mxu0 0.0
    %670 = vmatpush1.msra.mxu0 0.0
    %671 = vmatprep.subr.mxu0 0.0
    %672 = vmatpush1.msra.mxu0 0.0
    %673 = vmatprep.subr.mxu0 0.0
    %674 = vmatpush1.msra.mxu0 0.0
    %675 = vmatprep.subr.mxu0 0.0
    %676 = vmatpush1.msra.mxu0 0.0
    %677 = vmatprep.subr.mxu0 0.0
    %678 = vmatpush1.msra.mxu0 0.0
    %679 = vmatprep.subr.mxu0 0.0
    %680 = vmatpush1.msra.mxu0 0.0
    %681 = vmatprep.subr.mxu0 0.0
    %682 = vmatpush1.msra.mxu0 0.0
    %683 = vmatprep.subr.mxu0 0.0
    %684 = vmatpush1.msra.mxu0 0.0
    %685 = vmatprep.subr.mxu0 0.0
    %686 = vmatpush1.msra.mxu0 0.0
    %687 = vmatprep.subr.mxu0 0.0
    %688 = vmatpush1.msra.mxu0 0.0
    %689 = vmatprep.subr.mxu0 0.0
    %690 = vmatpush1.msra.mxu0 0.0
    %691 = vmatprep.subr.mxu0 0.0
    %692 = vmatpush1.msra.mxu0 0.0
    %693 = vmatprep.subr.mxu0 0.0
    %694 = vmatpush1.msra.mxu0 %v659
    %695 = vmatprep.subr.mxu0 0.0
    %696 = vmatpush1.msra.mxu0 %v657
    %697 = vmatprep.subr.mxu0 0.0
    %698 = vmatpush2.msra.mxu0 0.0
    %699 = vmatprep.subr.mxu0 0.0
    %700 = vmatpush2.msra.mxu0 0.0
    %701 = vmatprep.subr.mxu0 0.0
    %702 = vmatpush2.msra.mxu0 0.0
    %703 = vmatprep.subr.mxu0 0.0
    %704 = vmatpush2.msra.mxu0 0.0
    %705 = vmatprep.subr.mxu0 0.0
    %706 = vmatpush2.msra.mxu0 0.0
    %707 = vmatprep.subr.mxu0 0.0
    %708 = vmatpush2.msra.mxu0 0.0
    %709 = vmatprep.subr.mxu0 0.0
    %710 = vmatpush2.msra.mxu0 0.0
    %711 = vmatprep.subr.mxu0 0.0
    %712 = vmatpush2.msra.mxu0 0.0
    %713 = vmatprep.subr.mxu0 0.0
    %714 = vmatpush2.msra.mxu0 0.0
    %715 = vmatprep.subr.mxu0 0.0
    %716 = vmatpush2.msra.mxu0 0.0
    %717 = vmatprep.subr.mxu0 0.0
    %718 = vmatpush2.msra.mxu0 0.0
    %719 = vmatprep.subr.mxu0 0.0
    %720 = vmatpush2.msra.mxu0 0.0
    %721 = vmatprep.subr.mxu0 0.0
    %722 = vmatpush2.msra.mxu0 0.0
    %723 = vmatprep.subr.mxu0 0.0
    %724 = vmatpush2.msra.mxu0 0.0
    %725 = vmatprep.subr.mxu0 0.0
    %726 = vmatpush2.msra.mxu0 0.0
    %727 = vmatprep.subr.mxu0 0.0
    %728 = vmatpush2.msra.mxu0 0.0
    %729 = vmatprep.mubr.f32.mxu0 0.0
    %730 = vmatmul.mubr.f32.gmra.mxu0 %v663
    %v731 = vpop.f32.mrf.mxu0
    %v732 = vadd.f32 0.0, %v731
    %v733 = vpop.f32.mrf.mxu0
    %734 = vdwg.mxu0
    %v736 = vsel %vm392, %v732, 0
    %738 = vmatprep.subr.mxu0 0.0
    %739 = vmatpush1.msra.mxu0 0.0
    %740 = vmatprep.subr.mxu0 0.0
    %741 = vmatpush1.msra.mxu0 0.0
    %742 = vmatprep.subr.mxu0 0.0
    %743 = vmatpush1.msra.mxu0 0.0
    %744 = vmatprep.subr.mxu0 0.0
    %745 = vmatpush1.msra.mxu0 0.0
    %746 = vmatprep.subr.mxu0 0.0
    %747 = vmatpush1.msra.mxu0 0.0
    %748 = vmatprep.subr.mxu0 0.0
    %749 = vmatpush1.msra.mxu0 0.0
    %750 = vmatprep.subr.mxu0 0.0
    %751 = vmatpush1.msra.mxu0 0.0
    %752 = vmatprep.subr.mxu0 0.0
    %753 = vmatpush1.msra.mxu0 0.0
    %754 = vmatprep.subr.mxu0 0.0
    %755 = vmatpush1.msra.mxu0 0.0
    %756 = vmatprep.subr.mxu0 0.0
    %757 = vmatpush1.msra.mxu0 0.0
    %758 = vmatprep.subr.mxu0 0.0
    %759 = vmatpush1.msra.mxu0 0.0
    %760 = vmatprep.subr.mxu0 0.0
    %761 = vmatpush1.msra.mxu0 0.0
    %762 = vmatprep.subr.mxu0 0.0
    %763 = vmatpush1.msra.mxu0 0.0
    %764 = vmatprep.subr.mxu0 0.0
    %765 = vmatpush1.msra.mxu0 0.0
    %766 = vmatprep.subr.mxu0 0.0
    %767 = vmatpush1.msra.mxu0 0.0
    %768 = vmatprep.subr.mxu0 0.0
    %769 = vmatpush1.msra.mxu0 %v382
    %770 = vmatprep.subr.mxu0 0.0
    %771 = vmatpush2.msra.mxu0 0.0
    %772 = vmatprep.subr.mxu0 0.0
    %773 = vmatpush2.msra.mxu0 0.0
    %774 = vmatprep.subr.mxu0 0.0
    %775 = vmatpush2.msra.mxu0 0.0
    %776 = vmatprep.subr.mxu0 0.0
    %777 = vmatpush2.msra.mxu0 0.0
    %778 = vmatprep.subr.mxu0 0.0
    %779 = vmatpush2.msra.mxu0 0.0
    %780 = vmatprep.subr.mxu0 0.0
    %781 = vmatpush2.msra.mxu0 0.0
    %782 = vmatprep.subr.mxu0 0.0
    %783 = vmatpush2.msra.mxu0 0.0
    %784 = vmatprep.subr.mxu0 0.0
    %785 = vmatpush2.msra.mxu0 0.0
    %786 = vmatprep.subr.mxu0 0.0
    %787 = vmatpush2.msra.mxu0 0.0
    %788 = vmatprep.subr.mxu0 0.0
    %789 = vmatpush2.msra.mxu0 0.0
    %790 = vmatprep.subr.mxu0 0.0
    %791 = vmatpush2.msra.mxu0 0.0
    %792 = vmatprep.subr.mxu0 0.0
    %793 = vmatpush2.msra.mxu0 0.0
    %794 = vmatprep.subr.mxu0 0.0
    %795 = vmatpush2.msra.mxu0 0.0
    %796 = vmatprep.subr.mxu0 0.0
    %797 = vmatpush2.msra.mxu0 0.0
    %798 = vmatprep.subr.mxu0 0.0
    %799 = vmatpush2.msra.mxu0 0.0
    %800 = vmatprep.subr.mxu0 0.0
    %801 = vmatpush2.msra.mxu0 0.0
    %802 = vmatprep.mubr.f32.mxu0 0.0
    %803 = vmatmul.mubr.f32.gmra.mxu0 %v736
    %v804 = vpop.f32.mrf.mxu0
    %v805 = vadd.f32 0.0, %v804
    %v806 = vpop.f32.mrf.mxu0
    %807 = vdwg.mxu0
    %v809 = vsel %vm392, %v559, 0
    %811 = vmatprep.subr.mxu0 0.0
    %812 = vmatpush1.msra.mxu0 0.0
    %813 = vmatprep.subr.mxu0 0.0
    %814 = vmatpush1.msra.mxu0 0.0
    %815 = vmatprep.subr.mxu0 0.0
    %816 = vmatpush1.msra.mxu0 0.0
    %817 = vmatprep.subr.mxu0 0.0
    %818 = vmatpush1.msra.mxu0 0.0
    %819 = vmatprep.subr.mxu0 0.0
    %820 = vmatpush1.msra.mxu0 0.0
    %821 = vmatprep.subr.mxu0 0.0
    %822 = vmatpush1.msra.mxu0 0.0
    %823 = vmatprep.subr.mxu0 0.0
    %824 = vmatpush1.msra.mxu0 0.0
    %825 = vmatprep.subr.mxu0 0.0
    %826 = vmatpush1.msra.mxu0 0.0
    %827 = vmatprep.subr.mxu0 0.0
    %828 = vmatpush1.msra.mxu0 0.0
    %829 = vmatprep.subr.mxu0 0.0
    %830 = vmatpush1.msra.mxu0 0.0
    %831 = vmatprep.subr.mxu0 0.0
    %832 = vmatpush1.msra.mxu0 0.0
    %833 = vmatprep.subr.mxu0 0.0
    %834 = vmatpush1.msra.mxu0 0.0
    %835 = vmatprep.subr.mxu0 0.0
    %836 = vmatpush1.msra.mxu0 0.0
    %837 = vmatprep.subr.mxu0 0.0
    %838 = vmatpush1.msra.mxu0 0.0
    %839 = vmatprep.subr.mxu0 0.0
    %840 = vmatpush1.msra.mxu0 0.0
    %841 = vmatprep.subr.mxu0 0.0
    %842 = vmatpush1.msra.mxu0 %v381
    %843 = vmatprep.subr.mxu0 0.0
    %844 = vmatpush2.msra.mxu0 0.0
    %845 = vmatprep.subr.mxu0 0.0
    %846 = vmatpush2.msra.mxu0 0.0
    %847 = vmatprep.subr.mxu0 0.0
    %848 = vmatpush2.msra.mxu0 0.0
    %849 = vmatprep.subr.mxu0 0.0
    %850 = vmatpush2.msra.mxu0 0.0
    %851 = vmatprep.subr.mxu0 0.0
    %852 = vmatpush2.msra.mxu0 0.0
    %853 = vmatprep.subr.mxu0 0.0
    %854 = vmatpush2.msra.mxu0 0.0
    %855 = vmatprep.subr.mxu0 0.0
    %856 = vmatpush2.msra.mxu0 0.0
    %857 = vmatprep.subr.mxu0 0.0
    %858 = vmatpush2.msra.mxu0 0.0
    %859 = vmatprep.subr.mxu0 0.0
    %860 = vmatpush2.msra.mxu0 0.0
    %861 = vmatprep.subr.mxu0 0.0
    %862 = vmatpush2.msra.mxu0 0.0
    %863 = vmatprep.subr.mxu0 0.0
    %864 = vmatpush2.msra.mxu0 0.0
    %865 = vmatprep.subr.mxu0 0.0
    %866 = vmatpush2.msra.mxu0 0.0
    %867 = vmatprep.subr.mxu0 0.0
    %868 = vmatpush2.msra.mxu0 0.0
    %869 = vmatprep.subr.mxu0 0.0
    %870 = vmatpush2.msra.mxu0 0.0
    %871 = vmatprep.subr.mxu0 0.0
    %872 = vmatpush2.msra.mxu0 0.0
    %873 = vmatprep.subr.mxu0 0.0
    %874 = vmatpush2.msra.mxu0 0.0
    %875 = vmatprep.mubr.f32.mxu0 0.0
    %876 = vmatmul.mubr.f32.gmra.mxu0 %v809
    %v877 = vpop.f32.mrf.mxu0
    %v878 = vadd.f32 %v805, %v877
    %v879 = vpop.f32.mrf.mxu0
    %880 = vdwg.mxu0
    %881 = vrot.lane.b32.xlu0 %v263, 112
    %v882 = vpop.permute.xlu0 %881
    %883 = vrot.lane.b32.xlu0 %v363, 80
    %v884 = vpop.permute.xlu0 %883
    %885 = vrot.lane.b32.xlu0 %v368, 80
    %v886 = vpop.permute.xlu0 %885
    %v887 = vsel %vm392, %v882, 0
    %v889 = vsel %vm392, %v884, 0
    %v891 = vsel %vm392, %v886, 0
    %893 = vmatprep.subr.mxu0 0.0
    %894 = vmatpush1.xpose.msra.mxu0 0.0
    %895 = vmatprep.subr.mxu0 0.0
    %896 = vmatpush1.xpose.msra.mxu0 0.0
    %897 = vmatprep.subr.mxu0 0.0
    %898 = vmatpush1.xpose.msra.mxu0 0.0
    %899 = vmatprep.subr.mxu0 0.0
    %900 = vmatpush1.xpose.msra.mxu0 0.0
    %901 = vmatprep.subr.mxu0 0.0
    %902 = vmatpush1.xpose.msra.mxu0 0.0
    %903 = vmatprep.subr.mxu0 0.0
    %904 = vmatpush1.xpose.msra.mxu0 0.0
    %905 = vmatprep.subr.mxu0 0.0
    %906 = vmatpush1.xpose.msra.mxu0 0.0
    %907 = vmatprep.subr.mxu0 0.0
    %908 = vmatpush1.xpose.msra.mxu0 0.0
    %909 = vmatprep.subr.mxu0 0.0
    %910 = vmatpush1.xpose.msra.mxu0 0.0
    %911 = vmatprep.subr.mxu0 0.0
    %912 = vmatpush1.xpose.msra.mxu0 0.0
    %913 = vmatprep.subr.mxu0 0.0
    %914 = vmatpush1.xpose.msra.mxu0 0.0
    %915 = vmatprep.subr.mxu0 0.0
    %916 = vmatpush1.xpose.msra.mxu0 0.0
    %917 = vmatprep.subr.mxu0 0.0
    %918 = vmatpush1.xpose.msra.mxu0 0.0
    %919 = vmatprep.subr.mxu0 0.0
    %920 = vmatpush1.xpose.msra.mxu0 0.0
    %921 = vmatprep.subr.mxu0 0.0
    %922 = vmatpush1.xpose.msra.mxu0 %v891
    %923 = vmatprep.subr.mxu0 0.0
    %924 = vmatpush1.xpose.msra.mxu0 %v889
    %925 = vmatprep.subr.mxu0 0.0
    %926 = vmatpush2.xpose.msra.mxu0 0.0
    %927 = vmatprep.subr.mxu0 0.0
    %928 = vmatpush2.xpose.msra.mxu0 0.0
    %929 = vmatprep.subr.mxu0 0.0
    %930 = vmatpush2.xpose.msra.mxu0 0.0
    %931 = vmatprep.subr.mxu0 0.0
    %932 = vmatpush2.xpose.msra.mxu0 0.0
    %933 = vmatprep.subr.mxu0 0.0
    %934 = vmatpush2.xpose.msra.mxu0 0.0
    %935 = vmatprep.subr.mxu0 0.0
    %936 = vmatpush2.xpose.msra.mxu0 0.0
    %937 = vmatprep.subr.mxu0 0.0
    %938 = vmatpush2.xpose.msra.mxu0 0.0
    %939 = vmatprep.subr.mxu0 0.0
    %940 = vmatpush2.xpose.msra.mxu0 0.0
    %941 = vmatprep.subr.mxu0 0.0
    %942 = vmatpush2.xpose.msra.mxu0 0.0
    %943 = vmatprep.subr.mxu0 0.0
    %944 = vmatpush2.xpose.msra.mxu0 0.0
    %945 = vmatprep.subr.mxu0 0.0
    %946 = vmatpush2.xpose.msra.mxu0 0.0
    %947 = vmatprep.subr.mxu0 0.0
    %948 = vmatpush2.xpose.msra.mxu0 0.0
    %949 = vmatprep.subr.mxu0 0.0
    %950 = vmatpush2.xpose.msra.mxu0 0.0
    %951 = vmatprep.subr.mxu0 0.0
    %952 = vmatpush2.xpose.msra.mxu0 0.0
    %953 = vmatprep.subr.mxu0 0.0
    %954 = vmatpush2.xpose.msra.mxu0 0.0
    %955 = vmatprep.subr.mxu0 0.0
    %956 = vmatpush2.xpose.msra.mxu0 0.0
    %957 = vmatprep.mubr.f32.mxu0 0.0
    %958 = vmatmul.mubr.f32.gmra.mxu0 %v887
    %v959 = vpop.f32.mrf.mxu0
    %v960 = vadd.f32 0.0, %v959
    %v961 = vpop.f32.mrf.mxu0
    %962 = vdwg.mxu0
    %v963 = vmul.f32 %v960, 0.35355338
    %v964 = vsel %vm471, %v963, -inf
    %965 = vmax.xlane.f32.xlu0 %v964
    %v966 = vpop.xlane.xlu0 %965
    %v967 = vsub.f32 %v963, %v966
    %v968 = vmul.f32 %v967, 1.442695
    %v969 = vpow.pop %v968
    %v970 = vsel %vm471, %v969, 0.0
    %971 = vadd.xlane.f32.xlu0 %v970
    %v972 = vpop.xlane.xlu0 %971
    %v973 = vrcp.pop %v972
    %v974 = vmul.f32 %v969, %v973
    %975 = vrot.lane.b32.xlu0 %v363, 48
    %v976 = vpop.permute.xlu0 %975
    %977 = vrot.lane.b32.xlu0 %v368, 48
    %v978 = vpop.permute.xlu0 %977
    %v982 = vsel %vm471, %v974, 0
    %984 = vmatprep.subr.mxu0 0.0
    %985 = vmatpush1.msra.mxu0 0.0
    %986 = vmatprep.subr.mxu0 0.0
    %987 = vmatpush1.msra.mxu0 0.0
    %988 = vmatprep.subr.mxu0 0.0
    %989 = vmatpush1.msra.mxu0 0.0
    %990 = vmatprep.subr.mxu0 0.0
    %991 = vmatpush1.msra.mxu0 0.0
    %992 = vmatprep.subr.mxu0 0.0
    %993 = vmatpush1.msra.mxu0 0.0
    %994 = vmatprep.subr.mxu0 0.0
    %995 = vmatpush1.msra.mxu0 0.0
    %996 = vmatprep.subr.mxu0 0.0
    %997 = vmatpush1.msra.mxu0 0.0
    %998 = vmatprep.subr.mxu0 0.0
    %999 = vmatpush1.msra.mxu0 0.0
    %1000 = vmatprep.subr.mxu0 0.0
    %1001 = vmatpush1.msra.mxu0 0.0
    %1002 = vmatprep.subr.mxu0 0.0
    %1003 = vmatpush1.msra.mxu0 0.0
    %1004 = vmatprep.subr.mxu0 0.0
    %1005 = vmatpush1.msra.mxu0 0.0
    %1006 = vmatprep.subr.mxu0 0.0
    %1007 = vmatpush1.msra.mxu0 0.0
    %1008 = vmatprep.subr.mxu0 0.0
    %1009 = vmatpush1.msra.mxu0 0.0
    %1010 = vmatprep.subr.mxu0 0.0
    %1011 = vmatpush1.msra.mxu0 0.0
    %1012 = vmatprep.subr.mxu0 0.0
    %1013 = vmatpush1.msra.mxu0 %v978
    %1014 = vmatprep.subr.mxu0 0.0
    %1015 = vmatpush1.msra.mxu0 %v976
    %1016 = vmatprep.subr.mxu0 0.0
    %1017 = vmatpush2.msra.mxu0 0.0
    %1018 = vmatprep.subr.mxu0 0.0
    %1019 = vmatpush2.msra.mxu0 0.0
    %1020 = vmatprep.subr.mxu0 0.0
    %1021 = vmatpush2.msra.mxu0 0.0
    %1022 = vmatprep.subr.mxu0 0.0
    %1023 = vmatpush2.msra.mxu0 0.0
    %1024 = vmatprep.subr.mxu0 0.0
    %1025 = vmatpush2.msra.mxu0 0.0
    %1026 = vmatprep.subr.mxu0 0.0
    %1027 = vmatpush2.msra.mxu0 0.0
    %1028 = vmatprep.subr.mxu0 0.0
    %1029 = vmatpush2.msra.mxu0 0.0
    %1030 = vmatprep.subr.mxu0 0.0
    %1031 = vmatpush2.msra.mxu0 0.0
    %1032 = vmatprep.subr.mxu0 0.0
    %1033 = vmatpush2.msra.mxu0 0.0
    %1034 = vmatprep.subr.mxu0 0.0
    %1035 = vmatpush2.msra.mxu0 0.0
    %1036 = vmatprep.subr.mxu0 0.0
    %1037 = vmatpush2.msra.mxu0 0.0
    %1038 = vmatprep.subr.mxu0 0.0
    %1039 = vmatpush2.msra.mxu0 0.0
    %1040 = vmatprep.subr.mxu0 0.0
    %1041 = vmatpush2.msra.mxu0 0.0
    %1042 = vmatprep.subr.mxu0 0.0
    %1043 = vmatpush2.msra.mxu0 0.0
    %1044 = vmatprep.subr.mxu0 0.0
    %1045 = vmatpush2.msra.mxu0 0.0
    %1046 = vmatprep.subr.mxu0 0.0
    %1047 = vmatpush2.msra.mxu0 0.0
    %1048 = vmatprep.mubr.f32.mxu0 0.0
    %1049 = vmatmul.mubr.f32.gmra.mxu0 %v982
    %v1050 = vpop.f32.mrf.mxu0
    %v1051 = vadd.f32 0.0, %v1050
    %v1052 = vpop.f32.mrf.mxu0
    %1053 = vdwg.mxu0
    %v1055 = vsel %vm392, %v1051, 0
    %1057 = vmatprep.subr.mxu0 0.0
    %1058 = vmatpush1.msra.mxu0 0.0
    %1059 = vmatprep.subr.mxu0 0.0
    %1060 = vmatpush1.msra.mxu0 0.0
    %1061 = vmatprep.subr.mxu0 0.0
    %1062 = vmatpush1.msra.mxu0 0.0
    %1063 = vmatprep.subr.mxu0 0.0
    %1064 = vmatpush1.msra.mxu0 0.0
    %1065 = vmatprep.subr.mxu0 0.0
    %1066 = vmatpush1.msra.mxu0 0.0
    %1067 = vmatprep.subr.mxu0 0.0
    %1068 = vmatpush1.msra.mxu0 0.0
    %1069 = vmatprep.subr.mxu0 0.0
    %1070 = vmatpush1.msra.mxu0 0.0
    %1071 = vmatprep.subr.mxu0 0.0
    %1072 = vmatpush1.msra.mxu0 0.0
    %1073 = vmatprep.subr.mxu0 0.0
    %1074 = vmatpush1.msra.mxu0 0.0
    %1075 = vmatprep.subr.mxu0 0.0
    %1076 = vmatpush1.msra.mxu0 0.0
    %1077 = vmatprep.subr.mxu0 0.0
    %1078 = vmatpush1.msra.mxu0 0.0
    %1079 = vmatprep.subr.mxu0 0.0
    %1080 = vmatpush1.msra.mxu0 0.0
    %1081 = vmatprep.subr.mxu0 0.0
    %1082 = vmatpush1.msra.mxu0 0.0
    %1083 = vmatprep.subr.mxu0 0.0
    %1084 = vmatpush1.msra.mxu0 0.0
    %1085 = vmatprep.subr.mxu0 0.0
    %1086 = vmatpush1.msra.mxu0 0.0
    %1087 = vmatprep.subr.mxu0 0.0
    %1088 = vmatpush1.msra.mxu0 %v383
    %1089 = vmatprep.subr.mxu0 0.0
    %1090 = vmatpush2.msra.mxu0 0.0
    %1091 = vmatprep.subr.mxu0 0.0
    %1092 = vmatpush2.msra.mxu0 0.0
    %1093 = vmatprep.subr.mxu0 0.0
    %1094 = vmatpush2.msra.mxu0 0.0
    %1095 = vmatprep.subr.mxu0 0.0
    %1096 = vmatpush2.msra.mxu0 0.0
    %1097 = vmatprep.subr.mxu0 0.0
    %1098 = vmatpush2.msra.mxu0 0.0
    %1099 = vmatprep.subr.mxu0 0.0
    %1100 = vmatpush2.msra.mxu0 0.0
    %1101 = vmatprep.subr.mxu0 0.0
    %1102 = vmatpush2.msra.mxu0 0.0
    %1103 = vmatprep.subr.mxu0 0.0
    %1104 = vmatpush2.msra.mxu0 0.0
    %1105 = vmatprep.subr.mxu0 0.0
    %1106 = vmatpush2.msra.mxu0 0.0
    %1107 = vmatprep.subr.mxu0 0.0
    %1108 = vmatpush2.msra.mxu0 0.0
    %1109 = vmatprep.subr.mxu0 0.0
    %1110 = vmatpush2.msra.mxu0 0.0
    %1111 = vmatprep.subr.mxu0 0.0
    %1112 = vmatpush2.msra.mxu0 0.0
    %1113 = vmatprep.subr.mxu0 0.0
    %1114 = vmatpush2.msra.mxu0 0.0
    %1115 = vmatprep.subr.mxu0 0.0
    %1116 = vmatpush2.msra.mxu0 0.0
    %1117 = vmatprep.subr.mxu0 0.0
    %1118 = vmatpush2.msra.mxu0 0.0
    %1119 = vmatprep.subr.mxu0 0.0
    %1120 = vmatpush2.msra.mxu0 0.0
    %1121 = vmatprep.mubr.f32.mxu0 0.0
    %1122 = vmatmul.mubr.f32.gmra.mxu0 %v1055
    %v1123 = vpop.f32.mrf.mxu0
    %v1124 = vadd.f32 0.0, %v1123
    %v1125 = vpop.f32.mrf.mxu0
    %1126 = vdwg.mxu0
    %v1127 = vadd.f32 %v878, %v1124
    %1128 = vrot.lane.b32.xlu0 %v263, 104
    %v1129 = vpop.permute.xlu0 %1128
    %1130 = vrot.lane.b32.xlu0 %v363, 72
    %v1131 = vpop.permute.xlu0 %1130
    %1132 = vrot.lane.b32.xlu0 %v368, 72
    %v1133 = vpop.permute.xlu0 %1132
    %v1134 = vsel %vm392, %v1129, 0
    %v1136 = vsel %vm392, %v1131, 0
    %v1138 = vsel %vm392, %v1133, 0
    %1140 = vmatprep.subr.mxu0 0.0
    %1141 = vmatpush1.xpose.msra.mxu0 0.0
    %1142 = vmatprep.subr.mxu0 0.0
    %1143 = vmatpush1.xpose.msra.mxu0 0.0
    %1144 = vmatprep.subr.mxu0 0.0
    %1145 = vmatpush1.xpose.msra.mxu0 0.0
    %1146 = vmatprep.subr.mxu0 0.0
    %1147 = vmatpush1.xpose.msra.mxu0 0.0
    %1148 = vmatprep.subr.mxu0 0.0
    %1149 = vmatpush1.xpose.msra.mxu0 0.0
    %1150 = vmatprep.subr.mxu0 0.0
    %1151 = vmatpush1.xpose.msra.mxu0 0.0
    %1152 = vmatprep.subr.mxu0 0.0
    %1153 = vmatpush1.xpose.msra.mxu0 0.0
    %1154 = vmatprep.subr.mxu0 0.0
    %1155 = vmatpush1.xpose.msra.mxu0 0.0
    %1156 = vmatprep.subr.mxu0 0.0
    %1157 = vmatpush1.xpose.msra.mxu0 0.0
    %1158 = vmatprep.subr.mxu0 0.0
    %1159 = vmatpush1.xpose.msra.mxu0 0.0
    %1160 = vmatprep.subr.mxu0 0.0
    %1161 = vmatpush1.xpose.msra.mxu0 0.0
    %1162 = vmatprep.subr.mxu0 0.0
    %1163 = vmatpush1.xpose.msra.mxu0 0.0
    %1164 = vmatprep.subr.mxu0 0.0
    %1165 = vmatpush1.xpose.msra.mxu0 0.0
    %1166 = vmatprep.subr.mxu0 0.0
    %1167 = vmatpush1.xpose.msra.mxu0 0.0
    %1168 = vmatprep.subr.mxu0 0.0
    %1169 = vmatpush1.xpose.msra.mxu0 %v1138
    %1170 = vmatprep.subr.mxu0 0.0
    %1171 = vmatpush1.xpose.msra.mxu0 %v1136
    %1172 = vmatprep.subr.mxu0 0.0
    %1173 = vmatpush2.xpose.msra.mxu0 0.0
    %1174 = vmatprep.subr.mxu0 0.0
    %1175 = vmatpush2.xpose.msra.mxu0 0.0
    %1176 = vmatprep.subr.mxu0 0.0
    %1177 = vmatpush2.xpose.msra.mxu0 0.0
    %1178 = vmatprep.subr.mxu0 0.0
    %1179 = vmatpush2.xpose.msra.mxu0 0.0
    %1180 = vmatprep.subr.mxu0 0.0
    %1181 = vmatpush2.xpose.msra.mxu0 0.0
    %1182 = vmatprep.subr.mxu0 0.0
    %1183 = vmatpush2.xpose.msra.mxu0 0.0
    %1184 = vmatprep.subr.mxu0 0.0
    %1185 = vmatpush2.xpose.msra.mxu0 0.0
    %1186 = vmatprep.subr.mxu0 0.0
    %1187 = vmatpush2.xpose.msra.mxu0 0.0
    %1188 = vmatprep.subr.mxu0 0.0
    %1189 = vmatpush2.xpose.msra.mxu0 0.0
    %1190 = vmatprep.subr.mxu0 0.0
    %1191 = vmatpush2.xpose.msra.mxu0 0.0
    %1192 = vmatprep.subr.mxu0 0.0
    %1193 = vmatpush2.xpose.msra.mxu0 0.0
    %1194 = vmatprep.subr.mxu0 0.0
    %1195 = vmatpush2.xpose.msra.mxu0 0.0
    %1196 = vmatprep.subr.mxu0 0.0
    %1197 = vmatpush2.xpose.msra.mxu0 0.0
    %1198 = vmatprep.subr.mxu0 0.0
    %1199 = vmatpush2.xpose.msra.mxu0 0.0
    %1200 = vmatprep.subr.mxu0 0.0
    %1201 = vmatpush2.xpose.msra.mxu0 0.0
    %1202 = vmatprep.subr.mxu0 0.0
    %1203 = vmatpush2.xpose.msra.mxu0 0.0
    %1204 = vmatprep.mubr.f32.mxu0 0.0
    %1205 = vmatmul.mubr.f32.gmra.mxu0 %v1134
    %v1206 = vpop.f32.mrf.mxu0
    %v1207 = vadd.f32 0.0, %v1206
    %v1208 = vpop.f32.mrf.mxu0
    %1209 = vdwg.mxu0
    %v1210 = vmul.f32 %v1207, 0.35355338
    %v1211 = vsel %vm471, %v1210, -inf
    %1212 = vmax.xlane.f32.xlu0 %v1211
    %v1213 = vpop.xlane.xlu0 %1212
    %v1214 = vsub.f32 %v1210, %v1213
    %v1215 = vmul.f32 %v1214, 1.442695
    %v1216 = vpow.pop %v1215
    %v1217 = vsel %vm471, %v1216, 0.0
    %1218 = vadd.xlane.f32.xlu0 %v1217
    %v1219 = vpop.xlane.xlu0 %1218
    %v1220 = vrcp.pop %v1219
    %v1221 = vmul.f32 %v1216, %v1220
    %1222 = vrot.lane.b32.xlu0 %v363, 40
    %v1223 = vpop.permute.xlu0 %1222
    %1224 = vrot.lane.b32.xlu0 %v368, 40
    %v1225 = vpop.permute.xlu0 %1224
    %v1229 = vsel %vm471, %v1221, 0
    %1231 = vmatprep.subr.mxu0 0.0
    %1232 = vmatpush1.msra.mxu0 0.0
    %1233 = vmatprep.subr.mxu0 0.0
    %1234 = vmatpush1.msra.mxu0 0.0
    %1235 = vmatprep.subr.mxu0 0.0
    %1236 = vmatpush1.msra.mxu0 0.0
    %1237 = vmatprep.subr.mxu0 0.0
    %1238 = vmatpush1.msra.mxu0 0.0
    %1239 = vmatprep.subr.mxu0 0.0
    %1240 = vmatpush1.msra.mxu0 0.0
    %1241 = vmatprep.subr.mxu0 0.0
    %1242 = vmatpush1.msra.mxu0 0.0
    %1243 = vmatprep.subr.mxu0 0.0
    %1244 = vmatpush1.msra.mxu0 0.0
    %1245 = vmatprep.subr.mxu0 0.0
    %1246 = vmatpush1.msra.mxu0 0.0
    %1247 = vmatprep.subr.mxu0 0.0
    %1248 = vmatpush1.msra.mxu0 0.0
    %1249 = vmatprep.subr.mxu0 0.0
    %1250 = vmatpush1.msra.mxu0 0.0
    %1251 = vmatprep.subr.mxu0 0.0
    %1252 = vmatpush1.msra.mxu0 0.0
    %1253 = vmatprep.subr.mxu0 0.0
    %1254 = vmatpush1.msra.mxu0 0.0
    %1255 = vmatprep.subr.mxu0 0.0
    %1256 = vmatpush1.msra.mxu0 0.0
    %1257 = vmatprep.subr.mxu0 0.0
    %1258 = vmatpush1.msra.mxu0 0.0
    %1259 = vmatprep.subr.mxu0 0.0
    %1260 = vmatpush1.msra.mxu0 %v1225
    %1261 = vmatprep.subr.mxu0 0.0
    %1262 = vmatpush1.msra.mxu0 %v1223
    %1263 = vmatprep.subr.mxu0 0.0
    %1264 = vmatpush2.msra.mxu0 0.0
    %1265 = vmatprep.subr.mxu0 0.0
    %1266 = vmatpush2.msra.mxu0 0.0
    %1267 = vmatprep.subr.mxu0 0.0
    %1268 = vmatpush2.msra.mxu0 0.0
    %1269 = vmatprep.subr.mxu0 0.0
    %1270 = vmatpush2.msra.mxu0 0.0
    %1271 = vmatprep.subr.mxu0 0.0
    %1272 = vmatpush2.msra.mxu0 0.0
    %1273 = vmatprep.subr.mxu0 0.0
    %1274 = vmatpush2.msra.mxu0 0.0
    %1275 = vmatprep.subr.mxu0 0.0
    %1276 = vmatpush2.msra.mxu0 0.0
    %1277 = vmatprep.subr.mxu0 0.0
    %1278 = vmatpush2.msra.mxu0 0.0
    %1279 = vmatprep.subr.mxu0 0.0
    %1280 = vmatpush2.msra.mxu0 0.0
    %1281 = vmatprep.subr.mxu0 0.0
    %1282 = vmatpush2.msra.mxu0 0.0
    %1283 = vmatprep.subr.mxu0 0.0
    %1284 = vmatpush2.msra.mxu0 0.0
    %1285 = vmatprep.subr.mxu0 0.0
    %1286 = vmatpush2.msra.mxu0 0.0
    %1287 = vmatprep.subr.mxu0 0.0
    %1288 = vmatpush2.msra.mxu0 0.0
    %1289 = vmatprep.subr.mxu0 0.0
    %1290 = vmatpush2.msra.mxu0 0.0
    %1291 = vmatprep.subr.mxu0 0.0
    %1292 = vmatpush2.msra.mxu0 0.0
    %1293 = vmatprep.subr.mxu0 0.0
    %1294 = vmatpush2.msra.mxu0 0.0
    %1295 = vmatprep.mubr.f32.mxu0 0.0
    %1296 = vmatmul.mubr.f32.gmra.mxu0 %v1229
    %v1297 = vpop.f32.mrf.mxu0
    %v1298 = vadd.f32 0.0, %v1297
    %v1299 = vpop.f32.mrf.mxu0
    %1300 = vdwg.mxu0
    %v1302 = vsel %vm392, %v1298, 0
    %1304 = vmatprep.subr.mxu0 0.0
    %1305 = vmatpush1.msra.mxu0 0.0
    %1306 = vmatprep.subr.mxu0 0.0
    %1307 = vmatpush1.msra.mxu0 0.0
    %1308 = vmatprep.subr.mxu0 0.0
    %1309 = vmatpush1.msra.mxu0 0.0
    %1310 = vmatprep.subr.mxu0 0.0
    %1311 = vmatpush1.msra.mxu0 0.0
    %1312 = vmatprep.subr.mxu0 0.0
    %1313 = vmatpush1.msra.mxu0 0.0
    %1314 = vmatprep.subr.mxu0 0.0
    %1315 = vmatpush1.msra.mxu0 0.0
    %1316 = vmatprep.subr.mxu0 0.0
    %1317 = vmatpush1.msra.mxu0 0.0
    %1318 = vmatprep.subr.mxu0 0.0
    %1319 = vmatpush1.msra.mxu0 0.0
    %1320 = vmatprep.subr.mxu0 0.0
    %1321 = vmatpush1.msra.mxu0 0.0
    %1322 = vmatprep.subr.mxu0 0.0
    %1323 = vmatpush1.msra.mxu0 0.0
    %1324 = vmatprep.subr.mxu0 0.0
    %1325 = vmatpush1.msra.mxu0 0.0
    %1326 = vmatprep.subr.mxu0 0.0
    %1327 = vmatpush1.msra.mxu0 0.0
    %1328 = vmatprep.subr.mxu0 0.0
    %1329 = vmatpush1.msra.mxu0 0.0
    %1330 = vmatprep.subr.mxu0 0.0
    %1331 = vmatpush1.msra.mxu0 0.0
    %1332 = vmatprep.subr.mxu0 0.0
    %1333 = vmatpush1.msra.mxu0 0.0
    %1334 = vmatprep.subr.mxu0 0.0
    %1335 = vmatpush1.msra.mxu0 %v384
    %1336 = vmatprep.subr.mxu0 0.0
    %1337 = vmatpush2.msra.mxu0 0.0
    %1338 = vmatprep.subr.mxu0 0.0
    %1339 = vmatpush2.msra.mxu0 0.0
    %1340 = vmatprep.subr.mxu0 0.0
    %1341 = vmatpush2.msra.mxu0 0.0
    %1342 = vmatprep.subr.mxu0 0.0
    %1343 = vmatpush2.msra.mxu0 0.0
    %1344 = vmatprep.subr.mxu0 0.0
    %1345 = vmatpush2.msra.mxu0 0.0
    %1346 = vmatprep.subr.mxu0 0.0
    %1347 = vmatpush2.msra.mxu0 0.0
    %1348 = vmatprep.subr.mxu0 0.0
    %1349 = vmatpush2.msra.mxu0 0.0
    %1350 = vmatprep.subr.mxu0 0.0
    %1351 = vmatpush2.msra.mxu0 0.0
    %1352 = vmatprep.subr.mxu0 0.0
    %1353 = vmatpush2.msra.mxu0 0.0
    %1354 = vmatprep.subr.mxu0 0.0
    %1355 = vmatpush2.msra.mxu0 0.0
    %1356 = vmatprep.subr.mxu0 0.0
    %1357 = vmatpush2.msra.mxu0 0.0
    %1358 = vmatprep.subr.mxu0 0.0
    %1359 = vmatpush2.msra.mxu0 0.0
    %1360 = vmatprep.subr.mxu0 0.0
    %1361 = vmatpush2.msra.mxu0 0.0
    %1362 = vmatprep.subr.mxu0 0.0
    %1363 = vmatpush2.msra.mxu0 0.0
    %1364 = vmatprep.subr.mxu0 0.0
    %1365 = vmatpush2.msra.mxu0 0.0
    %1366 = vmatprep.subr.mxu0 0.0
    %1367 = vmatpush2.msra.mxu0 0.0
    %1368 = vmatprep.mubr.f32.mxu0 0.0
    %1369 = vmatmul.mubr.f32.gmra.mxu0 %v1302
    %v1370 = vpop.f32.mrf.mxu0
    %v1371 = vadd.f32 0.0, %v1370
    %v1372 = vpop.f32.mrf.mxu0
    %1373 = vdwg.mxu0
    %v1374 = vadd.f32 %v1127, %v1371
    %v1376 = vlaneseq
    %v1377 = vshrl.u32 %v1376, 7
    %v1378 = vsub.s32 0, %v1377
    %v1379 = vrot.slane %v385, %v1378
    %v1381 = vadd.f32 %v1374, %v1379
    %1384 = vrot.lane.b32.xlu0 %v373, 96
    %v1385 = vpop.permute.xlu0 %1384
    %1386 = vrot.lane.b32.xlu0 %v378, 96
    %v1387 = vpop.permute.xlu0 %1386
    %v1389 = vsel %vm392, %v268, 0
    %v1391 = vsel %vm392, %v1385, 0
    %v1393 = vsel %vm392, %v1387, 0
    %1395 = vmatprep.subr.mxu0 0.0
    %1396 = vmatpush1.xpose.msra.mxu0 0.0
    %1397 = vmatprep.subr.mxu0 0.0
    %1398 = vmatpush1.xpose.msra.mxu0 0.0
    %1399 = vmatprep.subr.mxu0 0.0
    %1400 = vmatpush1.xpose.msra.mxu0 0.0
    %1401 = vmatprep.subr.mxu0 0.0
    %1402 = vmatpush1.xpose.msra.mxu0 0.0
    %1403 = vmatprep.subr.mxu0 0.0
    %1404 = vmatpush1.xpose.msra.mxu0 0.0
    %1405 = vmatprep.subr.mxu0 0.0
    %1406 = vmatpush1.xpose.msra.mxu0 0.0
    %1407 = vmatprep.subr.mxu0 0.0
    %1408 = vmatpush1.xpose.msra.mxu0 0.0
    %1409 = vmatprep.subr.mxu0 0.0
    %1410 = vmatpush1.xpose.msra.mxu0 0.0
    %1411 = vmatprep.subr.mxu0 0.0
    %1412 = vmatpush1.xpose.msra.mxu0 0.0
    %1413 = vmatprep.subr.mxu0 0.0
    %1414 = vmatpush1.xpose.msra.mxu0 0.0
    %1415 = vmatprep.subr.mxu0 0.0
    %1416 = vmatpush1.xpose.msra.mxu0 0.0
    %1417 = vmatprep.subr.mxu0 0.0
    %1418 = vmatpush1.xpose.msra.mxu0 0.0
    %1419 = vmatprep.subr.mxu0 0.0
    %1420 = vmatpush1.xpose.msra.mxu0 0.0
    %1421 = vmatprep.subr.mxu0 0.0
    %1422 = vmatpush1.xpose.msra.mxu0 0.0
    %1423 = vmatprep.subr.mxu0 0.0
    %1424 = vmatpush1.xpose.msra.mxu0 %v1393
    %1425 = vmatprep.subr.mxu0 0.0
    %1426 = vmatpush1.xpose.msra.mxu0 %v1391
    %1427 = vmatprep.subr.mxu0 0.0
    %1428 = vmatpush2.xpose.msra.mxu0 0.0
    %1429 = vmatprep.subr.mxu0 0.0
    %1430 = vmatpush2.xpose.msra.mxu0 0.0
    %1431 = vmatprep.subr.mxu0 0.0
    %1432 = vmatpush2.xpose.msra.mxu0 0.0
    %1433 = vmatprep.subr.mxu0 0.0
    %1434 = vmatpush2.xpose.msra.mxu0 0.0
    %1435 = vmatprep.subr.mxu0 0.0
    %1436 = vmatpush2.xpose.msra.mxu0 0.0
    %1437 = vmatprep.subr.mxu0 0.0
    %1438 = vmatpush2.xpose.msra.mxu0 0.0
    %1439 = vmatprep.subr.mxu0 0.0
    %1440 = vmatpush2.xpose.msra.mxu0 0.0
    %1441 = vmatprep.subr.mxu0 0.0
    %1442 = vmatpush2.xpose.msra.mxu0 0.0
    %1443 = vmatprep.subr.mxu0 0.0
    %1444 = vmatpush2.xpose.msra.mxu0 0.0
    %1445 = vmatprep.subr.mxu0 0.0
    %1446 = vmatpush2.xpose.msra.mxu0 0.0
    %1447 = vmatprep.subr.mxu0 0.0
    %1448 = vmatpush2.xpose.msra.mxu0 0.0
    %1449 = vmatprep.subr.mxu0 0.0
    %1450 = vmatpush2.xpose.msra.mxu0 0.0
    %1451 = vmatprep.subr.mxu0 0.0
    %1452 = vmatpush2.xpose.msra.mxu0 0.0
    %1453 = vmatprep.subr.mxu0 0.0
    %1454 = vmatpush2.xpose.msra.mxu0 0.0
    %1455 = vmatprep.subr.mxu0 0.0
    %1456 = vmatpush2.xpose.msra.mxu0 0.0
    %1457 = vmatprep.subr.mxu0 0.0
    %1458 = vmatpush2.xpose.msra.mxu0 0.0
    %1459 = vmatprep.mubr.f32.mxu0 0.0
    %1460 = vmatmul.mubr.f32.gmra.mxu0 %v1389
    %v1461 = vpop.f32.mrf.mxu0
    %v1462 = vadd.f32 0.0, %v1461
    %v1463 = vpop.f32.mrf.mxu0
    %1464 = vdwg.mxu0
    %v1465 = vmul.f32 %v1462, 0.35355338
    %v1466 = vsel %vm471, %v1465, -inf
    %1467 = vmax.xlane.f32.xlu0 %v1466
    %v1468 = vpop.xlane.xlu0 %1467
    %v1469 = vsub.f32 %v1465, %v1468
    %v1470 = vmul.f32 %v1469, 1.442695
    %v1471 = vpow.pop %v1470
    %v1472 = vsel %vm471, %v1471, 0.0
    %1473 = vadd.xlane.f32.xlu0 %v1472
    %v1474 = vpop.xlane.xlu0 %1473
    %v1475 = vrcp.pop %v1474
    %v1476 = vmul.f32 %v1471, %v1475
    %1477 = vrot.lane.b32.xlu0 %v373, 64
    %v1478 = vpop.permute.xlu0 %1477
    %1479 = vrot.lane.b32.xlu0 %v378, 64
    %v1480 = vpop.permute.xlu0 %1479
    %v1484 = vsel %vm471, %v1476, 0
    %1486 = vmatprep.subr.mxu0 0.0
    %1487 = vmatpush1.msra.mxu0 0.0
    %1488 = vmatprep.subr.mxu0 0.0
    %1489 = vmatpush1.msra.mxu0 0.0
    %1490 = vmatprep.subr.mxu0 0.0
    %1491 = vmatpush1.msra.mxu0 0.0
    %1492 = vmatprep.subr.mxu0 0.0
    %1493 = vmatpush1.msra.mxu0 0.0
    %1494 = vmatprep.subr.mxu0 0.0
    %1495 = vmatpush1.msra.mxu0 0.0
    %1496 = vmatprep.subr.mxu0 0.0
    %1497 = vmatpush1.msra.mxu0 0.0
    %1498 = vmatprep.subr.mxu0 0.0
    %1499 = vmatpush1.msra.mxu0 0.0
    %1500 = vmatprep.subr.mxu0 0.0
    %1501 = vmatpush1.msra.mxu0 0.0
    %1502 = vmatprep.subr.mxu0 0.0
    %1503 = vmatpush1.msra.mxu0 0.0
    %1504 = vmatprep.subr.mxu0 0.0
    %1505 = vmatpush1.msra.mxu0 0.0
    %1506 = vmatprep.subr.mxu0 0.0
    %1507 = vmatpush1.msra.mxu0 0.0
    %1508 = vmatprep.subr.mxu0 0.0
    %1509 = vmatpush1.msra.mxu0 0.0
    %1510 = vmatprep.subr.mxu0 0.0
    %1511 = vmatpush1.msra.mxu0 0.0
    %1512 = vmatprep.subr.mxu0 0.0
    %1513 = vmatpush1.msra.mxu0 0.0
    %1514 = vmatprep.subr.mxu0 0.0
    %1515 = vmatpush1.msra.mxu0 %v1480
    %1516 = vmatprep.subr.mxu0 0.0
    %1517 = vmatpush1.msra.mxu0 %v1478
    %1518 = vmatprep.subr.mxu0 0.0
    %1519 = vmatpush2.msra.mxu0 0.0
    %1520 = vmatprep.subr.mxu0 0.0
    %1521 = vmatpush2.msra.mxu0 0.0
    %1522 = vmatprep.subr.mxu0 0.0
    %1523 = vmatpush2.msra.mxu0 0.0
    %1524 = vmatprep.subr.mxu0 0.0
    %1525 = vmatpush2.msra.mxu0 0.0
    %1526 = vmatprep.subr.mxu0 0.0
    %1527 = vmatpush2.msra.mxu0 0.0
    %1528 = vmatprep.subr.mxu0 0.0
    %1529 = vmatpush2.msra.mxu0 0.0
    %1530 = vmatprep.subr.mxu0 0.0
    %1531 = vmatpush2.msra.mxu0 0.0
    %1532 = vmatprep.subr.mxu0 0.0
    %1533 = vmatpush2.msra.mxu0 0.0
    %1534 = vmatprep.subr.mxu0 0.0
    %1535 = vmatpush2.msra.mxu0 0.0
    %1536 = vmatprep.subr.mxu0 0.0
    %1537 = vmatpush2.msra.mxu0 0.0
    %1538 = vmatprep.subr.mxu0 0.0
    %1539 = vmatpush2.msra.mxu0 0.0
    %1540 = vmatprep.subr.mxu0 0.0
    %1541 = vmatpush2.msra.mxu0 0.0
    %1542 = vmatprep.subr.mxu0 0.0
    %1543 = vmatpush2.msra.mxu0 0.0
    %1544 = vmatprep.subr.mxu0 0.0
    %1545 = vmatpush2.msra.mxu0 0.0
    %1546 = vmatprep.subr.mxu0 0.0
    %1547 = vmatpush2.msra.mxu0 0.0
    %1548 = vmatprep.subr.mxu0 0.0
    %1549 = vmatpush2.msra.mxu0 0.0
    %1550 = vmatprep.mubr.f32.mxu0 0.0
    %1551 = vmatmul.mubr.f32.gmra.mxu0 %v1484
    %v1552 = vpop.f32.mrf.mxu0
    %v1553 = vadd.f32 0.0, %v1552
    %v1554 = vpop.f32.mrf.mxu0
    %1555 = vdwg.mxu0
    %1556 = vrot.lane.b32.xlu0 %v268, 120
    %v1557 = vpop.permute.xlu0 %1556
    %1558 = vrot.lane.b32.xlu0 %v373, 88
    %v1559 = vpop.permute.xlu0 %1558
    %1560 = vrot.lane.b32.xlu0 %v378, 88
    %v1561 = vpop.permute.xlu0 %1560
    %v1562 = vsel %vm392, %v1557, 0
    %v1564 = vsel %vm392, %v1559, 0
    %v1566 = vsel %vm392, %v1561, 0
    %1568 = vmatprep.subr.mxu0 0.0
    %1569 = vmatpush1.xpose.msra.mxu0 0.0
    %1570 = vmatprep.subr.mxu0 0.0
    %1571 = vmatpush1.xpose.msra.mxu0 0.0
    %1572 = vmatprep.subr.mxu0 0.0
    %1573 = vmatpush1.xpose.msra.mxu0 0.0
    %1574 = vmatprep.subr.mxu0 0.0
    %1575 = vmatpush1.xpose.msra.mxu0 0.0
    %1576 = vmatprep.subr.mxu0 0.0
    %1577 = vmatpush1.xpose.msra.mxu0 0.0
    %1578 = vmatprep.subr.mxu0 0.0
    %1579 = vmatpush1.xpose.msra.mxu0 0.0
    %1580 = vmatprep.subr.mxu0 0.0
    %1581 = vmatpush1.xpose.msra.mxu0 0.0
    %1582 = vmatprep.subr.mxu0 0.0
    %1583 = vmatpush1.xpose.msra.mxu0 0.0
    %1584 = vmatprep.subr.mxu0 0.0
    %1585 = vmatpush1.xpose.msra.mxu0 0.0
    %1586 = vmatprep.subr.mxu0 0.0
    %1587 = vmatpush1.xpose.msra.mxu0 0.0
    %1588 = vmatprep.subr.mxu0 0.0
    %1589 = vmatpush1.xpose.msra.mxu0 0.0
    %1590 = vmatprep.subr.mxu0 0.0
    %1591 = vmatpush1.xpose.msra.mxu0 0.0
    %1592 = vmatprep.subr.mxu0 0.0
    %1593 = vmatpush1.xpose.msra.mxu0 0.0
    %1594 = vmatprep.subr.mxu0 0.0
    %1595 = vmatpush1.xpose.msra.mxu0 0.0
    %1596 = vmatprep.subr.mxu0 0.0
    %1597 = vmatpush1.xpose.msra.mxu0 %v1566
    %1598 = vmatprep.subr.mxu0 0.0
    %1599 = vmatpush1.xpose.msra.mxu0 %v1564
    %1600 = vmatprep.subr.mxu0 0.0
    %1601 = vmatpush2.xpose.msra.mxu0 0.0
    %1602 = vmatprep.subr.mxu0 0.0
    %1603 = vmatpush2.xpose.msra.mxu0 0.0
    %1604 = vmatprep.subr.mxu0 0.0
    %1605 = vmatpush2.xpose.msra.mxu0 0.0
    %1606 = vmatprep.subr.mxu0 0.0
    %1607 = vmatpush2.xpose.msra.mxu0 0.0
    %1608 = vmatprep.subr.mxu0 0.0
    %1609 = vmatpush2.xpose.msra.mxu0 0.0
    %1610 = vmatprep.subr.mxu0 0.0
    %1611 = vmatpush2.xpose.msra.mxu0 0.0
    %1612 = vmatprep.subr.mxu0 0.0
    %1613 = vmatpush2.xpose.msra.mxu0 0.0
    %1614 = vmatprep.subr.mxu0 0.0
    %1615 = vmatpush2.xpose.msra.mxu0 0.0
    %1616 = vmatprep.subr.mxu0 0.0
    %1617 = vmatpush2.xpose.msra.mxu0 0.0
    %1618 = vmatprep.subr.mxu0 0.0
    %1619 = vmatpush2.xpose.msra.mxu0 0.0
    %1620 = vmatprep.subr.mxu0 0.0
    %1621 = vmatpush2.xpose.msra.mxu0 0.0
    %1622 = vmatprep.subr.mxu0 0.0
    %1623 = vmatpush2.xpose.msra.mxu0 0.0
    %1624 = vmatprep.subr.mxu0 0.0
    %1625 = vmatpush2.xpose.msra.mxu0 0.0
    %1626 = vmatprep.subr.mxu0 0.0
    %1627 = vmatpush2.xpose.msra.mxu0 0.0
    %1628 = vmatprep.subr.mxu0 0.0
    %1629 = vmatpush2.xpose.msra.mxu0 0.0
    %1630 = vmatprep.subr.mxu0 0.0
    %1631 = vmatpush2.xpose.msra.mxu0 0.0
    %1632 = vmatprep.mubr.f32.mxu0 0.0
    %1633 = vmatmul.mubr.f32.gmra.mxu0 %v1562
    %v1634 = vpop.f32.mrf.mxu0
    %v1635 = vadd.f32 0.0, %v1634
    %v1636 = vpop.f32.mrf.mxu0
    %1637 = vdwg.mxu0
    %v1638 = vmul.f32 %v1635, 0.35355338
    %v1639 = vsel %vm471, %v1638, -inf
    %1640 = vmax.xlane.f32.xlu0 %v1639
    %v1641 = vpop.xlane.xlu0 %1640
    %v1642 = vsub.f32 %v1638, %v1641
    %v1643 = vmul.f32 %v1642, 1.442695
    %v1644 = vpow.pop %v1643
    %v1645 = vsel %vm471, %v1644, 0.0
    %1646 = vadd.xlane.f32.xlu0 %v1645
    %v1647 = vpop.xlane.xlu0 %1646
    %v1648 = vrcp.pop %v1647
    %v1649 = vmul.f32 %v1644, %v1648
    %1650 = vrot.lane.b32.xlu0 %v373, 56
    %v1651 = vpop.permute.xlu0 %1650
    %1652 = vrot.lane.b32.xlu0 %v378, 56
    %v1653 = vpop.permute.xlu0 %1652
    %v1657 = vsel %vm471, %v1649, 0
    %1659 = vmatprep.subr.mxu0 0.0
    %1660 = vmatpush1.msra.mxu0 0.0
    %1661 = vmatprep.subr.mxu0 0.0
    %1662 = vmatpush1.msra.mxu0 0.0
    %1663 = vmatprep.subr.mxu0 0.0
    %1664 = vmatpush1.msra.mxu0 0.0
    %1665 = vmatprep.subr.mxu0 0.0
    %1666 = vmatpush1.msra.mxu0 0.0
    %1667 = vmatprep.subr.mxu0 0.0
    %1668 = vmatpush1.msra.mxu0 0.0
    %1669 = vmatprep.subr.mxu0 0.0
    %1670 = vmatpush1.msra.mxu0 0.0
    %1671 = vmatprep.subr.mxu0 0.0
    %1672 = vmatpush1.msra.mxu0 0.0
    %1673 = vmatprep.subr.mxu0 0.0
    %1674 = vmatpush1.msra.mxu0 0.0
    %1675 = vmatprep.subr.mxu0 0.0
    %1676 = vmatpush1.msra.mxu0 0.0
    %1677 = vmatprep.subr.mxu0 0.0
    %1678 = vmatpush1.msra.mxu0 0.0
    %1679 = vmatprep.subr.mxu0 0.0
    %1680 = vmatpush1.msra.mxu0 0.0
    %1681 = vmatprep.subr.mxu0 0.0
    %1682 = vmatpush1.msra.mxu0 0.0
    %1683 = vmatprep.subr.mxu0 0.0
    %1684 = vmatpush1.msra.mxu0 0.0
    %1685 = vmatprep.subr.mxu0 0.0
    %1686 = vmatpush1.msra.mxu0 0.0
    %1687 = vmatprep.subr.mxu0 0.0
    %1688 = vmatpush1.msra.mxu0 %v1653
    %1689 = vmatprep.subr.mxu0 0.0
    %1690 = vmatpush1.msra.mxu0 %v1651
    %1691 = vmatprep.subr.mxu0 0.0
    %1692 = vmatpush2.msra.mxu0 0.0
    %1693 = vmatprep.subr.mxu0 0.0
    %1694 = vmatpush2.msra.mxu0 0.0
    %1695 = vmatprep.subr.mxu0 0.0
    %1696 = vmatpush2.msra.mxu0 0.0
    %1697 = vmatprep.subr.mxu0 0.0
    %1698 = vmatpush2.msra.mxu0 0.0
    %1699 = vmatprep.subr.mxu0 0.0
    %1700 = vmatpush2.msra.mxu0 0.0
    %1701 = vmatprep.subr.mxu0 0.0
    %1702 = vmatpush2.msra.mxu0 0.0
    %1703 = vmatprep.subr.mxu0 0.0
    %1704 = vmatpush2.msra.mxu0 0.0
    %1705 = vmatprep.subr.mxu0 0.0
    %1706 = vmatpush2.msra.mxu0 0.0
    %1707 = vmatprep.subr.mxu0 0.0
    %1708 = vmatpush2.msra.mxu0 0.0
    %1709 = vmatprep.subr.mxu0 0.0
    %1710 = vmatpush2.msra.mxu0 0.0
    %1711 = vmatprep.subr.mxu0 0.0
    %1712 = vmatpush2.msra.mxu0 0.0
    %1713 = vmatprep.subr.mxu0 0.0
    %1714 = vmatpush2.msra.mxu0 0.0
    %1715 = vmatprep.subr.mxu0 0.0
    %1716 = vmatpush2.msra.mxu0 0.0
    %1717 = vmatprep.subr.mxu0 0.0
    %1718 = vmatpush2.msra.mxu0 0.0
    %1719 = vmatprep.subr.mxu0 0.0
    %1720 = vmatpush2.msra.mxu0 0.0
    %1721 = vmatprep.subr.mxu0 0.0
    %1722 = vmatpush2.msra.mxu0 0.0
    %1723 = vmatprep.mubr.f32.mxu0 0.0
    %1724 = vmatmul.mubr.f32.gmra.mxu0 %v1657
    %v1725 = vpop.f32.mrf.mxu0
    %v1726 = vadd.f32 0.0, %v1725
    %v1727 = vpop.f32.mrf.mxu0
    %1728 = vdwg.mxu0
    %v1730 = vsel %vm392, %v1726, 0
    %1732 = vmatprep.subr.mxu0 0.0
    %1733 = vmatpush1.msra.mxu0 0.0
    %1734 = vmatprep.subr.mxu0 0.0
    %1735 = vmatpush1.msra.mxu0 0.0
    %1736 = vmatprep.subr.mxu0 0.0
    %1737 = vmatpush1.msra.mxu0 0.0
    %1738 = vmatprep.subr.mxu0 0.0
    %1739 = vmatpush1.msra.mxu0 0.0
    %1740 = vmatprep.subr.mxu0 0.0
    %1741 = vmatpush1.msra.mxu0 0.0
    %1742 = vmatprep.subr.mxu0 0.0
    %1743 = vmatpush1.msra.mxu0 0.0
    %1744 = vmatprep.subr.mxu0 0.0
    %1745 = vmatpush1.msra.mxu0 0.0
    %1746 = vmatprep.subr.mxu0 0.0
    %1747 = vmatpush1.msra.mxu0 0.0
    %1748 = vmatprep.subr.mxu0 0.0
    %1749 = vmatpush1.msra.mxu0 0.0
    %1750 = vmatprep.subr.mxu0 0.0
    %1751 = vmatpush1.msra.mxu0 0.0
    %1752 = vmatprep.subr.mxu0 0.0
    %1753 = vmatpush1.msra.mxu0 0.0
    %1754 = vmatprep.subr.mxu0 0.0
    %1755 = vmatpush1.msra.mxu0 0.0
    %1756 = vmatprep.subr.mxu0 0.0
    %1757 = vmatpush1.msra.mxu0 0.0
    %1758 = vmatprep.subr.mxu0 0.0
    %1759 = vmatpush1.msra.mxu0 0.0
    %1760 = vmatprep.subr.mxu0 0.0
    %1761 = vmatpush1.msra.mxu0 0.0
    %1762 = vmatprep.subr.mxu0 0.0
    %1763 = vmatpush1.msra.mxu0 %v382
    %1764 = vmatprep.subr.mxu0 0.0
    %1765 = vmatpush2.msra.mxu0 0.0
    %1766 = vmatprep.subr.mxu0 0.0
    %1767 = vmatpush2.msra.mxu0 0.0
    %1768 = vmatprep.subr.mxu0 0.0
    %1769 = vmatpush2.msra.mxu0 0.0
    %1770 = vmatprep.subr.mxu0 0.0
    %1771 = vmatpush2.msra.mxu0 0.0
    %1772 = vmatprep.subr.mxu0 0.0
    %1773 = vmatpush2.msra.mxu0 0.0
    %1774 = vmatprep.subr.mxu0 0.0
    %1775 = vmatpush2.msra.mxu0 0.0
    %1776 = vmatprep.subr.mxu0 0.0
    %1777 = vmatpush2.msra.mxu0 0.0
    %1778 = vmatprep.subr.mxu0 0.0
    %1779 = vmatpush2.msra.mxu0 0.0
    %1780 = vmatprep.subr.mxu0 0.0
    %1781 = vmatpush2.msra.mxu0 0.0
    %1782 = vmatprep.subr.mxu0 0.0
    %1783 = vmatpush2.msra.mxu0 0.0
    %1784 = vmatprep.subr.mxu0 0.0
    %1785 = vmatpush2.msra.mxu0 0.0
    %1786 = vmatprep.subr.mxu0 0.0
    %1787 = vmatpush2.msra.mxu0 0.0
    %1788 = vmatprep.subr.mxu0 0.0
    %1789 = vmatpush2.msra.mxu0 0.0
    %1790 = vmatprep.subr.mxu0 0.0
    %1791 = vmatpush2.msra.mxu0 0.0
    %1792 = vmatprep.subr.mxu0 0.0
    %1793 = vmatpush2.msra.mxu0 0.0
    %1794 = vmatprep.subr.mxu0 0.0
    %1795 = vmatpush2.msra.mxu0 0.0
    %1796 = vmatprep.mubr.f32.mxu0 0.0
    %1797 = vmatmul.mubr.f32.gmra.mxu0 %v1730
    %v1798 = vpop.f32.mrf.mxu0
    %v1799 = vadd.f32 0.0, %v1798
    %v1800 = vpop.f32.mrf.mxu0
    %1801 = vdwg.mxu0
    %v1803 = vsel %vm392, %v1553, 0
    %1805 = vmatprep.subr.mxu0 0.0
    %1806 = vmatpush1.msra.mxu0 0.0
    %1807 = vmatprep.subr.mxu0 0.0
    %1808 = vmatpush1.msra.mxu0 0.0
    %1809 = vmatprep.subr.mxu0 0.0
    %1810 = vmatpush1.msra.mxu0 0.0
    %1811 = vmatprep.subr.mxu0 0.0
    %1812 = vmatpush1.msra.mxu0 0.0
    %1813 = vmatprep.subr.mxu0 0.0
    %1814 = vmatpush1.msra.mxu0 0.0
    %1815 = vmatprep.subr.mxu0 0.0
    %1816 = vmatpush1.msra.mxu0 0.0
    %1817 = vmatprep.subr.mxu0 0.0
    %1818 = vmatpush1.msra.mxu0 0.0
    %1819 = vmatprep.subr.mxu0 0.0
    %1820 = vmatpush1.msra.mxu0 0.0
    %1821 = vmatprep.subr.mxu0 0.0
    %1822 = vmatpush1.msra.mxu0 0.0
    %1823 = vmatprep.subr.mxu0 0.0
    %1824 = vmatpush1.msra.mxu0 0.0
    %1825 = vmatprep.subr.mxu0 0.0
    %1826 = vmatpush1.msra.mxu0 0.0
    %1827 = vmatprep.subr.mxu0 0.0
    %1828 = vmatpush1.msra.mxu0 0.0
    %1829 = vmatprep.subr.mxu0 0.0
    %1830 = vmatpush1.msra.mxu0 0.0
    %1831 = vmatprep.subr.mxu0 0.0
    %1832 = vmatpush1.msra.mxu0 0.0
    %1833 = vmatprep.subr.mxu0 0.0
    %1834 = vmatpush1.msra.mxu0 0.0
    %1835 = vmatprep.subr.mxu0 0.0
    %1836 = vmatpush1.msra.mxu0 %v381
    %1837 = vmatprep.subr.mxu0 0.0
    %1838 = vmatpush2.msra.mxu0 0.0
    %1839 = vmatprep.subr.mxu0 0.0
    %1840 = vmatpush2.msra.mxu0 0.0
    %1841 = vmatprep.subr.mxu0 0.0
    %1842 = vmatpush2.msra.mxu0 0.0
    %1843 = vmatprep.subr.mxu0 0.0
    %1844 = vmatpush2.msra.mxu0 0.0
    %1845 = vmatprep.subr.mxu0 0.0
    %1846 = vmatpush2.msra.mxu0 0.0
    %1847 = vmatprep.subr.mxu0 0.0
    %1848 = vmatpush2.msra.mxu0 0.0
    %1849 = vmatprep.subr.mxu0 0.0
    %1850 = vmatpush2.msra.mxu0 0.0
    %1851 = vmatprep.subr.mxu0 0.0
    %1852 = vmatpush2.msra.mxu0 0.0
    %1853 = vmatprep.subr.mxu0 0.0
    %1854 = vmatpush2.msra.mxu0 0.0
    %1855 = vmatprep.subr.mxu0 0.0
    %1856 = vmatpush2.msra.mxu0 0.0
    %1857 = vmatprep.subr.mxu0 0.0
    %1858 = vmatpush2.msra.mxu0 0.0
    %1859 = vmatprep.subr.mxu0 0.0
    %1860 = vmatpush2.msra.mxu0 0.0
    %1861 = vmatprep.subr.mxu0 0.0
    %1862 = vmatpush2.msra.mxu0 0.0
    %1863 = vmatprep.subr.mxu0 0.0
    %1864 = vmatpush2.msra.mxu0 0.0
    %1865 = vmatprep.subr.mxu0 0.0
    %1866 = vmatpush2.msra.mxu0 0.0
    %1867 = vmatprep.subr.mxu0 0.0
    %1868 = vmatpush2.msra.mxu0 0.0
    %1869 = vmatprep.mubr.f32.mxu0 0.0
    %1870 = vmatmul.mubr.f32.gmra.mxu0 %v1803
    %v1871 = vpop.f32.mrf.mxu0
    %v1872 = vadd.f32 %v1799, %v1871
    %v1873 = vpop.f32.mrf.mxu0
    %1874 = vdwg.mxu0
    %1875 = vrot.lane.b32.xlu0 %v268, 112
    %v1876 = vpop.permute.xlu0 %1875
    %1877 = vrot.lane.b32.xlu0 %v373, 80
    %v1878 = vpop.permute.xlu0 %1877
    %1879 = vrot.lane.b32.xlu0 %v378, 80
    %v1880 = vpop.permute.xlu0 %1879
    %v1881 = vsel %vm392, %v1876, 0
    %v1883 = vsel %vm392, %v1878, 0
    %v1885 = vsel %vm392, %v1880, 0
    %1887 = vmatprep.subr.mxu0 0.0
    %1888 = vmatpush1.xpose.msra.mxu0 0.0
    %1889 = vmatprep.subr.mxu0 0.0
    %1890 = vmatpush1.xpose.msra.mxu0 0.0
    %1891 = vmatprep.subr.mxu0 0.0
    %1892 = vmatpush1.xpose.msra.mxu0 0.0
    %1893 = vmatprep.subr.mxu0 0.0
    %1894 = vmatpush1.xpose.msra.mxu0 0.0
    %1895 = vmatprep.subr.mxu0 0.0
    %1896 = vmatpush1.xpose.msra.mxu0 0.0
    %1897 = vmatprep.subr.mxu0 0.0
    %1898 = vmatpush1.xpose.msra.mxu0 0.0
    %1899 = vmatprep.subr.mxu0 0.0
    %1900 = vmatpush1.xpose.msra.mxu0 0.0
    %1901 = vmatprep.subr.mxu0 0.0
    %1902 = vmatpush1.xpose.msra.mxu0 0.0
    %1903 = vmatprep.subr.mxu0 0.0
    %1904 = vmatpush1.xpose.msra.mxu0 0.0
    %1905 = vmatprep.subr.mxu0 0.0
    %1906 = vmatpush1.xpose.msra.mxu0 0.0
    %1907 = vmatprep.subr.mxu0 0.0
    %1908 = vmatpush1.xpose.msra.mxu0 0.0
    %1909 = vmatprep.subr.mxu0 0.0
    %1910 = vmatpush1.xpose.msra.mxu0 0.0
    %1911 = vmatprep.subr.mxu0 0.0
    %1912 = vmatpush1.xpose.msra.mxu0 0.0
    %1913 = vmatprep.subr.mxu0 0.0
    %1914 = vmatpush1.xpose.msra.mxu0 0.0
    %1915 = vmatprep.subr.mxu0 0.0
    %1916 = vmatpush1.xpose.msra.mxu0 %v1885
    %1917 = vmatprep.subr.mxu0 0.0
    %1918 = vmatpush1.xpose.msra.mxu0 %v1883
    %1919 = vmatprep.subr.mxu0 0.0
    %1920 = vmatpush2.xpose.msra.mxu0 0.0
    %1921 = vmatprep.subr.mxu0 0.0
    %1922 = vmatpush2.xpose.msra.mxu0 0.0
    %1923 = vmatprep.subr.mxu0 0.0
    %1924 = vmatpush2.xpose.msra.mxu0 0.0
    %1925 = vmatprep.subr.mxu0 0.0
    %1926 = vmatpush2.xpose.msra.mxu0 0.0
    %1927 = vmatprep.subr.mxu0 0.0
    %1928 = vmatpush2.xpose.msra.mxu0 0.0
    %1929 = vmatprep.subr.mxu0 0.0
    %1930 = vmatpush2.xpose.msra.mxu0 0.0
    %1931 = vmatprep.subr.mxu0 0.0
    %1932 = vmatpush2.xpose.msra.mxu0 0.0
    %1933 = vmatprep.subr.mxu0 0.0
    %1934 = vmatpush2.xpose.msra.mxu0 0.0
    %1935 = vmatprep.subr.mxu0 0.0
    %1936 = vmatpush2.xpose.msra.mxu0 0.0
    %1937 = vmatprep.subr.mxu0 0.0
    %1938 = vmatpush2.xpose.msra.mxu0 0.0
    %1939 = vmatprep.subr.mxu0 0.0
    %1940 = vmatpush2.xpose.msra.mxu0 0.0
    %1941 = vmatprep.subr.mxu0 0.0
    %1942 = vmatpush2.xpose.msra.mxu0 0.0
    %1943 = vmatprep.subr.mxu0 0.0
    %1944 = vmatpush2.xpose.msra.mxu0 0.0
    %1945 = vmatprep.subr.mxu0 0.0
    %1946 = vmatpush2.xpose.msra.mxu0 0.0
    %1947 = vmatprep.subr.mxu0 0.0
    %1948 = vmatpush2.xpose.msra.mxu0 0.0
    %1949 = vmatprep.subr.mxu0 0.0
    %1950 = vmatpush2.xpose.msra.mxu0 0.0
    %1951 = vmatprep.mubr.f32.mxu0 0.0
    %1952 = vmatmul.mubr.f32.gmra.mxu0 %v1881
    %v1953 = vpop.f32.mrf.mxu0
    %v1954 = vadd.f32 0.0, %v1953
    %v1955 = vpop.f32.mrf.mxu0
    %1956 = vdwg.mxu0
    %v1957 = vmul.f32 %v1954, 0.35355338
    %v1958 = vsel %vm471, %v1957, -inf
    %1959 = vmax.xlane.f32.xlu0 %v1958
    %v1960 = vpop.xlane.xlu0 %1959
    %v1961 = vsub.f32 %v1957, %v1960
    %v1962 = vmul.f32 %v1961, 1.442695
    %v1963 = vpow.pop %v1962
    %v1964 = vsel %vm471, %v1963, 0.0
    %1965 = vadd.xlane.f32.xlu0 %v1964
    %v1966 = vpop.xlane.xlu0 %1965
    %v1967 = vrcp.pop %v1966
    %v1968 = vmul.f32 %v1963, %v1967
    %1969 = vrot.lane.b32.xlu0 %v373, 48
    %v1970 = vpop.permute.xlu0 %1969
    %1971 = vrot.lane.b32.xlu0 %v378, 48
    %v1972 = vpop.permute.xlu0 %1971
    %v1976 = vsel %vm471, %v1968, 0
    %1978 = vmatprep.subr.mxu0 0.0
    %1979 = vmatpush1.msra.mxu0 0.0
    %1980 = vmatprep.subr.mxu0 0.0
    %1981 = vmatpush1.msra.mxu0 0.0
    %1982 = vmatprep.subr.mxu0 0.0
    %1983 = vmatpush1.msra.mxu0 0.0
    %1984 = vmatprep.subr.mxu0 0.0
    %1985 = vmatpush1.msra.mxu0 0.0
    %1986 = vmatprep.subr.mxu0 0.0
    %1987 = vmatpush1.msra.mxu0 0.0
    %1988 = vmatprep.subr.mxu0 0.0
    %1989 = vmatpush1.msra.mxu0 0.0
    %1990 = vmatprep.subr.mxu0 0.0
    %1991 = vmatpush1.msra.mxu0 0.0
    %1992 = vmatprep.subr.mxu0 0.0
    %1993 = vmatpush1.msra.mxu0 0.0
    %1994 = vmatprep.subr.mxu0 0.0
    %1995 = vmatpush1.msra.mxu0 0.0
    %1996 = vmatprep.subr.mxu0 0.0
    %1997 = vmatpush1.msra.mxu0 0.0
    %1998 = vmatprep.subr.mxu0 0.0
    %1999 = vmatpush1.msra.mxu0 0.0
    %2000 = vmatprep.subr.mxu0 0.0
    %2001 = vmatpush1.msra.mxu0 0.0
    %2002 = vmatprep.subr.mxu0 0.0
    %2003 = vmatpush1.msra.mxu0 0.0
    %2004 = vmatprep.subr.mxu0 0.0
    %2005 = vmatpush1.msra.mxu0 0.0
    %2006 = vmatprep.subr.mxu0 0.0
    %2007 = vmatpush1.msra.mxu0 %v1972
    %2008 = vmatprep.subr.mxu0 0.0
    %2009 = vmatpush1.msra.mxu0 %v1970
    %2010 = vmatprep.subr.mxu0 0.0
    %2011 = vmatpush2.msra.mxu0 0.0
    %2012 = vmatprep.subr.mxu0 0.0
    %2013 = vmatpush2.msra.mxu0 0.0
    %2014 = vmatprep.subr.mxu0 0.0
    %2015 = vmatpush2.msra.mxu0 0.0
    %2016 = vmatprep.subr.mxu0 0.0
    %2017 = vmatpush2.msra.mxu0 0.0
    %2018 = vmatprep.subr.mxu0 0.0
    %2019 = vmatpush2.msra.mxu0 0.0
    %2020 = vmatprep.subr.mxu0 0.0
    %2021 = vmatpush2.msra.mxu0 0.0
    %2022 = vmatprep.subr.mxu0 0.0
    %2023 = vmatpush2.msra.mxu0 0.0
    %2024 = vmatprep.subr.mxu0 0.0
    %2025 = vmatpush2.msra.mxu0 0.0
    %2026 = vmatprep.subr.mxu0 0.0
    %2027 = vmatpush2.msra.mxu0 0.0
    %2028 = vmatprep.subr.mxu0 0.0
    %2029 = vmatpush2.msra.mxu0 0.0
    %2030 = vmatprep.subr.mxu0 0.0
    %2031 = vmatpush2.msra.mxu0 0.0
    %2032 = vmatprep.subr.mxu0 0.0
    %2033 = vmatpush2.msra.mxu0 0.0
    %2034 = vmatprep.subr.mxu0 0.0
    %2035 = vmatpush2.msra.mxu0 0.0
    %2036 = vmatprep.subr.mxu0 0.0
    %2037 = vmatpush2.msra.mxu0 0.0
    %2038 = vmatprep.subr.mxu0 0.0
    %2039 = vmatpush2.msra.mxu0 0.0
    %2040 = vmatprep.subr.mxu0 0.0
    %2041 = vmatpush2.msra.mxu0 0.0
    %2042 = vmatprep.mubr.f32.mxu0 0.0
    %2043 = vmatmul.mubr.f32.gmra.mxu0 %v1976
    %v2044 = vpop.f32.mrf.mxu0
    %v2045 = vadd.f32 0.0, %v2044
    %v2046 = vpop.f32.mrf.mxu0
    %2047 = vdwg.mxu0
    %v2049 = vsel %vm392, %v2045, 0
    %2051 = vmatprep.subr.mxu0 0.0
    %2052 = vmatpush1.msra.mxu0 0.0
    %2053 = vmatprep.subr.mxu0 0.0
    %2054 = vmatpush1.msra.mxu0 0.0
    %2055 = vmatprep.subr.mxu0 0.0
    %2056 = vmatpush1.msra.mxu0 0.0
    %2057 = vmatprep.subr.mxu0 0.0
    %2058 = vmatpush1.msra.mxu0 0.0
    %2059 = vmatprep.subr.mxu0 0.0
    %2060 = vmatpush1.msra.mxu0 0.0
    %2061 = vmatprep.subr.mxu0 0.0
    %2062 = vmatpush1.msra.mxu0 0.0
    %2063 = vmatprep.subr.mxu0 0.0
    %2064 = vmatpush1.msra.mxu0 0.0
    %2065 = vmatprep.subr.mxu0 0.0
    %2066 = vmatpush1.msra.mxu0 0.0
    %2067 = vmatprep.subr.mxu0 0.0
    %2068 = vmatpush1.msra.mxu0 0.0
    %2069 = vmatprep.subr.mxu0 0.0
    %2070 = vmatpush1.msra.mxu0 0.0
    %2071 = vmatprep.subr.mxu0 0.0
    %2072 = vmatpush1.msra.mxu0 0.0
    %2073 = vmatprep.subr.mxu0 0.0
    %2074 = vmatpush1.msra.mxu0 0.0
    %2075 = vmatprep.subr.mxu0 0.0
    %2076 = vmatpush1.msra.mxu0 0.0
    %2077 = vmatprep.subr.mxu0 0.0
    %2078 = vmatpush1.msra.mxu0 0.0
    %2079 = vmatprep.subr.mxu0 0.0
    %2080 = vmatpush1.msra.mxu0 0.0
    %2081 = vmatprep.subr.mxu0 0.0
    %2082 = vmatpush1.msra.mxu0 %v383
    %2083 = vmatprep.subr.mxu0 0.0
    %2084 = vmatpush2.msra.mxu0 0.0
    %2085 = vmatprep.subr.mxu0 0.0
    %2086 = vmatpush2.msra.mxu0 0.0
    %2087 = vmatprep.subr.mxu0 0.0
    %2088 = vmatpush2.msra.mxu0 0.0
    %2089 = vmatprep.subr.mxu0 0.0
    %2090 = vmatpush2.msra.mxu0 0.0
    %2091 = vmatprep.subr.mxu0 0.0
    %2092 = vmatpush2.msra.mxu0 0.0
    %2093 = vmatprep.subr.mxu0 0.0
    %2094 = vmatpush2.msra.mxu0 0.0
    %2095 = vmatprep.subr.mxu0 0.0
    %2096 = vmatpush2.msra.mxu0 0.0
    %2097 = vmatprep.subr.mxu0 0.0
    %2098 = vmatpush2.msra.mxu0 0.0
    %2099 = vmatprep.subr.mxu0 0.0
    %2100 = vmatpush2.msra.mxu0 0.0
    %2101 = vmatprep.subr.mxu0 0.0
    %2102 = vmatpush2.msra.mxu0 0.0
    %2103 = vmatprep.subr.mxu0 0.0
    %2104 = vmatpush2.msra.mxu0 0.0
    %2105 = vmatprep.subr.mxu0 0.0
    %2106 = vmatpush2.msra.mxu0 0.0
    %2107 = vmatprep.subr.mxu0 0.0
    %2108 = vmatpush2.msra.mxu0 0.0
    %2109 = vmatprep.subr.mxu0 0.0
    %2110 = vmatpush2.msra.mxu0 0.0
    %2111 = vmatprep.subr.mxu0 0.0
    %2112 = vmatpush2.msra.mxu0 0.0
    %2113 = vmatprep.subr.mxu0 0.0
    %2114 = vmatpush2.msra.mxu0 0.0
    %2115 = vmatprep.mubr.f32.mxu0 0.0
    %2116 = vmatmul.mubr.f32.gmra.mxu0 %v2049
    %v2117 = vpop.f32.mrf.mxu0
    %v2118 = vadd.f32 0.0, %v2117
    %v2119 = vpop.f32.mrf.mxu0
    %2120 = vdwg.mxu0
    %v2121 = vadd.f32 %v1872, %v2118
    %2122 = vrot.lane.b32.xlu0 %v268, 104
    %v2123 = vpop.permute.xlu0 %2122
    %2124 = vrot.lane.b32.xlu0 %v373, 72
    %v2125 = vpop.permute.xlu0 %2124
    %2126 = vrot.lane.b32.xlu0 %v378, 72
    %v2127 = vpop.permute.xlu0 %2126
    %v2128 = vsel %vm392, %v2123, 0
    %v2130 = vsel %vm392, %v2125, 0
    %v2132 = vsel %vm392, %v2127, 0
    %2134 = vmatprep.subr.mxu0 0.0
    %2135 = vmatpush1.xpose.msra.mxu0 0.0
    %2136 = vmatprep.subr.mxu0 0.0
    %2137 = vmatpush1.xpose.msra.mxu0 0.0
    %2138 = vmatprep.subr.mxu0 0.0
    %2139 = vmatpush1.xpose.msra.mxu0 0.0
    %2140 = vmatprep.subr.mxu0 0.0
    %2141 = vmatpush1.xpose.msra.mxu0 0.0
    %2142 = vmatprep.subr.mxu0 0.0
    %2143 = vmatpush1.xpose.msra.mxu0 0.0
    %2144 = vmatprep.subr.mxu0 0.0
    %2145 = vmatpush1.xpose.msra.mxu0 0.0
    %2146 = vmatprep.subr.mxu0 0.0
    %2147 = vmatpush1.xpose.msra.mxu0 0.0
    %2148 = vmatprep.subr.mxu0 0.0
    %2149 = vmatpush1.xpose.msra.mxu0 0.0
    %2150 = vmatprep.subr.mxu0 0.0
    %2151 = vmatpush1.xpose.msra.mxu0 0.0
    %2152 = vmatprep.subr.mxu0 0.0
    %2153 = vmatpush1.xpose.msra.mxu0 0.0
    %2154 = vmatprep.subr.mxu0 0.0
    %2155 = vmatpush1.xpose.msra.mxu0 0.0
    %2156 = vmatprep.subr.mxu0 0.0
    %2157 = vmatpush1.xpose.msra.mxu0 0.0
    %2158 = vmatprep.subr.mxu0 0.0
    %2159 = vmatpush1.xpose.msra.mxu0 0.0
    %2160 = vmatprep.subr.mxu0 0.0
    %2161 = vmatpush1.xpose.msra.mxu0 0.0
    %2162 = vmatprep.subr.mxu0 0.0
    %2163 = vmatpush1.xpose.msra.mxu0 %v2132
    %2164 = vmatprep.subr.mxu0 0.0
    %2165 = vmatpush1.xpose.msra.mxu0 %v2130
    %2166 = vmatprep.subr.mxu0 0.0
    %2167 = vmatpush2.xpose.msra.mxu0 0.0
    %2168 = vmatprep.subr.mxu0 0.0
    %2169 = vmatpush2.xpose.msra.mxu0 0.0
    %2170 = vmatprep.subr.mxu0 0.0
    %2171 = vmatpush2.xpose.msra.mxu0 0.0
    %2172 = vmatprep.subr.mxu0 0.0
    %2173 = vmatpush2.xpose.msra.mxu0 0.0
    %2174 = vmatprep.subr.mxu0 0.0
    %2175 = vmatpush2.xpose.msra.mxu0 0.0
    %2176 = vmatprep.subr.mxu0 0.0
    %2177 = vmatpush2.xpose.msra.mxu0 0.0
    %2178 = vmatprep.subr.mxu0 0.0
    %2179 = vmatpush2.xpose.msra.mxu0 0.0
    %2180 = vmatprep.subr.mxu0 0.0
    %2181 = vmatpush2.xpose.msra.mxu0 0.0
    %2182 = vmatprep.subr.mxu0 0.0
    %2183 = vmatpush2.xpose.msra.mxu0 0.0
    %2184 = vmatprep.subr.mxu0 0.0
    %2185 = vmatpush2.xpose.msra.mxu0 0.0
    %2186 = vmatprep.subr.mxu0 0.0
    %2187 = vmatpush2.xpose.msra.mxu0 0.0
    %2188 = vmatprep.subr.mxu0 0.0
    %2189 = vmatpush2.xpose.msra.mxu0 0.0
    %2190 = vmatprep.subr.mxu0 0.0
    %2191 = vmatpush2.xpose.msra.mxu0 0.0
    %2192 = vmatprep.subr.mxu0 0.0
    %2193 = vmatpush2.xpose.msra.mxu0 0.0
    %2194 = vmatprep.subr.mxu0 0.0
    %2195 = vmatpush2.xpose.msra.mxu0 0.0
    %2196 = vmatprep.subr.mxu0 0.0
    %2197 = vmatpush2.xpose.msra.mxu0 0.0
    %2198 = vmatprep.mubr.f32.mxu0 0.0
    %2199 = vmatmul.mubr.f32.gmra.mxu0 %v2128
    %v2200 = vpop.f32.mrf.mxu0
    %v2201 = vadd.f32 0.0, %v2200
    %v2202 = vpop.f32.mrf.mxu0
    %2203 = vdwg.mxu0
    %v2204 = vmul.f32 %v2201, 0.35355338
    %v2205 = vsel %vm471, %v2204, -inf
    %2206 = vmax.xlane.f32.xlu0 %v2205
    %v2207 = vpop.xlane.xlu0 %2206
    %v2208 = vsub.f32 %v2204, %v2207
    %v2209 = vmul.f32 %v2208, 1.442695
    %v2210 = vpow.pop %v2209
    %v2211 = vsel %vm471, %v2210, 0.0
    %2212 = vadd.xlane.f32.xlu0 %v2211
    %v2213 = vpop.xlane.xlu0 %2212
    %v2214 = vrcp.pop %v2213
    %v2215 = vmul.f32 %v2210, %v2214
    %2216 = vrot.lane.b32.xlu0 %v373, 40
    %v2217 = vpop.permute.xlu0 %2216
    %2218 = vrot.lane.b32.xlu0 %v378, 40
    %v2219 = vpop.permute.xlu0 %2218
    %v2223 = vsel %vm471, %v2215, 0
    %2225 = vmatprep.subr.mxu0 0.0
    %2226 = vmatpush1.msra.mxu0 0.0
    %2227 = vmatprep.subr.mxu0 0.0
    %2228 = vmatpush1.msra.mxu0 0.0
    %2229 = vmatprep.subr.mxu0 0.0
    %2230 = vmatpush1.msra.mxu0 0.0
    %2231 = vmatprep.subr.mxu0 0.0
    %2232 = vmatpush1.msra.mxu0 0.0
    %2233 = vmatprep.subr.mxu0 0.0
    %2234 = vmatpush1.msra.mxu0 0.0
    %2235 = vmatprep.subr.mxu0 0.0
    %2236 = vmatpush1.msra.mxu0 0.0
    %2237 = vmatprep.subr.mxu0 0.0
    %2238 = vmatpush1.msra.mxu0 0.0
    %2239 = vmatprep.subr.mxu0 0.0
    %2240 = vmatpush1.msra.mxu0 0.0
    %2241 = vmatprep.subr.mxu0 0.0
    %2242 = vmatpush1.msra.mxu0 0.0
    %2243 = vmatprep.subr.mxu0 0.0
    %2244 = vmatpush1.msra.mxu0 0.0
    %2245 = vmatprep.subr.mxu0 0.0
    %2246 = vmatpush1.msra.mxu0 0.0
    %2247 = vmatprep.subr.mxu0 0.0
    %2248 = vmatpush1.msra.mxu0 0.0
    %2249 = vmatprep.subr.mxu0 0.0
    %2250 = vmatpush1.msra.mxu0 0.0
    %2251 = vmatprep.subr.mxu0 0.0
    %2252 = vmatpush1.msra.mxu0 0.0
    %2253 = vmatprep.subr.mxu0 0.0
    %2254 = vmatpush1.msra.mxu0 %v2219
    %2255 = vmatprep.subr.mxu0 0.0
    %2256 = vmatpush1.msra.mxu0 %v2217
    %2257 = vmatprep.subr.mxu0 0.0
    %2258 = vmatpush2.msra.mxu0 0.0
    %2259 = vmatprep.subr.mxu0 0.0
    %2260 = vmatpush2.msra.mxu0 0.0
    %2261 = vmatprep.subr.mxu0 0.0
    %2262 = vmatpush2.msra.mxu0 0.0
    %2263 = vmatprep.subr.mxu0 0.0
    %2264 = vmatpush2.msra.mxu0 0.0
    %2265 = vmatprep.subr.mxu0 0.0
    %2266 = vmatpush2.msra.mxu0 0.0
    %2267 = vmatprep.subr.mxu0 0.0
    %2268 = vmatpush2.msra.mxu0 0.0
    %2269 = vmatprep.subr.mxu0 0.0
    %2270 = vmatpush2.msra.mxu0 0.0
    %2271 = vmatprep.subr.mxu0 0.0
    %2272 = vmatpush2.msra.mxu0 0.0
    %2273 = vmatprep.subr.mxu0 0.0
    %2274 = vmatpush2.msra.mxu0 0.0
    %2275 = vmatprep.subr.mxu0 0.0
    %2276 = vmatpush2.msra.mxu0 0.0
    %2277 = vmatprep.subr.mxu0 0.0
    %2278 = vmatpush2.msra.mxu0 0.0
    %2279 = vmatprep.subr.mxu0 0.0
    %2280 = vmatpush2.msra.mxu0 0.0
    %2281 = vmatprep.subr.mxu0 0.0
    %2282 = vmatpush2.msra.mxu0 0.0
    %2283 = vmatprep.subr.mxu0 0.0
    %2284 = vmatpush2.msra.mxu0 0.0
    %2285 = vmatprep.subr.mxu0 0.0
    %2286 = vmatpush2.msra.mxu0 0.0
    %2287 = vmatprep.subr.mxu0 0.0
    %2288 = vmatpush2.msra.mxu0 0.0
    %2289 = vmatprep.mubr.f32.mxu0 0.0
    %2290 = vmatmul.mubr.f32.gmra.mxu0 %v2223
    %v2291 = vpop.f32.mrf.mxu0
    %v2292 = vadd.f32 0.0, %v2291
    %v2293 = vpop.f32.mrf.mxu0
    %2294 = vdwg.mxu0
    %v2296 = vsel %vm392, %v2292, 0
    %2298 = vmatprep.subr.mxu0 0.0
    %2299 = vmatpush1.msra.mxu0 0.0
    %2300 = vmatprep.subr.mxu0 0.0
    %2301 = vmatpush1.msra.mxu0 0.0
    %2302 = vmatprep.subr.mxu0 0.0
    %2303 = vmatpush1.msra.mxu0 0.0
    %2304 = vmatprep.subr.mxu0 0.0
    %2305 = vmatpush1.msra.mxu0 0.0
    %2306 = vmatprep.subr.mxu0 0.0
    %2307 = vmatpush1.msra.mxu0 0.0
    %2308 = vmatprep.subr.mxu0 0.0
    %2309 = vmatpush1.msra.mxu0 0.0
    %2310 = vmatprep.subr.mxu0 0.0
    %2311 = vmatpush1.msra.mxu0 0.0
    %2312 = vmatprep.subr.mxu0 0.0
    %2313 = vmatpush1.msra.mxu0 0.0
    %2314 = vmatprep.subr.mxu0 0.0
    %2315 = vmatpush1.msra.mxu0 0.0
    %2316 = vmatprep.subr.mxu0 0.0
    %2317 = vmatpush1.msra.mxu0 0.0
    %2318 = vmatprep.subr.mxu0 0.0
    %2319 = vmatpush1.msra.mxu0 0.0
    %2320 = vmatprep.subr.mxu0 0.0
    %2321 = vmatpush1.msra.mxu0 0.0
    %2322 = vmatprep.subr.mxu0 0.0
    %2323 = vmatpush1.msra.mxu0 0.0
    %2324 = vmatprep.subr.mxu0 0.0
    %2325 = vmatpush1.msra.mxu0 0.0
    %2326 = vmatprep.subr.mxu0 0.0
    %2327 = vmatpush1.msra.mxu0 0.0
    %2328 = vmatprep.subr.mxu0 0.0
    %2329 = vmatpush1.msra.mxu0 %v384
    %2330 = vmatprep.subr.mxu0 0.0
    %2331 = vmatpush2.msra.mxu0 0.0
    %2332 = vmatprep.subr.mxu0 0.0
    %2333 = vmatpush2.msra.mxu0 0.0
    %2334 = vmatprep.subr.mxu0 0.0
    %2335 = vmatpush2.msra.mxu0 0.0
    %2336 = vmatprep.subr.mxu0 0.0
    %2337 = vmatpush2.msra.mxu0 0.0
    %2338 = vmatprep.subr.mxu0 0.0
    %2339 = vmatpush2.msra.mxu0 0.0
    %2340 = vmatprep.subr.mxu0 0.0
    %2341 = vmatpush2.msra.mxu0 0.0
    %2342 = vmatprep.subr.mxu0 0.0
    %2343 = vmatpush2.msra.mxu0 0.0
    %2344 = vmatprep.subr.mxu0 0.0
    %2345 = vmatpush2.msra.mxu0 0.0
    %2346 = vmatprep.subr.mxu0 0.0
    %2347 = vmatpush2.msra.mxu0 0.0
    %2348 = vmatprep.subr.mxu0 0.0
    %2349 = vmatpush2.msra.mxu0 0.0
    %2350 = vmatprep.subr.mxu0 0.0
    %2351 = vmatpush2.msra.mxu0 0.0
    %2352 = vmatprep.subr.mxu0 0.0
    %2353 = vmatpush2.msra.mxu0 0.0
    %2354 = vmatprep.subr.mxu0 0.0
    %2355 = vmatpush2.msra.mxu0 0.0
    %2356 = vmatprep.subr.mxu0 0.0
    %2357 = vmatpush2.msra.mxu0 0.0
    %2358 = vmatprep.subr.mxu0 0.0
    %2359 = vmatpush2.msra.mxu0 0.0
    %2360 = vmatprep.subr.mxu0 0.0
    %2361 = vmatpush2.msra.mxu0 0.0
    %2362 = vmatprep.mubr.f32.mxu0 0.0
    %2363 = vmatmul.mubr.f32.gmra.mxu0 %v2296
    %v2364 = vpop.f32.mrf.mxu0
    %v2365 = vadd.f32 0.0, %v2364
    %v2366 = vpop.f32.mrf.mxu0
    %2367 = vdwg.mxu0
    %v2368 = vadd.f32 %v2121, %v2365
    %v2369 = vadd.f32 %v2368, %v1379
    %s2370 = scalar_lea.vmem %s6, 32
    %v2371 = vld [vmem:[%s2370] sm:$0xff]
    %v2372 = vld [vmem:[%s2370 + $0x8] sm:$0xff]
    %v2373 = vld [vmem:[%s2370 + $0x10] sm:$0xff]
    %v2374 = vld [vmem:[%s2370 + $0x18] sm:$0xff]
    %s2375 = scalar_lea.vmem %s7, 1
    %v2376 = vld [vmem:[%s2375] sm:$0x1]
    %2377 = vrot.lane.b32.xlu0 %v263, 96
    %v2378 = vpop.permute.xlu0 %2377
    %v2379 = vsel %vm392, %v363, 0
    %v2381 = vsel %vm392, %v368, 0
    %v2383 = vsel %vm392, %v2378, 0
    %2385 = vmatprep.subr.mxu0 0.0
    %2386 = vmatpush1.xpose.msra.mxu0 0.0
    %2387 = vmatprep.subr.mxu0 0.0
    %2388 = vmatpush1.xpose.msra.mxu0 0.0
    %2389 = vmatprep.subr.mxu0 0.0
    %2390 = vmatpush1.xpose.msra.mxu0 0.0
    %2391 = vmatprep.subr.mxu0 0.0
    %2392 = vmatpush1.xpose.msra.mxu0 0.0
    %2393 = vmatprep.subr.mxu0 0.0
    %2394 = vmatpush1.xpose.msra.mxu0 0.0
    %2395 = vmatprep.subr.mxu0 0.0
    %2396 = vmatpush1.xpose.msra.mxu0 0.0
    %2397 = vmatprep.subr.mxu0 0.0
    %2398 = vmatpush1.xpose.msra.mxu0 0.0
    %2399 = vmatprep.subr.mxu0 0.0
    %2400 = vmatpush1.xpose.msra.mxu0 0.0
    %2401 = vmatprep.subr.mxu0 0.0
    %2402 = vmatpush1.xpose.msra.mxu0 0.0
    %2403 = vmatprep.subr.mxu0 0.0
    %2404 = vmatpush1.xpose.msra.mxu0 0.0
    %2405 = vmatprep.subr.mxu0 0.0
    %2406 = vmatpush1.xpose.msra.mxu0 0.0
    %2407 = vmatprep.subr.mxu0 0.0
    %2408 = vmatpush1.xpose.msra.mxu0 0.0
    %2409 = vmatprep.subr.mxu0 0.0
    %2410 = vmatpush1.xpose.msra.mxu0 0.0
    %2411 = vmatprep.subr.mxu0 0.0
    %2412 = vmatpush1.xpose.msra.mxu0 0.0
    %2413 = vmatprep.subr.mxu0 0.0
    %2414 = vmatpush1.xpose.msra.mxu0 0.0
    %2415 = vmatprep.subr.mxu0 0.0
    %2416 = vmatpush1.xpose.msra.mxu0 %v2383
    %2417 = vmatprep.subr.mxu0 0.0
    %2418 = vmatpush2.xpose.msra.mxu0 0.0
    %2419 = vmatprep.subr.mxu0 0.0
    %2420 = vmatpush2.xpose.msra.mxu0 0.0
    %2421 = vmatprep.subr.mxu0 0.0
    %2422 = vmatpush2.xpose.msra.mxu0 0.0
    %2423 = vmatprep.subr.mxu0 0.0
    %2424 = vmatpush2.xpose.msra.mxu0 0.0
    %2425 = vmatprep.subr.mxu0 0.0
    %2426 = vmatpush2.xpose.msra.mxu0 0.0
    %2427 = vmatprep.subr.mxu0 0.0
    %2428 = vmatpush2.xpose.msra.mxu0 0.0
    %2429 = vmatprep.subr.mxu0 0.0
    %2430 = vmatpush2.xpose.msra.mxu0 0.0
    %2431 = vmatprep.subr.mxu0 0.0
    %2432 = vmatpush2.xpose.msra.mxu0 0.0
    %2433 = vmatprep.subr.mxu0 0.0
    %2434 = vmatpush2.xpose.msra.mxu0 0.0
    %2435 = vmatprep.subr.mxu0 0.0
    %2436 = vmatpush2.xpose.msra.mxu0 0.0
    %2437 = vmatprep.subr.mxu0 0.0
    %2438 = vmatpush2.xpose.msra.mxu0 0.0
    %2439 = vmatprep.subr.mxu0 0.0
    %2440 = vmatpush2.xpose.msra.mxu0 0.0
    %2441 = vmatprep.subr.mxu0 0.0
    %2442 = vmatpush2.xpose.msra.mxu0 0.0
    %2443 = vmatprep.subr.mxu0 0.0
    %2444 = vmatpush2.xpose.msra.mxu0 0.0
    %2445 = vmatprep.subr.mxu0 0.0
    %2446 = vmatpush2.xpose.msra.mxu0 0.0
    %2447 = vmatprep.subr.mxu0 0.0
    %2448 = vmatpush2.xpose.msra.mxu0 0.0
    %2449 = vmatprep.mubr.f32.mxu0 0.0
    %2450 = vmatmul.mubr.f32.gmra.mxu0 %v2379
    %v2451 = vpop.f32.mrf.mxu0
    %v2452 = vadd.f32 0.0, %v2451
    %v2453 = vpop.f32.mrf.mxu0
    %2454 = vmatprep.mubr.f32.mxu0 0.0
    %2455 = vmatmul.mubr.f32.gmra.mxu0 %v2381
    %v2456 = vpop.f32.mrf.mxu0
    %v2457 = vadd.f32 0.0, %v2456
    %v2458 = vpop.f32.mrf.mxu0
    %2459 = vdwg.mxu0
    %v2460 = vmul.f32 %v2452, 0.35355338
    %v2461 = vmul.f32 %v2457, 0.35355338
    %v2462 = vsel %vm392, %v2460, -inf
    %2463 = vmax.xlane.f32.xlu0 %v2462
    %v2464 = vpop.xlane.xlu0 %2463
    %v2465 = vsel %vm392, %v2461, -inf
    %2466 = vmax.xlane.f32.xlu0 %v2465
    %v2467 = vpop.xlane.xlu0 %2466
    %v2468 = vsub.f32 %v2460, %v2464
    %v2469 = vsub.f32 %v2461, %v2467
    %v2470 = vmul.f32 %v2468, 1.442695
    %v2471 = vpow.pop %v2470
    %v2472 = vmul.f32 %v2469, 1.442695
    %v2473 = vpow.pop %v2472
    %v2474 = vsel %vm392, %v2471, 0.0
    %2475 = vadd.xlane.f32.xlu0 %v2474
    %v2476 = vpop.xlane.xlu0 %2475
    %v2477 = vsel %vm392, %v2473, 0.0
    %2478 = vadd.xlane.f32.xlu0 %v2477
    %v2479 = vpop.xlane.xlu0 %2478
    %v2480 = vrcp.pop %v2476
    %v2481 = vrcp.pop %v2479
    %v2482 = vmul.f32 %v2471, %v2480
    %v2483 = vmul.f32 %v2473, %v2481
    %2484 = vrot.lane.b32.xlu0 %v263, 64
    %v2485 = vpop.permute.xlu0 %2484
    %v2488 = vsel %vm392, %v2482, 0
    %v2491 = vsel %vm392, %v2483, 0
    %2493 = vmatprep.subr.mxu0 0.0
    %2494 = vmatpush1.msra.mxu0 0.0
    %2495 = vmatprep.subr.mxu0 0.0
    %2496 = vmatpush1.msra.mxu0 0.0
    %2497 = vmatprep.subr.mxu0 0.0
    %2498 = vmatpush1.msra.mxu0 0.0
    %2499 = vmatprep.subr.mxu0 0.0
    %2500 = vmatpush1.msra.mxu0 0.0
    %2501 = vmatprep.subr.mxu0 0.0
    %2502 = vmatpush1.msra.mxu0 0.0
    %2503 = vmatprep.subr.mxu0 0.0
    %2504 = vmatpush1.msra.mxu0 0.0
    %2505 = vmatprep.subr.mxu0 0.0
    %2506 = vmatpush1.msra.mxu0 0.0
    %2507 = vmatprep.subr.mxu0 0.0
    %2508 = vmatpush1.msra.mxu0 0.0
    %2509 = vmatprep.subr.mxu0 0.0
    %2510 = vmatpush1.msra.mxu0 0.0
    %2511 = vmatprep.subr.mxu0 0.0
    %2512 = vmatpush1.msra.mxu0 0.0
    %2513 = vmatprep.subr.mxu0 0.0
    %2514 = vmatpush1.msra.mxu0 0.0
    %2515 = vmatprep.subr.mxu0 0.0
    %2516 = vmatpush1.msra.mxu0 0.0
    %2517 = vmatprep.subr.mxu0 0.0
    %2518 = vmatpush1.msra.mxu0 0.0
    %2519 = vmatprep.subr.mxu0 0.0
    %2520 = vmatpush1.msra.mxu0 0.0
    %2521 = vmatprep.subr.mxu0 0.0
    %2522 = vmatpush1.msra.mxu0 0.0
    %2523 = vmatprep.subr.mxu0 0.0
    %2524 = vmatpush1.msra.mxu0 %v2485
    %2525 = vmatprep.subr.mxu0 0.0
    %2526 = vmatpush2.msra.mxu0 0.0
    %2527 = vmatprep.subr.mxu0 0.0
    %2528 = vmatpush2.msra.mxu0 0.0
    %2529 = vmatprep.subr.mxu0 0.0
    %2530 = vmatpush2.msra.mxu0 0.0
    %2531 = vmatprep.subr.mxu0 0.0
    %2532 = vmatpush2.msra.mxu0 0.0
    %2533 = vmatprep.subr.mxu0 0.0
    %2534 = vmatpush2.msra.mxu0 0.0
    %2535 = vmatprep.subr.mxu0 0.0
    %2536 = vmatpush2.msra.mxu0 0.0
    %2537 = vmatprep.subr.mxu0 0.0
    %2538 = vmatpush2.msra.mxu0 0.0
    %2539 = vmatprep.subr.mxu0 0.0
    %2540 = vmatpush2.msra.mxu0 0.0
    %2541 = vmatprep.subr.mxu0 0.0
    %2542 = vmatpush2.msra.mxu0 0.0
    %2543 = vmatprep.subr.mxu0 0.0
    %2544 = vmatpush2.msra.mxu0 0.0
    %2545 = vmatprep.subr.mxu0 0.0
    %2546 = vmatpush2.msra.mxu0 0.0
    %2547 = vmatprep.subr.mxu0 0.0
    %2548 = vmatpush2.msra.mxu0 0.0
    %2549 = vmatprep.subr.mxu0 0.0
    %2550 = vmatpush2.msra.mxu0 0.0
    %2551 = vmatprep.subr.mxu0 0.0
    %2552 = vmatpush2.msra.mxu0 0.0
    %2553 = vmatprep.subr.mxu0 0.0
    %2554 = vmatpush2.msra.mxu0 0.0
    %2555 = vmatprep.subr.mxu0 0.0
    %2556 = vmatpush2.msra.mxu0 0.0
    %2557 = vmatprep.mubr.f32.mxu0 0.0
    %2558 = vmatmul.mubr.f32.gmra.mxu0 %v2488
    %v2559 = vpop.f32.mrf.mxu0
    %v2560 = vadd.f32 0.0, %v2559
    %v2561 = vpop.f32.mrf.mxu0
    %2562 = vmatprep.mubr.f32.mxu0 0.0
    %2563 = vmatmul.mubr.f32.gmra.mxu0 %v2491
    %v2564 = vpop.f32.mrf.mxu0
    %v2565 = vadd.f32 0.0, %v2564
    %v2566 = vpop.f32.mrf.mxu0
    %2567 = vdwg.mxu0
    %2568 = vrot.lane.b32.xlu0 %v363, 120
    %v2569 = vpop.permute.xlu0 %2568
    %2570 = vrot.lane.b32.xlu0 %v368, 120
    %v2571 = vpop.permute.xlu0 %2570
    %2572 = vrot.lane.b32.xlu0 %v263, 88
    %v2573 = vpop.permute.xlu0 %2572
    %v2574 = vsel %vm392, %v2569, 0
    %v2576 = vsel %vm392, %v2571, 0
    %v2578 = vsel %vm392, %v2573, 0
    %2580 = vmatprep.subr.mxu0 0.0
    %2581 = vmatpush1.xpose.msra.mxu0 0.0
    %2582 = vmatprep.subr.mxu0 0.0
    %2583 = vmatpush1.xpose.msra.mxu0 0.0
    %2584 = vmatprep.subr.mxu0 0.0
    %2585 = vmatpush1.xpose.msra.mxu0 0.0
    %2586 = vmatprep.subr.mxu0 0.0
    %2587 = vmatpush1.xpose.msra.mxu0 0.0
    %2588 = vmatprep.subr.mxu0 0.0
    %2589 = vmatpush1.xpose.msra.mxu0 0.0
    %2590 = vmatprep.subr.mxu0 0.0
    %2591 = vmatpush1.xpose.msra.mxu0 0.0
    %2592 = vmatprep.subr.mxu0 0.0
    %2593 = vmatpush1.xpose.msra.mxu0 0.0
    %2594 = vmatprep.subr.mxu0 0.0
    %2595 = vmatpush1.xpose.msra.mxu0 0.0
    %2596 = vmatprep.subr.mxu0 0.0
    %2597 = vmatpush1.xpose.msra.mxu0 0.0
    %2598 = vmatprep.subr.mxu0 0.0
    %2599 = vmatpush1.xpose.msra.mxu0 0.0
    %2600 = vmatprep.subr.mxu0 0.0
    %2601 = vmatpush1.xpose.msra.mxu0 0.0
    %2602 = vmatprep.subr.mxu0 0.0
    %2603 = vmatpush1.xpose.msra.mxu0 0.0
    %2604 = vmatprep.subr.mxu0 0.0
    %2605 = vmatpush1.xpose.msra.mxu0 0.0
    %2606 = vmatprep.subr.mxu0 0.0
    %2607 = vmatpush1.xpose.msra.mxu0 0.0
    %2608 = vmatprep.subr.mxu0 0.0
    %2609 = vmatpush1.xpose.msra.mxu0 0.0
    %2610 = vmatprep.subr.mxu0 0.0
    %2611 = vmatpush1.xpose.msra.mxu0 %v2578
    %2612 = vmatprep.subr.mxu0 0.0
    %2613 = vmatpush2.xpose.msra.mxu0 0.0
    %2614 = vmatprep.subr.mxu0 0.0
    %2615 = vmatpush2.xpose.msra.mxu0 0.0
    %2616 = vmatprep.subr.mxu0 0.0
    %2617 = vmatpush2.xpose.msra.mxu0 0.0
    %2618 = vmatprep.subr.mxu0 0.0
    %2619 = vmatpush2.xpose.msra.mxu0 0.0
    %2620 = vmatprep.subr.mxu0 0.0
    %2621 = vmatpush2.xpose.msra.mxu0 0.0
    %2622 = vmatprep.subr.mxu0 0.0
    %2623 = vmatpush2.xpose.msra.mxu0 0.0
    %2624 = vmatprep.subr.mxu0 0.0
    %2625 = vmatpush2.xpose.msra.mxu0 0.0
    %2626 = vmatprep.subr.mxu0 0.0
    %2627 = vmatpush2.xpose.msra.mxu0 0.0
    %2628 = vmatprep.subr.mxu0 0.0
    %2629 = vmatpush2.xpose.msra.mxu0 0.0
    %2630 = vmatprep.subr.mxu0 0.0
    %2631 = vmatpush2.xpose.msra.mxu0 0.0
    %2632 = vmatprep.subr.mxu0 0.0
    %2633 = vmatpush2.xpose.msra.mxu0 0.0
    %2634 = vmatprep.subr.mxu0 0.0
    %2635 = vmatpush2.xpose.msra.mxu0 0.0
    %2636 = vmatprep.subr.mxu0 0.0
    %2637 = vmatpush2.xpose.msra.mxu0 0.0
    %2638 = vmatprep.subr.mxu0 0.0
    %2639 = vmatpush2.xpose.msra.mxu0 0.0
    %2640 = vmatprep.subr.mxu0 0.0
    %2641 = vmatpush2.xpose.msra.mxu0 0.0
    %2642 = vmatprep.subr.mxu0 0.0
    %2643 = vmatpush2.xpose.msra.mxu0 0.0
    %2644 = vmatprep.mubr.f32.mxu0 0.0
    %2645 = vmatmul.mubr.f32.gmra.mxu0 %v2574
    %v2646 = vpop.f32.mrf.mxu0
    %v2647 = vadd.f32 0.0, %v2646
    %v2648 = vpop.f32.mrf.mxu0
    %2649 = vmatprep.mubr.f32.mxu0 0.0
    %2650 = vmatmul.mubr.f32.gmra.mxu0 %v2576
    %v2651 = vpop.f32.mrf.mxu0
    %v2652 = vadd.f32 0.0, %v2651
    %v2653 = vpop.f32.mrf.mxu0
    %2654 = vdwg.mxu0
    %v2655 = vmul.f32 %v2647, 0.35355338
    %v2656 = vmul.f32 %v2652, 0.35355338
    %v2657 = vsel %vm392, %v2655, -inf
    %2658 = vmax.xlane.f32.xlu0 %v2657
    %v2659 = vpop.xlane.xlu0 %2658
    %v2660 = vsel %vm392, %v2656, -inf
    %2661 = vmax.xlane.f32.xlu0 %v2660
    %v2662 = vpop.xlane.xlu0 %2661
    %v2663 = vsub.f32 %v2655, %v2659
    %v2664 = vsub.f32 %v2656, %v2662
    %v2665 = vmul.f32 %v2663, 1.442695
    %v2666 = vpow.pop %v2665
    %v2667 = vmul.f32 %v2664, 1.442695
    %v2668 = vpow.pop %v2667
    %v2669 = vsel %vm392, %v2666, 0.0
    %2670 = vadd.xlane.f32.xlu0 %v2669
    %v2671 = vpop.xlane.xlu0 %2670
    %v2672 = vsel %vm392, %v2668, 0.0
    %2673 = vadd.xlane.f32.xlu0 %v2672
    %v2674 = vpop.xlane.xlu0 %2673
    %v2675 = vrcp.pop %v2671
    %v2676 = vrcp.pop %v2674
    %v2677 = vmul.f32 %v2666, %v2675
    %v2678 = vmul.f32 %v2668, %v2676
    %2679 = vrot.lane.b32.xlu0 %v263, 56
    %v2680 = vpop.permute.xlu0 %2679
    %v2683 = vsel %vm392, %v2677, 0
    %v2686 = vsel %vm392, %v2678, 0
    %2688 = vmatprep.subr.mxu0 0.0
    %2689 = vmatpush1.msra.mxu0 0.0
    %2690 = vmatprep.subr.mxu0 0.0
    %2691 = vmatpush1.msra.mxu0 0.0
    %2692 = vmatprep.subr.mxu0 0.0
    %2693 = vmatpush1.msra.mxu0 0.0
    %2694 = vmatprep.subr.mxu0 0.0
    %2695 = vmatpush1.msra.mxu0 0.0
    %2696 = vmatprep.subr.mxu0 0.0
    %2697 = vmatpush1.msra.mxu0 0.0
    %2698 = vmatprep.subr.mxu0 0.0
    %2699 = vmatpush1.msra.mxu0 0.0
    %2700 = vmatprep.subr.mxu0 0.0
    %2701 = vmatpush1.msra.mxu0 0.0
    %2702 = vmatprep.subr.mxu0 0.0
    %2703 = vmatpush1.msra.mxu0 0.0
    %2704 = vmatprep.subr.mxu0 0.0
    %2705 = vmatpush1.msra.mxu0 0.0
    %2706 = vmatprep.subr.mxu0 0.0
    %2707 = vmatpush1.msra.mxu0 0.0
    %2708 = vmatprep.subr.mxu0 0.0
    %2709 = vmatpush1.msra.mxu0 0.0
    %2710 = vmatprep.subr.mxu0 0.0
    %2711 = vmatpush1.msra.mxu0 0.0
    %2712 = vmatprep.subr.mxu0 0.0
    %2713 = vmatpush1.msra.mxu0 0.0
    %2714 = vmatprep.subr.mxu0 0.0
    %2715 = vmatpush1.msra.mxu0 0.0
    %2716 = vmatprep.subr.mxu0 0.0
    %2717 = vmatpush1.msra.mxu0 0.0
    %2718 = vmatprep.subr.mxu0 0.0
    %2719 = vmatpush1.msra.mxu0 %v2680
    %2720 = vmatprep.subr.mxu0 0.0
    %2721 = vmatpush2.msra.mxu0 0.0
    %2722 = vmatprep.subr.mxu0 0.0
    %2723 = vmatpush2.msra.mxu0 0.0
    %2724 = vmatprep.subr.mxu0 0.0
    %2725 = vmatpush2.msra.mxu0 0.0
    %2726 = vmatprep.subr.mxu0 0.0
    %2727 = vmatpush2.msra.mxu0 0.0
    %2728 = vmatprep.subr.mxu0 0.0
    %2729 = vmatpush2.msra.mxu0 0.0
    %2730 = vmatprep.subr.mxu0 0.0
    %2731 = vmatpush2.msra.mxu0 0.0
    %2732 = vmatprep.subr.mxu0 0.0
    %2733 = vmatpush2.msra.mxu0 0.0
    %2734 = vmatprep.subr.mxu0 0.0
    %2735 = vmatpush2.msra.mxu0 0.0
    %2736 = vmatprep.subr.mxu0 0.0
    %2737 = vmatpush2.msra.mxu0 0.0
    %2738 = vmatprep.subr.mxu0 0.0
    %2739 = vmatpush2.msra.mxu0 0.0
    %2740 = vmatprep.subr.mxu0 0.0
    %2741 = vmatpush2.msra.mxu0 0.0
    %2742 = vmatprep.subr.mxu0 0.0
    %2743 = vmatpush2.msra.mxu0 0.0
    %2744 = vmatprep.subr.mxu0 0.0
    %2745 = vmatpush2.msra.mxu0 0.0
    %2746 = vmatprep.subr.mxu0 0.0
    %2747 = vmatpush2.msra.mxu0 0.0
    %2748 = vmatprep.subr.mxu0 0.0
    %2749 = vmatpush2.msra.mxu0 0.0
    %2750 = vmatprep.subr.mxu0 0.0
    %2751 = vmatpush2.msra.mxu0 0.0
    %2752 = vmatprep.mubr.f32.mxu0 0.0
    %2753 = vmatmul.mubr.f32.gmra.mxu0 %v2683
    %v2754 = vpop.f32.mrf.mxu0
    %v2755 = vadd.f32 0.0, %v2754
    %v2756 = vpop.f32.mrf.mxu0
    %2757 = vmatprep.mubr.f32.mxu0 0.0
    %2758 = vmatmul.mubr.f32.gmra.mxu0 %v2686
    %v2759 = vpop.f32.mrf.mxu0
    %v2760 = vadd.f32 0.0, %v2759
    %v2761 = vpop.f32.mrf.mxu0
    %2762 = vdwg.mxu0
    %v2764 = vsel %vm392, %v2755, 0
    %v2767 = vsel %vm392, %v2760, 0
    %2769 = vmatprep.subr.mxu0 0.0
    %2770 = vmatpush1.msra.mxu0 0.0
    %2771 = vmatprep.subr.mxu0 0.0
    %2772 = vmatpush1.msra.mxu0 0.0
    %2773 = vmatprep.subr.mxu0 0.0
    %2774 = vmatpush1.msra.mxu0 0.0
    %2775 = vmatprep.subr.mxu0 0.0
    %2776 = vmatpush1.msra.mxu0 0.0
    %2777 = vmatprep.subr.mxu0 0.0
    %2778 = vmatpush1.msra.mxu0 0.0
    %2779 = vmatprep.subr.mxu0 0.0
    %2780 = vmatpush1.msra.mxu0 0.0
    %2781 = vmatprep.subr.mxu0 0.0
    %2782 = vmatpush1.msra.mxu0 0.0
    %2783 = vmatprep.subr.mxu0 0.0
    %2784 = vmatpush1.msra.mxu0 0.0
    %2785 = vmatprep.subr.mxu0 0.0
    %2786 = vmatpush1.msra.mxu0 0.0
    %2787 = vmatprep.subr.mxu0 0.0
    %2788 = vmatpush1.msra.mxu0 0.0
    %2789 = vmatprep.subr.mxu0 0.0
    %2790 = vmatpush1.msra.mxu0 0.0
    %2791 = vmatprep.subr.mxu0 0.0
    %2792 = vmatpush1.msra.mxu0 0.0
    %2793 = vmatprep.subr.mxu0 0.0
    %2794 = vmatpush1.msra.mxu0 0.0
    %2795 = vmatprep.subr.mxu0 0.0
    %2796 = vmatpush1.msra.mxu0 0.0
    %2797 = vmatprep.subr.mxu0 0.0
    %2798 = vmatpush1.msra.mxu0 0.0
    %2799 = vmatprep.subr.mxu0 0.0
    %2800 = vmatpush1.msra.mxu0 %v2372
    %2801 = vmatprep.subr.mxu0 0.0
    %2802 = vmatpush2.msra.mxu0 0.0
    %2803 = vmatprep.subr.mxu0 0.0
    %2804 = vmatpush2.msra.mxu0 0.0
    %2805 = vmatprep.subr.mxu0 0.0
    %2806 = vmatpush2.msra.mxu0 0.0
    %2807 = vmatprep.subr.mxu0 0.0
    %2808 = vmatpush2.msra.mxu0 0.0
    %2809 = vmatprep.subr.mxu0 0.0
    %2810 = vmatpush2.msra.mxu0 0.0
    %2811 = vmatprep.subr.mxu0 0.0
    %2812 = vmatpush2.msra.mxu0 0.0
    %2813 = vmatprep.subr.mxu0 0.0
    %2814 = vmatpush2.msra.mxu0 0.0
    %2815 = vmatprep.subr.mxu0 0.0
    %2816 = vmatpush2.msra.mxu0 0.0
    %2817 = vmatprep.subr.mxu0 0.0
    %2818 = vmatpush2.msra.mxu0 0.0
    %2819 = vmatprep.subr.mxu0 0.0
    %2820 = vmatpush2.msra.mxu0 0.0
    %2821 = vmatprep.subr.mxu0 0.0
    %2822 = vmatpush2.msra.mxu0 0.0
    %2823 = vmatprep.subr.mxu0 0.0
    %2824 = vmatpush2.msra.mxu0 0.0
    %2825 = vmatprep.subr.mxu0 0.0
    %2826 = vmatpush2.msra.mxu0 0.0
    %2827 = vmatprep.subr.mxu0 0.0
    %2828 = vmatpush2.msra.mxu0 0.0
    %2829 = vmatprep.subr.mxu0 0.0
    %2830 = vmatpush2.msra.mxu0 0.0
    %2831 = vmatprep.subr.mxu0 0.0
    %2832 = vmatpush2.msra.mxu0 0.0
    %2833 = vmatprep.mubr.f32.mxu0 0.0
    %2834 = vmatmul.mubr.f32.gmra.mxu0 %v2764
    %v2835 = vpop.f32.mrf.mxu0
    %v2836 = vadd.f32 0.0, %v2835
    %v2837 = vpop.f32.mrf.mxu0
    %2838 = vmatprep.mubr.f32.mxu0 0.0
    %2839 = vmatmul.mubr.f32.gmra.mxu0 %v2767
    %v2840 = vpop.f32.mrf.mxu0
    %v2841 = vadd.f32 0.0, %v2840
    %v2842 = vpop.f32.mrf.mxu0
    %2843 = vdwg.mxu0
    %v2845 = vsel %vm392, %v2560, 0
    %v2848 = vsel %vm392, %v2565, 0
    %2850 = vmatprep.subr.mxu0 0.0
    %2851 = vmatpush1.msra.mxu0 0.0
    %2852 = vmatprep.subr.mxu0 0.0
    %2853 = vmatpush1.msra.mxu0 0.0
    %2854 = vmatprep.subr.mxu0 0.0
    %2855 = vmatpush1.msra.mxu0 0.0
    %2856 = vmatprep.subr.mxu0 0.0
    %2857 = vmatpush1.msra.mxu0 0.0
    %2858 = vmatprep.subr.mxu0 0.0
    %2859 = vmatpush1.msra.mxu0 0.0
    %2860 = vmatprep.subr.mxu0 0.0
    %2861 = vmatpush1.msra.mxu0 0.0
    %2862 = vmatprep.subr.mxu0 0.0
    %2863 = vmatpush1.msra.mxu0 0.0
    %2864 = vmatprep.subr.mxu0 0.0
    %2865 = vmatpush1.msra.mxu0 0.0
    %2866 = vmatprep.subr.mxu0 0.0
    %2867 = vmatpush1.msra.mxu0 0.0
    %2868 = vmatprep.subr.mxu0 0.0
    %2869 = vmatpush1.msra.mxu0 0.0
    %2870 = vmatprep.subr.mxu0 0.0
    %2871 = vmatpush1.msra.mxu0 0.0
    %2872 = vmatprep.subr.mxu0 0.0
    %2873 = vmatpush1.msra.mxu0 0.0
    %2874 = vmatprep.subr.mxu0 0.0
    %2875 = vmatpush1.msra.mxu0 0.0
    %2876 = vmatprep.subr.mxu0 0.0
    %2877 = vmatpush1.msra.mxu0 0.0
    %2878 = vmatprep.subr.mxu0 0.0
    %2879 = vmatpush1.msra.mxu0 0.0
    %2880 = vmatprep.subr.mxu0 0.0
    %2881 = vmatpush1.msra.mxu0 %v2371
    %2882 = vmatprep.subr.mxu0 0.0
    %2883 = vmatpush2.msra.mxu0 0.0
    %2884 = vmatprep.subr.mxu0 0.0
    %2885 = vmatpush2.msra.mxu0 0.0
    %2886 = vmatprep.subr.mxu0 0.0
    %2887 = vmatpush2.msra.mxu0 0.0
    %2888 = vmatprep.subr.mxu0 0.0
    %2889 = vmatpush2.msra.mxu0 0.0
    %2890 = vmatprep.subr.mxu0 0.0
    %2891 = vmatpush2.msra.mxu0 0.0
    %2892 = vmatprep.subr.mxu0 0.0
    %2893 = vmatpush2.msra.mxu0 0.0
    %2894 = vmatprep.subr.mxu0 0.0
    %2895 = vmatpush2.msra.mxu0 0.0
    %2896 = vmatprep.subr.mxu0 0.0
    %2897 = vmatpush2.msra.mxu0 0.0
    %2898 = vmatprep.subr.mxu0 0.0
    %2899 = vmatpush2.msra.mxu0 0.0
    %2900 = vmatprep.subr.mxu0 0.0
    %2901 = vmatpush2.msra.mxu0 0.0
    %2902 = vmatprep.subr.mxu0 0.0
    %2903 = vmatpush2.msra.mxu0 0.0
    %2904 = vmatprep.subr.mxu0 0.0
    %2905 = vmatpush2.msra.mxu0 0.0
    %2906 = vmatprep.subr.mxu0 0.0
    %2907 = vmatpush2.msra.mxu0 0.0
    %2908 = vmatprep.subr.mxu0 0.0
    %2909 = vmatpush2.msra.mxu0 0.0
    %2910 = vmatprep.subr.mxu0 0.0
    %2911 = vmatpush2.msra.mxu0 0.0
    %2912 = vmatprep.subr.mxu0 0.0
    %2913 = vmatpush2.msra.mxu0 0.0
    %2914 = vmatprep.mubr.f32.mxu0 0.0
    %2915 = vmatmul.mubr.f32.gmra.mxu0 %v2845
    %v2916 = vpop.f32.mrf.mxu0
    %v2917 = vadd.f32 %v2836, %v2916
    %v2918 = vpop.f32.mrf.mxu0
    %2919 = vmatprep.mubr.f32.mxu0 0.0
    %2920 = vmatmul.mubr.f32.gmra.mxu0 %v2848
    %v2921 = vpop.f32.mrf.mxu0
    %v2922 = vadd.f32 %v2841, %v2921
    %v2923 = vpop.f32.mrf.mxu0
    %2924 = vdwg.mxu0
    %2925 = vrot.lane.b32.xlu0 %v363, 112
    %v2926 = vpop.permute.xlu0 %2925
    %2927 = vrot.lane.b32.xlu0 %v368, 112
    %v2928 = vpop.permute.xlu0 %2927
    %2929 = vrot.lane.b32.xlu0 %v263, 80
    %v2930 = vpop.permute.xlu0 %2929
    %v2931 = vsel %vm392, %v2926, 0
    %v2933 = vsel %vm392, %v2928, 0
    %v2935 = vsel %vm392, %v2930, 0
    %2937 = vmatprep.subr.mxu0 0.0
    %2938 = vmatpush1.xpose.msra.mxu0 0.0
    %2939 = vmatprep.subr.mxu0 0.0
    %2940 = vmatpush1.xpose.msra.mxu0 0.0
    %2941 = vmatprep.subr.mxu0 0.0
    %2942 = vmatpush1.xpose.msra.mxu0 0.0
    %2943 = vmatprep.subr.mxu0 0.0
    %2944 = vmatpush1.xpose.msra.mxu0 0.0
    %2945 = vmatprep.subr.mxu0 0.0
    %2946 = vmatpush1.xpose.msra.mxu0 0.0
    %2947 = vmatprep.subr.mxu0 0.0
    %2948 = vmatpush1.xpose.msra.mxu0 0.0
    %2949 = vmatprep.subr.mxu0 0.0
    %2950 = vmatpush1.xpose.msra.mxu0 0.0
    %2951 = vmatprep.subr.mxu0 0.0
    %2952 = vmatpush1.xpose.msra.mxu0 0.0
    %2953 = vmatprep.subr.mxu0 0.0
    %2954 = vmatpush1.xpose.msra.mxu0 0.0
    %2955 = vmatprep.subr.mxu0 0.0
    %2956 = vmatpush1.xpose.msra.mxu0 0.0
    %2957 = vmatprep.subr.mxu0 0.0
    %2958 = vmatpush1.xpose.msra.mxu0 0.0
    %2959 = vmatprep.subr.mxu0 0.0
    %2960 = vmatpush1.xpose.msra.mxu0 0.0
    %2961 = vmatprep.subr.mxu0 0.0
    %2962 = vmatpush1.xpose.msra.mxu0 0.0
    %2963 = vmatprep.subr.mxu0 0.0
    %2964 = vmatpush1.xpose.msra.mxu0 0.0
    %2965 = vmatprep.subr.mxu0 0.0
    %2966 = vmatpush1.xpose.msra.mxu0 0.0
    %2967 = vmatprep.subr.mxu0 0.0
    %2968 = vmatpush1.xpose.msra.mxu0 %v2935
    %2969 = vmatprep.subr.mxu0 0.0
    %2970 = vmatpush2.xpose.msra.mxu0 0.0
    %2971 = vmatprep.subr.mxu0 0.0
    %2972 = vmatpush2.xpose.msra.mxu0 0.0
    %2973 = vmatprep.subr.mxu0 0.0
    %2974 = vmatpush2.xpose.msra.mxu0 0.0
    %2975 = vmatprep.subr.mxu0 0.0
    %2976 = vmatpush2.xpose.msra.mxu0 0.0
    %2977 = vmatprep.subr.mxu0 0.0
    %2978 = vmatpush2.xpose.msra.mxu0 0.0
    %2979 = vmatprep.subr.mxu0 0.0
    %2980 = vmatpush2.xpose.msra.mxu0 0.0
    %2981 = vmatprep.subr.mxu0 0.0
    %2982 = vmatpush2.xpose.msra.mxu0 0.0
    %2983 = vmatprep.subr.mxu0 0.0
    %2984 = vmatpush2.xpose.msra.mxu0 0.0
    %2985 = vmatprep.subr.mxu0 0.0
    %2986 = vmatpush2.xpose.msra.mxu0 0.0
    %2987 = vmatprep.subr.mxu0 0.0
    %2988 = vmatpush2.xpose.msra.mxu0 0.0
    %2989 = vmatprep.subr.mxu0 0.0
    %2990 = vmatpush2.xpose.msra.mxu0 0.0
    %2991 = vmatprep.subr.mxu0 0.0
    %2992 = vmatpush2.xpose.msra.mxu0 0.0
    %2993 = vmatprep.subr.mxu0 0.0
    %2994 = vmatpush2.xpose.msra.mxu0 0.0
    %2995 = vmatprep.subr.mxu0 0.0
    %2996 = vmatpush2.xpose.msra.mxu0 0.0
    %2997 = vmatprep.subr.mxu0 0.0
    %2998 = vmatpush2.xpose.msra.mxu0 0.0
    %2999 = vmatprep.subr.mxu0 0.0
    %3000 = vmatpush2.xpose.msra.mxu0 0.0
    %3001 = vmatprep.mubr.f32.mxu0 0.0
    %3002 = vmatmul.mubr.f32.gmra.mxu0 %v2931
    %v3003 = vpop.f32.mrf.mxu0
    %v3004 = vadd.f32 0.0, %v3003
    %v3005 = vpop.f32.mrf.mxu0
    %3006 = vmatprep.mubr.f32.mxu0 0.0
    %3007 = vmatmul.mubr.f32.gmra.mxu0 %v2933
    %v3008 = vpop.f32.mrf.mxu0
    %v3009 = vadd.f32 0.0, %v3008
    %v3010 = vpop.f32.mrf.mxu0
    %3011 = vdwg.mxu0
    %v3012 = vmul.f32 %v3004, 0.35355338
    %v3013 = vmul.f32 %v3009, 0.35355338
    %v3014 = vsel %vm392, %v3012, -inf
    %3015 = vmax.xlane.f32.xlu0 %v3014
    %v3016 = vpop.xlane.xlu0 %3015
    %v3017 = vsel %vm392, %v3013, -inf
    %3018 = vmax.xlane.f32.xlu0 %v3017
    %v3019 = vpop.xlane.xlu0 %3018
    %v3020 = vsub.f32 %v3012, %v3016
    %v3021 = vsub.f32 %v3013, %v3019
    %v3022 = vmul.f32 %v3020, 1.442695
    %v3023 = vpow.pop %v3022
    %v3024 = vmul.f32 %v3021, 1.442695
    %v3025 = vpow.pop %v3024
    %v3026 = vsel %vm392, %v3023, 0.0
    %3027 = vadd.xlane.f32.xlu0 %v3026
    %v3028 = vpop.xlane.xlu0 %3027
    %v3029 = vsel %vm392, %v3025, 0.0
    %3030 = vadd.xlane.f32.xlu0 %v3029
    %v3031 = vpop.xlane.xlu0 %3030
    %v3032 = vrcp.pop %v3028
    %v3033 = vrcp.pop %v3031
    %v3034 = vmul.f32 %v3023, %v3032
    %v3035 = vmul.f32 %v3025, %v3033
    %3036 = vrot.lane.b32.xlu0 %v263, 48
    %v3037 = vpop.permute.xlu0 %3036
    %v3040 = vsel %vm392, %v3034, 0
    %v3043 = vsel %vm392, %v3035, 0
    %3045 = vmatprep.subr.mxu0 0.0
    %3046 = vmatpush1.msra.mxu0 0.0
    %3047 = vmatprep.subr.mxu0 0.0
    %3048 = vmatpush1.msra.mxu0 0.0
    %3049 = vmatprep.subr.mxu0 0.0
    %3050 = vmatpush1.msra.mxu0 0.0
    %3051 = vmatprep.subr.mxu0 0.0
    %3052 = vmatpush1.msra.mxu0 0.0
    %3053 = vmatprep.subr.mxu0 0.0
    %3054 = vmatpush1.msra.mxu0 0.0
    %3055 = vmatprep.subr.mxu0 0.0
    %3056 = vmatpush1.msra.mxu0 0.0
    %3057 = vmatprep.subr.mxu0 0.0
    %3058 = vmatpush1.msra.mxu0 0.0
    %3059 = vmatprep.subr.mxu0 0.0
    %3060 = vmatpush1.msra.mxu0 0.0
    %3061 = vmatprep.subr.mxu0 0.0
    %3062 = vmatpush1.msra.mxu0 0.0
    %3063 = vmatprep.subr.mxu0 0.0
    %3064 = vmatpush1.msra.mxu0 0.0
    %3065 = vmatprep.subr.mxu0 0.0
    %3066 = vmatpush1.msra.mxu0 0.0
    %3067 = vmatprep.subr.mxu0 0.0
    %3068 = vmatpush1.msra.mxu0 0.0
    %3069 = vmatprep.subr.mxu0 0.0
    %3070 = vmatpush1.msra.mxu0 0.0
    %3071 = vmatprep.subr.mxu0 0.0
    %3072 = vmatpush1.msra.mxu0 0.0
    %3073 = vmatprep.subr.mxu0 0.0
    %3074 = vmatpush1.msra.mxu0 0.0
    %3075 = vmatprep.subr.mxu0 0.0
    %3076 = vmatpush1.msra.mxu0 %v3037
    %3077 = vmatprep.subr.mxu0 0.0
    %3078 = vmatpush2.msra.mxu0 0.0
    %3079 = vmatprep.subr.mxu0 0.0
    %3080 = vmatpush2.msra.mxu0 0.0
    %3081 = vmatprep.subr.mxu0 0.0
    %3082 = vmatpush2.msra.mxu0 0.0
    %3083 = vmatprep.subr.mxu0 0.0
    %3084 = vmatpush2.msra.mxu0 0.0
    %3085 = vmatprep.subr.mxu0 0.0
    %3086 = vmatpush2.msra.mxu0 0.0
    %3087 = vmatprep.subr.mxu0 0.0
    %3088 = vmatpush2.msra.mxu0 0.0
    %3089 = vmatprep.subr.mxu0 0.0
    %3090 = vmatpush2.msra.mxu0 0.0
    %3091 = vmatprep.subr.mxu0 0.0
    %3092 = vmatpush2.msra.mxu0 0.0
    %3093 = vmatprep.subr.mxu0 0.0
    %3094 = vmatpush2.msra.mxu0 0.0
    %3095 = vmatprep.subr.mxu0 0.0
    %3096 = vmatpush2.msra.mxu0 0.0
    %3097 = vmatprep.subr.mxu0 0.0
    %3098 = vmatpush2.msra.mxu0 0.0
    %3099 = vmatprep.subr.mxu0 0.0
    %3100 = vmatpush2.msra.mxu0 0.0
    %3101 = vmatprep.subr.mxu0 0.0
    %3102 = vmatpush2.msra.mxu0 0.0
    %3103 = vmatprep.subr.mxu0 0.0
    %3104 = vmatpush2.msra.mxu0 0.0
    %3105 = vmatprep.subr.mxu0 0.0
    %3106 = vmatpush2.msra.mxu0 0.0
    %3107 = vmatprep.subr.mxu0 0.0
    %3108 = vmatpush2.msra.mxu0 0.0
    %3109 = vmatprep.mubr.f32.mxu0 0.0
    %3110 = vmatmul.mubr.f32.gmra.mxu0 %v3040
    %v3111 = vpop.f32.mrf.mxu0
    %v3112 = vadd.f32 0.0, %v3111
    %v3113 = vpop.f32.mrf.mxu0
    %3114 = vmatprep.mubr.f32.mxu0 0.0
    %3115 = vmatmul.mubr.f32.gmra.mxu0 %v3043
    %v3116 = vpop.f32.mrf.mxu0
    %v3117 = vadd.f32 0.0, %v3116
    %v3118 = vpop.f32.mrf.mxu0
    %3119 = vdwg.mxu0
    %v3121 = vsel %vm392, %v3112, 0
    %v3124 = vsel %vm392, %v3117, 0
    %3126 = vmatprep.subr.mxu0 0.0
    %3127 = vmatpush1.msra.mxu0 0.0
    %3128 = vmatprep.subr.mxu0 0.0
    %3129 = vmatpush1.msra.mxu0 0.0
    %3130 = vmatprep.subr.mxu0 0.0
    %3131 = vmatpush1.msra.mxu0 0.0
    %3132 = vmatprep.subr.mxu0 0.0
    %3133 = vmatpush1.msra.mxu0 0.0
    %3134 = vmatprep.subr.mxu0 0.0
    %3135 = vmatpush1.msra.mxu0 0.0
    %3136 = vmatprep.subr.mxu0 0.0
    %3137 = vmatpush1.msra.mxu0 0.0
    %3138 = vmatprep.subr.mxu0 0.0
    %3139 = vmatpush1.msra.mxu0 0.0
    %3140 = vmatprep.subr.mxu0 0.0
    %3141 = vmatpush1.msra.mxu0 0.0
    %3142 = vmatprep.subr.mxu0 0.0
    %3143 = vmatpush1.msra.mxu0 0.0
    %3144 = vmatprep.subr.mxu0 0.0
    %3145 = vmatpush1.msra.mxu0 0.0
    %3146 = vmatprep.subr.mxu0 0.0
    %3147 = vmatpush1.msra.mxu0 0.0
    %3148 = vmatprep.subr.mxu0 0.0
    %3149 = vmatpush1.msra.mxu0 0.0
    %3150 = vmatprep.subr.mxu0 0.0
    %3151 = vmatpush1.msra.mxu0 0.0
    %3152 = vmatprep.subr.mxu0 0.0
    %3153 = vmatpush1.msra.mxu0 0.0
    %3154 = vmatprep.subr.mxu0 0.0
    %3155 = vmatpush1.msra.mxu0 0.0
    %3156 = vmatprep.subr.mxu0 0.0
    %3157 = vmatpush1.msra.mxu0 %v2373
    %3158 = vmatprep.subr.mxu0 0.0
    %3159 = vmatpush2.msra.mxu0 0.0
    %3160 = vmatprep.subr.mxu0 0.0
    %3161 = vmatpush2.msra.mxu0 0.0
    %3162 = vmatprep.subr.mxu0 0.0
    %3163 = vmatpush2.msra.mxu0 0.0
    %3164 = vmatprep.subr.mxu0 0.0
    %3165 = vmatpush2.msra.mxu0 0.0
    %3166 = vmatprep.subr.mxu0 0.0
    %3167 = vmatpush2.msra.mxu0 0.0
    %3168 = vmatprep.subr.mxu0 0.0
    %3169 = vmatpush2.msra.mxu0 0.0
    %3170 = vmatprep.subr.mxu0 0.0
    %3171 = vmatpush2.msra.mxu0 0.0
    %3172 = vmatprep.subr.mxu0 0.0
    %3173 = vmatpush2.msra.mxu0 0.0
    %3174 = vmatprep.subr.mxu0 0.0
    %3175 = vmatpush2.msra.mxu0 0.0
    %3176 = vmatprep.subr.mxu0 0.0
    %3177 = vmatpush2.msra.mxu0 0.0
    %3178 = vmatprep.subr.mxu0 0.0
    %3179 = vmatpush2.msra.mxu0 0.0
    %3180 = vmatprep.subr.mxu0 0.0
    %3181 = vmatpush2.msra.mxu0 0.0
    %3182 = vmatprep.subr.mxu0 0.0
    %3183 = vmatpush2.msra.mxu0 0.0
    %3184 = vmatprep.subr.mxu0 0.0
    %3185 = vmatpush2.msra.mxu0 0.0
    %3186 = vmatprep.subr.mxu0 0.0
    %3187 = vmatpush2.msra.mxu0 0.0
    %3188 = vmatprep.subr.mxu0 0.0
    %3189 = vmatpush2.msra.mxu0 0.0
    %3190 = vmatprep.mubr.f32.mxu0 0.0
    %3191 = vmatmul.mubr.f32.gmra.mxu0 %v3121
    %v3192 = vpop.f32.mrf.mxu0
    %v3193 = vadd.f32 0.0, %v3192
    %v3194 = vpop.f32.mrf.mxu0
    %3195 = vmatprep.mubr.f32.mxu0 0.0
    %3196 = vmatmul.mubr.f32.gmra.mxu0 %v3124
    %v3197 = vpop.f32.mrf.mxu0
    %v3198 = vadd.f32 0.0, %v3197
    %v3199 = vpop.f32.mrf.mxu0
    %3200 = vdwg.mxu0
    %v3201 = vadd.f32 %v2917, %v3193
    %v3202 = vadd.f32 %v2922, %v3198
    %3203 = vrot.lane.b32.xlu0 %v363, 104
    %v3204 = vpop.permute.xlu0 %3203
    %3205 = vrot.lane.b32.xlu0 %v368, 104
    %v3206 = vpop.permute.xlu0 %3205
    %3207 = vrot.lane.b32.xlu0 %v263, 72
    %v3208 = vpop.permute.xlu0 %3207
    %v3209 = vsel %vm392, %v3204, 0
    %v3211 = vsel %vm392, %v3206, 0
    %v3213 = vsel %vm392, %v3208, 0
    %3215 = vmatprep.subr.mxu0 0.0
    %3216 = vmatpush1.xpose.msra.mxu0 0.0
    %3217 = vmatprep.subr.mxu0 0.0
    %3218 = vmatpush1.xpose.msra.mxu0 0.0
    %3219 = vmatprep.subr.mxu0 0.0
    %3220 = vmatpush1.xpose.msra.mxu0 0.0
    %3221 = vmatprep.subr.mxu0 0.0
    %3222 = vmatpush1.xpose.msra.mxu0 0.0
    %3223 = vmatprep.subr.mxu0 0.0
    %3224 = vmatpush1.xpose.msra.mxu0 0.0
    %3225 = vmatprep.subr.mxu0 0.0
    %3226 = vmatpush1.xpose.msra.mxu0 0.0
    %3227 = vmatprep.subr.mxu0 0.0
    %3228 = vmatpush1.xpose.msra.mxu0 0.0
    %3229 = vmatprep.subr.mxu0 0.0
    %3230 = vmatpush1.xpose.msra.mxu0 0.0
    %3231 = vmatprep.subr.mxu0 0.0
    %3232 = vmatpush1.xpose.msra.mxu0 0.0
    %3233 = vmatprep.subr.mxu0 0.0
    %3234 = vmatpush1.xpose.msra.mxu0 0.0
    %3235 = vmatprep.subr.mxu0 0.0
    %3236 = vmatpush1.xpose.msra.mxu0 0.0
    %3237 = vmatprep.subr.mxu0 0.0
    %3238 = vmatpush1.xpose.msra.mxu0 0.0
    %3239 = vmatprep.subr.mxu0 0.0
    %3240 = vmatpush1.xpose.msra.mxu0 0.0
    %3241 = vmatprep.subr.mxu0 0.0
    %3242 = vmatpush1.xpose.msra.mxu0 0.0
    %3243 = vmatprep.subr.mxu0 0.0
    %3244 = vmatpush1.xpose.msra.mxu0 0.0
    %3245 = vmatprep.subr.mxu0 0.0
    %3246 = vmatpush1.xpose.msra.mxu0 %v3213
    %3247 = vmatprep.subr.mxu0 0.0
    %3248 = vmatpush2.xpose.msra.mxu0 0.0
    %3249 = vmatprep.subr.mxu0 0.0
    %3250 = vmatpush2.xpose.msra.mxu0 0.0
    %3251 = vmatprep.subr.mxu0 0.0
    %3252 = vmatpush2.xpose.msra.mxu0 0.0
    %3253 = vmatprep.subr.mxu0 0.0
    %3254 = vmatpush2.xpose.msra.mxu0 0.0
    %3255 = vmatprep.subr.mxu0 0.0
    %3256 = vmatpush2.xpose.msra.mxu0 0.0
    %3257 = vmatprep.subr.mxu0 0.0
    %3258 = vmatpush2.xpose.msra.mxu0 0.0
    %3259 = vmatprep.subr.mxu0 0.0
    %3260 = vmatpush2.xpose.msra.mxu0 0.0
    %3261 = vmatprep.subr.mxu0 0.0
    %3262 = vmatpush2.xpose.msra.mxu0 0.0
    %3263 = vmatprep.subr.mxu0 0.0
    %3264 = vmatpush2.xpose.msra.mxu0 0.0
    %3265 = vmatprep.subr.mxu0 0.0
    %3266 = vmatpush2.xpose.msra.mxu0 0.0
    %3267 = vmatprep.subr.mxu0 0.0
    %3268 = vmatpush2.xpose.msra.mxu0 0.0
    %3269 = vmatprep.subr.mxu0 0.0
    %3270 = vmatpush2.xpose.msra.mxu0 0.0
    %3271 = vmatprep.subr.mxu0 0.0
    %3272 = vmatpush2.xpose.msra.mxu0 0.0
    %3273 = vmatprep.subr.mxu0 0.0
    %3274 = vmatpush2.xpose.msra.mxu0 0.0
    %3275 = vmatprep.subr.mxu0 0.0
    %3276 = vmatpush2.xpose.msra.mxu0 0.0
    %3277 = vmatprep.subr.mxu0 0.0
    %3278 = vmatpush2.xpose.msra.mxu0 0.0
    %3279 = vmatprep.mubr.f32.mxu0 0.0
    %3280 = vmatmul.mubr.f32.gmra.mxu0 %v3209
    %v3281 = vpop.f32.mrf.mxu0
    %v3282 = vadd.f32 0.0, %v3281
    %v3283 = vpop.f32.mrf.mxu0
    %3284 = vmatprep.mubr.f32.mxu0 0.0
    %3285 = vmatmul.mubr.f32.gmra.mxu0 %v3211
    %v3286 = vpop.f32.mrf.mxu0
    %v3287 = vadd.f32 0.0, %v3286
    %v3288 = vpop.f32.mrf.mxu0
    %3289 = vdwg.mxu0
    %v3290 = vmul.f32 %v3282, 0.35355338
    %v3291 = vmul.f32 %v3287, 0.35355338
    %v3292 = vsel %vm392, %v3290, -inf
    %3293 = vmax.xlane.f32.xlu0 %v3292
    %v3294 = vpop.xlane.xlu0 %3293
    %v3295 = vsel %vm392, %v3291, -inf
    %3296 = vmax.xlane.f32.xlu0 %v3295
    %v3297 = vpop.xlane.xlu0 %3296
    %v3298 = vsub.f32 %v3290, %v3294
    %v3299 = vsub.f32 %v3291, %v3297
    %v3300 = vmul.f32 %v3298, 1.442695
    %v3301 = vpow.pop %v3300
    %v3302 = vmul.f32 %v3299, 1.442695
    %v3303 = vpow.pop %v3302
    %v3304 = vsel %vm392, %v3301, 0.0
    %3305 = vadd.xlane.f32.xlu0 %v3304
    %v3306 = vpop.xlane.xlu0 %3305
    %v3307 = vsel %vm392, %v3303, 0.0
    %3308 = vadd.xlane.f32.xlu0 %v3307
    %v3309 = vpop.xlane.xlu0 %3308
    %v3310 = vrcp.pop %v3306
    %v3311 = vrcp.pop %v3309
    %v3312 = vmul.f32 %v3301, %v3310
    %v3313 = vmul.f32 %v3303, %v3311
    %3314 = vrot.lane.b32.xlu0 %v263, 40
    %v3315 = vpop.permute.xlu0 %3314
    %v3318 = vsel %vm392, %v3312, 0
    %v3321 = vsel %vm392, %v3313, 0
    %3323 = vmatprep.subr.mxu0 0.0
    %3324 = vmatpush1.msra.mxu0 0.0
    %3325 = vmatprep.subr.mxu0 0.0
    %3326 = vmatpush1.msra.mxu0 0.0
    %3327 = vmatprep.subr.mxu0 0.0
    %3328 = vmatpush1.msra.mxu0 0.0
    %3329 = vmatprep.subr.mxu0 0.0
    %3330 = vmatpush1.msra.mxu0 0.0
    %3331 = vmatprep.subr.mxu0 0.0
    %3332 = vmatpush1.msra.mxu0 0.0
    %3333 = vmatprep.subr.mxu0 0.0
    %3334 = vmatpush1.msra.mxu0 0.0
    %3335 = vmatprep.subr.mxu0 0.0
    %3336 = vmatpush1.msra.mxu0 0.0
    %3337 = vmatprep.subr.mxu0 0.0
    %3338 = vmatpush1.msra.mxu0 0.0
    %3339 = vmatprep.subr.mxu0 0.0
    %3340 = vmatpush1.msra.mxu0 0.0
    %3341 = vmatprep.subr.mxu0 0.0
    %3342 = vmatpush1.msra.mxu0 0.0
    %3343 = vmatprep.subr.mxu0 0.0
    %3344 = vmatpush1.msra.mxu0 0.0
    %3345 = vmatprep.subr.mxu0 0.0
    %3346 = vmatpush1.msra.mxu0 0.0
    %3347 = vmatprep.subr.mxu0 0.0
    %3348 = vmatpush1.msra.mxu0 0.0
    %3349 = vmatprep.subr.mxu0 0.0
    %3350 = vmatpush1.msra.mxu0 0.0
    %3351 = vmatprep.subr.mxu0 0.0
    %3352 = vmatpush1.msra.mxu0 0.0
    %3353 = vmatprep.subr.mxu0 0.0
    %3354 = vmatpush1.msra.mxu0 %v3315
    %3355 = vmatprep.subr.mxu0 0.0
    %3356 = vmatpush2.msra.mxu0 0.0
    %3357 = vmatprep.subr.mxu0 0.0
    %3358 = vmatpush2.msra.mxu0 0.0
    %3359 = vmatprep.subr.mxu0 0.0
    %3360 = vmatpush2.msra.mxu0 0.0
    %3361 = vmatprep.subr.mxu0 0.0
    %3362 = vmatpush2.msra.mxu0 0.0
    %3363 = vmatprep.subr.mxu0 0.0
    %3364 = vmatpush2.msra.mxu0 0.0
    %3365 = vmatprep.subr.mxu0 0.0
    %3366 = vmatpush2.msra.mxu0 0.0
    %3367 = vmatprep.subr.mxu0 0.0
    %3368 = vmatpush2.msra.mxu0 0.0
    %3369 = vmatprep.subr.mxu0 0.0
    %3370 = vmatpush2.msra.mxu0 0.0
    %3371 = vmatprep.subr.mxu0 0.0
    %3372 = vmatpush2.msra.mxu0 0.0
    %3373 = vmatprep.subr.mxu0 0.0
    %3374 = vmatpush2.msra.mxu0 0.0
    %3375 = vmatprep.subr.mxu0 0.0
    %3376 = vmatpush2.msra.mxu0 0.0
    %3377 = vmatprep.subr.mxu0 0.0
    %3378 = vmatpush2.msra.mxu0 0.0
    %3379 = vmatprep.subr.mxu0 0.0
    %3380 = vmatpush2.msra.mxu0 0.0
    %3381 = vmatprep.subr.mxu0 0.0
    %3382 = vmatpush2.msra.mxu0 0.0
    %3383 = vmatprep.subr.mxu0 0.0
    %3384 = vmatpush2.msra.mxu0 0.0
    %3385 = vmatprep.subr.mxu0 0.0
    %3386 = vmatpush2.msra.mxu0 0.0
    %3387 = vmatprep.mubr.f32.mxu0 0.0
    %3388 = vmatmul.mubr.f32.gmra.mxu0 %v3318
    %v3389 = vpop.f32.mrf.mxu0
    %v3390 = vadd.f32 0.0, %v3389
    %v3391 = vpop.f32.mrf.mxu0
    %3392 = vmatprep.mubr.f32.mxu0 0.0
    %3393 = vmatmul.mubr.f32.gmra.mxu0 %v3321
    %v3394 = vpop.f32.mrf.mxu0
    %v3395 = vadd.f32 0.0, %v3394
    %v3396 = vpop.f32.mrf.mxu0
    %3397 = vdwg.mxu0
    %v3399 = vsel %vm392, %v3390, 0
    %v3402 = vsel %vm392, %v3395, 0
    %3404 = vmatprep.subr.mxu0 0.0
    %3405 = vmatpush1.msra.mxu0 0.0
    %3406 = vmatprep.subr.mxu0 0.0
    %3407 = vmatpush1.msra.mxu0 0.0
    %3408 = vmatprep.subr.mxu0 0.0
    %3409 = vmatpush1.msra.mxu0 0.0
    %3410 = vmatprep.subr.mxu0 0.0
    %3411 = vmatpush1.msra.mxu0 0.0
    %3412 = vmatprep.subr.mxu0 0.0
    %3413 = vmatpush1.msra.mxu0 0.0
    %3414 = vmatprep.subr.mxu0 0.0
    %3415 = vmatpush1.msra.mxu0 0.0
    %3416 = vmatprep.subr.mxu0 0.0
    %3417 = vmatpush1.msra.mxu0 0.0
    %3418 = vmatprep.subr.mxu0 0.0
    %3419 = vmatpush1.msra.mxu0 0.0
    %3420 = vmatprep.subr.mxu0 0.0
    %3421 = vmatpush1.msra.mxu0 0.0
    %3422 = vmatprep.subr.mxu0 0.0
    %3423 = vmatpush1.msra.mxu0 0.0
    %3424 = vmatprep.subr.mxu0 0.0
    %3425 = vmatpush1.msra.mxu0 0.0
    %3426 = vmatprep.subr.mxu0 0.0
    %3427 = vmatpush1.msra.mxu0 0.0
    %3428 = vmatprep.subr.mxu0 0.0
    %3429 = vmatpush1.msra.mxu0 0.0
    %3430 = vmatprep.subr.mxu0 0.0
    %3431 = vmatpush1.msra.mxu0 0.0
    %3432 = vmatprep.subr.mxu0 0.0
    %3433 = vmatpush1.msra.mxu0 0.0
    %3434 = vmatprep.subr.mxu0 0.0
    %3435 = vmatpush1.msra.mxu0 %v2374
    %3436 = vmatprep.subr.mxu0 0.0
    %3437 = vmatpush2.msra.mxu0 0.0
    %3438 = vmatprep.subr.mxu0 0.0
    %3439 = vmatpush2.msra.mxu0 0.0
    %3440 = vmatprep.subr.mxu0 0.0
    %3441 = vmatpush2.msra.mxu0 0.0
    %3442 = vmatprep.subr.mxu0 0.0
    %3443 = vmatpush2.msra.mxu0 0.0
    %3444 = vmatprep.subr.mxu0 0.0
    %3445 = vmatpush2.msra.mxu0 0.0
    %3446 = vmatprep.subr.mxu0 0.0
    %3447 = vmatpush2.msra.mxu0 0.0
    %3448 = vmatprep.subr.mxu0 0.0
    %3449 = vmatpush2.msra.mxu0 0.0
    %3450 = vmatprep.subr.mxu0 0.0
    %3451 = vmatpush2.msra.mxu0 0.0
    %3452 = vmatprep.subr.mxu0 0.0
    %3453 = vmatpush2.msra.mxu0 0.0
    %3454 = vmatprep.subr.mxu0 0.0
    %3455 = vmatpush2.msra.mxu0 0.0
    %3456 = vmatprep.subr.mxu0 0.0
    %3457 = vmatpush2.msra.mxu0 0.0
    %3458 = vmatprep.subr.mxu0 0.0
    %3459 = vmatpush2.msra.mxu0 0.0
    %3460 = vmatprep.subr.mxu0 0.0
    %3461 = vmatpush2.msra.mxu0 0.0
    %3462 = vmatprep.subr.mxu0 0.0
    %3463 = vmatpush2.msra.mxu0 0.0
    %3464 = vmatprep.subr.mxu0 0.0
    %3465 = vmatpush2.msra.mxu0 0.0
    %3466 = vmatprep.subr.mxu0 0.0
    %3467 = vmatpush2.msra.mxu0 0.0
    %3468 = vmatprep.mubr.f32.mxu0 0.0
    %3469 = vmatmul.mubr.f32.gmra.mxu0 %v3399
    %v3470 = vpop.f32.mrf.mxu0
    %v3471 = vadd.f32 0.0, %v3470
    %v3472 = vpop.f32.mrf.mxu0
    %3473 = vmatprep.mubr.f32.mxu0 0.0
    %3474 = vmatmul.mubr.f32.gmra.mxu0 %v3402
    %v3475 = vpop.f32.mrf.mxu0
    %v3476 = vadd.f32 0.0, %v3475
    %v3477 = vpop.f32.mrf.mxu0
    %3478 = vdwg.mxu0
    %v3479 = vadd.f32 %v3201, %v3471
    %v3480 = vadd.f32 %v3202, %v3476
    %v3482 = vlaneseq
    %v3483 = vshrl.u32 %v3482, 7
    %v3484 = vsub.s32 0, %v3483
    %v3485 = vrot.slane %v2376, %v3484
    %v3487 = vadd.f32 %v3479, %v3485
    %v3488 = vadd.f32 %v3480, %v3485
    %3489 = vrot.lane.b32.xlu0 %v268, 96
    %v3490 = vpop.permute.xlu0 %3489
    %v3491 = vsel %vm392, %v373, 0
    %v3493 = vsel %vm392, %v378, 0
    %v3495 = vsel %vm392, %v3490, 0
    %3497 = vmatprep.subr.mxu0 0.0
    %3498 = vmatpush1.xpose.msra.mxu0 0.0
    %3499 = vmatprep.subr.mxu0 0.0
    %3500 = vmatpush1.xpose.msra.mxu0 0.0
    %3501 = vmatprep.subr.mxu0 0.0
    %3502 = vmatpush1.xpose.msra.mxu0 0.0
    %3503 = vmatprep.subr.mxu0 0.0
    %3504 = vmatpush1.xpose.msra.mxu0 0.0
    %3505 = vmatprep.subr.mxu0 0.0
    %3506 = vmatpush1.xpose.msra.mxu0 0.0
    %3507 = vmatprep.subr.mxu0 0.0
    %3508 = vmatpush1.xpose.msra.mxu0 0.0
    %3509 = vmatprep.subr.mxu0 0.0
    %3510 = vmatpush1.xpose.msra.mxu0 0.0
    %3511 = vmatprep.subr.mxu0 0.0
    %3512 = vmatpush1.xpose.msra.mxu0 0.0
    %3513 = vmatprep.subr.mxu0 0.0
    %3514 = vmatpush1.xpose.msra.mxu0 0.0
    %3515 = vmatprep.subr.mxu0 0.0
    %3516 = vmatpush1.xpose.msra.mxu0 0.0
    %3517 = vmatprep.subr.mxu0 0.0
    %3518 = vmatpush1.xpose.msra.mxu0 0.0
    %3519 = vmatprep.subr.mxu0 0.0
    %3520 = vmatpush1.xpose.msra.mxu0 0.0
    %3521 = vmatprep.subr.mxu0 0.0
    %3522 = vmatpush1.xpose.msra.mxu0 0.0
    %3523 = vmatprep.subr.mxu0 0.0
    %3524 = vmatpush1.xpose.msra.mxu0 0.0
    %3525 = vmatprep.subr.mxu0 0.0
    %3526 = vmatpush1.xpose.msra.mxu0 0.0
    %3527 = vmatprep.subr.mxu0 0.0
    %3528 = vmatpush1.xpose.msra.mxu0 %v3495
    %3529 = vmatprep.subr.mxu0 0.0
    %3530 = vmatpush2.xpose.msra.mxu0 0.0
    %3531 = vmatprep.subr.mxu0 0.0
    %3532 = vmatpush2.xpose.msra.mxu0 0.0
    %3533 = vmatprep.subr.mxu0 0.0
    %3534 = vmatpush2.xpose.msra.mxu0 0.0
    %3535 = vmatprep.subr.mxu0 0.0
    %3536 = vmatpush2.xpose.msra.mxu0 0.0
    %3537 = vmatprep.subr.mxu0 0.0
    %3538 = vmatpush2.xpose.msra.mxu0 0.0
    %3539 = vmatprep.subr.mxu0 0.0
    %3540 = vmatpush2.xpose.msra.mxu0 0.0
    %3541 = vmatprep.subr.mxu0 0.0
    %3542 = vmatpush2.xpose.msra.mxu0 0.0
    %3543 = vmatprep.subr.mxu0 0.0
    %3544 = vmatpush2.xpose.msra.mxu0 0.0
    %3545 = vmatprep.subr.mxu0 0.0
    %3546 = vmatpush2.xpose.msra.mxu0 0.0
    %3547 = vmatprep.subr.mxu0 0.0
    %3548 = vmatpush2.xpose.msra.mxu0 0.0
    %3549 = vmatprep.subr.mxu0 0.0
    %3550 = vmatpush2.xpose.msra.mxu0 0.0
    %3551 = vmatprep.subr.mxu0 0.0
    %3552 = vmatpush2.xpose.msra.mxu0 0.0
    %3553 = vmatprep.subr.mxu0 0.0
    %3554 = vmatpush2.xpose.msra.mxu0 0.0
    %3555 = vmatprep.subr.mxu0 0.0
    %3556 = vmatpush2.xpose.msra.mxu0 0.0
    %3557 = vmatprep.subr.mxu0 0.0
    %3558 = vmatpush2.xpose.msra.mxu0 0.0
    %3559 = vmatprep.subr.mxu0 0.0
    %3560 = vmatpush2.xpose.msra.mxu0 0.0
    %3561 = vmatprep.mubr.f32.mxu0 0.0
    %3562 = vmatmul.mubr.f32.gmra.mxu0 %v3491
    %v3563 = vpop.f32.mrf.mxu0
    %v3564 = vadd.f32 0.0, %v3563
    %v3565 = vpop.f32.mrf.mxu0
    %3566 = vmatprep.mubr.f32.mxu0 0.0
    %3567 = vmatmul.mubr.f32.gmra.mxu0 %v3493
    %v3568 = vpop.f32.mrf.mxu0
    %v3569 = vadd.f32 0.0, %v3568
    %v3570 = vpop.f32.mrf.mxu0
    %3571 = vdwg.mxu0
    %v3572 = vmul.f32 %v3564, 0.35355338
    %v3573 = vmul.f32 %v3569, 0.35355338
    %v3574 = vsel %vm392, %v3572, -inf
    %3575 = vmax.xlane.f32.xlu0 %v3574
    %v3576 = vpop.xlane.xlu0 %3575
    %v3577 = vsel %vm392, %v3573, -inf
    %3578 = vmax.xlane.f32.xlu0 %v3577
    %v3579 = vpop.xlane.xlu0 %3578
    %v3580 = vsub.f32 %v3572, %v3576
    %v3581 = vsub.f32 %v3573, %v3579
    %v3582 = vmul.f32 %v3580, 1.442695
    %v3583 = vpow.pop %v3582
    %v3584 = vmul.f32 %v3581, 1.442695
    %v3585 = vpow.pop %v3584
    %v3586 = vsel %vm392, %v3583, 0.0
    %3587 = vadd.xlane.f32.xlu0 %v3586
    %v3588 = vpop.xlane.xlu0 %3587
    %v3589 = vsel %vm392, %v3585, 0.0
    %3590 = vadd.xlane.f32.xlu0 %v3589
    %v3591 = vpop.xlane.xlu0 %3590
    %v3592 = vrcp.pop %v3588
    %v3593 = vrcp.pop %v3591
    %v3594 = vmul.f32 %v3583, %v3592
    %v3595 = vmul.f32 %v3585, %v3593
    %3596 = vrot.lane.b32.xlu0 %v268, 64
    %v3597 = vpop.permute.xlu0 %3596
    %v3600 = vsel %vm392, %v3594, 0
    %v3603 = vsel %vm392, %v3595, 0
    %3605 = vmatprep.subr.mxu0 0.0
    %3606 = vmatpush1.msra.mxu0 0.0
    %3607 = vmatprep.subr.mxu0 0.0
    %3608 = vmatpush1.msra.mxu0 0.0
    %3609 = vmatprep.subr.mxu0 0.0
    %3610 = vmatpush1.msra.mxu0 0.0
    %3611 = vmatprep.subr.mxu0 0.0
    %3612 = vmatpush1.msra.mxu0 0.0
    %3613 = vmatprep.subr.mxu0 0.0
    %3614 = vmatpush1.msra.mxu0 0.0
    %3615 = vmatprep.subr.mxu0 0.0
    %3616 = vmatpush1.msra.mxu0 0.0
    %3617 = vmatprep.subr.mxu0 0.0
    %3618 = vmatpush1.msra.mxu0 0.0
    %3619 = vmatprep.subr.mxu0 0.0
    %3620 = vmatpush1.msra.mxu0 0.0
    %3621 = vmatprep.subr.mxu0 0.0
    %3622 = vmatpush1.msra.mxu0 0.0
    %3623 = vmatprep.subr.mxu0 0.0
    %3624 = vmatpush1.msra.mxu0 0.0
    %3625 = vmatprep.subr.mxu0 0.0
    %3626 = vmatpush1.msra.mxu0 0.0
    %3627 = vmatprep.subr.mxu0 0.0
    %3628 = vmatpush1.msra.mxu0 0.0
    %3629 = vmatprep.subr.mxu0 0.0
    %3630 = vmatpush1.msra.mxu0 0.0
    %3631 = vmatprep.subr.mxu0 0.0
    %3632 = vmatpush1.msra.mxu0 0.0
    %3633 = vmatprep.subr.mxu0 0.0
    %3634 = vmatpush1.msra.mxu0 0.0
    %3635 = vmatprep.subr.mxu0 0.0
    %3636 = vmatpush1.msra.mxu0 %v3597
    %3637 = vmatprep.subr.mxu0 0.0
    %3638 = vmatpush2.msra.mxu0 0.0
    %3639 = vmatprep.subr.mxu0 0.0
    %3640 = vmatpush2.msra.mxu0 0.0
    %3641 = vmatprep.subr.mxu0 0.0
    %3642 = vmatpush2.msra.mxu0 0.0
    %3643 = vmatprep.subr.mxu0 0.0
    %3644 = vmatpush2.msra.mxu0 0.0
    %3645 = vmatprep.subr.mxu0 0.0
    %3646 = vmatpush2.msra.mxu0 0.0
    %3647 = vmatprep.subr.mxu0 0.0
    %3648 = vmatpush2.msra.mxu0 0.0
    %3649 = vmatprep.subr.mxu0 0.0
    %3650 = vmatpush2.msra.mxu0 0.0
    %3651 = vmatprep.subr.mxu0 0.0
    %3652 = vmatpush2.msra.mxu0 0.0
    %3653 = vmatprep.subr.mxu0 0.0
    %3654 = vmatpush2.msra.mxu0 0.0
    %3655 = vmatprep.subr.mxu0 0.0
    %3656 = vmatpush2.msra.mxu0 0.0
    %3657 = vmatprep.subr.mxu0 0.0
    %3658 = vmatpush2.msra.mxu0 0.0
    %3659 = vmatprep.subr.mxu0 0.0
    %3660 = vmatpush2.msra.mxu0 0.0
    %3661 = vmatprep.subr.mxu0 0.0
    %3662 = vmatpush2.msra.mxu0 0.0
    %3663 = vmatprep.subr.mxu0 0.0
    %3664 = vmatpush2.msra.mxu0 0.0
    %3665 = vmatprep.subr.mxu0 0.0
    %3666 = vmatpush2.msra.mxu0 0.0
    %3667 = vmatprep.subr.mxu0 0.0
    %3668 = vmatpush2.msra.mxu0 0.0
    %3669 = vmatprep.mubr.f32.mxu0 0.0
    %3670 = vmatmul.mubr.f32.gmra.mxu0 %v3600
    %v3671 = vpop.f32.mrf.mxu0
    %v3672 = vadd.f32 0.0, %v3671
    %v3673 = vpop.f32.mrf.mxu0
    %3674 = vmatprep.mubr.f32.mxu0 0.0
    %3675 = vmatmul.mubr.f32.gmra.mxu0 %v3603
    %v3676 = vpop.f32.mrf.mxu0
    %v3677 = vadd.f32 0.0, %v3676
    %v3678 = vpop.f32.mrf.mxu0
    %3679 = vdwg.mxu0
    %3680 = vrot.lane.b32.xlu0 %v373, 120
    %v3681 = vpop.permute.xlu0 %3680
    %3682 = vrot.lane.b32.xlu0 %v378, 120
    %v3683 = vpop.permute.xlu0 %3682
    %3684 = vrot.lane.b32.xlu0 %v268, 88
    %v3685 = vpop.permute.xlu0 %3684
    %v3686 = vsel %vm392, %v3681, 0
    %v3688 = vsel %vm392, %v3683, 0
    %v3690 = vsel %vm392, %v3685, 0
    %3692 = vmatprep.subr.mxu0 0.0
    %3693 = vmatpush1.xpose.msra.mxu0 0.0
    %3694 = vmatprep.subr.mxu0 0.0
    %3695 = vmatpush1.xpose.msra.mxu0 0.0
    %3696 = vmatprep.subr.mxu0 0.0
    %3697 = vmatpush1.xpose.msra.mxu0 0.0
    %3698 = vmatprep.subr.mxu0 0.0
    %3699 = vmatpush1.xpose.msra.mxu0 0.0
    %3700 = vmatprep.subr.mxu0 0.0
    %3701 = vmatpush1.xpose.msra.mxu0 0.0
    %3702 = vmatprep.subr.mxu0 0.0
    %3703 = vmatpush1.xpose.msra.mxu0 0.0
    %3704 = vmatprep.subr.mxu0 0.0
    %3705 = vmatpush1.xpose.msra.mxu0 0.0
    %3706 = vmatprep.subr.mxu0 0.0
    %3707 = vmatpush1.xpose.msra.mxu0 0.0
    %3708 = vmatprep.subr.mxu0 0.0
    %3709 = vmatpush1.xpose.msra.mxu0 0.0
    %3710 = vmatprep.subr.mxu0 0.0
    %3711 = vmatpush1.xpose.msra.mxu0 0.0
    %3712 = vmatprep.subr.mxu0 0.0
    %3713 = vmatpush1.xpose.msra.mxu0 0.0
    %3714 = vmatprep.subr.mxu0 0.0
    %3715 = vmatpush1.xpose.msra.mxu0 0.0
    %3716 = vmatprep.subr.mxu0 0.0
    %3717 = vmatpush1.xpose.msra.mxu0 0.0
    %3718 = vmatprep.subr.mxu0 0.0
    %3719 = vmatpush1.xpose.msra.mxu0 0.0
    %3720 = vmatprep.subr.mxu0 0.0
    %3721 = vmatpush1.xpose.msra.mxu0 0.0
    %3722 = vmatprep.subr.mxu0 0.0
    %3723 = vmatpush1.xpose.msra.mxu0 %v3690
    %3724 = vmatprep.subr.mxu0 0.0
    %3725 = vmatpush2.xpose.msra.mxu0 0.0
    %3726 = vmatprep.subr.mxu0 0.0
    %3727 = vmatpush2.xpose.msra.mxu0 0.0
    %3728 = vmatprep.subr.mxu0 0.0
    %3729 = vmatpush2.xpose.msra.mxu0 0.0
    %3730 = vmatprep.subr.mxu0 0.0
    %3731 = vmatpush2.xpose.msra.mxu0 0.0
    %3732 = vmatprep.subr.mxu0 0.0
    %3733 = vmatpush2.xpose.msra.mxu0 0.0
    %3734 = vmatprep.subr.mxu0 0.0
    %3735 = vmatpush2.xpose.msra.mxu0 0.0
    %3736 = vmatprep.subr.mxu0 0.0
    %3737 = vmatpush2.xpose.msra.mxu0 0.0
    %3738 = vmatprep.subr.mxu0 0.0
    %3739 = vmatpush2.xpose.msra.mxu0 0.0
    %3740 = vmatprep.subr.mxu0 0.0
    %3741 = vmatpush2.xpose.msra.mxu0 0.0
    %3742 = vmatprep.subr.mxu0 0.0
    %3743 = vmatpush2.xpose.msra.mxu0 0.0
    %3744 = vmatprep.subr.mxu0 0.0
    %3745 = vmatpush2.xpose.msra.mxu0 0.0
    %3746 = vmatprep.subr.mxu0 0.0
    %3747 = vmatpush2.xpose.msra.mxu0 0.0
    %3748 = vmatprep.subr.mxu0 0.0
    %3749 = vmatpush2.xpose.msra.mxu0 0.0
    %3750 = vmatprep.subr.mxu0 0.0
    %3751 = vmatpush2.xpose.msra.mxu0 0.0
    %3752 = vmatprep.subr.mxu0 0.0
    %3753 = vmatpush2.xpose.msra.mxu0 0.0
    %3754 = vmatprep.subr.mxu0 0.0
    %3755 = vmatpush2.xpose.msra.mxu0 0.0
    %3756 = vmatprep.mubr.f32.mxu0 0.0
    %3757 = vmatmul.mubr.f32.gmra.mxu0 %v3686
    %v3758 = vpop.f32.mrf.mxu0
    %v3759 = vadd.f32 0.0, %v3758
    %v3760 = vpop.f32.mrf.mxu0
    %3761 = vmatprep.mubr.f32.mxu0 0.0
    %3762 = vmatmul.mubr.f32.gmra.mxu0 %v3688
    %v3763 = vpop.f32.mrf.mxu0
    %v3764 = vadd.f32 0.0, %v3763
    %v3765 = vpop.f32.mrf.mxu0
    %3766 = vdwg.mxu0
    %v3767 = vmul.f32 %v3759, 0.35355338
    %v3768 = vmul.f32 %v3764, 0.35355338
    %v3769 = vsel %vm392, %v3767, -inf
    %3770 = vmax.xlane.f32.xlu0 %v3769
    %v3771 = vpop.xlane.xlu0 %3770
    %v3772 = vsel %vm392, %v3768, -inf
    %3773 = vmax.xlane.f32.xlu0 %v3772
    %v3774 = vpop.xlane.xlu0 %3773
    %v3775 = vsub.f32 %v3767, %v3771
    %v3776 = vsub.f32 %v3768, %v3774
    %v3777 = vmul.f32 %v3775, 1.442695
    %v3778 = vpow.pop %v3777
    %v3779 = vmul.f32 %v3776, 1.442695
    %v3780 = vpow.pop %v3779
    %v3781 = vsel %vm392, %v3778, 0.0
    %3782 = vadd.xlane.f32.xlu0 %v3781
    %v3783 = vpop.xlane.xlu0 %3782
    %v3784 = vsel %vm392, %v3780, 0.0
    %3785 = vadd.xlane.f32.xlu0 %v3784
    %v3786 = vpop.xlane.xlu0 %3785
    %v3787 = vrcp.pop %v3783
    %v3788 = vrcp.pop %v3786
    %v3789 = vmul.f32 %v3778, %v3787
    %v3790 = vmul.f32 %v3780, %v3788
    %3791 = vrot.lane.b32.xlu0 %v268, 56
    %v3792 = vpop.permute.xlu0 %3791
    %v3795 = vsel %vm392, %v3789, 0
    %v3798 = vsel %vm392, %v3790, 0
    %3800 = vmatprep.subr.mxu0 0.0
    %3801 = vmatpush1.msra.mxu0 0.0
    %3802 = vmatprep.subr.mxu0 0.0
    %3803 = vmatpush1.msra.mxu0 0.0
    %3804 = vmatprep.subr.mxu0 0.0
    %3805 = vmatpush1.msra.mxu0 0.0
    %3806 = vmatprep.subr.mxu0 0.0
    %3807 = vmatpush1.msra.mxu0 0.0
    %3808 = vmatprep.subr.mxu0 0.0
    %3809 = vmatpush1.msra.mxu0 0.0
    %3810 = vmatprep.subr.mxu0 0.0
    %3811 = vmatpush1.msra.mxu0 0.0
    %3812 = vmatprep.subr.mxu0 0.0
    %3813 = vmatpush1.msra.mxu0 0.0
    %3814 = vmatprep.subr.mxu0 0.0
    %3815 = vmatpush1.msra.mxu0 0.0
    %3816 = vmatprep.subr.mxu0 0.0
    %3817 = vmatpush1.msra.mxu0 0.0
    %3818 = vmatprep.subr.mxu0 0.0
    %3819 = vmatpush1.msra.mxu0 0.0
    %3820 = vmatprep.subr.mxu0 0.0
    %3821 = vmatpush1.msra.mxu0 0.0
    %3822 = vmatprep.subr.mxu0 0.0
    %3823 = vmatpush1.msra.mxu0 0.0
    %3824 = vmatprep.subr.mxu0 0.0
    %3825 = vmatpush1.msra.mxu0 0.0
    %3826 = vmatprep.subr.mxu0 0.0
    %3827 = vmatpush1.msra.mxu0 0.0
    %3828 = vmatprep.subr.mxu0 0.0
    %3829 = vmatpush1.msra.mxu0 0.0
    %3830 = vmatprep.subr.mxu0 0.0
    %3831 = vmatpush1.msra.mxu0 %v3792
    %3832 = vmatprep.subr.mxu0 0.0
    %3833 = vmatpush2.msra.mxu0 0.0
    %3834 = vmatprep.subr.mxu0 0.0
    %3835 = vmatpush2.msra.mxu0 0.0
    %3836 = vmatprep.subr.mxu0 0.0
    %3837 = vmatpush2.msra.mxu0 0.0
    %3838 = vmatprep.subr.mxu0 0.0
    %3839 = vmatpush2.msra.mxu0 0.0
    %3840 = vmatprep.subr.mxu0 0.0
    %3841 = vmatpush2.msra.mxu0 0.0
    %3842 = vmatprep.subr.mxu0 0.0
    %3843 = vmatpush2.msra.mxu0 0.0
    %3844 = vmatprep.subr.mxu0 0.0
    %3845 = vmatpush2.msra.mxu0 0.0
    %3846 = vmatprep.subr.mxu0 0.0
    %3847 = vmatpush2.msra.mxu0 0.0
    %3848 = vmatprep.subr.mxu0 0.0
    %3849 = vmatpush2.msra.mxu0 0.0
    %3850 = vmatprep.subr.mxu0 0.0
    %3851 = vmatpush2.msra.mxu0 0.0
    %3852 = vmatprep.subr.mxu0 0.0
    %3853 = vmatpush2.msra.mxu0 0.0
    %3854 = vmatprep.subr.mxu0 0.0
    %3855 = vmatpush2.msra.mxu0 0.0
    %3856 = vmatprep.subr.mxu0 0.0
    %3857 = vmatpush2.msra.mxu0 0.0
    %3858 = vmatprep.subr.mxu0 0.0
    %3859 = vmatpush2.msra.mxu0 0.0
    %3860 = vmatprep.subr.mxu0 0.0
    %3861 = vmatpush2.msra.mxu0 0.0
    %3862 = vmatprep.subr.mxu0 0.0
    %3863 = vmatpush2.msra.mxu0 0.0
    %3864 = vmatprep.mubr.f32.mxu0 0.0
    %3865 = vmatmul.mubr.f32.gmra.mxu0 %v3795
    %v3866 = vpop.f32.mrf.mxu0
    %v3867 = vadd.f32 0.0, %v3866
    %v3868 = vpop.f32.mrf.mxu0
    %3869 = vmatprep.mubr.f32.mxu0 0.0
    %3870 = vmatmul.mubr.f32.gmra.mxu0 %v3798
    %v3871 = vpop.f32.mrf.mxu0
    %v3872 = vadd.f32 0.0, %v3871
    %v3873 = vpop.f32.mrf.mxu0
    %3874 = vdwg.mxu0
    %v3876 = vsel %vm392, %v3867, 0
    %v3879 = vsel %vm392, %v3872, 0
    %3881 = vmatprep.subr.mxu0 0.0
    %3882 = vmatpush1.msra.mxu0 0.0
    %3883 = vmatprep.subr.mxu0 0.0
    %3884 = vmatpush1.msra.mxu0 0.0
    %3885 = vmatprep.subr.mxu0 0.0
    %3886 = vmatpush1.msra.mxu0 0.0
    %3887 = vmatprep.subr.mxu0 0.0
    %3888 = vmatpush1.msra.mxu0 0.0
    %3889 = vmatprep.subr.mxu0 0.0
    %3890 = vmatpush1.msra.mxu0 0.0
    %3891 = vmatprep.subr.mxu0 0.0
    %3892 = vmatpush1.msra.mxu0 0.0
    %3893 = vmatprep.subr.mxu0 0.0
    %3894 = vmatpush1.msra.mxu0 0.0
    %3895 = vmatprep.subr.mxu0 0.0
    %3896 = vmatpush1.msra.mxu0 0.0
    %3897 = vmatprep.subr.mxu0 0.0
    %3898 = vmatpush1.msra.mxu0 0.0
    %3899 = vmatprep.subr.mxu0 0.0
    %3900 = vmatpush1.msra.mxu0 0.0
    %3901 = vmatprep.subr.mxu0 0.0
    %3902 = vmatpush1.msra.mxu0 0.0
    %3903 = vmatprep.subr.mxu0 0.0
    %3904 = vmatpush1.msra.mxu0 0.0
    %3905 = vmatprep.subr.mxu0 0.0
    %3906 = vmatpush1.msra.mxu0 0.0
    %3907 = vmatprep.subr.mxu0 0.0
    %3908 = vmatpush1.msra.mxu0 0.0
    %3909 = vmatprep.subr.mxu0 0.0
    %3910 = vmatpush1.msra.mxu0 0.0
    %3911 = vmatprep.subr.mxu0 0.0
    %3912 = vmatpush1.msra.mxu0 %v2372
    %3913 = vmatprep.subr.mxu0 0.0
    %3914 = vmatpush2.msra.mxu0 0.0
    %3915 = vmatprep.subr.mxu0 0.0
    %3916 = vmatpush2.msra.mxu0 0.0
    %3917 = vmatprep.subr.mxu0 0.0
    %3918 = vmatpush2.msra.mxu0 0.0
    %3919 = vmatprep.subr.mxu0 0.0
    %3920 = vmatpush2.msra.mxu0 0.0
    %3921 = vmatprep.subr.mxu0 0.0
    %3922 = vmatpush2.msra.mxu0 0.0
    %3923 = vmatprep.subr.mxu0 0.0
    %3924 = vmatpush2.msra.mxu0 0.0
    %3925 = vmatprep.subr.mxu0 0.0
    %3926 = vmatpush2.msra.mxu0 0.0
    %3927 = vmatprep.subr.mxu0 0.0
    %3928 = vmatpush2.msra.mxu0 0.0
    %3929 = vmatprep.subr.mxu0 0.0
    %3930 = vmatpush2.msra.mxu0 0.0
    %3931 = vmatprep.subr.mxu0 0.0
    %3932 = vmatpush2.msra.mxu0 0.0
    %3933 = vmatprep.subr.mxu0 0.0
    %3934 = vmatpush2.msra.mxu0 0.0
    %3935 = vmatprep.subr.mxu0 0.0
    %3936 = vmatpush2.msra.mxu0 0.0
    %3937 = vmatprep.subr.mxu0 0.0
    %3938 = vmatpush2.msra.mxu0 0.0
    %3939 = vmatprep.subr.mxu0 0.0
    %3940 = vmatpush2.msra.mxu0 0.0
    %3941 = vmatprep.subr.mxu0 0.0
    %3942 = vmatpush2.msra.mxu0 0.0
    %3943 = vmatprep.subr.mxu0 0.0
    %3944 = vmatpush2.msra.mxu0 0.0
    %3945 = vmatprep.mubr.f32.mxu0 0.0
    %3946 = vmatmul.mubr.f32.gmra.mxu0 %v3876
    %v3947 = vpop.f32.mrf.mxu0
    %v3948 = vadd.f32 0.0, %v3947
    %v3949 = vpop.f32.mrf.mxu0
    %3950 = vmatprep.mubr.f32.mxu0 0.0
    %3951 = vmatmul.mubr.f32.gmra.mxu0 %v3879
    %v3952 = vpop.f32.mrf.mxu0
    %v3953 = vadd.f32 0.0, %v3952
    %v3954 = vpop.f32.mrf.mxu0
    %3955 = vdwg.mxu0
    %v3957 = vsel %vm392, %v3672, 0
    %v3960 = vsel %vm392, %v3677, 0
    %3962 = vmatprep.subr.mxu0 0.0
    %3963 = vmatpush1.msra.mxu0 0.0
    %3964 = vmatprep.subr.mxu0 0.0
    %3965 = vmatpush1.msra.mxu0 0.0
    %3966 = vmatprep.subr.mxu0 0.0
    %3967 = vmatpush1.msra.mxu0 0.0
    %3968 = vmatprep.subr.mxu0 0.0
    %3969 = vmatpush1.msra.mxu0 0.0
    %3970 = vmatprep.subr.mxu0 0.0
    %3971 = vmatpush1.msra.mxu0 0.0
    %3972 = vmatprep.subr.mxu0 0.0
    %3973 = vmatpush1.msra.mxu0 0.0
    %3974 = vmatprep.subr.mxu0 0.0
    %3975 = vmatpush1.msra.mxu0 0.0
    %3976 = vmatprep.subr.mxu0 0.0
    %3977 = vmatpush1.msra.mxu0 0.0
    %3978 = vmatprep.subr.mxu0 0.0
    %3979 = vmatpush1.msra.mxu0 0.0
    %3980 = vmatprep.subr.mxu0 0.0
    %3981 = vmatpush1.msra.mxu0 0.0
    %3982 = vmatprep.subr.mxu0 0.0
    %3983 = vmatpush1.msra.mxu0 0.0
    %3984 = vmatprep.subr.mxu0 0.0
    %3985 = vmatpush1.msra.mxu0 0.0
    %3986 = vmatprep.subr.mxu0 0.0
    %3987 = vmatpush1.msra.mxu0 0.0
    %3988 = vmatprep.subr.mxu0 0.0
    %3989 = vmatpush1.msra.mxu0 0.0
    %3990 = vmatprep.subr.mxu0 0.0
    %3991 = vmatpush1.msra.mxu0 0.0
    %3992 = vmatprep.subr.mxu0 0.0
    %3993 = vmatpush1.msra.mxu0 %v2371
    %3994 = vmatprep.subr.mxu0 0.0
    %3995 = vmatpush2.msra.mxu0 0.0
    %3996 = vmatprep.subr.mxu0 0.0
    %3997 = vmatpush2.msra.mxu0 0.0
    %3998 = vmatprep.subr.mxu0 0.0
    %3999 = vmatpush2.msra.mxu0 0.0
    %4000 = vmatprep.subr.mxu0 0.0
    %4001 = vmatpush2.msra.mxu0 0.0
    %4002 = vmatprep.subr.mxu0 0.0
    %4003 = vmatpush2.msra.mxu0 0.0
    %4004 = vmatprep.subr.mxu0 0.0
    %4005 = vmatpush2.msra.mxu0 0.0
    %4006 = vmatprep.subr.mxu0 0.0
    %4007 = vmatpush2.msra.mxu0 0.0
    %4008 = vmatprep.subr.mxu0 0.0
    %4009 = vmatpush2.msra.mxu0 0.0
    %4010 = vmatprep.subr.mxu0 0.0
    %4011 = vmatpush2.msra.mxu0 0.0
    %4012 = vmatprep.subr.mxu0 0.0
    %4013 = vmatpush2.msra.mxu0 0.0
    %4014 = vmatprep.subr.mxu0 0.0
    %4015 = vmatpush2.msra.mxu0 0.0
    %4016 = vmatprep.subr.mxu0 0.0
    %4017 = vmatpush2.msra.mxu0 0.0
    %4018 = vmatprep.subr.mxu0 0.0
    %4019 = vmatpush2.msra.mxu0 0.0
    %4020 = vmatprep.subr.mxu0 0.0
    %4021 = vmatpush2.msra.mxu0 0.0
    %4022 = vmatprep.subr.mxu0 0.0
    %4023 = vmatpush2.msra.mxu0 0.0
    %4024 = vmatprep.subr.mxu0 0.0
    %4025 = vmatpush2.msra.mxu0 0.0
    %4026 = vmatprep.mubr.f32.mxu0 0.0
    %4027 = vmatmul.mubr.f32.gmra.mxu0 %v3957
    %v4028 = vpop.f32.mrf.mxu0
    %v4029 = vadd.f32 %v3948, %v4028
    %v4030 = vpop.f32.mrf.mxu0
    %4031 = vmatprep.mubr.f32.mxu0 0.0
    %4032 = vmatmul.mubr.f32.gmra.mxu0 %v3960
    %v4033 = vpop.f32.mrf.mxu0
    %v4034 = vadd.f32 %v3953, %v4033
    %v4035 = vpop.f32.mrf.mxu0
    %4036 = vdwg.mxu0
    %4037 = vrot.lane.b32.xlu0 %v373, 112
    %v4038 = vpop.permute.xlu0 %4037
    %4039 = vrot.lane.b32.xlu0 %v378, 112
    %v4040 = vpop.permute.xlu0 %4039
    %4041 = vrot.lane.b32.xlu0 %v268, 80
    %v4042 = vpop.permute.xlu0 %4041
    %v4043 = vsel %vm392, %v4038, 0
    %v4045 = vsel %vm392, %v4040, 0
    %v4047 = vsel %vm392, %v4042, 0
    %4049 = vmatprep.subr.mxu0 0.0
    %4050 = vmatpush1.xpose.msra.mxu0 0.0
    %4051 = vmatprep.subr.mxu0 0.0
    %4052 = vmatpush1.xpose.msra.mxu0 0.0
    %4053 = vmatprep.subr.mxu0 0.0
    %4054 = vmatpush1.xpose.msra.mxu0 0.0
    %4055 = vmatprep.subr.mxu0 0.0
    %4056 = vmatpush1.xpose.msra.mxu0 0.0
    %4057 = vmatprep.subr.mxu0 0.0
    %4058 = vmatpush1.xpose.msra.mxu0 0.0
    %4059 = vmatprep.subr.mxu0 0.0
    %4060 = vmatpush1.xpose.msra.mxu0 0.0
    %4061 = vmatprep.subr.mxu0 0.0
    %4062 = vmatpush1.xpose.msra.mxu0 0.0
    %4063 = vmatprep.subr.mxu0 0.0
    %4064 = vmatpush1.xpose.msra.mxu0 0.0
    %4065 = vmatprep.subr.mxu0 0.0
    %4066 = vmatpush1.xpose.msra.mxu0 0.0
    %4067 = vmatprep.subr.mxu0 0.0
    %4068 = vmatpush1.xpose.msra.mxu0 0.0
    %4069 = vmatprep.subr.mxu0 0.0
    %4070 = vmatpush1.xpose.msra.mxu0 0.0
    %4071 = vmatprep.subr.mxu0 0.0
    %4072 = vmatpush1.xpose.msra.mxu0 0.0
    %4073 = vmatprep.subr.mxu0 0.0
    %4074 = vmatpush1.xpose.msra.mxu0 0.0
    %4075 = vmatprep.subr.mxu0 0.0
    %4076 = vmatpush1.xpose.msra.mxu0 0.0
    %4077 = vmatprep.subr.mxu0 0.0
    %4078 = vmatpush1.xpose.msra.mxu0 0.0
    %4079 = vmatprep.subr.mxu0 0.0
    %4080 = vmatpush1.xpose.msra.mxu0 %v4047
    %4081 = vmatprep.subr.mxu0 0.0
    %4082 = vmatpush2.xpose.msra.mxu0 0.0
    %4083 = vmatprep.subr.mxu0 0.0
    %4084 = vmatpush2.xpose.msra.mxu0 0.0
    %4085 = vmatprep.subr.mxu0 0.0
    %4086 = vmatpush2.xpose.msra.mxu0 0.0
    %4087 = vmatprep.subr.mxu0 0.0
    %4088 = vmatpush2.xpose.msra.mxu0 0.0
    %4089 = vmatprep.subr.mxu0 0.0
    %4090 = vmatpush2.xpose.msra.mxu0 0.0
    %4091 = vmatprep.subr.mxu0 0.0
    %4092 = vmatpush2.xpose.msra.mxu0 0.0
    %4093 = vmatprep.subr.mxu0 0.0
    %4094 = vmatpush2.xpose.msra.mxu0 0.0
    %4095 = vmatprep.subr.mxu0 0.0
    %4096 = vmatpush2.xpose.msra.mxu0 0.0
    %4097 = vmatprep.subr.mxu0 0.0
    %4098 = vmatpush2.xpose.msra.mxu0 0.0
    %4099 = vmatprep.subr.mxu0 0.0
    %4100 = vmatpush2.xpose.msra.mxu0 0.0
    %4101 = vmatprep.subr.mxu0 0.0
    %4102 = vmatpush2.xpose.msra.mxu0 0.0
    %4103 = vmatprep.subr.mxu0 0.0
    %4104 = vmatpush2.xpose.msra.mxu0 0.0
    %4105 = vmatprep.subr.mxu0 0.0
    %4106 = vmatpush2.xpose.msra.mxu0 0.0
    %4107 = vmatprep.subr.mxu0 0.0
    %4108 = vmatpush2.xpose.msra.mxu0 0.0
    %4109 = vmatprep.subr.mxu0 0.0
    %4110 = vmatpush2.xpose.msra.mxu0 0.0
    %4111 = vmatprep.subr.mxu0 0.0
    %4112 = vmatpush2.xpose.msra.mxu0 0.0
    %4113 = vmatprep.mubr.f32.mxu0 0.0
    %4114 = vmatmul.mubr.f32.gmra.mxu0 %v4043
    %v4115 = vpop.f32.mrf.mxu0
    %v4116 = vadd.f32 0.0, %v4115
    %v4117 = vpop.f32.mrf.mxu0
    %4118 = vmatprep.mubr.f32.mxu0 0.0
    %4119 = vmatmul.mubr.f32.gmra.mxu0 %v4045
    %v4120 = vpop.f32.mrf.mxu0
    %v4121 = vadd.f32 0.0, %v4120
    %v4122 = vpop.f32.mrf.mxu0
    %4123 = vdwg.mxu0
    %v4124 = vmul.f32 %v4116, 0.35355338
    %v4125 = vmul.f32 %v4121, 0.35355338
    %v4126 = vsel %vm392, %v4124, -inf
    %4127 = vmax.xlane.f32.xlu0 %v4126
    %v4128 = vpop.xlane.xlu0 %4127
    %v4129 = vsel %vm392, %v4125, -inf
    %4130 = vmax.xlane.f32.xlu0 %v4129
    %v4131 = vpop.xlane.xlu0 %4130
    %v4132 = vsub.f32 %v4124, %v4128
    %v4133 = vsub.f32 %v4125, %v4131
    %v4134 = vmul.f32 %v4132, 1.442695
    %v4135 = vpow.pop %v4134
    %v4136 = vmul.f32 %v4133, 1.442695
    %v4137 = vpow.pop %v4136
    %v4138 = vsel %vm392, %v4135, 0.0
    %4139 = vadd.xlane.f32.xlu0 %v4138
    %v4140 = vpop.xlane.xlu0 %4139
    %v4141 = vsel %vm392, %v4137, 0.0
    %4142 = vadd.xlane.f32.xlu0 %v4141
    %v4143 = vpop.xlane.xlu0 %4142
    %v4144 = vrcp.pop %v4140
    %v4145 = vrcp.pop %v4143
    %v4146 = vmul.f32 %v4135, %v4144
    %v4147 = vmul.f32 %v4137, %v4145
    %4148 = vrot.lane.b32.xlu0 %v268, 48
    %v4149 = vpop.permute.xlu0 %4148
    %v4152 = vsel %vm392, %v4146, 0
    %v4155 = vsel %vm392, %v4147, 0
    %4157 = vmatprep.subr.mxu0 0.0
    %4158 = vmatpush1.msra.mxu0 0.0
    %4159 = vmatprep.subr.mxu0 0.0
    %4160 = vmatpush1.msra.mxu0 0.0
    %4161 = vmatprep.subr.mxu0 0.0
    %4162 = vmatpush1.msra.mxu0 0.0
    %4163 = vmatprep.subr.mxu0 0.0
    %4164 = vmatpush1.msra.mxu0 0.0
    %4165 = vmatprep.subr.mxu0 0.0
    %4166 = vmatpush1.msra.mxu0 0.0
    %4167 = vmatprep.subr.mxu0 0.0
    %4168 = vmatpush1.msra.mxu0 0.0
    %4169 = vmatprep.subr.mxu0 0.0
    %4170 = vmatpush1.msra.mxu0 0.0
    %4171 = vmatprep.subr.mxu0 0.0
    %4172 = vmatpush1.msra.mxu0 0.0
    %4173 = vmatprep.subr.mxu0 0.0
    %4174 = vmatpush1.msra.mxu0 0.0
    %4175 = vmatprep.subr.mxu0 0.0
    %4176 = vmatpush1.msra.mxu0 0.0
    %4177 = vmatprep.subr.mxu0 0.0
    %4178 = vmatpush1.msra.mxu0 0.0
    %4179 = vmatprep.subr.mxu0 0.0
    %4180 = vmatpush1.msra.mxu0 0.0
    %4181 = vmatprep.subr.mxu0 0.0
    %4182 = vmatpush1.msra.mxu0 0.0
    %4183 = vmatprep.subr.mxu0 0.0
    %4184 = vmatpush1.msra.mxu0 0.0
    %4185 = vmatprep.subr.mxu0 0.0
    %4186 = vmatpush1.msra.mxu0 0.0
    %4187 = vmatprep.subr.mxu0 0.0
    %4188 = vmatpush1.msra.mxu0 %v4149
    %4189 = vmatprep.subr.mxu0 0.0
    %4190 = vmatpush2.msra.mxu0 0.0
    %4191 = vmatprep.subr.mxu0 0.0
    %4192 = vmatpush2.msra.mxu0 0.0
    %4193 = vmatprep.subr.mxu0 0.0
    %4194 = vmatpush2.msra.mxu0 0.0
    %4195 = vmatprep.subr.mxu0 0.0
    %4196 = vmatpush2.msra.mxu0 0.0
    %4197 = vmatprep.subr.mxu0 0.0
    %4198 = vmatpush2.msra.mxu0 0.0
    %4199 = vmatprep.subr.mxu0 0.0
    %4200 = vmatpush2.msra.mxu0 0.0
    %4201 = vmatprep.subr.mxu0 0.0
    %4202 = vmatpush2.msra.mxu0 0.0
    %4203 = vmatprep.subr.mxu0 0.0
    %4204 = vmatpush2.msra.mxu0 0.0
    %4205 = vmatprep.subr.mxu0 0.0
    %4206 = vmatpush2.msra.mxu0 0.0
    %4207 = vmatprep.subr.mxu0 0.0
    %4208 = vmatpush2.msra.mxu0 0.0
    %4209 = vmatprep.subr.mxu0 0.0
    %4210 = vmatpush2.msra.mxu0 0.0
    %4211 = vmatprep.subr.mxu0 0.0
    %4212 = vmatpush2.msra.mxu0 0.0
    %4213 = vmatprep.subr.mxu0 0.0
    %4214 = vmatpush2.msra.mxu0 0.0
    %4215 = vmatprep.subr.mxu0 0.0
    %4216 = vmatpush2.msra.mxu0 0.0
    %4217 = vmatprep.subr.mxu0 0.0
    %4218 = vmatpush2.msra.mxu0 0.0
    %4219 = vmatprep.subr.mxu0 0.0
    %4220 = vmatpush2.msra.mxu0 0.0
    %4221 = vmatprep.mubr.f32.mxu0 0.0
    %4222 = vmatmul.mubr.f32.gmra.mxu0 %v4152
    %v4223 = vpop.f32.mrf.mxu0
    %v4224 = vadd.f32 0.0, %v4223
    %v4225 = vpop.f32.mrf.mxu0
    %4226 = vmatprep.mubr.f32.mxu0 0.0
    %4227 = vmatmul.mubr.f32.gmra.mxu0 %v4155
    %v4228 = vpop.f32.mrf.mxu0
    %v4229 = vadd.f32 0.0, %v4228
    %v4230 = vpop.f32.mrf.mxu0
    %4231 = vdwg.mxu0
    %v4233 = vsel %vm392, %v4224, 0
    %v4236 = vsel %vm392, %v4229, 0
    %4238 = vmatprep.subr.mxu0 0.0
    %4239 = vmatpush1.msra.mxu0 0.0
    %4240 = vmatprep.subr.mxu0 0.0
    %4241 = vmatpush1.msra.mxu0 0.0
    %4242 = vmatprep.subr.mxu0 0.0
    %4243 = vmatpush1.msra.mxu0 0.0
    %4244 = vmatprep.subr.mxu0 0.0
    %4245 = vmatpush1.msra.mxu0 0.0
    %4246 = vmatprep.subr.mxu0 0.0
    %4247 = vmatpush1.msra.mxu0 0.0
    %4248 = vmatprep.subr.mxu0 0.0
    %4249 = vmatpush1.msra.mxu0 0.0
    %4250 = vmatprep.subr.mxu0 0.0
    %4251 = vmatpush1.msra.mxu0 0.0
    %4252 = vmatprep.subr.mxu0 0.0
    %4253 = vmatpush1.msra.mxu0 0.0
    %4254 = vmatprep.subr.mxu0 0.0
    %4255 = vmatpush1.msra.mxu0 0.0
    %4256 = vmatprep.subr.mxu0 0.0
    %4257 = vmatpush1.msra.mxu0 0.0
    %4258 = vmatprep.subr.mxu0 0.0
    %4259 = vmatpush1.msra.mxu0 0.0
    %4260 = vmatprep.subr.mxu0 0.0
    %4261 = vmatpush1.msra.mxu0 0.0
    %4262 = vmatprep.subr.mxu0 0.0
    %4263 = vmatpush1.msra.mxu0 0.0
    %4264 = vmatprep.subr.mxu0 0.0
    %4265 = vmatpush1.msra.mxu0 0.0
    %4266 = vmatprep.subr.mxu0 0.0
    %4267 = vmatpush1.msra.mxu0 0.0
    %4268 = vmatprep.subr.mxu0 0.0
    %4269 = vmatpush1.msra.mxu0 %v2373
    %4270 = vmatprep.subr.mxu0 0.0
    %4271 = vmatpush2.msra.mxu0 0.0
    %4272 = vmatprep.subr.mxu0 0.0
    %4273 = vmatpush2.msra.mxu0 0.0
    %4274 = vmatprep.subr.mxu0 0.0
    %4275 = vmatpush2.msra.mxu0 0.0
    %4276 = vmatprep.subr.mxu0 0.0
    %4277 = vmatpush2.msra.mxu0 0.0
    %4278 = vmatprep.subr.mxu0 0.0
    %4279 = vmatpush2.msra.mxu0 0.0
    %4280 = vmatprep.subr.mxu0 0.0
    %4281 = vmatpush2.msra.mxu0 0.0
    %4282 = vmatprep.subr.mxu0 0.0
    %4283 = vmatpush2.msra.mxu0 0.0
    %4284 = vmatprep.subr.mxu0 0.0
    %4285 = vmatpush2.msra.mxu0 0.0
    %4286 = vmatprep.subr.mxu0 0.0
    %4287 = vmatpush2.msra.mxu0 0.0
    %4288 = vmatprep.subr.mxu0 0.0
    %4289 = vmatpush2.msra.mxu0 0.0
    %4290 = vmatprep.subr.mxu0 0.0
    %4291 = vmatpush2.msra.mxu0 0.0
    %4292 = vmatprep.subr.mxu0 0.0
    %4293 = vmatpush2.msra.mxu0 0.0
    %4294 = vmatprep.subr.mxu0 0.0
    %4295 = vmatpush2.msra.mxu0 0.0
    %4296 = vmatprep.subr.mxu0 0.0
    %4297 = vmatpush2.msra.mxu0 0.0
    %4298 = vmatprep.subr.mxu0 0.0
    %4299 = vmatpush2.msra.mxu0 0.0
    %4300 = vmatprep.subr.mxu0 0.0
    %4301 = vmatpush2.msra.mxu0 0.0
    %4302 = vmatprep.mubr.f32.mxu0 0.0
    %4303 = vmatmul.mubr.f32.gmra.mxu0 %v4233
    %v4304 = vpop.f32.mrf.mxu0
    %v4305 = vadd.f32 0.0, %v4304
    %v4306 = vpop.f32.mrf.mxu0
    %4307 = vmatprep.mubr.f32.mxu0 0.0
    %4308 = vmatmul.mubr.f32.gmra.mxu0 %v4236
    %v4309 = vpop.f32.mrf.mxu0
    %v4310 = vadd.f32 0.0, %v4309
    %v4311 = vpop.f32.mrf.mxu0
    %4312 = vdwg.mxu0
    %v4313 = vadd.f32 %v4029, %v4305
    %v4314 = vadd.f32 %v4034, %v4310
    %4315 = vrot.lane.b32.xlu0 %v373, 104
    %v4316 = vpop.permute.xlu0 %4315
    %4317 = vrot.lane.b32.xlu0 %v378, 104
    %v4318 = vpop.permute.xlu0 %4317
    %4319 = vrot.lane.b32.xlu0 %v268, 72
    %v4320 = vpop.permute.xlu0 %4319
    %v4321 = vsel %vm392, %v4316, 0
    %v4323 = vsel %vm392, %v4318, 0
    %v4325 = vsel %vm392, %v4320, 0
    %4327 = vmatprep.subr.mxu0 0.0
    %4328 = vmatpush1.xpose.msra.mxu0 0.0
    %4329 = vmatprep.subr.mxu0 0.0
    %4330 = vmatpush1.xpose.msra.mxu0 0.0
    %4331 = vmatprep.subr.mxu0 0.0
    %4332 = vmatpush1.xpose.msra.mxu0 0.0
    %4333 = vmatprep.subr.mxu0 0.0
    %4334 = vmatpush1.xpose.msra.mxu0 0.0
    %4335 = vmatprep.subr.mxu0 0.0
    %4336 = vmatpush1.xpose.msra.mxu0 0.0
    %4337 = vmatprep.subr.mxu0 0.0
    %4338 = vmatpush1.xpose.msra.mxu0 0.0
    %4339 = vmatprep.subr.mxu0 0.0
    %4340 = vmatpush1.xpose.msra.mxu0 0.0
    %4341 = vmatprep.subr.mxu0 0.0
    %4342 = vmatpush1.xpose.msra.mxu0 0.0
    %4343 = vmatprep.subr.mxu0 0.0
    %4344 = vmatpush1.xpose.msra.mxu0 0.0
    %4345 = vmatprep.subr.mxu0 0.0
    %4346 = vmatpush1.xpose.msra.mxu0 0.0
    %4347 = vmatprep.subr.mxu0 0.0
    %4348 = vmatpush1.xpose.msra.mxu0 0.0
    %4349 = vmatprep.subr.mxu0 0.0
    %4350 = vmatpush1.xpose.msra.mxu0 0.0
    %4351 = vmatprep.subr.mxu0 0.0
    %4352 = vmatpush1.xpose.msra.mxu0 0.0
    %4353 = vmatprep.subr.mxu0 0.0
    %4354 = vmatpush1.xpose.msra.mxu0 0.0
    %4355 = vmatprep.subr.mxu0 0.0
    %4356 = vmatpush1.xpose.msra.mxu0 0.0
    %4357 = vmatprep.subr.mxu0 0.0
    %4358 = vmatpush1.xpose.msra.mxu0 %v4325
    %4359 = vmatprep.subr.mxu0 0.0
    %4360 = vmatpush2.xpose.msra.mxu0 0.0
    %4361 = vmatprep.subr.mxu0 0.0
    %4362 = vmatpush2.xpose.msra.mxu0 0.0
    %4363 = vmatprep.subr.mxu0 0.0
    %4364 = vmatpush2.xpose.msra.mxu0 0.0
    %4365 = vmatprep.subr.mxu0 0.0
    %4366 = vmatpush2.xpose.msra.mxu0 0.0
    %4367 = vmatprep.subr.mxu0 0.0
    %4368 = vmatpush2.xpose.msra.mxu0 0.0
    %4369 = vmatprep.subr.mxu0 0.0
    %4370 = vmatpush2.xpose.msra.mxu0 0.0
    %4371 = vmatprep.subr.mxu0 0.0
    %4372 = vmatpush2.xpose.msra.mxu0 0.0
    %4373 = vmatprep.subr.mxu0 0.0
    %4374 = vmatpush2.xpose.msra.mxu0 0.0
    %4375 = vmatprep.subr.mxu0 0.0
    %4376 = vmatpush2.xpose.msra.mxu0 0.0
    %4377 = vmatprep.subr.mxu0 0.0
    %4378 = vmatpush2.xpose.msra.mxu0 0.0
    %4379 = vmatprep.subr.mxu0 0.0
    %4380 = vmatpush2.xpose.msra.mxu0 0.0
    %4381 = vmatprep.subr.mxu0 0.0
    %4382 = vmatpush2.xpose.msra.mxu0 0.0
    %4383 = vmatprep.subr.mxu0 0.0
    %4384 = vmatpush2.xpose.msra.mxu0 0.0
    %4385 = vmatprep.subr.mxu0 0.0
    %4386 = vmatpush2.xpose.msra.mxu0 0.0
    %4387 = vmatprep.subr.mxu0 0.0
    %4388 = vmatpush2.xpose.msra.mxu0 0.0
    %4389 = vmatprep.subr.mxu0 0.0
    %4390 = vmatpush2.xpose.msra.mxu0 0.0
    %4391 = vmatprep.mubr.f32.mxu0 0.0
    %4392 = vmatmul.mubr.f32.gmra.mxu0 %v4321
    %v4393 = vpop.f32.mrf.mxu0
    %v4394 = vadd.f32 0.0, %v4393
    %v4395 = vpop.f32.mrf.mxu0
    %4396 = vmatprep.mubr.f32.mxu0 0.0
    %4397 = vmatmul.mubr.f32.gmra.mxu0 %v4323
    %v4398 = vpop.f32.mrf.mxu0
    %v4399 = vadd.f32 0.0, %v4398
    %v4400 = vpop.f32.mrf.mxu0
    %4401 = vdwg.mxu0
    %v4402 = vmul.f32 %v4394, 0.35355338
    %v4403 = vmul.f32 %v4399, 0.35355338
    %v4404 = vsel %vm392, %v4402, -inf
    %4405 = vmax.xlane.f32.xlu0 %v4404
    %v4406 = vpop.xlane.xlu0 %4405
    %v4407 = vsel %vm392, %v4403, -inf
    %4408 = vmax.xlane.f32.xlu0 %v4407
    %v4409 = vpop.xlane.xlu0 %4408
    %v4410 = vsub.f32 %v4402, %v4406
    %v4411 = vsub.f32 %v4403, %v4409
    %v4412 = vmul.f32 %v4410, 1.442695
    %v4413 = vpow.pop %v4412
    %v4414 = vmul.f32 %v4411, 1.442695
    %v4415 = vpow.pop %v4414
    %v4416 = vsel %vm392, %v4413, 0.0
    %4417 = vadd.xlane.f32.xlu0 %v4416
    %v4418 = vpop.xlane.xlu0 %4417
    %v4419 = vsel %vm392, %v4415, 0.0
    %4420 = vadd.xlane.f32.xlu0 %v4419
    %v4421 = vpop.xlane.xlu0 %4420
    %v4422 = vrcp.pop %v4418
    %v4423 = vrcp.pop %v4421
    %v4424 = vmul.f32 %v4413, %v4422
    %v4425 = vmul.f32 %v4415, %v4423
    %4426 = vrot.lane.b32.xlu0 %v268, 40
    %v4427 = vpop.permute.xlu0 %4426
    %v4430 = vsel %vm392, %v4424, 0
    %v4433 = vsel %vm392, %v4425, 0
    %4435 = vmatprep.subr.mxu0 0.0
    %4436 = vmatpush1.msra.mxu0 0.0
    %4437 = vmatprep.subr.mxu0 0.0
    %4438 = vmatpush1.msra.mxu0 0.0
    %4439 = vmatprep.subr.mxu0 0.0
    %4440 = vmatpush1.msra.mxu0 0.0
    %4441 = vmatprep.subr.mxu0 0.0
    %4442 = vmatpush1.msra.mxu0 0.0
    %4443 = vmatprep.subr.mxu0 0.0
    %4444 = vmatpush1.msra.mxu0 0.0
    %4445 = vmatprep.subr.mxu0 0.0
    %4446 = vmatpush1.msra.mxu0 0.0
    %4447 = vmatprep.subr.mxu0 0.0
    %4448 = vmatpush1.msra.mxu0 0.0
    %4449 = vmatprep.subr.mxu0 0.0
    %4450 = vmatpush1.msra.mxu0 0.0
    %4451 = vmatprep.subr.mxu0 0.0
    %4452 = vmatpush1.msra.mxu0 0.0
    %4453 = vmatprep.subr.mxu0 0.0
    %4454 = vmatpush1.msra.mxu0 0.0
    %4455 = vmatprep.subr.mxu0 0.0
    %4456 = vmatpush1.msra.mxu0 0.0
    %4457 = vmatprep.subr.mxu0 0.0
    %4458 = vmatpush1.msra.mxu0 0.0
    %4459 = vmatprep.subr.mxu0 0.0
    %4460 = vmatpush1.msra.mxu0 0.0
    %4461 = vmatprep.subr.mxu0 0.0
    %4462 = vmatpush1.msra.mxu0 0.0
    %4463 = vmatprep.subr.mxu0 0.0
    %4464 = vmatpush1.msra.mxu0 0.0
    %4465 = vmatprep.subr.mxu0 0.0
    %4466 = vmatpush1.msra.mxu0 %v4427
    %4467 = vmatprep.subr.mxu0 0.0
    %4468 = vmatpush2.msra.mxu0 0.0
    %4469 = vmatprep.subr.mxu0 0.0
    %4470 = vmatpush2.msra.mxu0 0.0
    %4471 = vmatprep.subr.mxu0 0.0
    %4472 = vmatpush2.msra.mxu0 0.0
    %4473 = vmatprep.subr.mxu0 0.0
    %4474 = vmatpush2.msra.mxu0 0.0
    %4475 = vmatprep.subr.mxu0 0.0
    %4476 = vmatpush2.msra.mxu0 0.0
    %4477 = vmatprep.subr.mxu0 0.0
    %4478 = vmatpush2.msra.mxu0 0.0
    %4479 = vmatprep.subr.mxu0 0.0
    %4480 = vmatpush2.msra.mxu0 0.0
    %4481 = vmatprep.subr.mxu0 0.0
    %4482 = vmatpush2.msra.mxu0 0.0
    %4483 = vmatprep.subr.mxu0 0.0
    %4484 = vmatpush2.msra.mxu0 0.0
    %4485 = vmatprep.subr.mxu0 0.0
    %4486 = vmatpush2.msra.mxu0 0.0
    %4487 = vmatprep.subr.mxu0 0.0
    %4488 = vmatpush2.msra.mxu0 0.0
    %4489 = vmatprep.subr.mxu0 0.0
    %4490 = vmatpush2.msra.mxu0 0.0
    %4491 = vmatprep.subr.mxu0 0.0
    %4492 = vmatpush2.msra.mxu0 0.0
    %4493 = vmatprep.subr.mxu0 0.0
    %4494 = vmatpush2.msra.mxu0 0.0
    %4495 = vmatprep.subr.mxu0 0.0
    %4496 = vmatpush2.msra.mxu0 0.0
    %4497 = vmatprep.subr.mxu0 0.0
    %4498 = vmatpush2.msra.mxu0 0.0
    %4499 = vmatprep.mubr.f32.mxu0 0.0
    %4500 = vmatmul.mubr.f32.gmra.mxu0 %v4430
    %v4501 = vpop.f32.mrf.mxu0
    %v4502 = vadd.f32 0.0, %v4501
    %v4503 = vpop.f32.mrf.mxu0
    %4504 = vmatprep.mubr.f32.mxu0 0.0
    %4505 = vmatmul.mubr.f32.gmra.mxu0 %v4433
    %v4506 = vpop.f32.mrf.mxu0
    %v4507 = vadd.f32 0.0, %v4506
    %v4508 = vpop.f32.mrf.mxu0
    %4509 = vdwg.mxu0
    %v4511 = vsel %vm392, %v4502, 0
    %v4514 = vsel %vm392, %v4507, 0
    %4516 = vmatprep.subr.mxu0 0.0
    %4517 = vmatpush1.msra.mxu0 0.0
    %4518 = vmatprep.subr.mxu0 0.0
    %4519 = vmatpush1.msra.mxu0 0.0
    %4520 = vmatprep.subr.mxu0 0.0
    %4521 = vmatpush1.msra.mxu0 0.0
    %4522 = vmatprep.subr.mxu0 0.0
    %4523 = vmatpush1.msra.mxu0 0.0
    %4524 = vmatprep.subr.mxu0 0.0
    %4525 = vmatpush1.msra.mxu0 0.0
    %4526 = vmatprep.subr.mxu0 0.0
    %4527 = vmatpush1.msra.mxu0 0.0
    %4528 = vmatprep.subr.mxu0 0.0
    %4529 = vmatpush1.msra.mxu0 0.0
    %4530 = vmatprep.subr.mxu0 0.0
    %4531 = vmatpush1.msra.mxu0 0.0
    %4532 = vmatprep.subr.mxu0 0.0
    %4533 = vmatpush1.msra.mxu0 0.0
    %4534 = vmatprep.subr.mxu0 0.0
    %4535 = vmatpush1.msra.mxu0 0.0
    %4536 = vmatprep.subr.mxu0 0.0
    %4537 = vmatpush1.msra.mxu0 0.0
    %4538 = vmatprep.subr.mxu0 0.0
    %4539 = vmatpush1.msra.mxu0 0.0
    %4540 = vmatprep.subr.mxu0 0.0
    %4541 = vmatpush1.msra.mxu0 0.0
    %4542 = vmatprep.subr.mxu0 0.0
    %4543 = vmatpush1.msra.mxu0 0.0
    %4544 = vmatprep.subr.mxu0 0.0
    %4545 = vmatpush1.msra.mxu0 0.0
    %4546 = vmatprep.subr.mxu0 0.0
    %4547 = vmatpush1.msra.mxu0 %v2374
    %4548 = vmatprep.subr.mxu0 0.0
    %4549 = vmatpush2.msra.mxu0 0.0
    %4550 = vmatprep.subr.mxu0 0.0
    %4551 = vmatpush2.msra.mxu0 0.0
    %4552 = vmatprep.subr.mxu0 0.0
    %4553 = vmatpush2.msra.mxu0 0.0
    %4554 = vmatprep.subr.mxu0 0.0
    %4555 = vmatpush2.msra.mxu0 0.0
    %4556 = vmatprep.subr.mxu0 0.0
    %4557 = vmatpush2.msra.mxu0 0.0
    %4558 = vmatprep.subr.mxu0 0.0
    %4559 = vmatpush2.msra.mxu0 0.0
    %4560 = vmatprep.subr.mxu0 0.0
    %4561 = vmatpush2.msra.mxu0 0.0
    %4562 = vmatprep.subr.mxu0 0.0
    %4563 = vmatpush2.msra.mxu0 0.0
    %4564 = vmatprep.subr.mxu0 0.0
    %4565 = vmatpush2.msra.mxu0 0.0
    %4566 = vmatprep.subr.mxu0 0.0
    %4567 = vmatpush2.msra.mxu0 0.0
    %4568 = vmatprep.subr.mxu0 0.0
    %4569 = vmatpush2.msra.mxu0 0.0
    %4570 = vmatprep.subr.mxu0 0.0
    %4571 = vmatpush2.msra.mxu0 0.0
    %4572 = vmatprep.subr.mxu0 0.0
    %4573 = vmatpush2.msra.mxu0 0.0
    %4574 = vmatprep.subr.mxu0 0.0
    %4575 = vmatpush2.msra.mxu0 0.0
    %4576 = vmatprep.subr.mxu0 0.0
    %4577 = vmatpush2.msra.mxu0 0.0
    %4578 = vmatprep.subr.mxu0 0.0
    %4579 = vmatpush2.msra.mxu0 0.0
    %4580 = vmatprep.mubr.f32.mxu0 0.0
    %4581 = vmatmul.mubr.f32.gmra.mxu0 %v4511
    %v4582 = vpop.f32.mrf.mxu0
    %v4583 = vadd.f32 0.0, %v4582
    %v4584 = vpop.f32.mrf.mxu0
    %4585 = vmatprep.mubr.f32.mxu0 0.0
    %4586 = vmatmul.mubr.f32.gmra.mxu0 %v4514
    %v4587 = vpop.f32.mrf.mxu0
    %v4588 = vadd.f32 0.0, %v4587
    %v4589 = vpop.f32.mrf.mxu0
    %4590 = vdwg.mxu0
    %v4591 = vadd.f32 %v4313, %v4583
    %v4592 = vadd.f32 %v4314, %v4588
    %v4593 = vadd.f32 %v4591, %v3485
    %v4594 = vadd.f32 %v4592, %v3485
    %v4595 = vadd.f32 %v51, %v1381
    %v4596 = vadd.f32 %v52, %v2369
    %v4597 = vadd.f32 %v53, %v3487
    %v4598 = vadd.f32 %v54, %v3488
    %v4599 = vadd.f32 %v55, %v4593
    %v4600 = vadd.f32 %v56, %v4594
    %s4601 = scalar_lea.vmem %s2, 2
    %v4602 = vld [vmem:[%s4601] sm:$0x1]
    %s4603 = scalar_lea.vmem %s3, 2
    %v4604 = vld [vmem:[%s4603] sm:$0x1]
    %v4605 = vld [vmem:[%s8] sm:$0xff]
    %v4606 = vld [vmem:[%s8 + $0x8] sm:$0xff]
    %v4607 = vld [vmem:[%s8 + $0x10] sm:$0xff]
    %v4608 = vld [vmem:[%s8 + $0x18] sm:$0xff]
    %v4609 = vld [vmem:[%s9] sm:$0x1]
    %v4610 = vld [vmem:[%s10] sm:$0x1]
    %v4611 = vld [vmem:[%s11] sm:$0x1]
    %v4612 = vld [vmem:[%s12] sm:$0xff]
    %v4613 = vld [vmem:[%s12 + $0x8] sm:$0xff]
    %v4614 = vld [vmem:[%s12 + $0x10] sm:$0xff]
    %v4615 = vld [vmem:[%s12 + $0x18] sm:$0xff]
    %v4616 = vld [vmem:[%s12 + $0x20] sm:$0xff]
    %v4617 = vld [vmem:[%s12 + $0x28] sm:$0xff]
    %v4618 = vld [vmem:[%s12 + $0x30] sm:$0xff]
    %v4619 = vld [vmem:[%s12 + $0x38] sm:$0xff]
    %v4620 = vld [vmem:[%s13] sm:$0x1]
    %v4621 = vsel %vm59, %v4595, 0.0
    %4622 = vadd.xlane.f32.xlu0 %v4621
    %v4623 = vpop.xlane.xlu0 %4622
    %v4624 = vsel %vm59, %v4596, 0.0
    %4625 = vadd.xlane.f32.xlu0 %v4624
    %v4626 = vpop.xlane.xlu0 %4625
    %v4627 = vmul.f32 %v4623, %v66
    %v4628 = vmul.f32 %v4626, %v66
    %v4629 = vsub.f32 %v4595, %v4627
    %v4630 = vsub.f32 %v4596, %v4628
    %v4631 = vmul.f32 %v4629, %v4629
    %v4632 = vmul.f32 %v4630, %v4630
    %v4633 = vsel %vm59, %v4631, 0.0
    %4634 = vadd.xlane.f32.xlu0 %v4633
    %v4635 = vpop.xlane.xlu0 %4634
    %v4636 = vsel %vm59, %v4632, 0.0
    %4637 = vadd.xlane.f32.xlu0 %v4636
    %v4638 = vpop.xlane.xlu0 %4637
    %v4639 = vmul.f32 %v4635, %v66
    %v4640 = vmul.f32 %v4638, %v66
    %v4641 = vadd.f32 %v4639, 1e-05
    %v4642 = vadd.f32 %v4640, 1e-05
    %v4643 = vrsqrt.pop %v4641
    %v4644 = vrsqrt.pop %v4642
    %v4645 = vmul.f32 %v4629, %v4643
    %v4646 = vmul.f32 %v4630, %v4644
    %v4648 = vlaneseq
    %v4649 = vshrl.u32 %v4648, 7
    %v4650 = vsub.s32 0, %v4649
    %v4651 = vrot.slane %v4602, %v4650
    %v4653 = vmul.f32 %v4645, %v4651
    %v4654 = vmul.f32 %v4646, %v4651
    %v4656 = vlaneseq
    %v4657 = vshrl.u32 %v4656, 7
    %v4658 = vsub.s32 0, %v4657
    %v4659 = vrot.slane %v4604, %v4658
    %v4661 = vadd.f32 %v4653, %v4659
    %v4662 = vadd.f32 %v4654, %v4659
    %v4664 = vlaneseq
    %v4665 = vshrl.u32 %v4664, 7
    %v4666 = vsub.s32 0, %v4665
    %v4667 = vrot.slane %v4609, %v4666
    %v4670 = vsel %vm59, %v4661, 0
    %v4673 = vsel %vm59, %v4662, 0
    %4675 = vmatprep.subr.mxu0 0.0
    %4676 = vmatpush1.msra.mxu0 0.0
    %4677 = vmatprep.subr.mxu0 0.0
    %4678 = vmatpush1.msra.mxu0 0.0
    %4679 = vmatprep.subr.mxu0 0.0
    %4680 = vmatpush1.msra.mxu0 0.0
    %4681 = vmatprep.subr.mxu0 0.0
    %4682 = vmatpush1.msra.mxu0 0.0
    %4683 = vmatprep.subr.mxu0 0.0
    %4684 = vmatpush1.msra.mxu0 0.0
    %4685 = vmatprep.subr.mxu0 0.0
    %4686 = vmatpush1.msra.mxu0 0.0
    %4687 = vmatprep.subr.mxu0 0.0
    %4688 = vmatpush1.msra.mxu0 0.0
    %4689 = vmatprep.subr.mxu0 0.0
    %4690 = vmatpush1.msra.mxu0 0.0
    %4691 = vmatprep.subr.mxu0 0.0
    %4692 = vmatpush1.msra.mxu0 0.0
    %4693 = vmatprep.subr.mxu0 0.0
    %4694 = vmatpush1.msra.mxu0 0.0
    %4695 = vmatprep.subr.mxu0 0.0
    %4696 = vmatpush1.msra.mxu0 0.0
    %4697 = vmatprep.subr.mxu0 0.0
    %4698 = vmatpush1.msra.mxu0 0.0
    %4699 = vmatprep.subr.mxu0 0.0
    %4700 = vmatpush1.msra.mxu0 %v4608
    %4701 = vmatprep.subr.mxu0 0.0
    %4702 = vmatpush1.msra.mxu0 %v4607
    %4703 = vmatprep.subr.mxu0 0.0
    %4704 = vmatpush1.msra.mxu0 %v4606
    %4705 = vmatprep.subr.mxu0 0.0
    %4706 = vmatpush1.msra.mxu0 %v4605
    %4707 = vmatprep.subr.mxu0 0.0
    %4708 = vmatpush2.msra.mxu0 0.0
    %4709 = vmatprep.subr.mxu0 0.0
    %4710 = vmatpush2.msra.mxu0 0.0
    %4711 = vmatprep.subr.mxu0 0.0
    %4712 = vmatpush2.msra.mxu0 0.0
    %4713 = vmatprep.subr.mxu0 0.0
    %4714 = vmatpush2.msra.mxu0 0.0
    %4715 = vmatprep.subr.mxu0 0.0
    %4716 = vmatpush2.msra.mxu0 0.0
    %4717 = vmatprep.subr.mxu0 0.0
    %4718 = vmatpush2.msra.mxu0 0.0
    %4719 = vmatprep.subr.mxu0 0.0
    %4720 = vmatpush2.msra.mxu0 0.0
    %4721 = vmatprep.subr.mxu0 0.0
    %4722 = vmatpush2.msra.mxu0 0.0
    %4723 = vmatprep.subr.mxu0 0.0
    %4724 = vmatpush2.msra.mxu0 0.0
    %4725 = vmatprep.subr.mxu0 0.0
    %4726 = vmatpush2.msra.mxu0 0.0
    %4727 = vmatprep.subr.mxu0 0.0
    %4728 = vmatpush2.msra.mxu0 0.0
    %4729 = vmatprep.subr.mxu0 0.0
    %4730 = vmatpush2.msra.mxu0 0.0
    %4731 = vmatprep.subr.mxu0 0.0
    %4732 = vmatpush2.msra.mxu0 0.0
    %4733 = vmatprep.subr.mxu0 0.0
    %4734 = vmatpush2.msra.mxu0 0.0
    %4735 = vmatprep.subr.mxu0 0.0
    %4736 = vmatpush2.msra.mxu0 0.0
    %4737 = vmatprep.subr.mxu0 0.0
    %4738 = vmatpush2.msra.mxu0 0.0
    %4739 = vmatprep.mubr.f32.mxu0 0.0
    %4740 = vmatmul.mubr.f32.gmra.mxu0 %v4670
    %v4741 = vpop.f32.mrf.mxu0
    %v4742 = vadd.f32 %v4667, %v4741
    %v4743 = vpop.f32.mrf.mxu0
    %4744 = vmatprep.mubr.f32.mxu0 0.0
    %4745 = vmatmul.mubr.f32.gmra.mxu0 %v4673
    %v4746 = vpop.f32.mrf.mxu0
    %v4747 = vadd.f32 %v4667, %v4746
    %v4748 = vpop.f32.mrf.mxu0
    %4749 = vdwg.mxu0
    %v4750 = vmul.f32 %v4742, 0.5
    %v4751 = vmul.f32 %v4747, 0.5
    %v4752 = vmul.f32 %v4742, 0.70710677
    %v4753 = vmul.f32 %v4747, 0.70710677
    %v4754 = vand.u32 2147483647, %v4752
    %v4755 = vand.u32 2147483647, %v4753
    %v4756 = vmul.f32 %v4754, 0.3275911
    %v4757 = vmul.f32 %v4755, 0.3275911
    %v4758 = vadd.f32 %v4756, 1.0
    %v4759 = vadd.f32 %v4757, 1.0
    %v4760 = vrcp.pop %v4758
    %v4761 = vmul.f32 1.0, %v4760
    %v4762 = vrcp.pop %v4759
    %v4763 = vmul.f32 1.0, %v4762
    %v4764 = vmul.f32 %v4761, 1.0614054
    %v4765 = vmul.f32 %v4763, 1.0614054
    %v4766 = vadd.f32 %v4764, -1.4531521
    %v4767 = vadd.f32 %v4765, -1.4531521
    %v4768 = vmul.f32 %v4766, %v4761
    %v4769 = vmul.f32 %v4767, %v4763
    %v4770 = vadd.f32 %v4768, 1.4214138
    %v4771 = vadd.f32 %v4769, 1.4214138
    %v4772 = vmul.f32 %v4770, %v4761
    %v4773 = vmul.f32 %v4771, %v4763
    %v4774 = vadd.f32 %v4772, -0.28449672
    %v4775 = vadd.f32 %v4773, -0.28449672
    %v4776 = vmul.f32 %v4774, %v4761
    %v4777 = vmul.f32 %v4775, %v4763
    %v4778 = vadd.f32 %v4776, 0.2548296
    %v4779 = vadd.f32 %v4777, 0.2548296
    %v4780 = vmul.f32 %v4778, %v4761
    %v4781 = vmul.f32 %v4779, %v4763
    %v4782 = vsub.f32 0.0, %v4754
    %v4783 = vsub.f32 0.0, %v4755
    %v4784 = vmul.f32 %v4782, %v4754
    %v4785 = vmul.f32 %v4783, %v4755
    %v4786 = vmul.f32 %v4784, 1.442695
    %v4787 = vpow.pop %v4786
    %v4788 = vmul.f32 %v4785, 1.442695
    %v4789 = vpow.pop %v4788
    %v4790 = vmul.f32 %v4780, %v4787
    %v4791 = vmul.f32 %v4781, %v4789
    %v4792 = vsub.f32 1.0, %v4790
    %v4793 = vsub.f32 1.0, %v4791
    %vm4794 = vcmp.ge.f32.partialorder %v4752, 0.0
    %vm4795 = vcmp.ge.f32.partialorder %v4753, 0.0
    %v4796 = vsub.f32 0.0, %v4792
    %v4797 = vsub.f32 0.0, %v4793
    %v4798 = vsel %vm4794, %v4792, %v4796
    %v4799 = vsel %vm4795, %v4793, %v4797
    %v4800 = vadd.f32 %v4798, 1.0
    %v4801 = vadd.f32 %v4799, 1.0
    %v4802 = vmul.f32 %v4750, %v4800
    %v4803 = vmul.f32 %v4751, %v4801
    %vm4804 = vcmask 523264
    %v4805 = vsel %vm4804, %v4802, 0.0
    %4806 = vadd.xlane.f32.xlu0 %v4805
    %v4807 = vpop.xlane.xlu0 %4806
    %v4808 = vsel %vm4804, %v4803, 0.0
    %4809 = vadd.xlane.f32.xlu0 %v4808
    %v4810 = vpop.xlane.xlu0 %4809
    %v4811 = vrcp.pop 64.0
    %v4812 = vmul.f32 %v4807, %v4811
    %v4813 = vmul.f32 %v4810, %v4811
    %v4814 = vsub.f32 %v4802, %v4812
    %v4815 = vsub.f32 %v4803, %v4813
    %v4816 = vmul.f32 %v4814, %v4814
    %v4817 = vmul.f32 %v4815, %v4815
    %v4818 = vsel %vm4804, %v4816, 0.0
    %4819 = vadd.xlane.f32.xlu0 %v4818
    %v4820 = vpop.xlane.xlu0 %4819
    %v4821 = vsel %vm4804, %v4817, 0.0
    %4822 = vadd.xlane.f32.xlu0 %v4821
    %v4823 = vpop.xlane.xlu0 %4822
    %v4824 = vmul.f32 %v4820, %v4811
    %v4825 = vmul.f32 %v4823, %v4811
    %v4826 = vadd.f32 %v4824, 1e-05
    %v4827 = vadd.f32 %v4825, 1e-05
    %v4828 = vrsqrt.pop %v4826
    %v4829 = vrsqrt.pop %v4827
    %v4830 = vmul.f32 %v4814, %v4828
    %v4831 = vmul.f32 %v4815, %v4829
    %v4833 = vlaneseq
    %v4834 = vshrl.u32 %v4833, 7
    %v4835 = vsub.s32 0, %v4834
    %v4836 = vrot.slane %v4610, %v4835
    %v4838 = vmul.f32 %v4830, %v4836
    %v4839 = vmul.f32 %v4831, %v4836
    %v4841 = vlaneseq
    %v4842 = vshrl.u32 %v4841, 7
    %v4843 = vsub.s32 0, %v4842
    %v4844 = vrot.slane %v4611, %v4843
    %v4846 = vadd.f32 %v4838, %v4844
    %v4847 = vadd.f32 %v4839, %v4844
    %v4849 = vlaneseq
    %v4850 = vshrl.u32 %v4849, 7
    %v4851 = vsub.s32 0, %v4850
    %v4852 = vrot.slane %v4620, %v4851
    %v4855 = vsel %vm4804, %v4846, 0
    %v4858 = vsel %vm4804, %v4847, 0
    %4860 = vmatprep.subr.mxu0 0.0
    %4861 = vmatpush1.msra.mxu0 0.0
    %4862 = vmatprep.subr.mxu0 0.0
    %4863 = vmatpush1.msra.mxu0 0.0
    %4864 = vmatprep.subr.mxu0 0.0
    %4865 = vmatpush1.msra.mxu0 0.0
    %4866 = vmatprep.subr.mxu0 0.0
    %4867 = vmatpush1.msra.mxu0 0.0
    %4868 = vmatprep.subr.mxu0 0.0
    %4869 = vmatpush1.msra.mxu0 0.0
    %4870 = vmatprep.subr.mxu0 0.0
    %4871 = vmatpush1.msra.mxu0 0.0
    %4872 = vmatprep.subr.mxu0 0.0
    %4873 = vmatpush1.msra.mxu0 0.0
    %4874 = vmatprep.subr.mxu0 0.0
    %4875 = vmatpush1.msra.mxu0 0.0
    %4876 = vmatprep.subr.mxu0 0.0
    %4877 = vmatpush1.msra.mxu0 %v4619
    %4878 = vmatprep.subr.mxu0 0.0
    %4879 = vmatpush1.msra.mxu0 %v4618
    %4880 = vmatprep.subr.mxu0 0.0
    %4881 = vmatpush1.msra.mxu0 %v4617
    %4882 = vmatprep.subr.mxu0 0.0
    %4883 = vmatpush1.msra.mxu0 %v4616
    %4884 = vmatprep.subr.mxu0 0.0
    %4885 = vmatpush1.msra.mxu0 %v4615
    %4886 = vmatprep.subr.mxu0 0.0
    %4887 = vmatpush1.msra.mxu0 %v4614
    %4888 = vmatprep.subr.mxu0 0.0
    %4889 = vmatpush1.msra.mxu0 %v4613
    %4890 = vmatprep.subr.mxu0 0.0
    %4891 = vmatpush1.msra.mxu0 %v4612
    %4892 = vmatprep.subr.mxu0 0.0
    %4893 = vmatpush2.msra.mxu0 0.0
    %4894 = vmatprep.subr.mxu0 0.0
    %4895 = vmatpush2.msra.mxu0 0.0
    %4896 = vmatprep.subr.mxu0 0.0
    %4897 = vmatpush2.msra.mxu0 0.0
    %4898 = vmatprep.subr.mxu0 0.0
    %4899 = vmatpush2.msra.mxu0 0.0
    %4900 = vmatprep.subr.mxu0 0.0
    %4901 = vmatpush2.msra.mxu0 0.0
    %4902 = vmatprep.subr.mxu0 0.0
    %4903 = vmatpush2.msra.mxu0 0.0
    %4904 = vmatprep.subr.mxu0 0.0
    %4905 = vmatpush2.msra.mxu0 0.0
    %4906 = vmatprep.subr.mxu0 0.0
    %4907 = vmatpush2.msra.mxu0 0.0
    %4908 = vmatprep.subr.mxu0 0.0
    %4909 = vmatpush2.msra.mxu0 0.0
    %4910 = vmatprep.subr.mxu0 0.0
    %4911 = vmatpush2.msra.mxu0 0.0
    %4912 = vmatprep.subr.mxu0 0.0
    %4913 = vmatpush2.msra.mxu0 0.0
    %4914 = vmatprep.subr.mxu0 0.0
    %4915 = vmatpush2.msra.mxu0 0.0
    %4916 = vmatprep.subr.mxu0 0.0
    %4917 = vmatpush2.msra.mxu0 0.0
    %4918 = vmatprep.subr.mxu0 0.0
    %4919 = vmatpush2.msra.mxu0 0.0
    %4920 = vmatprep.subr.mxu0 0.0
    %4921 = vmatpush2.msra.mxu0 0.0
    %4922 = vmatprep.subr.mxu0 0.0
    %4923 = vmatpush2.msra.mxu0 0.0
    %4924 = vmatprep.mubr.f32.mxu0 0.0
    %4925 = vmatmul.mubr.f32.gmra.mxu0 %v4855
    %v4926 = vpop.f32.mrf.mxu0
    %v4927 = vadd.f32 %v4852, %v4926
    %v4928 = vpop.f32.mrf.mxu0
    %4929 = vmatprep.mubr.f32.mxu0 0.0
    %4930 = vmatmul.mubr.f32.gmra.mxu0 %v4858
    %v4931 = vpop.f32.mrf.mxu0
    %v4932 = vadd.f32 %v4852, %v4931
    %v4933 = vpop.f32.mrf.mxu0
    %4934 = vdwg.mxu0
    %s4935 = scalar_lea.vmem %s2, 3
    %v4936 = vld [vmem:[%s4935] sm:$0x1]
    %s4937 = scalar_lea.vmem %s3, 3
    %v4938 = vld [vmem:[%s4937] sm:$0x1]
    %s4939 = scalar_lea.vmem %s8, 32
    %v4940 = vld [vmem:[%s4939] sm:$0xff]
    %v4941 = vld [vmem:[%s4939 + $0x8] sm:$0xff]
    %v4942 = vld [vmem:[%s4939 + $0x10] sm:$0xff]
    %v4943 = vld [vmem:[%s4939 + $0x18] sm:$0xff]
    %s4944 = scalar_lea.vmem %s9, 1
    %v4945 = vld [vmem:[%s4944] sm:$0x1]
    %s4946 = scalar_lea.vmem %s10, 1
    %v4947 = vld [vmem:[%s4946] sm:$0x1]
    %s4948 = scalar_lea.vmem %s11, 1
    %v4949 = vld [vmem:[%s4948] sm:$0x1]
    %s4950 = scalar_lea.vmem %s12, 64
    %v4951 = vld [vmem:[%s4950] sm:$0xff]
    %v4952 = vld [vmem:[%s4950 + $0x8] sm:$0xff]
    %v4953 = vld [vmem:[%s4950 + $0x10] sm:$0xff]
    %v4954 = vld [vmem:[%s4950 + $0x18] sm:$0xff]
    %v4955 = vld [vmem:[%s4950 + $0x20] sm:$0xff]
    %v4956 = vld [vmem:[%s4950 + $0x28] sm:$0xff]
    %v4957 = vld [vmem:[%s4950 + $0x30] sm:$0xff]
    %v4958 = vld [vmem:[%s4950 + $0x38] sm:$0xff]
    %s4959 = scalar_lea.vmem %s13, 1
    %v4960 = vld [vmem:[%s4959] sm:$0x1]
    %v4961 = vsel %vm59, %v4597, 0.0
    %4962 = vadd.xlane.f32.xlu0 %v4961
    %v4963 = vpop.xlane.xlu0 %4962
    %v4964 = vsel %vm59, %v4598, 0.0
    %4965 = vadd.xlane.f32.xlu0 %v4964
    %v4966 = vpop.xlane.xlu0 %4965
    %v4967 = vsel %vm59, %v4599, 0.0
    %4968 = vadd.xlane.f32.xlu0 %v4967
    %v4969 = vpop.xlane.xlu0 %4968
    %v4970 = vsel %vm59, %v4600, 0.0
    %4971 = vadd.xlane.f32.xlu0 %v4970
    %v4972 = vpop.xlane.xlu0 %4971
    %v4973 = vmul.f32 %v4963, %v66
    %v4974 = vmul.f32 %v4966, %v66
    %v4975 = vmul.f32 %v4969, %v66
    %v4976 = vmul.f32 %v4972, %v66
    %v4977 = vsub.f32 %v4597, %v4973
    %v4978 = vsub.f32 %v4598, %v4974
    %v4979 = vsub.f32 %v4599, %v4975
    %v4980 = vsub.f32 %v4600, %v4976
    %v4981 = vmul.f32 %v4977, %v4977
    %v4982 = vmul.f32 %v4978, %v4978
    %v4983 = vmul.f32 %v4979, %v4979
    %v4984 = vmul.f32 %v4980, %v4980
    %v4985 = vsel %vm59, %v4981, 0.0
    %4986 = vadd.xlane.f32.xlu0 %v4985
    %v4987 = vpop.xlane.xlu0 %4986
    %v4988 = vsel %vm59, %v4982, 0.0
    %4989 = vadd.xlane.f32.xlu0 %v4988
    %v4990 = vpop.xlane.xlu0 %4989
    %v4991 = vsel %vm59, %v4983, 0.0
    %4992 = vadd.xlane.f32.xlu0 %v4991
    %v4993 = vpop.xlane.xlu0 %4992
    %v4994 = vsel %vm59, %v4984, 0.0
    %4995 = vadd.xlane.f32.xlu0 %v4994
    %v4996 = vpop.xlane.xlu0 %4995
    %v4997 = vmul.f32 %v4987, %v66
    %v4998 = vmul.f32 %v4990, %v66
    %v4999 = vmul.f32 %v4993, %v66
    %v5000 = vmul.f32 %v4996, %v66
    %v5001 = vadd.f32 %v4997, 1e-05
    %v5002 = vadd.f32 %v4998, 1e-05
    %v5003 = vadd.f32 %v4999, 1e-05
    %v5004 = vadd.f32 %v5000, 1e-05
    %v5005 = vrsqrt.pop %v5001
    %v5006 = vrsqrt.pop %v5002
    %v5007 = vrsqrt.pop %v5003
    %v5008 = vrsqrt.pop %v5004
    %v5009 = vmul.f32 %v4977, %v5005
    %v5010 = vmul.f32 %v4978, %v5006
    %v5011 = vmul.f32 %v4979, %v5007
    %v5012 = vmul.f32 %v4980, %v5008
    %v5014 = vlaneseq
    %v5015 = vshrl.u32 %v5014, 7
    %v5016 = vsub.s32 0, %v5015
    %v5017 = vrot.slane %v4936, %v5016
    %v5019 = vmul.f32 %v5009, %v5017
    %v5020 = vmul.f32 %v5010, %v5017
    %v5021 = vmul.f32 %v5011, %v5017
    %v5022 = vmul.f32 %v5012, %v5017
    %v5024 = vlaneseq
    %v5025 = vshrl.u32 %v5024, 7
    %v5026 = vsub.s32 0, %v5025
    %v5027 = vrot.slane %v4938, %v5026
    %v5029 = vadd.f32 %v5019, %v5027
    %v5030 = vadd.f32 %v5020, %v5027
    %v5031 = vadd.f32 %v5021, %v5027
    %v5032 = vadd.f32 %v5022, %v5027
    %v5034 = vlaneseq
    %v5035 = vshrl.u32 %v5034, 7
    %v5036 = vsub.s32 0, %v5035
    %v5037 = vrot.slane %v4945, %v5036
    %v5040 = vsel %vm59, %v5029, 0
    %v5043 = vsel %vm59, %v5030, 0
    %v5046 = vsel %vm59, %v5031, 0
    %v5049 = vsel %vm59, %v5032, 0
    %5051 = vmatprep.subr.mxu0 0.0
    %5052 = vmatpush1.msra.mxu0 0.0
    %5053 = vmatprep.subr.mxu0 0.0
    %5054 = vmatpush1.msra.mxu0 0.0
    %5055 = vmatprep.subr.mxu0 0.0
    %5056 = vmatpush1.msra.mxu0 0.0
    %5057 = vmatprep.subr.mxu0 0.0
    %5058 = vmatpush1.msra.mxu0 0.0
    %5059 = vmatprep.subr.mxu0 0.0
    %5060 = vmatpush1.msra.mxu0 0.0
    %5061 = vmatprep.subr.mxu0 0.0
    %5062 = vmatpush1.msra.mxu0 0.0
    %5063 = vmatprep.subr.mxu0 0.0
    %5064 = vmatpush1.msra.mxu0 0.0
    %5065 = vmatprep.subr.mxu0 0.0
    %5066 = vmatpush1.msra.mxu0 0.0
    %5067 = vmatprep.subr.mxu0 0.0
    %5068 = vmatpush1.msra.mxu0 0.0
    %5069 = vmatprep.subr.mxu0 0.0
    %5070 = vmatpush1.msra.mxu0 0.0
    %5071 = vmatprep.subr.mxu0 0.0
    %5072 = vmatpush1.msra.mxu0 0.0
    %5073 = vmatprep.subr.mxu0 0.0
    %5074 = vmatpush1.msra.mxu0 0.0
    %5075 = vmatprep.subr.mxu0 0.0
    %5076 = vmatpush1.msra.mxu0 %v4943
    %5077 = vmatprep.subr.mxu0 0.0
    %5078 = vmatpush1.msra.mxu0 %v4942
    %5079 = vmatprep.subr.mxu0 0.0
    %5080 = vmatpush1.msra.mxu0 %v4941
    %5081 = vmatprep.subr.mxu0 0.0
    %5082 = vmatpush1.msra.mxu0 %v4940
    %5083 = vmatprep.subr.mxu0 0.0
    %5084 = vmatpush2.msra.mxu0 0.0
    %5085 = vmatprep.subr.mxu0 0.0
    %5086 = vmatpush2.msra.mxu0 0.0
    %5087 = vmatprep.subr.mxu0 0.0
    %5088 = vmatpush2.msra.mxu0 0.0
    %5089 = vmatprep.subr.mxu0 0.0
    %5090 = vmatpush2.msra.mxu0 0.0
    %5091 = vmatprep.subr.mxu0 0.0
    %5092 = vmatpush2.msra.mxu0 0.0
    %5093 = vmatprep.subr.mxu0 0.0
    %5094 = vmatpush2.msra.mxu0 0.0
    %5095 = vmatprep.subr.mxu0 0.0
    %5096 = vmatpush2.msra.mxu0 0.0
    %5097 = vmatprep.subr.mxu0 0.0
    %5098 = vmatpush2.msra.mxu0 0.0
    %5099 = vmatprep.subr.mxu0 0.0
    %5100 = vmatpush2.msra.mxu0 0.0
    %5101 = vmatprep.subr.mxu0 0.0
    %5102 = vmatpush2.msra.mxu0 0.0
    %5103 = vmatprep.subr.mxu0 0.0
    %5104 = vmatpush2.msra.mxu0 0.0
    %5105 = vmatprep.subr.mxu0 0.0
    %5106 = vmatpush2.msra.mxu0 0.0
    %5107 = vmatprep.subr.mxu0 0.0
    %5108 = vmatpush2.msra.mxu0 0.0
    %5109 = vmatprep.subr.mxu0 0.0
    %5110 = vmatpush2.msra.mxu0 0.0
    %5111 = vmatprep.subr.mxu0 0.0
    %5112 = vmatpush2.msra.mxu0 0.0
    %5113 = vmatprep.subr.mxu0 0.0
    %5114 = vmatpush2.msra.mxu0 0.0
    %5115 = vmatprep.mubr.f32.mxu0 0.0
    %5116 = vmatmul.mubr.f32.gmra.mxu0 %v5040
    %v5117 = vpop.f32.mrf.mxu0
    %v5118 = vadd.f32 %v5037, %v5117
    %v5119 = vpop.f32.mrf.mxu0
    %5120 = vmatprep.mubr.f32.mxu0 0.0
    %5121 = vmatmul.mubr.f32.gmra.mxu0 %v5043
    %v5122 = vpop.f32.mrf.mxu0
    %v5123 = vadd.f32 %v5037, %v5122
    %v5124 = vpop.f32.mrf.mxu0
    %5125 = vmatprep.mubr.f32.mxu0 0.0
    %5126 = vmatmul.mubr.f32.gmra.mxu0 %v5046
    %v5127 = vpop.f32.mrf.mxu0
    %v5128 = vadd.f32 %v5037, %v5127
    %v5129 = vpop.f32.mrf.mxu0
    %5130 = vmatprep.mubr.f32.mxu0 0.0
    %5131 = vmatmul.mubr.f32.gmra.mxu0 %v5049
    %v5132 = vpop.f32.mrf.mxu0
    %v5133 = vadd.f32 %v5037, %v5132
    %v5134 = vpop.f32.mrf.mxu0
    %5135 = vdwg.mxu0
    %v5136 = vmul.f32 %v5118, 0.5
    %v5137 = vmul.f32 %v5123, 0.5
    %v5138 = vmul.f32 %v5128, 0.5
    %v5139 = vmul.f32 %v5133, 0.5
    %v5140 = vmul.f32 %v5118, 0.70710677
    %v5141 = vmul.f32 %v5123, 0.70710677
    %v5142 = vmul.f32 %v5128, 0.70710677
    %v5143 = vmul.f32 %v5133, 0.70710677
    %v5144 = vand.u32 2147483647, %v5140
    %v5145 = vand.u32 2147483647, %v5141
    %v5146 = vand.u32 2147483647, %v5142
    %v5147 = vand.u32 2147483647, %v5143
    %v5148 = vmul.f32 %v5144, 0.3275911
    %v5149 = vmul.f32 %v5145, 0.3275911
    %v5150 = vmul.f32 %v5146, 0.3275911
    %v5151 = vmul.f32 %v5147, 0.3275911
    %v5152 = vadd.f32 %v5148, 1.0
    %v5153 = vadd.f32 %v5149, 1.0
    %v5154 = vadd.f32 %v5150, 1.0
    %v5155 = vadd.f32 %v5151, 1.0
    %v5156 = vrcp.pop %v5152
    %v5157 = vmul.f32 1.0, %v5156
    %v5158 = vrcp.pop %v5153
    %v5159 = vmul.f32 1.0, %v5158
    %v5160 = vrcp.pop %v5154
    %v5161 = vmul.f32 1.0, %v5160
    %v5162 = vrcp.pop %v5155
    %v5163 = vmul.f32 1.0, %v5162
    %v5164 = vmul.f32 %v5157, 1.0614054
    %v5165 = vmul.f32 %v5159, 1.0614054
    %v5166 = vmul.f32 %v5161, 1.0614054
    %v5167 = vmul.f32 %v5163, 1.0614054
    %v5168 = vadd.f32 %v5164, -1.4531521
    %v5169 = vadd.f32 %v5165, -1.4531521
    %v5170 = vadd.f32 %v5166, -1.4531521
    %v5171 = vadd.f32 %v5167, -1.4531521
    %v5172 = vmul.f32 %v5168, %v5157
    %v5173 = vmul.f32 %v5169, %v5159
    %v5174 = vmul.f32 %v5170, %v5161
    %v5175 = vmul.f32 %v5171, %v5163
    %v5176 = vadd.f32 %v5172, 1.4214138
    %v5177 = vadd.f32 %v5173, 1.4214138
    %v5178 = vadd.f32 %v5174, 1.4214138
    %v5179 = vadd.f32 %v5175, 1.4214138
    %v5180 = vmul.f32 %v5176, %v5157
    %v5181 = vmul.f32 %v5177, %v5159
    %v5182 = vmul.f32 %v5178, %v5161
    %v5183 = vmul.f32 %v5179, %v5163
    %v5184 = vadd.f32 %v5180, -0.28449672
    %v5185 = vadd.f32 %v5181, -0.28449672
    %v5186 = vadd.f32 %v5182, -0.28449672
    %v5187 = vadd.f32 %v5183, -0.28449672
    %v5188 = vmul.f32 %v5184, %v5157
    %v5189 = vmul.f32 %v5185, %v5159
    %v5190 = vmul.f32 %v5186, %v5161
    %v5191 = vmul.f32 %v5187, %v5163
    %v5192 = vadd.f32 %v5188, 0.2548296
    %v5193 = vadd.f32 %v5189, 0.2548296
    %v5194 = vadd.f32 %v5190, 0.2548296
    %v5195 = vadd.f32 %v5191, 0.2548296
    %v5196 = vmul.f32 %v5192, %v5157
    %v5197 = vmul.f32 %v5193, %v5159
    %v5198 = vmul.f32 %v5194, %v5161
    %v5199 = vmul.f32 %v5195, %v5163
    %v5200 = vsub.f32 0.0, %v5144
    %v5201 = vsub.f32 0.0, %v5145
    %v5202 = vsub.f32 0.0, %v5146
    %v5203 = vsub.f32 0.0, %v5147
    %v5204 = vmul.f32 %v5200, %v5144
    %v5205 = vmul.f32 %v5201, %v5145
    %v5206 = vmul.f32 %v5202, %v5146
    %v5207 = vmul.f32 %v5203, %v5147
    %v5208 = vmul.f32 %v5204, 1.442695
    %v5209 = vpow.pop %v5208
    %v5210 = vmul.f32 %v5205, 1.442695
    %v5211 = vpow.pop %v5210
    %v5212 = vmul.f32 %v5206, 1.442695
    %v5213 = vpow.pop %v5212
    %v5214 = vmul.f32 %v5207, 1.442695
    %v5215 = vpow.pop %v5214
    %v5216 = vmul.f32 %v5196, %v5209
    %v5217 = vmul.f32 %v5197, %v5211
    %v5218 = vmul.f32 %v5198, %v5213
    %v5219 = vmul.f32 %v5199, %v5215
    %v5220 = vsub.f32 1.0, %v5216
    %v5221 = vsub.f32 1.0, %v5217
    %v5222 = vsub.f32 1.0, %v5218
    %v5223 = vsub.f32 1.0, %v5219
    %vm5224 = vcmp.ge.f32.partialorder %v5140, 0.0
    %vm5225 = vcmp.ge.f32.partialorder %v5141, 0.0
    %vm5226 = vcmp.ge.f32.partialorder %v5142, 0.0
    %vm5227 = vcmp.ge.f32.partialorder %v5143, 0.0
    %v5228 = vsub.f32 0.0, %v5220
    %v5229 = vsub.f32 0.0, %v5221
    %v5230 = vsub.f32 0.0, %v5222
    %v5231 = vsub.f32 0.0, %v5223
    %v5232 = vsel %vm5224, %v5220, %v5228
    %v5233 = vsel %vm5225, %v5221, %v5229
    %v5234 = vsel %vm5226, %v5222, %v5230
    %v5235 = vsel %vm5227, %v5223, %v5231
    %v5236 = vadd.f32 %v5232, 1.0
    %v5237 = vadd.f32 %v5233, 1.0
    %v5238 = vadd.f32 %v5234, 1.0
    %v5239 = vadd.f32 %v5235, 1.0
    %v5240 = vmul.f32 %v5136, %v5236
    %v5241 = vmul.f32 %v5137, %v5237
    %v5242 = vmul.f32 %v5138, %v5238
    %v5243 = vmul.f32 %v5139, %v5239
    %v5244 = vsel %vm4804, %v5240, 0.0
    %5245 = vadd.xlane.f32.xlu0 %v5244
    %v5246 = vpop.xlane.xlu0 %5245
    %v5247 = vsel %vm4804, %v5241, 0.0
    %5248 = vadd.xlane.f32.xlu0 %v5247
    %v5249 = vpop.xlane.xlu0 %5248
    %v5250 = vsel %vm4804, %v5242, 0.0
    %5251 = vadd.xlane.f32.xlu0 %v5250
    %v5252 = vpop.xlane.xlu0 %5251
    %v5253 = vsel %vm4804, %v5243, 0.0
    %5254 = vadd.xlane.f32.xlu0 %v5253
    %v5255 = vpop.xlane.xlu0 %5254
    %v5256 = vmul.f32 %v5246, %v4811
    %v5257 = vmul.f32 %v5249, %v4811
    %v5258 = vmul.f32 %v5252, %v4811
    %v5259 = vmul.f32 %v5255, %v4811
    %v5260 = vsub.f32 %v5240, %v5256
    %v5261 = vsub.f32 %v5241, %v5257
    %v5262 = vsub.f32 %v5242, %v5258
    %v5263 = vsub.f32 %v5243, %v5259
    %v5264 = vmul.f32 %v5260, %v5260
    %v5265 = vmul.f32 %v5261, %v5261
    %v5266 = vmul.f32 %v5262, %v5262
    %v5267 = vmul.f32 %v5263, %v5263
    %v5268 = vsel %vm4804, %v5264, 0.0
    %5269 = vadd.xlane.f32.xlu0 %v5268
    %v5270 = vpop.xlane.xlu0 %5269
    %v5271 = vsel %vm4804, %v5265, 0.0
    %5272 = vadd.xlane.f32.xlu0 %v5271
    %v5273 = vpop.xlane.xlu0 %5272
    %v5274 = vsel %vm4804, %v5266, 0.0
    %5275 = vadd.xlane.f32.xlu0 %v5274
    %v5276 = vpop.xlane.xlu0 %5275
    %v5277 = vsel %vm4804, %v5267, 0.0
    %5278 = vadd.xlane.f32.xlu0 %v5277
    %v5279 = vpop.xlane.xlu0 %5278
    %v5280 = vmul.f32 %v5270, %v4811
    %v5281 = vmul.f32 %v5273, %v4811
    %v5282 = vmul.f32 %v5276, %v4811
    %v5283 = vmul.f32 %v5279, %v4811
    %v5284 = vadd.f32 %v5280, 1e-05
    %v5285 = vadd.f32 %v5281, 1e-05
    %v5286 = vadd.f32 %v5282, 1e-05
    %v5287 = vadd.f32 %v5283, 1e-05
    %v5288 = vrsqrt.pop %v5284
    %v5289 = vrsqrt.pop %v5285
    %v5290 = vrsqrt.pop %v5286
    %v5291 = vrsqrt.pop %v5287
    %v5292 = vmul.f32 %v5260, %v5288
    %v5293 = vmul.f32 %v5261, %v5289
    %v5294 = vmul.f32 %v5262, %v5290
    %v5295 = vmul.f32 %v5263, %v5291
    %v5297 = vlaneseq
    %v5298 = vshrl.u32 %v5297, 7
    %v5299 = vsub.s32 0, %v5298
    %v5300 = vrot.slane %v4947, %v5299
    %v5302 = vmul.f32 %v5292, %v5300
    %v5303 = vmul.f32 %v5293, %v5300
    %v5304 = vmul.f32 %v5294, %v5300
    %v5305 = vmul.f32 %v5295, %v5300
    %v5307 = vlaneseq
    %v5308 = vshrl.u32 %v5307, 7
    %v5309 = vsub.s32 0, %v5308
    %v5310 = vrot.slane %v4949, %v5309
    %v5312 = vadd.f32 %v5302, %v5310
    %v5313 = vadd.f32 %v5303, %v5310
    %v5314 = vadd.f32 %v5304, %v5310
    %v5315 = vadd.f32 %v5305, %v5310
    %v5317 = vlaneseq
    %v5318 = vshrl.u32 %v5317, 7
    %v5319 = vsub.s32 0, %v5318
    %v5320 = vrot.slane %v4960, %v5319
    %v5323 = vsel %vm4804, %v5312, 0
    %v5326 = vsel %vm4804, %v5313, 0
    %v5329 = vsel %vm4804, %v5314, 0
    %v5332 = vsel %vm4804, %v5315, 0
    %5334 = vmatprep.subr.mxu0 0.0
    %5335 = vmatpush1.msra.mxu0 0.0
    %5336 = vmatprep.subr.mxu0 0.0
    %5337 = vmatpush1.msra.mxu0 0.0
    %5338 = vmatprep.subr.mxu0 0.0
    %5339 = vmatpush1.msra.mxu0 0.0
    %5340 = vmatprep.subr.mxu0 0.0
    %5341 = vmatpush1.msra.mxu0 0.0
    %5342 = vmatprep.subr.mxu0 0.0
    %5343 = vmatpush1.msra.mxu0 0.0
    %5344 = vmatprep.subr.mxu0 0.0
    %5345 = vmatpush1.msra.mxu0 0.0
    %5346 = vmatprep.subr.mxu0 0.0
    %5347 = vmatpush1.msra.mxu0 0.0
    %5348 = vmatprep.subr.mxu0 0.0
    %5349 = vmatpush1.msra.mxu0 0.0
    %5350 = vmatprep.subr.mxu0 0.0
    %5351 = vmatpush1.msra.mxu0 %v4958
    %5352 = vmatprep.subr.mxu0 0.0
    %5353 = vmatpush1.msra.mxu0 %v4957
    %5354 = vmatprep.subr.mxu0 0.0
    %5355 = vmatpush1.msra.mxu0 %v4956
    %5356 = vmatprep.subr.mxu0 0.0
    %5357 = vmatpush1.msra.mxu0 %v4955
    %5358 = vmatprep.subr.mxu0 0.0
    %5359 = vmatpush1.msra.mxu0 %v4954
    %5360 = vmatprep.subr.mxu0 0.0
    %5361 = vmatpush1.msra.mxu0 %v4953
    %5362 = vmatprep.subr.mxu0 0.0
    %5363 = vmatpush1.msra.mxu0 %v4952
    %5364 = vmatprep.subr.mxu0 0.0
    %5365 = vmatpush1.msra.mxu0 %v4951
    %5366 = vmatprep.subr.mxu0 0.0
    %5367 = vmatpush2.msra.mxu0 0.0
    %5368 = vmatprep.subr.mxu0 0.0
    %5369 = vmatpush2.msra.mxu0 0.0
    %5370 = vmatprep.subr.mxu0 0.0
    %5371 = vmatpush2.msra.mxu0 0.0
    %5372 = vmatprep.subr.mxu0 0.0
    %5373 = vmatpush2.msra.mxu0 0.0
    %5374 = vmatprep.subr.mxu0 0.0
    %5375 = vmatpush2.msra.mxu0 0.0
    %5376 = vmatprep.subr.mxu0 0.0
    %5377 = vmatpush2.msra.mxu0 0.0
    %5378 = vmatprep.subr.mxu0 0.0
    %5379 = vmatpush2.msra.mxu0 0.0
    %5380 = vmatprep.subr.mxu0 0.0
    %5381 = vmatpush2.msra.mxu0 0.0
    %5382 = vmatprep.subr.mxu0 0.0
    %5383 = vmatpush2.msra.mxu0 0.0
    %5384 = vmatprep.subr.mxu0 0.0
    %5385 = vmatpush2.msra.mxu0 0.0
    %5386 = vmatprep.subr.mxu0 0.0
    %5387 = vmatpush2.msra.mxu0 0.0
    %5388 = vmatprep.subr.mxu0 0.0
    %5389 = vmatpush2.msra.mxu0 0.0
    %5390 = vmatprep.subr.mxu0 0.0
    %5391 = vmatpush2.msra.mxu0 0.0
    %5392 = vmatprep.subr.mxu0 0.0
    %5393 = vmatpush2.msra.mxu0 0.0
    %5394 = vmatprep.subr.mxu0 0.0
    %5395 = vmatpush2.msra.mxu0 0.0
    %5396 = vmatprep.subr.mxu0 0.0
    %5397 = vmatpush2.msra.mxu0 0.0
    %5398 = vmatprep.mubr.f32.mxu0 0.0
    %5399 = vmatmul.mubr.f32.gmra.mxu0 %v5323
    %v5400 = vpop.f32.mrf.mxu0
    %v5401 = vadd.f32 %v5320, %v5400
    %v5402 = vpop.f32.mrf.mxu0
    %5403 = vmatprep.mubr.f32.mxu0 0.0
    %5404 = vmatmul.mubr.f32.gmra.mxu0 %v5326
    %v5405 = vpop.f32.mrf.mxu0
    %v5406 = vadd.f32 %v5320, %v5405
    %v5407 = vpop.f32.mrf.mxu0
    %5408 = vmatprep.mubr.f32.mxu0 0.0
    %5409 = vmatmul.mubr.f32.gmra.mxu0 %v5329
    %v5410 = vpop.f32.mrf.mxu0
    %v5411 = vadd.f32 %v5320, %v5410
    %v5412 = vpop.f32.mrf.mxu0
    %5413 = vmatprep.mubr.f32.mxu0 0.0
    %5414 = vmatmul.mubr.f32.gmra.mxu0 %v5332
    %v5415 = vpop.f32.mrf.mxu0
    %v5416 = vadd.f32 %v5320, %v5415
    %v5417 = vpop.f32.mrf.mxu0
    %5418 = vdwg.mxu0
    %v5419 = vadd.f32 %v4595, %v4927
    %v5420 = vadd.f32 %v4596, %v4932
    %5421 = vst.msk [vmem:[#allocation2] sm:$0xff] %vm59, %v5419
    %5422 = vst.msk [vmem:[#allocation2 + $0x8] sm:$0xff] %vm59, %v5420
    %v5423 = vadd.f32 %v4597, %v5401
    %v5424 = vadd.f32 %v4598, %v5406
    %v5425 = vadd.f32 %v4599, %v5411
    %v5426 = vadd.f32 %v4600, %v5416
    %5427 = vst.msk [vmem:[#allocation4] sm:$0xff] %vm59, %v5423
    %5428 = vst.msk [vmem:[#allocation4 + $0x8] sm:$0xff] %vm59, %v5424
    %5429 = vst.msk [vmem:[#allocation4 + $0x10] sm:$0xff] %vm59, %v5425
    %5430 = vst.msk [vmem:[#allocation4 + $0x18] sm:$0xff] %vm59, %v5426
    // Predicated region
    $region58: #{dualformer_block.1} parent=1 // pred_check
      _
    $region59: #{dualformer_block.1} parent=1 // pred_check_branch
      %5432 = sbr.rel (0) target = $region61
    $region60: #{dualformer_block.1} parent=1 // pred_region
      %s5434 = ssub.s32 256, 256
      %5435 = vsyncadd [#allocation3], %s5434
      %s5436 = sshll.u32 [#allocation2], 4
      %s5437 = int_to_ptr.vmem [resolvable:$true] %s5436
      %5442 = dma.vmem_to_hbm [thread:$0]  %s5437, 256, %s14, [#allocation3], 128, 128, 8
    $region61: #{dualformer_block.1} parent=1 // pred_fallthru
      _
    // Predicated region
    $region62: #{dualformer_block.1} parent=1 // pred_check
      _
    $region63: #{dualformer_block.1} parent=1 // pred_check_branch
      %5444 = sbr.rel (0) target = $region65
    $region64: #{dualformer_block.1} parent=1 // pred_region
      %s5446 = ssub.s32 512, 512
      %5447 = vsyncadd [#allocation5], %s5446
      %s5448 = sshll.u32 [#allocation4], 4
      %s5449 = int_to_ptr.vmem [resolvable:$true] %s5448
      %5454 = dma.vmem_to_hbm [thread:$0]  %s5449, 512, %s15, [#allocation5], 128, 128, 8
    $region65: #{dualformer_block.1} parent=1 // pred_fallthru
      _
    // Predicated region
    $region66: #{dualformer_block.1} parent=1 // pred_check
      _
    $region67: #{dualformer_block.1} parent=1 // pred_check_branch
      %5456 = sbr.rel (0) target = $region69
    $region68: #{dualformer_block.1} parent=1 // pred_region
      %5457 = dma.done [#allocation3], 256
    $region69: #{dualformer_block.1} parent=1 // pred_fallthru
      _
    // Predicated region
    $region70: #{dualformer_block.1} parent=1 // pred_check
      _
    $region71: #{dualformer_block.1} parent=1 // pred_check_branch
      %5459 = sbr.rel (0) target = $region73
    $region72: #{dualformer_block.1} parent=1 // pred_region
      %5460 = dma.done [#allocation5], 512
    $region73: #{dualformer_block.1} parent=1 // pred_fallthru
      _
    %5461 = vsyncpa [#allocation3], 1
    %5462 = vsyncpa [#allocation5], 1

</llo_original>
